<compile_context>
chip_gen: v5e
topology: v5e:2x2
jax: 0.10.0
libtpu: 0.0.40
codegen_flags: <defaults>
</compile_context>

<pallas_src>
import functools

import jax
import jax.numpy as jnp
from jax import lax
from jax.experimental import pallas as pl
from jax.experimental.pallas import tpu as pltpu


C1 = 64    # slice1 channels (vgg19 features[0..3])
C2 = 128   # slice2 channels (vgg19 features[5..8])


def _im2col_3x3(x):
    """(B, H, W, C) -> (B, H*W, 9*C) patches for a 3x3 same-padded conv."""
    B, H, W, C = x.shape
    xp = jnp.pad(x, ((0, 0), (1, 1), (1, 1), (0, 0)))
    cols = [xp[:, dy:dy + H, dx:dx + W, :] for dy in range(3) for dx in range(3)]
    return jnp.concatenate(cols, axis=-1).reshape(B, H * W, 9 * C)


def _vgg_loss_kernel(H, W,
                     pb_ref,
                     w1_ref, b1_ref, w2_ref, b2_ref,
                     w3_ref, b3_ref, w4_ref, b4_ref,
                     out_ref,
                     pad1_ref, f1img_ref, padp_ref, pad3_ref):
    H2, W2 = H // 2, W // 2
    HW, HW2 = H * W, H2 * W2
    inv_n1 = 1.0 / float(C1 * H * W)
    inv_n2 = 1.0 / float(C2 * H2 * W2)

    # Zero the padded scratches once per grid step (interiors get overwritten,
    # borders must stay zero -> same-padding conv).
    pad1_ref[...] = jnp.zeros_like(pad1_ref)
    padp_ref[...] = jnp.zeros_like(padp_ref)
    pad3_ref[...] = jnp.zeros_like(pad3_ref)

    def conv3x3(pad_ref, hh, ww, w_ref, b_ref):
        """im2col (input+target stacked in M) + one big-K bf16 MXU matmul."""
        cin = pad_ref.shape[-1]
        rows = []
        for b in range(2):                                    # 0 = input, 1 = target
            taps = []
            for dy in range(3):
                for dx in range(3):
                    t = pad_ref[b, dy:dy + hh, dx:dx + ww, :]
                    taps.append(t.reshape(hh * ww, cin).astype(jnp.bfloat16))
            rows.append(jnp.concatenate(taps, axis=-1))       # (hh*ww, 9*cin)
        col = jnp.concatenate(rows, axis=0)                   # (2*hh*ww, 9*cin) bf16
        acc = jnp.dot(col, w_ref[...], preferred_element_type=jnp.float32)
        return jnp.maximum(acc + b_ref[...], 0.0)             # (2*hh*ww, cout) f32

    # conv1 (3->64): K=27 im2col built in the wrapper, both images stacked in M.
    h1 = jnp.maximum(
        jnp.dot(pb_ref[0], w1_ref[...], preferred_element_type=jnp.float32)
        + b1_ref[...], 0.0)                                   # (2*HW, 64)

    # conv2 (64->64), K=576.
    pad1_ref[:, 1:H + 1, 1:W + 1, :] = h1.reshape(2, H, W, C1)
    f1 = conv3x3(pad1_ref, H, W, w2_ref, b2_ref)              # (2*HW, 64)

    # 2x2 stride-2 maxpool fused into the start of slice2 (strided ref loads
    # along W, pair-max along H via leading-dim reshape).
    f1img_ref[...] = f1.reshape(2, H, W, C1)
    ev = f1img_ref[:, :, pl.ds(0, W2, 2), :]                  # even columns
    od = f1img_ref[:, :, pl.ds(1, W2, 2), :]                  # odd columns
    xp = jnp.maximum(ev, od)                                  # (2, H, W2, C1)
    t = xp.reshape(2, H2, 2, W2, C1)                          # leading-dim split only
    pooled = jnp.maximum(t[:, :, 0], t[:, :, 1])              # (2, H2, W2, C1)

    # conv3 (64->128), K=576.
    padp_ref[:, 1:H2 + 1, 1:W2 + 1, :] = pooled
    h3 = conv3x3(padp_ref, H2, W2, w3_ref, b3_ref)            # (2*HW2, 128)
    # conv4 (128->128), K=1152.
    pad3_ref[:, 1:H2 + 1, 1:W2 + 1, :] = h3.reshape(2, H2, W2, C2)
    f2 = conv3x3(pad3_ref, H2, W2, w4_ref, b4_ref)            # (2*HW2, 128)

    # Split the stacked features back into input / target halves (row 0..HW-1
    # is input, HW..2*HW-1 is target; both offsets are sublane-aligned).
    f1_i, f1_t = f1[:HW], f1[HW:]
    f2_i, f2_t = f2[:HW2], f2[HW2:]

    d = f1_i - f1_t
    content_p = jnp.sum(d * d)

    def gram(f, inv_n):
        # feat^T @ feat / n  == torch.bmm(F, F^T)/n with F = (C, H*W).
        dims = (((0,), (0,)), ((), ()))
        return lax.dot_general(f, f, dims,
                               preferred_element_type=jnp.float32) * inv_n

    dg1 = gram(f1_i, inv_n1) - gram(f1_t, inv_n1)
    gram1_p = jnp.sum(dg1 * dg1)
    dg2 = gram(f2_i, inv_n2) - gram(f2_t, inv_n2)
    gram2_p = jnp.sum(dg2 * dg2)

    # Lane-dense per-batch partial-sum output: lane0=content, 1=gram1, 2=gram2.
    lane = lax.broadcasted_iota(jnp.int32, (8, 128), 1)
    out_ref[0] = (jnp.where(lane == 0, content_p, 0.0)
                  + jnp.where(lane == 1, gram1_p, 0.0)
                  + jnp.where(lane == 2, gram2_p, 0.0))


def _fused_vgg_loss_call(p_both, w1r, b1, w2r, b2, w3r, b3, w4r, b4, H, W):
    B, M2, K1 = p_both.shape        # M2 = 2 * H * W (input + target stacked)
    H2, W2 = H // 2, W // 2
    kernel = functools.partial(_vgg_loss_kernel, H, W)
    return pl.pallas_call(
        kernel,
        out_shape=jax.ShapeDtypeStruct((B, 8, 128), jnp.float32),
        grid=(B,),
        in_specs=[
            pl.BlockSpec((1, M2, K1), lambda i: (i, 0, 0)),
            pl.BlockSpec(w1r.shape, lambda i: (0, 0)),
            pl.BlockSpec(b1.shape, lambda i: (0, 0)),
            pl.BlockSpec(w2r.shape, lambda i: (0, 0)),
            pl.BlockSpec(b2.shape, lambda i: (0, 0)),
            pl.BlockSpec(w3r.shape, lambda i: (0, 0)),
            pl.BlockSpec(b3.shape, lambda i: (0, 0)),
            pl.BlockSpec(w4r.shape, lambda i: (0, 0)),
            pl.BlockSpec(b4.shape, lambda i: (0, 0)),
        ],
        out_specs=pl.BlockSpec((1, 8, 128), lambda i: (i, 0, 0)),
        scratch_shapes=[
            pltpu.VMEM((2, H + 2, W + 2, C1), jnp.float32),    # padded conv2 input
            pltpu.VMEM((2, H, W, C1), jnp.float32),            # f1 image for maxpool
            pltpu.VMEM((2, H2 + 2, W2 + 2, C1), jnp.float32),  # padded conv3 input
            pltpu.VMEM((2, H2 + 2, W2 + 2, C2), jnp.float32),  # padded conv4 input
        ],
        compiler_params=pltpu.CompilerParams(
            dimension_semantics=("parallel",)),
    )(p_both, w1r, b1, w2r, b2, w3r, b3, w4r, b4)


def init_vgg_params(key):
    """Deterministic synthetic weights with VGG19 slice1/slice2 shapes."""
    ks = jax.random.split(key, 4)

    def conv_p(k, cin, cout):
        w = 0.05 * jax.random.normal(k, (3, 3, cin, cout), jnp.float32)
        b = jnp.zeros((1, cout), jnp.float32)
        return w, b

    w1, b1 = conv_p(ks[0], 3, C1)      # vgg.features[0]
    w2, b2 = conv_p(ks[1], C1, C1)     # vgg.features[2]
    w3, b3 = conv_p(ks[2], C1, C2)     # vgg.features[5]
    w4, b4 = conv_p(ks[3], C2, C2)     # vgg.features[7]
    return dict(w1=w1, b1=b1, w2=w2, b2=b2, w3=w3, b3=b3, w4=w4, b4=b4)


@jax.jit
def vgg_loss(inp_nchw, tgt_nchw, params):
    if inp_nchw.shape[1] == 1:
        inp_nchw = jnp.repeat(inp_nchw, 3, axis=1)
    if tgt_nchw.shape[1] == 1:
        tgt_nchw = jnp.repeat(tgt_nchw, 3, axis=1)

    x_in = jnp.transpose(inp_nchw, (0, 2, 3, 1)).astype(jnp.float32)  # NHWC
    x_tg = jnp.transpose(tgt_nchw, (0, 2, 3, 1)).astype(jnp.float32)
    B, H, W, _ = x_in.shape

    # First conv (Cin=3) gets its K=27 im2col built here (tiny data), so the
    # in-kernel MXU never sees a 3-lane operand.  Input and target are stacked
    # along the row (M) dim so every in-kernel matmul serves both images.
    p_in = _im2col_3x3(x_in)
    p_tg = _im2col_3x3(x_tg)
    p_both = jnp.concatenate([p_in, p_tg], axis=1).astype(jnp.bfloat16)  # (B, 2HW, 27)

    w1r = params['w1'].reshape(9 * 3, C1).astype(jnp.bfloat16)
    w2r = params['w2'].reshape(9 * C1, C1).astype(jnp.bfloat16)
    w3r = params['w3'].reshape(9 * C1, C2).astype(jnp.bfloat16)
    w4r = params['w4'].reshape(9 * C2, C2).astype(jnp.bfloat16)
    b1, b2, b3, b4 = params['b1'], params['b2'], params['b3'], params['b4']

    partials = _fused_vgg_loss_call(p_both, w1r, b1, w2r, b2,
                                    w3r, b3, w4r, b4, H, W)          # (B, 8, 128)

    # content = F.mse_loss(f1_in, f1_tg): mean over B*C1*H*W elements.
    content_loss = jnp.sum(partials[:, 0, 0]) / float(B * H * W * C1)
    # style = mse(gram1) + mse(gram2): mean over B*C*C elements each.
    style_loss = (jnp.sum(partials[:, 0, 1]) / float(B * C1 * C1)
                  + jnp.sum(partials[:, 0, 2]) / float(B * C2 * C2))
    return content_loss, style_loss


if __name__ == "__main__":
    key = jax.random.PRNGKey(0)
    k_in, k_tg, k_p = jax.random.split(key, 3)

    # Single-channel inputs (as in BraTS); module repeats them to 3 channels.
    inp = jax.random.normal(k_in, (2, 1, 16, 16), jnp.float32)
    tgt = jax.random.normal(k_tg, (2, 1, 16, 16), jnp.float32)
    params = init_vgg_params(k_p)

    content, style = vgg_loss(inp, tgt, params)
    jax.block_until_ready((content, style))
    print("KERNEL_OK")
</pallas_src>

<mosaic_0001>
module attributes {stable_mosaic.version = 11 : i64} {
  func.func @_vgg_loss_kernel(%arg0: i32, %arg1: memref<1x512x27xbf16, #tpu.memory_space<vmem>>, %arg2: memref<27x64xbf16, #tpu.memory_space<vmem>>, %arg3: memref<1x64xf32, #tpu.memory_space<vmem>>, %arg4: memref<576x64xbf16, #tpu.memory_space<vmem>>, %arg5: memref<1x64xf32, #tpu.memory_space<vmem>>, %arg6: memref<576x128xbf16, #tpu.memory_space<vmem>>, %arg7: memref<1x128xf32, #tpu.memory_space<vmem>>, %arg8: memref<1152x128xbf16, #tpu.memory_space<vmem>>, %arg9: memref<1x128xf32, #tpu.memory_space<vmem>>, %arg10: memref<1x8x128xf32, #tpu.memory_space<vmem>>, %arg11: memref<2x18x18x64xf32, #tpu.memory_space<vmem>>, %arg12: memref<2x16x16x64xf32, #tpu.memory_space<vmem>>, %arg13: memref<2x10x10x64xf32, #tpu.memory_space<vmem>>, %arg14: memref<2x10x10x128xf32, #tpu.memory_space<vmem>>) attributes {dimension_semantics = [#tpu.dimension_semantics<parallel>], iteration_bounds = array<i64: 2>, scalar_prefetch = 0 : i64, scratch_operands = 4 : i64, tpu.core_type = #tpu.core_type<tc>, window_params = [{transform_indices = @transform_0, window_bounds = array<i64: 1, 512, 27>}, {pipeline_mode = #tpu.pipeline_mode<synchronous>, transform_indices = @transform_1, window_bounds = array<i64: 27, 64>}, {pipeline_mode = #tpu.pipeline_mode<synchronous>, transform_indices = @transform_2, window_bounds = array<i64: 1, 64>}, {pipeline_mode = #tpu.pipeline_mode<synchronous>, transform_indices = @transform_3, window_bounds = array<i64: 576, 64>}, {pipeline_mode = #tpu.pipeline_mode<synchronous>, transform_indices = @transform_4, window_bounds = array<i64: 1, 64>}, {pipeline_mode = #tpu.pipeline_mode<synchronous>, transform_indices = @transform_5, window_bounds = array<i64: 576, 128>}, {pipeline_mode = #tpu.pipeline_mode<synchronous>, transform_indices = @transform_6, window_bounds = array<i64: 1, 128>}, {pipeline_mode = #tpu.pipeline_mode<synchronous>, transform_indices = @transform_7, window_bounds = array<i64: 1152, 128>}, {pipeline_mode = #tpu.pipeline_mode<synchronous>, transform_indices = @transform_8, window_bounds = array<i64: 1, 128>}, {transform_indices = @transform_9, window_bounds = array<i64: 1, 8, 128>}]} {
    %cst = arith.constant 0.000000e+00 : f32
    %0 = vector.broadcast %cst : f32 to vector<2x18x18x64xf32>
    %c0 = arith.constant 0 : index
    %c0_0 = arith.constant 0 : index
    %c0_1 = arith.constant 0 : index
    %c0_2 = arith.constant 0 : index
    %1 = vector.load %arg11[%c0, %c0_0, %c0_1, %c0_2] : memref<2x18x18x64xf32, #tpu.memory_space<vmem>>, vector<2x18x18x64xf32>
    tpu.vector_store %arg11[%c0, %c0_0, %c0_1, %c0_2], %0 {strides = array<i32>} : memref<2x18x18x64xf32, #tpu.memory_space<vmem>>, vector<2x18x18x64xf32>,
    %cst_3 = arith.constant 0.000000e+00 : f32
    %2 = vector.broadcast %cst_3 : f32 to vector<2x10x10x64xf32>
    %c0_4 = arith.constant 0 : index
    %c0_5 = arith.constant 0 : index
    %c0_6 = arith.constant 0 : index
    %c0_7 = arith.constant 0 : index
    %3 = vector.load %arg13[%c0_4, %c0_5, %c0_6, %c0_7] : memref<2x10x10x64xf32, #tpu.memory_space<vmem>>, vector<2x10x10x64xf32>
    tpu.vector_store %arg13[%c0_4, %c0_5, %c0_6, %c0_7], %2 {strides = array<i32>} : memref<2x10x10x64xf32, #tpu.memory_space<vmem>>, vector<2x10x10x64xf32>,
    %cst_8 = arith.constant 0.000000e+00 : f32
    %4 = vector.broadcast %cst_8 : f32 to vector<2x10x10x128xf32>
    %c0_9 = arith.constant 0 : index
    %c0_10 = arith.constant 0 : index
    %c0_11 = arith.constant 0 : index
    %c0_12 = arith.constant 0 : index
    %5 = vector.load %arg14[%c0_9, %c0_10, %c0_11, %c0_12] : memref<2x10x10x128xf32, #tpu.memory_space<vmem>>, vector<2x10x10x128xf32>
    tpu.vector_store %arg14[%c0_9, %c0_10, %c0_11, %c0_12], %4 {strides = array<i32>} : memref<2x10x10x128xf32, #tpu.memory_space<vmem>>, vector<2x10x10x128xf32>,
    %c0_13 = arith.constant 0 : index
    %c0_14 = arith.constant 0 : index
    %c0_15 = arith.constant 0 : index
    %6 = vector.load %arg1[%c0_13, %c0_14, %c0_15] : memref<1x512x27xbf16, #tpu.memory_space<vmem>>, vector<1x512x27xbf16>
    %7 = vector.shape_cast %6 : vector<1x512x27xbf16> to vector<512x27xbf16>
    %c0_16 = arith.constant 0 : index
    %c0_17 = arith.constant 0 : index
    %8 = vector.load %arg2[%c0_16, %c0_17] : memref<27x64xbf16, #tpu.memory_space<vmem>>, vector<27x64xbf16>
    %cst_18 = arith.constant dense<0.000000e+00> : vector<512x64xf32>
    %9 = tpu.matmul %7, %8, %cst_18 {dimension_numbers = #tpu.dot_dimension_numbers<[1], [0], [0], [1], [0, 0, 1, 1], [], []>} : vector<512x27xbf16>, vector<27x64xbf16>, vector<512x64xf32> -> vector<512x64xf32>
    %c0_19 = arith.constant 0 : index
    %c0_20 = arith.constant 0 : index
    %10 = vector.load %arg3[%c0_19, %c0_20] : memref<1x64xf32, #tpu.memory_space<vmem>>, vector<1x64xf32>
    %11 = vector.broadcast %10 : vector<1x64xf32> to vector<512x64xf32>
    %12 = arith.addf %9, %11 : vector<512x64xf32>
    %cst_21 = arith.constant 0.000000e+00 : f32
    %13 = vector.broadcast %cst_21 : f32 to vector<512x64xf32>
    %14 = arith.maximumf %12, %13 : vector<512x64xf32>
    %15 = vector.shape_cast %14 : vector<512x64xf32> to vector<2x16x16x64xf32>
    %c0_22 = arith.constant 0 : index
    %c1 = arith.constant 1 : index
    %c1_23 = arith.constant 1 : index
    %c0_24 = arith.constant 0 : index
    %16 = vector.load %arg11[%c0_22, %c1, %c1_23, %c0_24] : memref<2x18x18x64xf32, #tpu.memory_space<vmem>>, vector<2x16x16x64xf32>
    tpu.vector_store %arg11[%c0_22, %c1, %c1_23, %c0_24], %15 {strides = array<i32>} : memref<2x18x18x64xf32, #tpu.memory_space<vmem>>, vector<2x16x16x64xf32>,
    %c0_25 = arith.constant 0 : index
    %c0_26 = arith.constant 0 : index
    %c0_27 = arith.constant 0 : index
    %c0_28 = arith.constant 0 : index
    %17 = vector.load %arg11[%c0_25, %c0_26, %c0_27, %c0_28] : memref<2x18x18x64xf32, #tpu.memory_space<vmem>>, vector<1x16x16x64xf32>
    %18 = vector.shape_cast %17 : vector<1x16x16x64xf32> to vector<16x16x64xf32>
    %19 = vector.shape_cast %18 : vector<16x16x64xf32> to vector<256x64xf32>
    %20 = arith.truncf %19 : vector<256x64xf32> to vector<256x64xbf16>
    %c0_29 = arith.constant 0 : index
    %c0_30 = arith.constant 0 : index
    %c1_31 = arith.constant 1 : index
    %c0_32 = arith.constant 0 : index
    %21 = vector.load %arg11[%c0_29, %c0_30, %c1_31, %c0_32] : memref<2x18x18x64xf32, #tpu.memory_space<vmem>>, vector<1x16x16x64xf32>
    %22 = vector.shape_cast %21 : vector<1x16x16x64xf32> to vector<16x16x64xf32>
    %23 = vector.shape_cast %22 : vector<16x16x64xf32> to vector<256x64xf32>
    %24 = arith.truncf %23 : vector<256x64xf32> to vector<256x64xbf16>
    %c0_33 = arith.constant 0 : index
    %c0_34 = arith.constant 0 : index
    %c2 = arith.constant 2 : index
    %c0_35 = arith.constant 0 : index
    %25 = vector.load %arg11[%c0_33, %c0_34, %c2, %c0_35] : memref<2x18x18x64xf32, #tpu.memory_space<vmem>>, vector<1x16x16x64xf32>
    %26 = vector.shape_cast %25 : vector<1x16x16x64xf32> to vector<16x16x64xf32>
    %27 = vector.shape_cast %26 : vector<16x16x64xf32> to vector<256x64xf32>
    %28 = arith.truncf %27 : vector<256x64xf32> to vector<256x64xbf16>
    %c0_36 = arith.constant 0 : index
    %c1_37 = arith.constant 1 : index
    %c0_38 = arith.constant 0 : index
    %c0_39 = arith.constant 0 : index
    %29 = vector.load %arg11[%c0_36, %c1_37, %c0_38, %c0_39] : memref<2x18x18x64xf32, #tpu.memory_space<vmem>>, vector<1x16x16x64xf32>
    %30 = vector.shape_cast %29 : vector<1x16x16x64xf32> to vector<16x16x64xf32>
    %31 = vector.shape_cast %30 : vector<16x16x64xf32> to vector<256x64xf32>
    %32 = arith.truncf %31 : vector<256x64xf32> to vector<256x64xbf16>
    %c0_40 = arith.constant 0 : index
    %c1_41 = arith.constant 1 : index
    %c1_42 = arith.constant 1 : index
    %c0_43 = arith.constant 0 : index
    %33 = vector.load %arg11[%c0_40, %c1_41, %c1_42, %c0_43] : memref<2x18x18x64xf32, #tpu.memory_space<vmem>>, vector<1x16x16x64xf32>
    %34 = vector.shape_cast %33 : vector<1x16x16x64xf32> to vector<16x16x64xf32>
    %35 = vector.shape_cast %34 : vector<16x16x64xf32> to vector<256x64xf32>
    %36 = arith.truncf %35 : vector<256x64xf32> to vector<256x64xbf16>
    %c0_44 = arith.constant 0 : index
    %c1_45 = arith.constant 1 : index
    %c2_46 = arith.constant 2 : index
    %c0_47 = arith.constant 0 : index
    %37 = vector.load %arg11[%c0_44, %c1_45, %c2_46, %c0_47] : memref<2x18x18x64xf32, #tpu.memory_space<vmem>>, vector<1x16x16x64xf32>
    %38 = vector.shape_cast %37 : vector<1x16x16x64xf32> to vector<16x16x64xf32>
    %39 = vector.shape_cast %38 : vector<16x16x64xf32> to vector<256x64xf32>
    %40 = arith.truncf %39 : vector<256x64xf32> to vector<256x64xbf16>
    %c0_48 = arith.constant 0 : index
    %c2_49 = arith.constant 2 : index
    %c0_50 = arith.constant 0 : index
    %c0_51 = arith.constant 0 : index
    %41 = vector.load %arg11[%c0_48, %c2_49, %c0_50, %c0_51] : memref<2x18x18x64xf32, #tpu.memory_space<vmem>>, vector<1x16x16x64xf32>
    %42 = vector.shape_cast %41 : vector<1x16x16x64xf32> to vector<16x16x64xf32>
    %43 = vector.shape_cast %42 : vector<16x16x64xf32> to vector<256x64xf32>
    %44 = arith.truncf %43 : vector<256x64xf32> to vector<256x64xbf16>
    %c0_52 = arith.constant 0 : index
    %c2_53 = arith.constant 2 : index
    %c1_54 = arith.constant 1 : index
    %c0_55 = arith.constant 0 : index
    %45 = vector.load %arg11[%c0_52, %c2_53, %c1_54, %c0_55] : memref<2x18x18x64xf32, #tpu.memory_space<vmem>>, vector<1x16x16x64xf32>
    %46 = vector.shape_cast %45 : vector<1x16x16x64xf32> to vector<16x16x64xf32>
    %47 = vector.shape_cast %46 : vector<16x16x64xf32> to vector<256x64xf32>
    %48 = arith.truncf %47 : vector<256x64xf32> to vector<256x64xbf16>
    %c0_56 = arith.constant 0 : index
    %c2_57 = arith.constant 2 : index
    %c2_58 = arith.constant 2 : index
    %c0_59 = arith.constant 0 : index
    %49 = vector.load %arg11[%c0_56, %c2_57, %c2_58, %c0_59] : memref<2x18x18x64xf32, #tpu.memory_space<vmem>>, vector<1x16x16x64xf32>
    %50 = vector.shape_cast %49 : vector<1x16x16x64xf32> to vector<16x16x64xf32>
    %51 = vector.shape_cast %50 : vector<16x16x64xf32> to vector<256x64xf32>
    %52 = arith.truncf %51 : vector<256x64xf32> to vector<256x64xbf16>
    %53 = tpu.concatenate %20, %24, %28, %32, %36, %40, %44, %48, %52 in 1 : vector<256x64xbf16>, vector<256x64xbf16>, vector<256x64xbf16>, vector<256x64xbf16>, vector<256x64xbf16>, vector<256x64xbf16>, vector<256x64xbf16>, vector<256x64xbf16>, vector<256x64xbf16> -> vector<256x576xbf16>
    %c1_60 = arith.constant 1 : index
    %c0_61 = arith.constant 0 : index
    %c0_62 = arith.constant 0 : index
    %c0_63 = arith.constant 0 : index
    %54 = vector.load %arg11[%c1_60, %c0_61, %c0_62, %c0_63] : memref<2x18x18x64xf32, #tpu.memory_space<vmem>>, vector<1x16x16x64xf32>
    %55 = vector.shape_cast %54 : vector<1x16x16x64xf32> to vector<16x16x64xf32>
    %56 = vector.shape_cast %55 : vector<16x16x64xf32> to vector<256x64xf32>
    %57 = arith.truncf %56 : vector<256x64xf32> to vector<256x64xbf16>
    %c1_64 = arith.constant 1 : index
    %c0_65 = arith.constant 0 : index
    %c1_66 = arith.constant 1 : index
    %c0_67 = arith.constant 0 : index
    %58 = vector.load %arg11[%c1_64, %c0_65, %c1_66, %c0_67] : memref<2x18x18x64xf32, #tpu.memory_space<vmem>>, vector<1x16x16x64xf32>
    %59 = vector.shape_cast %58 : vector<1x16x16x64xf32> to vector<16x16x64xf32>
    %60 = vector.shape_cast %59 : vector<16x16x64xf32> to vector<256x64xf32>
    %61 = arith.truncf %60 : vector<256x64xf32> to vector<256x64xbf16>
    %c1_68 = arith.constant 1 : index
    %c0_69 = arith.constant 0 : index
    %c2_70 = arith.constant 2 : index
    %c0_71 = arith.constant 0 : index
    %62 = vector.load %arg11[%c1_68, %c0_69, %c2_70, %c0_71] : memref<2x18x18x64xf32, #tpu.memory_space<vmem>>, vector<1x16x16x64xf32>
    %63 = vector.shape_cast %62 : vector<1x16x16x64xf32> to vector<16x16x64xf32>
    %64 = vector.shape_cast %63 : vector<16x16x64xf32> to vector<256x64xf32>
    %65 = arith.truncf %64 : vector<256x64xf32> to vector<256x64xbf16>
    %c1_72 = arith.constant 1 : index
    %c1_73 = arith.constant 1 : index
    %c0_74 = arith.constant 0 : index
    %c0_75 = arith.constant 0 : index
    %66 = vector.load %arg11[%c1_72, %c1_73, %c0_74, %c0_75] : memref<2x18x18x64xf32, #tpu.memory_space<vmem>>, vector<1x16x16x64xf32>
    %67 = vector.shape_cast %66 : vector<1x16x16x64xf32> to vector<16x16x64xf32>
    %68 = vector.shape_cast %67 : vector<16x16x64xf32> to vector<256x64xf32>
    %69 = arith.truncf %68 : vector<256x64xf32> to vector<256x64xbf16>
    %c1_76 = arith.constant 1 : index
    %c1_77 = arith.constant 1 : index
    %c1_78 = arith.constant 1 : index
    %c0_79 = arith.constant 0 : index
    %70 = vector.load %arg11[%c1_76, %c1_77, %c1_78, %c0_79] : memref<2x18x18x64xf32, #tpu.memory_space<vmem>>, vector<1x16x16x64xf32>
    %71 = vector.shape_cast %70 : vector<1x16x16x64xf32> to vector<16x16x64xf32>
    %72 = vector.shape_cast %71 : vector<16x16x64xf32> to vector<256x64xf32>
    %73 = arith.truncf %72 : vector<256x64xf32> to vector<256x64xbf16>
    %c1_80 = arith.constant 1 : index
    %c1_81 = arith.constant 1 : index
    %c2_82 = arith.constant 2 : index
    %c0_83 = arith.constant 0 : index
    %74 = vector.load %arg11[%c1_80, %c1_81, %c2_82, %c0_83] : memref<2x18x18x64xf32, #tpu.memory_space<vmem>>, vector<1x16x16x64xf32>
    %75 = vector.shape_cast %74 : vector<1x16x16x64xf32> to vector<16x16x64xf32>
    %76 = vector.shape_cast %75 : vector<16x16x64xf32> to vector<256x64xf32>
    %77 = arith.truncf %76 : vector<256x64xf32> to vector<256x64xbf16>
    %c1_84 = arith.constant 1 : index
    %c2_85 = arith.constant 2 : index
    %c0_86 = arith.constant 0 : index
    %c0_87 = arith.constant 0 : index
    %78 = vector.load %arg11[%c1_84, %c2_85, %c0_86, %c0_87] : memref<2x18x18x64xf32, #tpu.memory_space<vmem>>, vector<1x16x16x64xf32>
    %79 = vector.shape_cast %78 : vector<1x16x16x64xf32> to vector<16x16x64xf32>
    %80 = vector.shape_cast %79 : vector<16x16x64xf32> to vector<256x64xf32>
    %81 = arith.truncf %80 : vector<256x64xf32> to vector<256x64xbf16>
    %c1_88 = arith.constant 1 : index
    %c2_89 = arith.constant 2 : index
    %c1_90 = arith.constant 1 : index
    %c0_91 = arith.constant 0 : index
    %82 = vector.load %arg11[%c1_88, %c2_89, %c1_90, %c0_91] : memref<2x18x18x64xf32, #tpu.memory_space<vmem>>, vector<1x16x16x64xf32>
    %83 = vector.shape_cast %82 : vector<1x16x16x64xf32> to vector<16x16x64xf32>
    %84 = vector.shape_cast %83 : vector<16x16x64xf32> to vector<256x64xf32>
    %85 = arith.truncf %84 : vector<256x64xf32> to vector<256x64xbf16>
    %c1_92 = arith.constant 1 : index
    %c2_93 = arith.constant 2 : index
    %c2_94 = arith.constant 2 : index
    %c0_95 = arith.constant 0 : index
    %86 = vector.load %arg11[%c1_92, %c2_93, %c2_94, %c0_95] : memref<2x18x18x64xf32, #tpu.memory_space<vmem>>, vector<1x16x16x64xf32>
    %87 = vector.shape_cast %86 : vector<1x16x16x64xf32> to vector<16x16x64xf32>
    %88 = vector.shape_cast %87 : vector<16x16x64xf32> to vector<256x64xf32>
    %89 = arith.truncf %88 : vector<256x64xf32> to vector<256x64xbf16>
    %90 = tpu.concatenate %57, %61, %65, %69, %73, %77, %81, %85, %89 in 1 : vector<256x64xbf16>, vector<256x64xbf16>, vector<256x64xbf16>, vector<256x64xbf16>, vector<256x64xbf16>, vector<256x64xbf16>, vector<256x64xbf16>, vector<256x64xbf16>, vector<256x64xbf16> -> vector<256x576xbf16>
    %91 = tpu.concatenate %53, %90 in 0 : vector<256x576xbf16>, vector<256x576xbf16> -> vector<512x576xbf16>
    %c0_96 = arith.constant 0 : index
    %c0_97 = arith.constant 0 : index
    %92 = vector.load %arg4[%c0_96, %c0_97] : memref<576x64xbf16, #tpu.memory_space<vmem>>, vector<576x64xbf16>
    %cst_98 = arith.constant dense<0.000000e+00> : vector<512x64xf32>
    %93 = tpu.matmul %91, %92, %cst_98 {dimension_numbers = #tpu.dot_dimension_numbers<[1], [0], [0], [1], [0, 0, 1, 1], [], []>} : vector<512x576xbf16>, vector<576x64xbf16>, vector<512x64xf32> -> vector<512x64xf32>
    %c0_99 = arith.constant 0 : index
    %c0_100 = arith.constant 0 : index
    %94 = vector.load %arg5[%c0_99, %c0_100] : memref<1x64xf32, #tpu.memory_space<vmem>>, vector<1x64xf32>
    %95 = vector.broadcast %94 : vector<1x64xf32> to vector<512x64xf32>
    %96 = arith.addf %93, %95 : vector<512x64xf32>
    %cst_101 = arith.constant 0.000000e+00 : f32
    %97 = vector.broadcast %cst_101 : f32 to vector<512x64xf32>
    %98 = arith.maximumf %96, %97 : vector<512x64xf32>
    %99 = vector.shape_cast %98 : vector<512x64xf32> to vector<2x16x16x64xf32>
    %c0_102 = arith.constant 0 : index
    %c0_103 = arith.constant 0 : index
    %c0_104 = arith.constant 0 : index
    %c0_105 = arith.constant 0 : index
    %100 = vector.load %arg12[%c0_102, %c0_103, %c0_104, %c0_105] : memref<2x16x16x64xf32, #tpu.memory_space<vmem>>, vector<2x16x16x64xf32>
    tpu.vector_store %arg12[%c0_102, %c0_103, %c0_104, %c0_105], %99 {strides = array<i32>} : memref<2x16x16x64xf32, #tpu.memory_space<vmem>>, vector<2x16x16x64xf32>,
    %c0_106 = arith.constant 0 : index
    %c0_107 = arith.constant 0 : index
    %c0_108 = arith.constant 0 : index
    %c0_109 = arith.constant 0 : index
    %101 = tpu.strided_load %arg12[%c0_106, %c0_107, %c0_108, %c0_109] {strides = array<i32: 1, 1, 2, 1>} : memref<2x16x16x64xf32, #tpu.memory_space<vmem>>, vector<2x16x8x64xf32>
    %c0_110 = arith.constant 0 : index
    %c0_111 = arith.constant 0 : index
    %c1_112 = arith.constant 1 : index
    %c0_113 = arith.constant 0 : index
    %102 = tpu.strided_load %arg12[%c0_110, %c0_111, %c1_112, %c0_113] {strides = array<i32: 1, 1, 2, 1>} : memref<2x16x16x64xf32, #tpu.memory_space<vmem>>, vector<2x16x8x64xf32>
    %103 = arith.maximumf %101, %102 : vector<2x16x8x64xf32>
    %104 = vector.shape_cast %103 : vector<2x16x8x64xf32> to vector<2x8x2x8x64xf32>
    %105 = vector.extract_strided_slice %104 {offsets = [0, 0, 0, 0, 0], sizes = [2, 8, 1, 8, 64], strides = [1, 1, 1, 1, 1]} : vector<2x8x2x8x64xf32> to vector<2x8x1x8x64xf32>
    %106 = vector.shape_cast %105 : vector<2x8x1x8x64xf32> to vector<2x8x8x64xf32>
    %107 = vector.extract_strided_slice %104 {offsets = [0, 0, 1, 0, 0], sizes = [2, 8, 1, 8, 64], strides = [1, 1, 1, 1, 1]} : vector<2x8x2x8x64xf32> to vector<2x8x1x8x64xf32>
    %108 = vector.shape_cast %107 : vector<2x8x1x8x64xf32> to vector<2x8x8x64xf32>
    %109 = arith.maximumf %106, %108 : vector<2x8x8x64xf32>
    %c0_114 = arith.constant 0 : index
    %c1_115 = arith.constant 1 : index
    %c1_116 = arith.constant 1 : index
    %c0_117 = arith.constant 0 : index
    %110 = vector.load %arg13[%c0_114, %c1_115, %c1_116, %c0_117] : memref<2x10x10x64xf32, #tpu.memory_space<vmem>>, vector<2x8x8x64xf32>
    tpu.vector_store %arg13[%c0_114, %c1_115, %c1_116, %c0_117], %109 {strides = array<i32>} : memref<2x10x10x64xf32, #tpu.memory_space<vmem>>, vector<2x8x8x64xf32>,
    %c0_118 = arith.constant 0 : index
    %c0_119 = arith.constant 0 : index
    %c0_120 = arith.constant 0 : index
    %c0_121 = arith.constant 0 : index
    %111 = vector.load %arg13[%c0_118, %c0_119, %c0_120, %c0_121] : memref<2x10x10x64xf32, #tpu.memory_space<vmem>>, vector<1x8x8x64xf32>
    %112 = vector.shape_cast %111 : vector<1x8x8x64xf32> to vector<8x8x64xf32>
    %113 = vector.shape_cast %112 : vector<8x8x64xf32> to vector<64x64xf32>
    %114 = arith.truncf %113 : vector<64x64xf32> to vector<64x64xbf16>
    %c0_122 = arith.constant 0 : index
    %c0_123 = arith.constant 0 : index
    %c1_124 = arith.constant 1 : index
    %c0_125 = arith.constant 0 : index
    %115 = vector.load %arg13[%c0_122, %c0_123, %c1_124, %c0_125] : memref<2x10x10x64xf32, #tpu.memory_space<vmem>>, vector<1x8x8x64xf32>
    %116 = vector.shape_cast %115 : vector<1x8x8x64xf32> to vector<8x8x64xf32>
    %117 = vector.shape_cast %116 : vector<8x8x64xf32> to vector<64x64xf32>
    %118 = arith.truncf %117 : vector<64x64xf32> to vector<64x64xbf16>
    %c0_126 = arith.constant 0 : index
    %c0_127 = arith.constant 0 : index
    %c2_128 = arith.constant 2 : index
    %c0_129 = arith.constant 0 : index
    %119 = vector.load %arg13[%c0_126, %c0_127, %c2_128, %c0_129] : memref<2x10x10x64xf32, #tpu.memory_space<vmem>>, vector<1x8x8x64xf32>
    %120 = vector.shape_cast %119 : vector<1x8x8x64xf32> to vector<8x8x64xf32>
    %121 = vector.shape_cast %120 : vector<8x8x64xf32> to vector<64x64xf32>
    %122 = arith.truncf %121 : vector<64x64xf32> to vector<64x64xbf16>
    %c0_130 = arith.constant 0 : index
    %c1_131 = arith.constant 1 : index
    %c0_132 = arith.constant 0 : index
    %c0_133 = arith.constant 0 : index
    %123 = vector.load %arg13[%c0_130, %c1_131, %c0_132, %c0_133] : memref<2x10x10x64xf32, #tpu.memory_space<vmem>>, vector<1x8x8x64xf32>
    %124 = vector.shape_cast %123 : vector<1x8x8x64xf32> to vector<8x8x64xf32>
    %125 = vector.shape_cast %124 : vector<8x8x64xf32> to vector<64x64xf32>
    %126 = arith.truncf %125 : vector<64x64xf32> to vector<64x64xbf16>
    %c0_134 = arith.constant 0 : index
    %c1_135 = arith.constant 1 : index
    %c1_136 = arith.constant 1 : index
    %c0_137 = arith.constant 0 : index
    %127 = vector.load %arg13[%c0_134, %c1_135, %c1_136, %c0_137] : memref<2x10x10x64xf32, #tpu.memory_space<vmem>>, vector<1x8x8x64xf32>
    %128 = vector.shape_cast %127 : vector<1x8x8x64xf32> to vector<8x8x64xf32>
    %129 = vector.shape_cast %128 : vector<8x8x64xf32> to vector<64x64xf32>
    %130 = arith.truncf %129 : vector<64x64xf32> to vector<64x64xbf16>
    %c0_138 = arith.constant 0 : index
    %c1_139 = arith.constant 1 : index
    %c2_140 = arith.constant 2 : index
    %c0_141 = arith.constant 0 : index
    %131 = vector.load %arg13[%c0_138, %c1_139, %c2_140, %c0_141] : memref<2x10x10x64xf32, #tpu.memory_space<vmem>>, vector<1x8x8x64xf32>
    %132 = vector.shape_cast %131 : vector<1x8x8x64xf32> to vector<8x8x64xf32>
    %133 = vector.shape_cast %132 : vector<8x8x64xf32> to vector<64x64xf32>
    %134 = arith.truncf %133 : vector<64x64xf32> to vector<64x64xbf16>
    %c0_142 = arith.constant 0 : index
    %c2_143 = arith.constant 2 : index
    %c0_144 = arith.constant 0 : index
    %c0_145 = arith.constant 0 : index
    %135 = vector.load %arg13[%c0_142, %c2_143, %c0_144, %c0_145] : memref<2x10x10x64xf32, #tpu.memory_space<vmem>>, vector<1x8x8x64xf32>
    %136 = vector.shape_cast %135 : vector<1x8x8x64xf32> to vector<8x8x64xf32>
    %137 = vector.shape_cast %136 : vector<8x8x64xf32> to vector<64x64xf32>
    %138 = arith.truncf %137 : vector<64x64xf32> to vector<64x64xbf16>
    %c0_146 = arith.constant 0 : index
    %c2_147 = arith.constant 2 : index
    %c1_148 = arith.constant 1 : index
    %c0_149 = arith.constant 0 : index
    %139 = vector.load %arg13[%c0_146, %c2_147, %c1_148, %c0_149] : memref<2x10x10x64xf32, #tpu.memory_space<vmem>>, vector<1x8x8x64xf32>
    %140 = vector.shape_cast %139 : vector<1x8x8x64xf32> to vector<8x8x64xf32>
    %141 = vector.shape_cast %140 : vector<8x8x64xf32> to vector<64x64xf32>
    %142 = arith.truncf %141 : vector<64x64xf32> to vector<64x64xbf16>
    %c0_150 = arith.constant 0 : index
    %c2_151 = arith.constant 2 : index
    %c2_152 = arith.constant 2 : index
    %c0_153 = arith.constant 0 : index
    %143 = vector.load %arg13[%c0_150, %c2_151, %c2_152, %c0_153] : memref<2x10x10x64xf32, #tpu.memory_space<vmem>>, vector<1x8x8x64xf32>
    %144 = vector.shape_cast %143 : vector<1x8x8x64xf32> to vector<8x8x64xf32>
    %145 = vector.shape_cast %144 : vector<8x8x64xf32> to vector<64x64xf32>
    %146 = arith.truncf %145 : vector<64x64xf32> to vector<64x64xbf16>
    %147 = tpu.concatenate %114, %118, %122, %126, %130, %134, %138, %142, %146 in 1 : vector<64x64xbf16>, vector<64x64xbf16>, vector<64x64xbf16>, vector<64x64xbf16>, vector<64x64xbf16>, vector<64x64xbf16>, vector<64x64xbf16>, vector<64x64xbf16>, vector<64x64xbf16> -> vector<64x576xbf16>
    %c1_154 = arith.constant 1 : index
    %c0_155 = arith.constant 0 : index
    %c0_156 = arith.constant 0 : index
    %c0_157 = arith.constant 0 : index
    %148 = vector.load %arg13[%c1_154, %c0_155, %c0_156, %c0_157] : memref<2x10x10x64xf32, #tpu.memory_space<vmem>>, vector<1x8x8x64xf32>
    %149 = vector.shape_cast %148 : vector<1x8x8x64xf32> to vector<8x8x64xf32>
    %150 = vector.shape_cast %149 : vector<8x8x64xf32> to vector<64x64xf32>
    %151 = arith.truncf %150 : vector<64x64xf32> to vector<64x64xbf16>
    %c1_158 = arith.constant 1 : index
    %c0_159 = arith.constant 0 : index
    %c1_160 = arith.constant 1 : index
    %c0_161 = arith.constant 0 : index
    %152 = vector.load %arg13[%c1_158, %c0_159, %c1_160, %c0_161] : memref<2x10x10x64xf32, #tpu.memory_space<vmem>>, vector<1x8x8x64xf32>
    %153 = vector.shape_cast %152 : vector<1x8x8x64xf32> to vector<8x8x64xf32>
    %154 = vector.shape_cast %153 : vector<8x8x64xf32> to vector<64x64xf32>
    %155 = arith.truncf %154 : vector<64x64xf32> to vector<64x64xbf16>
    %c1_162 = arith.constant 1 : index
    %c0_163 = arith.constant 0 : index
    %c2_164 = arith.constant 2 : index
    %c0_165 = arith.constant 0 : index
    %156 = vector.load %arg13[%c1_162, %c0_163, %c2_164, %c0_165] : memref<2x10x10x64xf32, #tpu.memory_space<vmem>>, vector<1x8x8x64xf32>
    %157 = vector.shape_cast %156 : vector<1x8x8x64xf32> to vector<8x8x64xf32>
    %158 = vector.shape_cast %157 : vector<8x8x64xf32> to vector<64x64xf32>
    %159 = arith.truncf %158 : vector<64x64xf32> to vector<64x64xbf16>
    %c1_166 = arith.constant 1 : index
    %c1_167 = arith.constant 1 : index
    %c0_168 = arith.constant 0 : index
    %c0_169 = arith.constant 0 : index
    %160 = vector.load %arg13[%c1_166, %c1_167, %c0_168, %c0_169] : memref<2x10x10x64xf32, #tpu.memory_space<vmem>>, vector<1x8x8x64xf32>
    %161 = vector.shape_cast %160 : vector<1x8x8x64xf32> to vector<8x8x64xf32>
    %162 = vector.shape_cast %161 : vector<8x8x64xf32> to vector<64x64xf32>
    %163 = arith.truncf %162 : vector<64x64xf32> to vector<64x64xbf16>
    %c1_170 = arith.constant 1 : index
    %c1_171 = arith.constant 1 : index
    %c1_172 = arith.constant 1 : index
    %c0_173 = arith.constant 0 : index
    %164 = vector.load %arg13[%c1_170, %c1_171, %c1_172, %c0_173] : memref<2x10x10x64xf32, #tpu.memory_space<vmem>>, vector<1x8x8x64xf32>
    %165 = vector.shape_cast %164 : vector<1x8x8x64xf32> to vector<8x8x64xf32>
    %166 = vector.shape_cast %165 : vector<8x8x64xf32> to vector<64x64xf32>
    %167 = arith.truncf %166 : vector<64x64xf32> to vector<64x64xbf16>
    %c1_174 = arith.constant 1 : index
    %c1_175 = arith.constant 1 : index
    %c2_176 = arith.constant 2 : index
    %c0_177 = arith.constant 0 : index
    %168 = vector.load %arg13[%c1_174, %c1_175, %c2_176, %c0_177] : memref<2x10x10x64xf32, #tpu.memory_space<vmem>>, vector<1x8x8x64xf32>
    %169 = vector.shape_cast %168 : vector<1x8x8x64xf32> to vector<8x8x64xf32>
    %170 = vector.shape_cast %169 : vector<8x8x64xf32> to vector<64x64xf32>
    %171 = arith.truncf %170 : vector<64x64xf32> to vector<64x64xbf16>
    %c1_178 = arith.constant 1 : index
    %c2_179 = arith.constant 2 : index
    %c0_180 = arith.constant 0 : index
    %c0_181 = arith.constant 0 : index
    %172 = vector.load %arg13[%c1_178, %c2_179, %c0_180, %c0_181] : memref<2x10x10x64xf32, #tpu.memory_space<vmem>>, vector<1x8x8x64xf32>
    %173 = vector.shape_cast %172 : vector<1x8x8x64xf32> to vector<8x8x64xf32>
    %174 = vector.shape_cast %173 : vector<8x8x64xf32> to vector<64x64xf32>
    %175 = arith.truncf %174 : vector<64x64xf32> to vector<64x64xbf16>
    %c1_182 = arith.constant 1 : index
    %c2_183 = arith.constant 2 : index
    %c1_184 = arith.constant 1 : index
    %c0_185 = arith.constant 0 : index
    %176 = vector.load %arg13[%c1_182, %c2_183, %c1_184, %c0_185] : memref<2x10x10x64xf32, #tpu.memory_space<vmem>>, vector<1x8x8x64xf32>
    %177 = vector.shape_cast %176 : vector<1x8x8x64xf32> to vector<8x8x64xf32>
    %178 = vector.shape_cast %177 : vector<8x8x64xf32> to vector<64x64xf32>
    %179 = arith.truncf %178 : vector<64x64xf32> to vector<64x64xbf16>
    %c1_186 = arith.constant 1 : index
    %c2_187 = arith.constant 2 : index
    %c2_188 = arith.constant 2 : index
    %c0_189 = arith.constant 0 : index
    %180 = vector.load %arg13[%c1_186, %c2_187, %c2_188, %c0_189] : memref<2x10x10x64xf32, #tpu.memory_space<vmem>>, vector<1x8x8x64xf32>
    %181 = vector.shape_cast %180 : vector<1x8x8x64xf32> to vector<8x8x64xf32>
    %182 = vector.shape_cast %181 : vector<8x8x64xf32> to vector<64x64xf32>
    %183 = arith.truncf %182 : vector<64x64xf32> to vector<64x64xbf16>
    %184 = tpu.concatenate %151, %155, %159, %163, %167, %171, %175, %179, %183 in 1 : vector<64x64xbf16>, vector<64x64xbf16>, vector<64x64xbf16>, vector<64x64xbf16>, vector<64x64xbf16>, vector<64x64xbf16>, vector<64x64xbf16>, vector<64x64xbf16>, vector<64x64xbf16> -> vector<64x576xbf16>
    %185 = tpu.concatenate %147, %184 in 0 : vector<64x576xbf16>, vector<64x576xbf16> -> vector<128x576xbf16>
    %c0_190 = arith.constant 0 : index
    %c0_191 = arith.constant 0 : index
    %186 = vector.load %arg6[%c0_190, %c0_191] : memref<576x128xbf16, #tpu.memory_space<vmem>>, vector<576x128xbf16>
    %cst_192 = arith.constant dense<0.000000e+00> : vector<128x128xf32>
    %187 = tpu.matmul %185, %186, %cst_192 {dimension_numbers = #tpu.dot_dimension_numbers<[1], [0], [0], [1], [0, 0, 1, 1], [], []>} : vector<128x576xbf16>, vector<576x128xbf16>, vector<128x128xf32> -> vector<128x128xf32>
    %c0_193 = arith.constant 0 : index
    %c0_194 = arith.constant 0 : index
    %188 = vector.load %arg7[%c0_193, %c0_194] : memref<1x128xf32, #tpu.memory_space<vmem>>, vector<1x128xf32>
    %189 = vector.broadcast %188 : vector<1x128xf32> to vector<128x128xf32>
    %190 = arith.addf %187, %189 : vector<128x128xf32>
    %cst_195 = arith.constant 0.000000e+00 : f32
    %191 = vector.broadcast %cst_195 : f32 to vector<128x128xf32>
    %192 = arith.maximumf %190, %191 : vector<128x128xf32>
    %193 = vector.shape_cast %192 : vector<128x128xf32> to vector<2x8x8x128xf32>
    %c0_196 = arith.constant 0 : index
    %c1_197 = arith.constant 1 : index
    %c1_198 = arith.constant 1 : index
    %c0_199 = arith.constant 0 : index
    %194 = vector.load %arg14[%c0_196, %c1_197, %c1_198, %c0_199] : memref<2x10x10x128xf32, #tpu.memory_space<vmem>>, vector<2x8x8x128xf32>
    tpu.vector_store %arg14[%c0_196, %c1_197, %c1_198, %c0_199], %193 {strides = array<i32>} : memref<2x10x10x128xf32, #tpu.memory_space<vmem>>, vector<2x8x8x128xf32>,
    %c0_200 = arith.constant 0 : index
    %c0_201 = arith.constant 0 : index
    %c0_202 = arith.constant 0 : index
    %c0_203 = arith.constant 0 : index
    %195 = vector.load %arg14[%c0_200, %c0_201, %c0_202, %c0_203] : memref<2x10x10x128xf32, #tpu.memory_space<vmem>>, vector<1x8x8x128xf32>
    %196 = vector.shape_cast %195 : vector<1x8x8x128xf32> to vector<8x8x128xf32>
    %197 = vector.shape_cast %196 : vector<8x8x128xf32> to vector<64x128xf32>
    %198 = arith.truncf %197 : vector<64x128xf32> to vector<64x128xbf16>
    %c0_204 = arith.constant 0 : index
    %c0_205 = arith.constant 0 : index
    %c1_206 = arith.constant 1 : index
    %c0_207 = arith.constant 0 : index
    %199 = vector.load %arg14[%c0_204, %c0_205, %c1_206, %c0_207] : memref<2x10x10x128xf32, #tpu.memory_space<vmem>>, vector<1x8x8x128xf32>
    %200 = vector.shape_cast %199 : vector<1x8x8x128xf32> to vector<8x8x128xf32>
    %201 = vector.shape_cast %200 : vector<8x8x128xf32> to vector<64x128xf32>
    %202 = arith.truncf %201 : vector<64x128xf32> to vector<64x128xbf16>
    %c0_208 = arith.constant 0 : index
    %c0_209 = arith.constant 0 : index
    %c2_210 = arith.constant 2 : index
    %c0_211 = arith.constant 0 : index
    %203 = vector.load %arg14[%c0_208, %c0_209, %c2_210, %c0_211] : memref<2x10x10x128xf32, #tpu.memory_space<vmem>>, vector<1x8x8x128xf32>
    %204 = vector.shape_cast %203 : vector<1x8x8x128xf32> to vector<8x8x128xf32>
    %205 = vector.shape_cast %204 : vector<8x8x128xf32> to vector<64x128xf32>
    %206 = arith.truncf %205 : vector<64x128xf32> to vector<64x128xbf16>
    %c0_212 = arith.constant 0 : index
    %c1_213 = arith.constant 1 : index
    %c0_214 = arith.constant 0 : index
    %c0_215 = arith.constant 0 : index
    %207 = vector.load %arg14[%c0_212, %c1_213, %c0_214, %c0_215] : memref<2x10x10x128xf32, #tpu.memory_space<vmem>>, vector<1x8x8x128xf32>
    %208 = vector.shape_cast %207 : vector<1x8x8x128xf32> to vector<8x8x128xf32>
    %209 = vector.shape_cast %208 : vector<8x8x128xf32> to vector<64x128xf32>
    %210 = arith.truncf %209 : vector<64x128xf32> to vector<64x128xbf16>
    %c0_216 = arith.constant 0 : index
    %c1_217 = arith.constant 1 : index
    %c1_218 = arith.constant 1 : index
    %c0_219 = arith.constant 0 : index
    %211 = vector.load %arg14[%c0_216, %c1_217, %c1_218, %c0_219] : memref<2x10x10x128xf32, #tpu.memory_space<vmem>>, vector<1x8x8x128xf32>
    %212 = vector.shape_cast %211 : vector<1x8x8x128xf32> to vector<8x8x128xf32>
    %213 = vector.shape_cast %212 : vector<8x8x128xf32> to vector<64x128xf32>
    %214 = arith.truncf %213 : vector<64x128xf32> to vector<64x128xbf16>
    %c0_220 = arith.constant 0 : index
    %c1_221 = arith.constant 1 : index
    %c2_222 = arith.constant 2 : index
    %c0_223 = arith.constant 0 : index
    %215 = vector.load %arg14[%c0_220, %c1_221, %c2_222, %c0_223] : memref<2x10x10x128xf32, #tpu.memory_space<vmem>>, vector<1x8x8x128xf32>
    %216 = vector.shape_cast %215 : vector<1x8x8x128xf32> to vector<8x8x128xf32>
    %217 = vector.shape_cast %216 : vector<8x8x128xf32> to vector<64x128xf32>
    %218 = arith.truncf %217 : vector<64x128xf32> to vector<64x128xbf16>
    %c0_224 = arith.constant 0 : index
    %c2_225 = arith.constant 2 : index
    %c0_226 = arith.constant 0 : index
    %c0_227 = arith.constant 0 : index
    %219 = vector.load %arg14[%c0_224, %c2_225, %c0_226, %c0_227] : memref<2x10x10x128xf32, #tpu.memory_space<vmem>>, vector<1x8x8x128xf32>
    %220 = vector.shape_cast %219 : vector<1x8x8x128xf32> to vector<8x8x128xf32>
    %221 = vector.shape_cast %220 : vector<8x8x128xf32> to vector<64x128xf32>
    %222 = arith.truncf %221 : vector<64x128xf32> to vector<64x128xbf16>
    %c0_228 = arith.constant 0 : index
    %c2_229 = arith.constant 2 : index
    %c1_230 = arith.constant 1 : index
    %c0_231 = arith.constant 0 : index
    %223 = vector.load %arg14[%c0_228, %c2_229, %c1_230, %c0_231] : memref<2x10x10x128xf32, #tpu.memory_space<vmem>>, vector<1x8x8x128xf32>
    %224 = vector.shape_cast %223 : vector<1x8x8x128xf32> to vector<8x8x128xf32>
    %225 = vector.shape_cast %224 : vector<8x8x128xf32> to vector<64x128xf32>
    %226 = arith.truncf %225 : vector<64x128xf32> to vector<64x128xbf16>
    %c0_232 = arith.constant 0 : index
    %c2_233 = arith.constant 2 : index
    %c2_234 = arith.constant 2 : index
    %c0_235 = arith.constant 0 : index
    %227 = vector.load %arg14[%c0_232, %c2_233, %c2_234, %c0_235] : memref<2x10x10x128xf32, #tpu.memory_space<vmem>>, vector<1x8x8x128xf32>
    %228 = vector.shape_cast %227 : vector<1x8x8x128xf32> to vector<8x8x128xf32>
    %229 = vector.shape_cast %228 : vector<8x8x128xf32> to vector<64x128xf32>
    %230 = arith.truncf %229 : vector<64x128xf32> to vector<64x128xbf16>
    %231 = tpu.concatenate %198, %202, %206, %210, %214, %218, %222, %226, %230 in 1 : vector<64x128xbf16>, vector<64x128xbf16>, vector<64x128xbf16>, vector<64x128xbf16>, vector<64x128xbf16>, vector<64x128xbf16>, vector<64x128xbf16>, vector<64x128xbf16>, vector<64x128xbf16> -> vector<64x1152xbf16>
    %c1_236 = arith.constant 1 : index
    %c0_237 = arith.constant 0 : index
    %c0_238 = arith.constant 0 : index
    %c0_239 = arith.constant 0 : index
    %232 = vector.load %arg14[%c1_236, %c0_237, %c0_238, %c0_239] : memref<2x10x10x128xf32, #tpu.memory_space<vmem>>, vector<1x8x8x128xf32>
    %233 = vector.shape_cast %232 : vector<1x8x8x128xf32> to vector<8x8x128xf32>
    %234 = vector.shape_cast %233 : vector<8x8x128xf32> to vector<64x128xf32>
    %235 = arith.truncf %234 : vector<64x128xf32> to vector<64x128xbf16>
    %c1_240 = arith.constant 1 : index
    %c0_241 = arith.constant 0 : index
    %c1_242 = arith.constant 1 : index
    %c0_243 = arith.constant 0 : index
    %236 = vector.load %arg14[%c1_240, %c0_241, %c1_242, %c0_243] : memref<2x10x10x128xf32, #tpu.memory_space<vmem>>, vector<1x8x8x128xf32>
    %237 = vector.shape_cast %236 : vector<1x8x8x128xf32> to vector<8x8x128xf32>
    %238 = vector.shape_cast %237 : vector<8x8x128xf32> to vector<64x128xf32>
    %239 = arith.truncf %238 : vector<64x128xf32> to vector<64x128xbf16>
    %c1_244 = arith.constant 1 : index
    %c0_245 = arith.constant 0 : index
    %c2_246 = arith.constant 2 : index
    %c0_247 = arith.constant 0 : index
    %240 = vector.load %arg14[%c1_244, %c0_245, %c2_246, %c0_247] : memref<2x10x10x128xf32, #tpu.memory_space<vmem>>, vector<1x8x8x128xf32>
    %241 = vector.shape_cast %240 : vector<1x8x8x128xf32> to vector<8x8x128xf32>
    %242 = vector.shape_cast %241 : vector<8x8x128xf32> to vector<64x128xf32>
    %243 = arith.truncf %242 : vector<64x128xf32> to vector<64x128xbf16>
    %c1_248 = arith.constant 1 : index
    %c1_249 = arith.constant 1 : index
    %c0_250 = arith.constant 0 : index
    %c0_251 = arith.constant 0 : index
    %244 = vector.load %arg14[%c1_248, %c1_249, %c0_250, %c0_251] : memref<2x10x10x128xf32, #tpu.memory_space<vmem>>, vector<1x8x8x128xf32>
    %245 = vector.shape_cast %244 : vector<1x8x8x128xf32> to vector<8x8x128xf32>
    %246 = vector.shape_cast %245 : vector<8x8x128xf32> to vector<64x128xf32>
    %247 = arith.truncf %246 : vector<64x128xf32> to vector<64x128xbf16>
    %c1_252 = arith.constant 1 : index
    %c1_253 = arith.constant 1 : index
    %c1_254 = arith.constant 1 : index
    %c0_255 = arith.constant 0 : index
    %248 = vector.load %arg14[%c1_252, %c1_253, %c1_254, %c0_255] : memref<2x10x10x128xf32, #tpu.memory_space<vmem>>, vector<1x8x8x128xf32>
    %249 = vector.shape_cast %248 : vector<1x8x8x128xf32> to vector<8x8x128xf32>
    %250 = vector.shape_cast %249 : vector<8x8x128xf32> to vector<64x128xf32>
    %251 = arith.truncf %250 : vector<64x128xf32> to vector<64x128xbf16>
    %c1_256 = arith.constant 1 : index
    %c1_257 = arith.constant 1 : index
    %c2_258 = arith.constant 2 : index
    %c0_259 = arith.constant 0 : index
    %252 = vector.load %arg14[%c1_256, %c1_257, %c2_258, %c0_259] : memref<2x10x10x128xf32, #tpu.memory_space<vmem>>, vector<1x8x8x128xf32>
    %253 = vector.shape_cast %252 : vector<1x8x8x128xf32> to vector<8x8x128xf32>
    %254 = vector.shape_cast %253 : vector<8x8x128xf32> to vector<64x128xf32>
    %255 = arith.truncf %254 : vector<64x128xf32> to vector<64x128xbf16>
    %c1_260 = arith.constant 1 : index
    %c2_261 = arith.constant 2 : index
    %c0_262 = arith.constant 0 : index
    %c0_263 = arith.constant 0 : index
    %256 = vector.load %arg14[%c1_260, %c2_261, %c0_262, %c0_263] : memref<2x10x10x128xf32, #tpu.memory_space<vmem>>, vector<1x8x8x128xf32>
    %257 = vector.shape_cast %256 : vector<1x8x8x128xf32> to vector<8x8x128xf32>
    %258 = vector.shape_cast %257 : vector<8x8x128xf32> to vector<64x128xf32>
    %259 = arith.truncf %258 : vector<64x128xf32> to vector<64x128xbf16>
    %c1_264 = arith.constant 1 : index
    %c2_265 = arith.constant 2 : index
    %c1_266 = arith.constant 1 : index
    %c0_267 = arith.constant 0 : index
    %260 = vector.load %arg14[%c1_264, %c2_265, %c1_266, %c0_267] : memref<2x10x10x128xf32, #tpu.memory_space<vmem>>, vector<1x8x8x128xf32>
    %261 = vector.shape_cast %260 : vector<1x8x8x128xf32> to vector<8x8x128xf32>
    %262 = vector.shape_cast %261 : vector<8x8x128xf32> to vector<64x128xf32>
    %263 = arith.truncf %262 : vector<64x128xf32> to vector<64x128xbf16>
    %c1_268 = arith.constant 1 : index
    %c2_269 = arith.constant 2 : index
    %c2_270 = arith.constant 2 : index
    %c0_271 = arith.constant 0 : index
    %264 = vector.load %arg14[%c1_268, %c2_269, %c2_270, %c0_271] : memref<2x10x10x128xf32, #tpu.memory_space<vmem>>, vector<1x8x8x128xf32>
    %265 = vector.shape_cast %264 : vector<1x8x8x128xf32> to vector<8x8x128xf32>
    %266 = vector.shape_cast %265 : vector<8x8x128xf32> to vector<64x128xf32>
    %267 = arith.truncf %266 : vector<64x128xf32> to vector<64x128xbf16>
    %268 = tpu.concatenate %235, %239, %243, %247, %251, %255, %259, %263, %267 in 1 : vector<64x128xbf16>, vector<64x128xbf16>, vector<64x128xbf16>, vector<64x128xbf16>, vector<64x128xbf16>, vector<64x128xbf16>, vector<64x128xbf16>, vector<64x128xbf16>, vector<64x128xbf16> -> vector<64x1152xbf16>
    %269 = tpu.concatenate %231, %268 in 0 : vector<64x1152xbf16>, vector<64x1152xbf16> -> vector<128x1152xbf16>
    %c0_272 = arith.constant 0 : index
    %c0_273 = arith.constant 0 : index
    %270 = vector.load %arg8[%c0_272, %c0_273] : memref<1152x128xbf16, #tpu.memory_space<vmem>>, vector<1152x128xbf16>
    %cst_274 = arith.constant dense<0.000000e+00> : vector<128x128xf32>
    %271 = tpu.matmul %269, %270, %cst_274 {dimension_numbers = #tpu.dot_dimension_numbers<[1], [0], [0], [1], [0, 0, 1, 1], [], []>} : vector<128x1152xbf16>, vector<1152x128xbf16>, vector<128x128xf32> -> vector<128x128xf32>
    %c0_275 = arith.constant 0 : index
    %c0_276 = arith.constant 0 : index
    %272 = vector.load %arg9[%c0_275, %c0_276] : memref<1x128xf32, #tpu.memory_space<vmem>>, vector<1x128xf32>
    %273 = vector.broadcast %272 : vector<1x128xf32> to vector<128x128xf32>
    %274 = arith.addf %271, %273 : vector<128x128xf32>
    %cst_277 = arith.constant 0.000000e+00 : f32
    %275 = vector.broadcast %cst_277 : f32 to vector<128x128xf32>
    %276 = arith.maximumf %274, %275 : vector<128x128xf32>
    %277 = vector.extract_strided_slice %98 {offsets = [0, 0], sizes = [256, 64], strides = [1, 1]} : vector<512x64xf32> to vector<256x64xf32>
    %278 = vector.extract_strided_slice %98 {offsets = [256, 0], sizes = [256, 64], strides = [1, 1]} : vector<512x64xf32> to vector<256x64xf32>
    %279 = vector.extract_strided_slice %276 {offsets = [0, 0], sizes = [64, 128], strides = [1, 1]} : vector<128x128xf32> to vector<64x128xf32>
    %280 = vector.extract_strided_slice %276 {offsets = [64, 0], sizes = [64, 128], strides = [1, 1]} : vector<128x128xf32> to vector<64x128xf32>
    %281 = arith.subf %277, %278 : vector<256x64xf32>
    %282 = arith.mulf %281, %281 : vector<256x64xf32>
    %283 = vector.shape_cast %282 : vector<256x64xf32> to vector<1x256x64xf32>
    %cst_278 = arith.constant dense<0.000000e+00> : vector<1xf32>
    %284 = vector.multi_reduction <add>, %283, %cst_278 [1, 2] : vector<1x256x64xf32> to vector<1xf32>
    %285 = vector.shape_cast %284 : vector<1xf32> to vector<1x1x1xf32>
    %286 = vector.extract %285[0, 0, 0] : f32 from vector<1x1x1xf32>
    %cst_279 = arith.constant dense<0.000000e+00> : vector<64x64xf32>
    %287 = tpu.matmul %277, %277, %cst_279 {dimension_numbers = #tpu.dot_dimension_numbers<[0], [0], [1], [1], [0, 1, 1, 1], [], []>} : vector<256x64xf32>, vector<256x64xf32>, vector<64x64xf32> -> vector<64x64xf32>
    %cst_280 = arith.constant 6.10351563E-5 : f32
    %288 = vector.broadcast %cst_280 : f32 to vector<64x64xf32>
    %289 = arith.mulf %287, %288 : vector<64x64xf32>
    %cst_281 = arith.constant dense<0.000000e+00> : vector<64x64xf32>
    %290 = tpu.matmul %278, %278, %cst_281 {dimension_numbers = #tpu.dot_dimension_numbers<[0], [0], [1], [1], [0, 1, 1, 1], [], []>} : vector<256x64xf32>, vector<256x64xf32>, vector<64x64xf32> -> vector<64x64xf32>
    %cst_282 = arith.constant 6.10351563E-5 : f32
    %291 = vector.broadcast %cst_282 : f32 to vector<64x64xf32>
    %292 = arith.mulf %290, %291 : vector<64x64xf32>
    %293 = arith.subf %289, %292 : vector<64x64xf32>
    %294 = arith.mulf %293, %293 : vector<64x64xf32>
    %295 = vector.shape_cast %294 : vector<64x64xf32> to vector<1x64x64xf32>
    %cst_283 = arith.constant dense<0.000000e+00> : vector<1xf32>
    %296 = vector.multi_reduction <add>, %295, %cst_283 [1, 2] : vector<1x64x64xf32> to vector<1xf32>
    %297 = vector.shape_cast %296 : vector<1xf32> to vector<1x1x1xf32>
    %298 = vector.extract %297[0, 0, 0] : f32 from vector<1x1x1xf32>
    %cst_284 = arith.constant dense<0.000000e+00> : vector<128x128xf32>
    %299 = tpu.matmul %279, %279, %cst_284 {dimension_numbers = #tpu.dot_dimension_numbers<[0], [0], [1], [1], [0, 1, 1, 1], [], []>} : vector<64x128xf32>, vector<64x128xf32>, vector<128x128xf32> -> vector<128x128xf32>
    %cst_285 = arith.constant 1.22070313E-4 : f32
    %300 = vector.broadcast %cst_285 : f32 to vector<128x128xf32>
    %301 = arith.mulf %299, %300 : vector<128x128xf32>
    %cst_286 = arith.constant dense<0.000000e+00> : vector<128x128xf32>
    %302 = tpu.matmul %280, %280, %cst_286 {dimension_numbers = #tpu.dot_dimension_numbers<[0], [0], [1], [1], [0, 1, 1, 1], [], []>} : vector<64x128xf32>, vector<64x128xf32>, vector<128x128xf32> -> vector<128x128xf32>
    %cst_287 = arith.constant 1.22070313E-4 : f32
    %303 = vector.broadcast %cst_287 : f32 to vector<128x128xf32>
    %304 = arith.mulf %302, %303 : vector<128x128xf32>
    %305 = arith.subf %301, %304 : vector<128x128xf32>
    %306 = arith.mulf %305, %305 : vector<128x128xf32>
    %307 = vector.shape_cast %306 : vector<128x128xf32> to vector<1x128x128xf32>
    %cst_288 = arith.constant dense<0.000000e+00> : vector<1xf32>
    %308 = vector.multi_reduction <add>, %307, %cst_288 [1, 2] : vector<1x128x128xf32> to vector<1xf32>
    %309 = vector.shape_cast %308 : vector<1xf32> to vector<1x1x1xf32>
    %310 = vector.extract %309[0, 0, 0] : f32 from vector<1x1x1xf32>
    %311 = tpu.iota {dimensions = array<i32: 1>} : vector<8x128xi32>
    %c0_i32 = arith.constant 0 : i32
    %312 = vector.broadcast %c0_i32 : i32 to vector<8x128xi32>
    %313 = arith.cmpi eq, %311, %312 : vector<8x128xi32>
    %cst_289 = arith.constant 0.000000e+00 : f32
    %314 = vector.broadcast %286 : f32 to vector<8x128xf32>
    %315 = vector.broadcast %cst_289 : f32 to vector<8x128xf32>
    %316 = arith.select %313, %314, %315 : vector<8x128xi1>, vector<8x128xf32>
    %c1_i32 = arith.constant 1 : i32
    %317 = vector.broadcast %c1_i32 : i32 to vector<8x128xi32>
    %318 = arith.cmpi eq, %311, %317 : vector<8x128xi32>
    %cst_290 = arith.constant 0.000000e+00 : f32
    %319 = vector.broadcast %298 : f32 to vector<8x128xf32>
    %320 = vector.broadcast %cst_290 : f32 to vector<8x128xf32>
    %321 = arith.select %318, %319, %320 : vector<8x128xi1>, vector<8x128xf32>
    %322 = arith.addf %316, %321 : vector<8x128xf32>
    %c2_i32 = arith.constant 2 : i32
    %323 = vector.broadcast %c2_i32 : i32 to vector<8x128xi32>
    %324 = arith.cmpi eq, %311, %323 : vector<8x128xi32>
    %cst_291 = arith.constant 0.000000e+00 : f32
    %325 = vector.broadcast %310 : f32 to vector<8x128xf32>
    %326 = vector.broadcast %cst_291 : f32 to vector<8x128xf32>
    %327 = arith.select %324, %325, %326 : vector<8x128xi1>, vector<8x128xf32>
    %328 = arith.addf %322, %327 : vector<8x128xf32>
    %c0_292 = arith.constant 0 : index
    %c0_293 = arith.constant 0 : index
    %c0_294 = arith.constant 0 : index
    %329 = vector.load %arg10[%c0_292, %c0_293, %c0_294] : memref<1x8x128xf32, #tpu.memory_space<vmem>>, vector<1x8x128xf32>
    %330 = vector.shape_cast %329 : vector<1x8x128xf32> to vector<8x128xf32>
    %331 = vector.shape_cast %328 : vector<8x128xf32> to vector<1x8x128xf32>
    tpu.vector_store %arg10[%c0_292, %c0_293, %c0_294], %331 {strides = array<i32>} : memref<1x8x128xf32, #tpu.memory_space<vmem>>, vector<1x8x128xf32>,
    return
  }
  func.func @transform_0(%arg0: i32) -> (i32, i32, i32) {
    %c0_i32 = arith.constant 0 : i32
    %c0_i32_0 = arith.constant 0 : i32
    %c0_i32_1 = arith.constant 0 : i32
    return %arg0, %c0_i32, %c0_i32_0 : i32, i32, i32
  }
  func.func @transform_1(%arg0: i32) -> (i32, i32) {
    %c0_i32 = arith.constant 0 : i32
    %c0_i32_0 = arith.constant 0 : i32
    %c0_i32_1 = arith.constant 0 : i32
    return %c0_i32, %c0_i32_0 : i32, i32
  }
  func.func @transform_2(%arg0: i32) -> (i32, i32) {
    %c0_i32 = arith.constant 0 : i32
    %c0_i32_0 = arith.constant 0 : i32
    %c0_i32_1 = arith.constant 0 : i32
    return %c0_i32, %c0_i32_0 : i32, i32
  }
  func.func @transform_3(%arg0: i32) -> (i32, i32) {
    %c0_i32 = arith.constant 0 : i32
    %c0_i32_0 = arith.constant 0 : i32
    %c0_i32_1 = arith.constant 0 : i32
    return %c0_i32, %c0_i32_0 : i32, i32
  }
  func.func @transform_4(%arg0: i32) -> (i32, i32) {
    %c0_i32 = arith.constant 0 : i32
    %c0_i32_0 = arith.constant 0 : i32
    %c0_i32_1 = arith.constant 0 : i32
    return %c0_i32, %c0_i32_0 : i32, i32
  }
  func.func @transform_5(%arg0: i32) -> (i32, i32) {
    %c0_i32 = arith.constant 0 : i32
    %c0_i32_0 = arith.constant 0 : i32
    %c0_i32_1 = arith.constant 0 : i32
    return %c0_i32, %c0_i32_0 : i32, i32
  }
  func.func @transform_6(%arg0: i32) -> (i32, i32) {
    %c0_i32 = arith.constant 0 : i32
    %c0_i32_0 = arith.constant 0 : i32
    %c0_i32_1 = arith.constant 0 : i32
    return %c0_i32, %c0_i32_0 : i32, i32
  }
  func.func @transform_7(%arg0: i32) -> (i32, i32) {
    %c0_i32 = arith.constant 0 : i32
    %c0_i32_0 = arith.constant 0 : i32
    %c0_i32_1 = arith.constant 0 : i32
    return %c0_i32, %c0_i32_0 : i32, i32
  }
  func.func @transform_8(%arg0: i32) -> (i32, i32) {
    %c0_i32 = arith.constant 0 : i32
    %c0_i32_0 = arith.constant 0 : i32
    %c0_i32_1 = arith.constant 0 : i32
    return %c0_i32, %c0_i32_0 : i32, i32
  }
  func.func @transform_9(%arg0: i32) -> (i32, i32, i32) {
    %c0_i32 = arith.constant 0 : i32
    %c0_i32_0 = arith.constant 0 : i32
    %c0_i32_1 = arith.constant 0 : i32
    return %arg0, %c0_i32, %c0_i32_0 : i32, i32, i32
  }
}

</mosaic_0001>

<llo_original>
// kernel: vgg_loss.1
$region0: #{vgg_loss.1}
  #allocation0 [shape = 'u32[]', space=smem, size = 0x4, offset = 0x4, fixed_abs, tag = 'smem constant byte address 0x4 - core index']
  #allocation1 [shape = 'u32[72,128]{1,0:T(1,128)}', space=vmem, size = 0x9000, scoped, tag = 'internal scratch']
  #allocation2 [shape = 'f32[2,18,18,64]{3,2,1,0:T(8,128)}', space=vmem, size = 0x6c000, scoped, tag = 'scratch operand']
  #allocation3 [shape = 'f32[2,16,16,64]{3,2,1,0:T(8,128)}', space=vmem, size = 0x40000, scoped, tag = 'scratch operand']
  #allocation4 [shape = 'f32[2,10,10,64]{3,2,1,0:T(8,128)}', space=vmem, size = 0x28000, scoped, tag = 'scratch operand']
  #allocation5 [shape = 'f32[2,10,10,128]{3,2,1,0:T(8,128)}', space=vmem, size = 0x28000, scoped, tag = 'scratch operand']
  %s0 = inlined_call_operand.vmem [shape: bf16[2,512,27], index: 0, kind: input, shape index: {}]
  %s1 = inlined_call_operand.vmem [shape: bf16[27,64], index: 1, kind: input, shape index: {}]
  %s2 = inlined_call_operand.vmem [shape: f32[1,64], index: 2, kind: input, shape index: {}]
  %s3 = inlined_call_operand.vmem [shape: bf16[576,64], index: 3, kind: input, shape index: {}]
  %s4 = inlined_call_operand.vmem [shape: f32[1,64], index: 4, kind: input, shape index: {}]
  %s5 = inlined_call_operand.vmem [shape: bf16[576,128], index: 5, kind: input, shape index: {}]
  %s6 = inlined_call_operand.vmem [shape: f32[1,128], index: 6, kind: input, shape index: {}]
  %s7 = inlined_call_operand.vmem [shape: bf16[1152,128], index: 7, kind: input, shape index: {}]
  %s8 = inlined_call_operand.vmem [shape: f32[1,128], index: 8, kind: input, shape index: {}]
  %s9 = inlined_call_operand.vmem [shape: f32[2,8,128], index: 9, kind: output, shape index: {}]
  %s10 = sld [smem:[#allocation0]]
  $region69: #{vgg_loss.1} parent=0
    _
  %s12 = ssub.s32 1, %s10
  %s13 = scalar_select 0, %s12, %s10
  loop: start=0, step=1, limit=4
  $region2: #{vgg_loss.1} parent=0 // loop_pre_header
    _
  $region3: #{vgg_loss.1} parent=0 // loop_header
    %s15 = sphi 0, %s19
    %p16 = scmp.ge.s32.totalorder %s15, 4
    %s25 = sphi 0, %s27
    %s28 = sphi 0, %s25
    %s29 = sphi 0, %s28
    %s45 = sphi 0, %s29
    %s49 = sphi 0, %s49
    %s51 = sphi 0, %s49
    %s52 = sphi 0, %s51
    %s66 = sphi 0, %s52
    %s70 = sphi 0, %s70
    %s72 = sphi 0, %s70
    %s73 = sphi 0, %s72
    %s87 = sphi 0, %s73
    %s91 = sphi 0, %s91
    %s93 = sphi 0, %s91
    %s94 = sphi 0, %s93
    %s108 = sphi 0, %s94
    %s112 = sphi 0, %s112
    %s114 = sphi 0, %s112
    %s115 = sphi 0, %s114
    %s129 = sphi 0, %s115
    %s133 = sphi 0, %s133
    %s135 = sphi 0, %s133
    %s136 = sphi 0, %s135
    %s150 = sphi 0, %s136
    %s154 = sphi 0, %s154
    %s156 = sphi 0, %s154
    %s157 = sphi 0, %s156
    %s171 = sphi 0, %s157
    %s175 = sphi 0, %s175
    %s177 = sphi 0, %s175
    %s178 = sphi 0, %s177
    %s192 = sphi 0, %s178
    %s196 = sphi 0, %s196
    %s198 = sphi 0, %s196
    %s199 = sphi 0, %s198
    %s213 = sphi 0, %s199
    %s219 = sphi 0, %s221
    %s222 = sphi 0, %s219
    %s223 = sphi 0, %s222
    %s239 = sphi 0, %s223
  $region4: #{vgg_loss.1} parent=0 // loop_header_branch
    %18 = sbr.rel (%p16) target = $region8
  $region5: #{vgg_loss.1} parent=0 // loop_body
    %s20 = ssub.s32 %s15, 1
    %s21 = ssub.s32 %s15, 2
    %s22 = sadd.s32 %s15, 1
    %s23 = ssub.s32 %s15, %s22
    %p24 = scmp.eq.s32.totalorder %s23, 0
    %s26 = sadd.s32 %s25, 1
    %s27 = scalar_select %p24, %s25, %s26
    %p30 = pneg %p24
    %p31 = scmp.eq.s32.totalorder %s15, 1
    %p32 = por %p30, %p31
    %p33 = scmp.ne.s32.totalorder %s25, %s28
    %p34 = scmp.eq.s32.totalorder %s15, 0
    %p35 = por %p33, %p34
    %p36 = scmp.ne.s32.totalorder %s25, %s28
    %p37 = scmp.eq.s32.totalorder %s20, 1
    %p38 = por %p36, %p37
    %p39 = scmp.ne.s32.totalorder %s28, %s29
    %p40 = scmp.eq.s32.totalorder %s20, 0
    %p41 = por %p39, %p40
    %p42 = scmp.ne.s32.totalorder %s28, %s29
    %p43 = scmp.eq.s32.totalorder %s21, 1
    %p44 = por %p42, %p43
    %p46 = scmp.ne.s32.totalorder %s29, %s45
    %p47 = scmp.eq.s32.totalorder %s21, 0
    %p48 = por %p46, %p47
    %s50 = sadd.s32 %s49, 1
    %p53 = scmp.eq.s32.totalorder %s15, 1
    %p54 = scmp.ne.s32.totalorder %s49, %s51
    %p55 = scmp.eq.s32.totalorder %s15, 0
    %p56 = por %p54, %p55
    %p57 = scmp.ne.s32.totalorder %s49, %s51
    %p58 = scmp.eq.s32.totalorder %s20, 1
    %p59 = por %p57, %p58
    %p60 = scmp.ne.s32.totalorder %s51, %s52
    %p61 = scmp.eq.s32.totalorder %s20, 0
    %p62 = por %p60, %p61
    %p63 = scmp.ne.s32.totalorder %s51, %s52
    %p64 = scmp.eq.s32.totalorder %s21, 1
    %p65 = por %p63, %p64
    %p67 = scmp.ne.s32.totalorder %s52, %s66
    %p68 = scmp.eq.s32.totalorder %s21, 0
    %p69 = por %p67, %p68
    %s71 = sadd.s32 %s70, 1
    %p74 = scmp.eq.s32.totalorder %s15, 1
    %p75 = scmp.ne.s32.totalorder %s70, %s72
    %p76 = scmp.eq.s32.totalorder %s15, 0
    %p77 = por %p75, %p76
    %p78 = scmp.ne.s32.totalorder %s70, %s72
    %p79 = scmp.eq.s32.totalorder %s20, 1
    %p80 = por %p78, %p79
    %p81 = scmp.ne.s32.totalorder %s72, %s73
    %p82 = scmp.eq.s32.totalorder %s20, 0
    %p83 = por %p81, %p82
    %p84 = scmp.ne.s32.totalorder %s72, %s73
    %p85 = scmp.eq.s32.totalorder %s21, 1
    %p86 = por %p84, %p85
    %p88 = scmp.ne.s32.totalorder %s73, %s87
    %p89 = scmp.eq.s32.totalorder %s21, 0
    %p90 = por %p88, %p89
    %s92 = sadd.s32 %s91, 1
    %p95 = scmp.eq.s32.totalorder %s15, 1
    %p96 = scmp.ne.s32.totalorder %s91, %s93
    %p97 = scmp.eq.s32.totalorder %s15, 0
    %p98 = por %p96, %p97
    %p99 = scmp.ne.s32.totalorder %s91, %s93
    %p100 = scmp.eq.s32.totalorder %s20, 1
    %p101 = por %p99, %p100
    %p102 = scmp.ne.s32.totalorder %s93, %s94
    %p103 = scmp.eq.s32.totalorder %s20, 0
    %p104 = por %p102, %p103
    %p105 = scmp.ne.s32.totalorder %s93, %s94
    %p106 = scmp.eq.s32.totalorder %s21, 1
    %p107 = por %p105, %p106
    %p109 = scmp.ne.s32.totalorder %s94, %s108
    %p110 = scmp.eq.s32.totalorder %s21, 0
    %p111 = por %p109, %p110
    %s113 = sadd.s32 %s112, 1
    %p116 = scmp.eq.s32.totalorder %s15, 1
    %p117 = scmp.ne.s32.totalorder %s112, %s114
    %p118 = scmp.eq.s32.totalorder %s15, 0
    %p119 = por %p117, %p118
    %p120 = scmp.ne.s32.totalorder %s112, %s114
    %p121 = scmp.eq.s32.totalorder %s20, 1
    %p122 = por %p120, %p121
    %p123 = scmp.ne.s32.totalorder %s114, %s115
    %p124 = scmp.eq.s32.totalorder %s20, 0
    %p125 = por %p123, %p124
    %p126 = scmp.ne.s32.totalorder %s114, %s115
    %p127 = scmp.eq.s32.totalorder %s21, 1
    %p128 = por %p126, %p127
    %p130 = scmp.ne.s32.totalorder %s115, %s129
    %p131 = scmp.eq.s32.totalorder %s21, 0
    %p132 = por %p130, %p131
    %s134 = sadd.s32 %s133, 1
    %p137 = scmp.eq.s32.totalorder %s15, 1
    %p138 = scmp.ne.s32.totalorder %s133, %s135
    %p139 = scmp.eq.s32.totalorder %s15, 0
    %p140 = por %p138, %p139
    %p141 = scmp.ne.s32.totalorder %s133, %s135
    %p142 = scmp.eq.s32.totalorder %s20, 1
    %p143 = por %p141, %p142
    %p144 = scmp.ne.s32.totalorder %s135, %s136
    %p145 = scmp.eq.s32.totalorder %s20, 0
    %p146 = por %p144, %p145
    %p147 = scmp.ne.s32.totalorder %s135, %s136
    %p148 = scmp.eq.s32.totalorder %s21, 1
    %p149 = por %p147, %p148
    %p151 = scmp.ne.s32.totalorder %s136, %s150
    %p152 = scmp.eq.s32.totalorder %s21, 0
    %p153 = por %p151, %p152
    %s155 = sadd.s32 %s154, 1
    %p158 = scmp.eq.s32.totalorder %s15, 1
    %p159 = scmp.ne.s32.totalorder %s154, %s156
    %p160 = scmp.eq.s32.totalorder %s15, 0
    %p161 = por %p159, %p160
    %p162 = scmp.ne.s32.totalorder %s154, %s156
    %p163 = scmp.eq.s32.totalorder %s20, 1
    %p164 = por %p162, %p163
    %p165 = scmp.ne.s32.totalorder %s156, %s157
    %p166 = scmp.eq.s32.totalorder %s20, 0
    %p167 = por %p165, %p166
    %p168 = scmp.ne.s32.totalorder %s156, %s157
    %p169 = scmp.eq.s32.totalorder %s21, 1
    %p170 = por %p168, %p169
    %p172 = scmp.ne.s32.totalorder %s157, %s171
    %p173 = scmp.eq.s32.totalorder %s21, 0
    %p174 = por %p172, %p173
    %s176 = sadd.s32 %s175, 1
    %p179 = scmp.eq.s32.totalorder %s15, 1
    %p180 = scmp.ne.s32.totalorder %s175, %s177
    %p181 = scmp.eq.s32.totalorder %s15, 0
    %p182 = por %p180, %p181
    %p183 = scmp.ne.s32.totalorder %s175, %s177
    %p184 = scmp.eq.s32.totalorder %s20, 1
    %p185 = por %p183, %p184
    %p186 = scmp.ne.s32.totalorder %s177, %s178
    %p187 = scmp.eq.s32.totalorder %s20, 0
    %p188 = por %p186, %p187
    %p189 = scmp.ne.s32.totalorder %s177, %s178
    %p190 = scmp.eq.s32.totalorder %s21, 1
    %p191 = por %p189, %p190
    %p193 = scmp.ne.s32.totalorder %s178, %s192
    %p194 = scmp.eq.s32.totalorder %s21, 0
    %p195 = por %p193, %p194
    %s197 = sadd.s32 %s196, 1
    %p200 = scmp.eq.s32.totalorder %s15, 1
    %p201 = scmp.ne.s32.totalorder %s196, %s198
    %p202 = scmp.eq.s32.totalorder %s15, 0
    %p203 = por %p201, %p202
    %p204 = scmp.ne.s32.totalorder %s196, %s198
    %p205 = scmp.eq.s32.totalorder %s20, 1
    %p206 = por %p204, %p205
    %p207 = scmp.ne.s32.totalorder %s198, %s199
    %p208 = scmp.eq.s32.totalorder %s20, 0
    %p209 = por %p207, %p208
    %p210 = scmp.ne.s32.totalorder %s198, %s199
    %p211 = scmp.eq.s32.totalorder %s21, 1
    %p212 = por %p210, %p211
    %p214 = scmp.ne.s32.totalorder %s199, %s213
    %p215 = scmp.eq.s32.totalorder %s21, 0
    %p216 = por %p214, %p215
    %s217 = ssub.s32 %s15, %s22
    %p218 = scmp.eq.s32.totalorder %s217, 0
    %s220 = sadd.s32 %s219, 1
    %s221 = scalar_select %p218, %s219, %s220
    %p224 = pneg %p218
    %p225 = scmp.eq.s32.totalorder %s15, 1
    %p226 = por %p224, %p225
    %p227 = scmp.ne.s32.totalorder %s219, %s222
    %p228 = scmp.eq.s32.totalorder %s15, 0
    %p229 = por %p227, %p228
    %p230 = scmp.ne.s32.totalorder %s219, %s222
    %p231 = scmp.eq.s32.totalorder %s20, 1
    %p232 = por %p230, %p231
    %p233 = scmp.ne.s32.totalorder %s222, %s223
    %p234 = scmp.eq.s32.totalorder %s20, 0
    %p235 = por %p233, %p234
    %p236 = scmp.ne.s32.totalorder %s222, %s223
    %p237 = scmp.eq.s32.totalorder %s21, 1
    %p238 = por %p236, %p237
    %p240 = scmp.ne.s32.totalorder %s223, %s239
    %p241 = scmp.eq.s32.totalorder %s21, 0
    %p242 = por %p240, %p241
    %p243 = scmp.le.s32.totalorder 1, %s15
    %p244 = scmp.lt.s32.totalorder %s15, 3
    %p245 = pnand %p243, %p244
    %p246 = pneg %p245
    // Predicated region
    $region9: #{vgg_loss.1} parent=5 // pred_check
      _
    $region10: #{vgg_loss.1} parent=5 // pred_check_branch
      %248 = sbr.rel (%p245) target = $region12
    $region11: #{vgg_loss.1} parent=5 // pred_region
      %s249 = ssub.s32 %s15, 1
      // Predicated region
      $region13: #{vgg_loss.1} parent=11 // pred_check
        %p250 = pneg %p62
      $region14: #{vgg_loss.1} parent=11 // pred_check_branch
        %252 = sbr.rel (%p250) target = $region16
      $region15: #{vgg_loss.1} parent=11 // pred_region
        _
      $region16: #{vgg_loss.1} parent=11 // pred_fallthru
        _
      // Predicated region
      $region17: #{vgg_loss.1} parent=11 // pred_check
        %p253 = pneg %p83
      $region18: #{vgg_loss.1} parent=11 // pred_check_branch
        %255 = sbr.rel (%p253) target = $region20
      $region19: #{vgg_loss.1} parent=11 // pred_region
        _
      $region20: #{vgg_loss.1} parent=11 // pred_fallthru
        _
      // Predicated region
      $region21: #{vgg_loss.1} parent=11 // pred_check
        %p256 = pneg %p104
      $region22: #{vgg_loss.1} parent=11 // pred_check_branch
        %258 = sbr.rel (%p256) target = $region24
      $region23: #{vgg_loss.1} parent=11 // pred_region
        _
      $region24: #{vgg_loss.1} parent=11 // pred_fallthru
        _
      // Predicated region
      $region25: #{vgg_loss.1} parent=11 // pred_check
        %p259 = pneg %p125
      $region26: #{vgg_loss.1} parent=11 // pred_check_branch
        %261 = sbr.rel (%p259) target = $region28
      $region27: #{vgg_loss.1} parent=11 // pred_region
        _
      $region28: #{vgg_loss.1} parent=11 // pred_fallthru
        _
      // Predicated region
      $region29: #{vgg_loss.1} parent=11 // pred_check
        %p262 = pneg %p146
      $region30: #{vgg_loss.1} parent=11 // pred_check_branch
        %264 = sbr.rel (%p262) target = $region32
      $region31: #{vgg_loss.1} parent=11 // pred_region
        _
      $region32: #{vgg_loss.1} parent=11 // pred_fallthru
        _
      // Predicated region
      $region33: #{vgg_loss.1} parent=11 // pred_check
        %p265 = pneg %p167
      $region34: #{vgg_loss.1} parent=11 // pred_check_branch
        %267 = sbr.rel (%p265) target = $region36
      $region35: #{vgg_loss.1} parent=11 // pred_region
        _
      $region36: #{vgg_loss.1} parent=11 // pred_fallthru
        _
      // Predicated region
      $region37: #{vgg_loss.1} parent=11 // pred_check
        %p268 = pneg %p188
      $region38: #{vgg_loss.1} parent=11 // pred_check_branch
        %270 = sbr.rel (%p268) target = $region40
      $region39: #{vgg_loss.1} parent=11 // pred_region
        _
      $region40: #{vgg_loss.1} parent=11 // pred_fallthru
        _
      // Predicated region
      $region41: #{vgg_loss.1} parent=11 // pred_check
        %p271 = pneg %p209
      $region42: #{vgg_loss.1} parent=11 // pred_check_branch
        %273 = sbr.rel (%p271) target = $region44
      $region43: #{vgg_loss.1} parent=11 // pred_region
        _
      $region44: #{vgg_loss.1} parent=11 // pred_fallthru
        _
    $region12: #{vgg_loss.1} parent=5 // pred_fallthru
      _
    %p274 = scmp.lt.s32.totalorder %s15, 2
    // Predicated region
    $region45: #{vgg_loss.1} parent=5 // pred_check
      %p275 = pneg %p274
    $region46: #{vgg_loss.1} parent=5 // pred_check_branch
      %277 = sbr.rel (%p275) target = $region48
    $region47: #{vgg_loss.1} parent=5 // pred_region
      // Predicated region
      $region49: #{vgg_loss.1} parent=47 // pred_check
        %p278 = pneg %p35
      $region50: #{vgg_loss.1} parent=47 // pred_check_branch
        %280 = sbr.rel (%p278) target = $region52
      $region51: #{vgg_loss.1} parent=47 // pred_region
        %p281 = scmp.lt.s32.totalorder %s15, 1
        %s282 = scalar_select %p281, %s15, 1
        %s283 = smul.addr %s282, 64
        %s284 = smul.addr %s283, 4
        %s285 = scalar_lea.vmem %s0, %s284
      $region52: #{vgg_loss.1} parent=47 // pred_fallthru
        _
    $region48: #{vgg_loss.1} parent=5 // pred_fallthru
      _
    %p286 = scmp.le.s32.totalorder 1, %s15
    %p287 = scmp.lt.s32.totalorder %s15, 3
    %p288 = pnand %p286, %p287
    %p289 = pneg %p288
    // Predicated region
    $region53: #{vgg_loss.1} parent=5 // pred_check
      _
    $region54: #{vgg_loss.1} parent=5 // pred_check_branch
      %291 = sbr.rel (%p288) target = $region56
    $region55: #{vgg_loss.1} parent=5 // pred_region
      %s292 = ssub.s32 %s15, 1
      %p293 = scmp.lt.s32.totalorder %s20, 1
      %s294 = scalar_select %p293, %s20, 1
      %s295 = smul.addr %s294, 64
      %s296 = smul.addr %s295, 4
      %s297 = scalar_lea.vmem %s0, %s296
      %p298 = pneg %p41
      %p299 = pneg %p38
      %p300 = pneg %p62
      %p301 = pneg %p59
      %p302 = pneg %p83
      %p303 = pneg %p80
      %p304 = pneg %p104
      %p305 = pneg %p101
      %p306 = pneg %p125
      %p307 = pneg %p122
      %p308 = pneg %p146
      %p309 = pneg %p143
      %p310 = pneg %p167
      %p311 = pneg %p164
      %p312 = pneg %p188
      %p313 = pneg %p185
      %p314 = pneg %p209
      %p315 = pneg %p206
      %p316 = pneg %p235
      %p317 = pneg %p232
      %p318 = scmp.lt.s32.totalorder %s20, 1
      %s319 = scalar_select %p318, %s20, 1
      %s320 = smul.addr %s319, 8
      %s321 = scalar_lea.vmem %s9, %s320
      %p322 = scmp.lt.s32.totalorder %s20, 1
      %s323 = scalar_select %p322, %s20, 1
      %s324 = smul.addr %s323, 64
      %s325 = smul.addr %s324, 4
      %s326 = scalar_lea.vmem %s0, %s325
      %p327 = scmp.lt.s32.totalorder %s20, 1
      %s328 = scalar_select %p327, %s20, 1
      %s329 = smul.addr %s328, 8
      %s330 = scalar_lea.vmem %s9, %s329
      %vm332 = vcmask 523264
      %333 = vst.msk [vmem:[#allocation2] sm:$0xff] %vm332, 0.0
      %334 = vst.msk [vmem:[#allocation2 + $0x8] sm:$0xff] %vm332, 0.0
      %vm335 = vcmask 517120
      %336 = vst.msk [vmem:[#allocation2 + $0x10] sm:$0x3] %vm335, 0.0
      %337 = vst.msk [vmem:[#allocation2 + $0x18] sm:$0xff] %vm332, 0.0
      %338 = vst.msk [vmem:[#allocation2 + $0x20] sm:$0xff] %vm332, 0.0
      %339 = vst.msk [vmem:[#allocation2 + $0x28] sm:$0x3] %vm335, 0.0
      %340 = vst.msk [vmem:[#allocation2 + $0x30] sm:$0xff] %vm332, 0.0
      %341 = vst.msk [vmem:[#allocation2 + $0x38] sm:$0xff] %vm332, 0.0
      %342 = vst.msk [vmem:[#allocation2 + $0x40] sm:$0x3] %vm335, 0.0
      %343 = vst.msk [vmem:[#allocation2 + $0x48] sm:$0xff] %vm332, 0.0
      %344 = vst.msk [vmem:[#allocation2 + $0x50] sm:$0xff] %vm332, 0.0
      %345 = vst.msk [vmem:[#allocation2 + $0x58] sm:$0x3] %vm335, 0.0
      %346 = vst.msk [vmem:[#allocation2 + $0x60] sm:$0xff] %vm332, 0.0
      %347 = vst.msk [vmem:[#allocation2 + $0x68] sm:$0xff] %vm332, 0.0
      %348 = vst.msk [vmem:[#allocation2 + $0x70] sm:$0x3] %vm335, 0.0
      %349 = vst.msk [vmem:[#allocation2 + $0x78] sm:$0xff] %vm332, 0.0
      %350 = vst.msk [vmem:[#allocation2 + $0x80] sm:$0xff] %vm332, 0.0
      %351 = vst.msk [vmem:[#allocation2 + $0x88] sm:$0x3] %vm335, 0.0
      %352 = vst.msk [vmem:[#allocation2 + $0x90] sm:$0xff] %vm332, 0.0
      %353 = vst.msk [vmem:[#allocation2 + $0x98] sm:$0xff] %vm332, 0.0
      %354 = vst.msk [vmem:[#allocation2 + $0xa0] sm:$0x3] %vm335, 0.0
      %355 = vst.msk [vmem:[#allocation2 + $0xa8] sm:$0xff] %vm332, 0.0
      %356 = vst.msk [vmem:[#allocation2 + $0xb0] sm:$0xff] %vm332, 0.0
      %357 = vst.msk [vmem:[#allocation2 + $0xb8] sm:$0x3] %vm335, 0.0
      %358 = vst.msk [vmem:[#allocation2 + $0xc0] sm:$0xff] %vm332, 0.0
      %359 = vst.msk [vmem:[#allocation2 + $0xc8] sm:$0xff] %vm332, 0.0
      %360 = vst.msk [vmem:[#allocation2 + $0xd0] sm:$0x3] %vm335, 0.0
      %361 = vst.msk [vmem:[#allocation2 + $0xd8] sm:$0xff] %vm332, 0.0
      %362 = vst.msk [vmem:[#allocation2 + $0xe0] sm:$0xff] %vm332, 0.0
      %363 = vst.msk [vmem:[#allocation2 + $0xe8] sm:$0x3] %vm335, 0.0
      %364 = vst.msk [vmem:[#allocation2 + $0xf0] sm:$0xff] %vm332, 0.0
      %365 = vst.msk [vmem:[#allocation2 + $0xf8] sm:$0xff] %vm332, 0.0
      %366 = vst.msk [vmem:[#allocation2 + $0x100] sm:$0x3] %vm335, 0.0
      %367 = vst.msk [vmem:[#allocation2 + $0x108] sm:$0xff] %vm332, 0.0
      %368 = vst.msk [vmem:[#allocation2 + $0x110] sm:$0xff] %vm332, 0.0
      %369 = vst.msk [vmem:[#allocation2 + $0x118] sm:$0x3] %vm335, 0.0
      %370 = vst.msk [vmem:[#allocation2 + $0x120] sm:$0xff] %vm332, 0.0
      %371 = vst.msk [vmem:[#allocation2 + $0x128] sm:$0xff] %vm332, 0.0
      %372 = vst.msk [vmem:[#allocation2 + $0x130] sm:$0x3] %vm335, 0.0
      %373 = vst.msk [vmem:[#allocation2 + $0x138] sm:$0xff] %vm332, 0.0
      %374 = vst.msk [vmem:[#allocation2 + $0x140] sm:$0xff] %vm332, 0.0
      %375 = vst.msk [vmem:[#allocation2 + $0x148] sm:$0x3] %vm335, 0.0
      %376 = vst.msk [vmem:[#allocation2 + $0x150] sm:$0xff] %vm332, 0.0
      %377 = vst.msk [vmem:[#allocation2 + $0x158] sm:$0xff] %vm332, 0.0
      %378 = vst.msk [vmem:[#allocation2 + $0x160] sm:$0x3] %vm335, 0.0
      %379 = vst.msk [vmem:[#allocation2 + $0x168] sm:$0xff] %vm332, 0.0
      %380 = vst.msk [vmem:[#allocation2 + $0x170] sm:$0xff] %vm332, 0.0
      %381 = vst.msk [vmem:[#allocation2 + $0x178] sm:$0x3] %vm335, 0.0
      %382 = vst.msk [vmem:[#allocation2 + $0x180] sm:$0xff] %vm332, 0.0
      %383 = vst.msk [vmem:[#allocation2 + $0x188] sm:$0xff] %vm332, 0.0
      %384 = vst.msk [vmem:[#allocation2 + $0x190] sm:$0x3] %vm335, 0.0
      %385 = vst.msk [vmem:[#allocation2 + $0x198] sm:$0xff] %vm332, 0.0
      %386 = vst.msk [vmem:[#allocation2 + $0x1a0] sm:$0xff] %vm332, 0.0
      %387 = vst.msk [vmem:[#allocation2 + $0x1a8] sm:$0x3] %vm335, 0.0
      %388 = vst.msk [vmem:[#allocation2 + $0x1b0] sm:$0xff] %vm332, 0.0
      %389 = vst.msk [vmem:[#allocation2 + $0x1b8] sm:$0xff] %vm332, 0.0
      %390 = vst.msk [vmem:[#allocation2 + $0x1c0] sm:$0x3] %vm335, 0.0
      %391 = vst.msk [vmem:[#allocation2 + $0x1c8] sm:$0xff] %vm332, 0.0
      %392 = vst.msk [vmem:[#allocation2 + $0x1d0] sm:$0xff] %vm332, 0.0
      %393 = vst.msk [vmem:[#allocation2 + $0x1d8] sm:$0x3] %vm335, 0.0
      %394 = vst.msk [vmem:[#allocation2 + $0x1e0] sm:$0xff] %vm332, 0.0
      %395 = vst.msk [vmem:[#allocation2 + $0x1e8] sm:$0xff] %vm332, 0.0
      %396 = vst.msk [vmem:[#allocation2 + $0x1f0] sm:$0x3] %vm335, 0.0
      %397 = vst.msk [vmem:[#allocation2 + $0x1f8] sm:$0xff] %vm332, 0.0
      %398 = vst.msk [vmem:[#allocation2 + $0x200] sm:$0xff] %vm332, 0.0
      %399 = vst.msk [vmem:[#allocation2 + $0x208] sm:$0x3] %vm335, 0.0
      %400 = vst.msk [vmem:[#allocation2 + $0x210] sm:$0xff] %vm332, 0.0
      %401 = vst.msk [vmem:[#allocation2 + $0x218] sm:$0xff] %vm332, 0.0
      %402 = vst.msk [vmem:[#allocation2 + $0x220] sm:$0x3] %vm335, 0.0
      %403 = vst.msk [vmem:[#allocation2 + $0x228] sm:$0xff] %vm332, 0.0
      %404 = vst.msk [vmem:[#allocation2 + $0x230] sm:$0xff] %vm332, 0.0
      %405 = vst.msk [vmem:[#allocation2 + $0x238] sm:$0x3] %vm335, 0.0
      %406 = vst.msk [vmem:[#allocation2 + $0x240] sm:$0xff] %vm332, 0.0
      %407 = vst.msk [vmem:[#allocation2 + $0x248] sm:$0xff] %vm332, 0.0
      %408 = vst.msk [vmem:[#allocation2 + $0x250] sm:$0x3] %vm335, 0.0
      %409 = vst.msk [vmem:[#allocation2 + $0x258] sm:$0xff] %vm332, 0.0
      %410 = vst.msk [vmem:[#allocation2 + $0x260] sm:$0xff] %vm332, 0.0
      %411 = vst.msk [vmem:[#allocation2 + $0x268] sm:$0x3] %vm335, 0.0
      %412 = vst.msk [vmem:[#allocation2 + $0x270] sm:$0xff] %vm332, 0.0
      %413 = vst.msk [vmem:[#allocation2 + $0x278] sm:$0xff] %vm332, 0.0
      %414 = vst.msk [vmem:[#allocation2 + $0x280] sm:$0x3] %vm335, 0.0
      %415 = vst.msk [vmem:[#allocation2 + $0x288] sm:$0xff] %vm332, 0.0
      %416 = vst.msk [vmem:[#allocation2 + $0x290] sm:$0xff] %vm332, 0.0
      %417 = vst.msk [vmem:[#allocation2 + $0x298] sm:$0x3] %vm335, 0.0
      %418 = vst.msk [vmem:[#allocation2 + $0x2a0] sm:$0xff] %vm332, 0.0
      %419 = vst.msk [vmem:[#allocation2 + $0x2a8] sm:$0xff] %vm332, 0.0
      %420 = vst.msk [vmem:[#allocation2 + $0x2b0] sm:$0x3] %vm335, 0.0
      %421 = vst.msk [vmem:[#allocation2 + $0x2b8] sm:$0xff] %vm332, 0.0
      %422 = vst.msk [vmem:[#allocation2 + $0x2c0] sm:$0xff] %vm332, 0.0
      %423 = vst.msk [vmem:[#allocation2 + $0x2c8] sm:$0x3] %vm335, 0.0
      %424 = vst.msk [vmem:[#allocation2 + $0x2d0] sm:$0xff] %vm332, 0.0
      %425 = vst.msk [vmem:[#allocation2 + $0x2d8] sm:$0xff] %vm332, 0.0
      %426 = vst.msk [vmem:[#allocation2 + $0x2e0] sm:$0x3] %vm335, 0.0
      %427 = vst.msk [vmem:[#allocation2 + $0x2e8] sm:$0xff] %vm332, 0.0
      %428 = vst.msk [vmem:[#allocation2 + $0x2f0] sm:$0xff] %vm332, 0.0
      %429 = vst.msk [vmem:[#allocation2 + $0x2f8] sm:$0x3] %vm335, 0.0
      %430 = vst.msk [vmem:[#allocation2 + $0x300] sm:$0xff] %vm332, 0.0
      %431 = vst.msk [vmem:[#allocation2 + $0x308] sm:$0xff] %vm332, 0.0
      %432 = vst.msk [vmem:[#allocation2 + $0x310] sm:$0x3] %vm335, 0.0
      %433 = vst.msk [vmem:[#allocation2 + $0x318] sm:$0xff] %vm332, 0.0
      %434 = vst.msk [vmem:[#allocation2 + $0x320] sm:$0xff] %vm332, 0.0
      %435 = vst.msk [vmem:[#allocation2 + $0x328] sm:$0x3] %vm335, 0.0
      %436 = vst.msk [vmem:[#allocation2 + $0x330] sm:$0xff] %vm332, 0.0
      %437 = vst.msk [vmem:[#allocation2 + $0x338] sm:$0xff] %vm332, 0.0
      %438 = vst.msk [vmem:[#allocation2 + $0x340] sm:$0x3] %vm335, 0.0
      %439 = vst.msk [vmem:[#allocation2 + $0x348] sm:$0xff] %vm332, 0.0
      %440 = vst.msk [vmem:[#allocation2 + $0x350] sm:$0xff] %vm332, 0.0
      %441 = vst.msk [vmem:[#allocation2 + $0x358] sm:$0x3] %vm335, 0.0
      %442 = vst.msk [vmem:[#allocation4] sm:$0xff] %vm332, 0.0
      %443 = vst.msk [vmem:[#allocation4 + $0x8] sm:$0x3] %vm335, 0.0
      %444 = vst.msk [vmem:[#allocation4 + $0x10] sm:$0xff] %vm332, 0.0
      %445 = vst.msk [vmem:[#allocation4 + $0x18] sm:$0x3] %vm335, 0.0
      %446 = vst.msk [vmem:[#allocation4 + $0x20] sm:$0xff] %vm332, 0.0
      %447 = vst.msk [vmem:[#allocation4 + $0x28] sm:$0x3] %vm335, 0.0
      %448 = vst.msk [vmem:[#allocation4 + $0x30] sm:$0xff] %vm332, 0.0
      %449 = vst.msk [vmem:[#allocation4 + $0x38] sm:$0x3] %vm335, 0.0
      %450 = vst.msk [vmem:[#allocation4 + $0x40] sm:$0xff] %vm332, 0.0
      %451 = vst.msk [vmem:[#allocation4 + $0x48] sm:$0x3] %vm335, 0.0
      %452 = vst.msk [vmem:[#allocation4 + $0x50] sm:$0xff] %vm332, 0.0
      %453 = vst.msk [vmem:[#allocation4 + $0x58] sm:$0x3] %vm335, 0.0
      %454 = vst.msk [vmem:[#allocation4 + $0x60] sm:$0xff] %vm332, 0.0
      %455 = vst.msk [vmem:[#allocation4 + $0x68] sm:$0x3] %vm335, 0.0
      %456 = vst.msk [vmem:[#allocation4 + $0x70] sm:$0xff] %vm332, 0.0
      %457 = vst.msk [vmem:[#allocation4 + $0x78] sm:$0x3] %vm335, 0.0
      %458 = vst.msk [vmem:[#allocation4 + $0x80] sm:$0xff] %vm332, 0.0
      %459 = vst.msk [vmem:[#allocation4 + $0x88] sm:$0x3] %vm335, 0.0
      %460 = vst.msk [vmem:[#allocation4 + $0x90] sm:$0xff] %vm332, 0.0
      %461 = vst.msk [vmem:[#allocation4 + $0x98] sm:$0x3] %vm335, 0.0
      %462 = vst.msk [vmem:[#allocation4 + $0xa0] sm:$0xff] %vm332, 0.0
      %463 = vst.msk [vmem:[#allocation4 + $0xa8] sm:$0x3] %vm335, 0.0
      %464 = vst.msk [vmem:[#allocation4 + $0xb0] sm:$0xff] %vm332, 0.0
      %465 = vst.msk [vmem:[#allocation4 + $0xb8] sm:$0x3] %vm335, 0.0
      %466 = vst.msk [vmem:[#allocation4 + $0xc0] sm:$0xff] %vm332, 0.0
      %467 = vst.msk [vmem:[#allocation4 + $0xc8] sm:$0x3] %vm335, 0.0
      %468 = vst.msk [vmem:[#allocation4 + $0xd0] sm:$0xff] %vm332, 0.0
      %469 = vst.msk [vmem:[#allocation4 + $0xd8] sm:$0x3] %vm335, 0.0
      %470 = vst.msk [vmem:[#allocation4 + $0xe0] sm:$0xff] %vm332, 0.0
      %471 = vst.msk [vmem:[#allocation4 + $0xe8] sm:$0x3] %vm335, 0.0
      %472 = vst.msk [vmem:[#allocation4 + $0xf0] sm:$0xff] %vm332, 0.0
      %473 = vst.msk [vmem:[#allocation4 + $0xf8] sm:$0x3] %vm335, 0.0
      %474 = vst.msk [vmem:[#allocation4 + $0x100] sm:$0xff] %vm332, 0.0
      %475 = vst.msk [vmem:[#allocation4 + $0x108] sm:$0x3] %vm335, 0.0
      %476 = vst.msk [vmem:[#allocation4 + $0x110] sm:$0xff] %vm332, 0.0
      %477 = vst.msk [vmem:[#allocation4 + $0x118] sm:$0x3] %vm335, 0.0
      %478 = vst.msk [vmem:[#allocation4 + $0x120] sm:$0xff] %vm332, 0.0
      %479 = vst.msk [vmem:[#allocation4 + $0x128] sm:$0x3] %vm335, 0.0
      %480 = vst.msk [vmem:[#allocation4 + $0x130] sm:$0xff] %vm332, 0.0
      %481 = vst.msk [vmem:[#allocation4 + $0x138] sm:$0x3] %vm335, 0.0
      %482 = vst [vmem:[#allocation5] sm:$0xff] 0.0
      %483 = vst [vmem:[#allocation5 + $0x8] sm:$0x3] 0.0
      %484 = vst [vmem:[#allocation5 + $0x10] sm:$0xff] 0.0
      %485 = vst [vmem:[#allocation5 + $0x18] sm:$0x3] 0.0
      %486 = vst [vmem:[#allocation5 + $0x20] sm:$0xff] 0.0
      %487 = vst [vmem:[#allocation5 + $0x28] sm:$0x3] 0.0
      %488 = vst [vmem:[#allocation5 + $0x30] sm:$0xff] 0.0
      %489 = vst [vmem:[#allocation5 + $0x38] sm:$0x3] 0.0
      %490 = vst [vmem:[#allocation5 + $0x40] sm:$0xff] 0.0
      %491 = vst [vmem:[#allocation5 + $0x48] sm:$0x3] 0.0
      %492 = vst [vmem:[#allocation5 + $0x50] sm:$0xff] 0.0
      %493 = vst [vmem:[#allocation5 + $0x58] sm:$0x3] 0.0
      %494 = vst [vmem:[#allocation5 + $0x60] sm:$0xff] 0.0
      %495 = vst [vmem:[#allocation5 + $0x68] sm:$0x3] 0.0
      %496 = vst [vmem:[#allocation5 + $0x70] sm:$0xff] 0.0
      %497 = vst [vmem:[#allocation5 + $0x78] sm:$0x3] 0.0
      %498 = vst [vmem:[#allocation5 + $0x80] sm:$0xff] 0.0
      %499 = vst [vmem:[#allocation5 + $0x88] sm:$0x3] 0.0
      %500 = vst [vmem:[#allocation5 + $0x90] sm:$0xff] 0.0
      %501 = vst [vmem:[#allocation5 + $0x98] sm:$0x3] 0.0
      %502 = vst [vmem:[#allocation5 + $0xa0] sm:$0xff] 0.0
      %503 = vst [vmem:[#allocation5 + $0xa8] sm:$0x3] 0.0
      %504 = vst [vmem:[#allocation5 + $0xb0] sm:$0xff] 0.0
      %505 = vst [vmem:[#allocation5 + $0xb8] sm:$0x3] 0.0
      %506 = vst [vmem:[#allocation5 + $0xc0] sm:$0xff] 0.0
      %507 = vst [vmem:[#allocation5 + $0xc8] sm:$0x3] 0.0
      %508 = vst [vmem:[#allocation5 + $0xd0] sm:$0xff] 0.0
      %509 = vst [vmem:[#allocation5 + $0xd8] sm:$0x3] 0.0
      %510 = vst [vmem:[#allocation5 + $0xe0] sm:$0xff] 0.0
      %511 = vst [vmem:[#allocation5 + $0xe8] sm:$0x3] 0.0
      %512 = vst [vmem:[#allocation5 + $0xf0] sm:$0xff] 0.0
      %513 = vst [vmem:[#allocation5 + $0xf8] sm:$0x3] 0.0
      %514 = vst [vmem:[#allocation5 + $0x100] sm:$0xff] 0.0
      %515 = vst [vmem:[#allocation5 + $0x108] sm:$0x3] 0.0
      %516 = vst [vmem:[#allocation5 + $0x110] sm:$0xff] 0.0
      %517 = vst [vmem:[#allocation5 + $0x118] sm:$0x3] 0.0
      %518 = vst [vmem:[#allocation5 + $0x120] sm:$0xff] 0.0
      %519 = vst [vmem:[#allocation5 + $0x128] sm:$0x3] 0.0
      %520 = vst [vmem:[#allocation5 + $0x130] sm:$0xff] 0.0
      %521 = vst [vmem:[#allocation5 + $0x138] sm:$0x3] 0.0
      %v522 = vld [vmem:[%s326] sm:$0xf]
      %v523 = vld [vmem:[%s326 + $0x4] sm:$0xf]
      %v524 = vld [vmem:[%s326 + $0x8] sm:$0xf]
      %v525 = vld [vmem:[%s326 + $0xc] sm:$0xf]
      %v526 = vld [vmem:[%s326 + $0x10] sm:$0xf]
      %v527 = vld [vmem:[%s326 + $0x14] sm:$0xf]
      %v528 = vld [vmem:[%s326 + $0x18] sm:$0xf]
      %v529 = vld [vmem:[%s326 + $0x1c] sm:$0xf]
      %v530 = vld [vmem:[%s326 + $0x20] sm:$0xf]
      %v531 = vld [vmem:[%s326 + $0x24] sm:$0xf]
      %v532 = vld [vmem:[%s326 + $0x28] sm:$0xf]
      %v533 = vld [vmem:[%s326 + $0x2c] sm:$0xf]
      %v534 = vld [vmem:[%s326 + $0x30] sm:$0xf]
      %v535 = vld [vmem:[%s326 + $0x34] sm:$0xf]
      %v536 = vld [vmem:[%s326 + $0x38] sm:$0xf]
      %v537 = vld [vmem:[%s326 + $0x3c] sm:$0xf]
      %v538 = vld [vmem:[%s326 + $0x40] sm:$0xf]
      %v539 = vld [vmem:[%s326 + $0x44] sm:$0xf]
      %v540 = vld [vmem:[%s326 + $0x48] sm:$0xf]
      %v541 = vld [vmem:[%s326 + $0x4c] sm:$0xf]
      %v542 = vld [vmem:[%s326 + $0x50] sm:$0xf]
      %v543 = vld [vmem:[%s326 + $0x54] sm:$0xf]
      %v544 = vld [vmem:[%s326 + $0x58] sm:$0xf]
      %v545 = vld [vmem:[%s326 + $0x5c] sm:$0xf]
      %v546 = vld [vmem:[%s326 + $0x60] sm:$0xf]
      %v547 = vld [vmem:[%s326 + $0x64] sm:$0xf]
      %v548 = vld [vmem:[%s326 + $0x68] sm:$0xf]
      %v549 = vld [vmem:[%s326 + $0x6c] sm:$0xf]
      %v550 = vld [vmem:[%s326 + $0x70] sm:$0xf]
      %v551 = vld [vmem:[%s326 + $0x74] sm:$0xf]
      %v552 = vld [vmem:[%s326 + $0x78] sm:$0xf]
      %v553 = vld [vmem:[%s326 + $0x7c] sm:$0xf]
      %v554 = vld [vmem:[%s326 + $0x80] sm:$0xf]
      %v555 = vld [vmem:[%s326 + $0x84] sm:$0xf]
      %v556 = vld [vmem:[%s326 + $0x88] sm:$0xf]
      %v557 = vld [vmem:[%s326 + $0x8c] sm:$0xf]
      %v558 = vld [vmem:[%s326 + $0x90] sm:$0xf]
      %v559 = vld [vmem:[%s326 + $0x94] sm:$0xf]
      %v560 = vld [vmem:[%s326 + $0x98] sm:$0xf]
      %v561 = vld [vmem:[%s326 + $0x9c] sm:$0xf]
      %v562 = vld [vmem:[%s326 + $0xa0] sm:$0xf]
      %v563 = vld [vmem:[%s326 + $0xa4] sm:$0xf]
      %v564 = vld [vmem:[%s326 + $0xa8] sm:$0xf]
      %v565 = vld [vmem:[%s326 + $0xac] sm:$0xf]
      %v566 = vld [vmem:[%s326 + $0xb0] sm:$0xf]
      %v567 = vld [vmem:[%s326 + $0xb4] sm:$0xf]
      %v568 = vld [vmem:[%s326 + $0xb8] sm:$0xf]
      %v569 = vld [vmem:[%s326 + $0xbc] sm:$0xf]
      %v570 = vld [vmem:[%s326 + $0xc0] sm:$0xf]
      %v571 = vld [vmem:[%s326 + $0xc4] sm:$0xf]
      %v572 = vld [vmem:[%s326 + $0xc8] sm:$0xf]
      %v573 = vld [vmem:[%s326 + $0xcc] sm:$0xf]
      %v574 = vld [vmem:[%s326 + $0xd0] sm:$0xf]
      %v575 = vld [vmem:[%s326 + $0xd4] sm:$0xf]
      %v576 = vld [vmem:[%s326 + $0xd8] sm:$0xf]
      %v577 = vld [vmem:[%s326 + $0xdc] sm:$0xf]
      %v578 = vld [vmem:[%s326 + $0xe0] sm:$0xf]
      %v579 = vld [vmem:[%s326 + $0xe4] sm:$0xf]
      %v580 = vld [vmem:[%s326 + $0xe8] sm:$0xf]
      %v581 = vld [vmem:[%s326 + $0xec] sm:$0xf]
      %v582 = vld [vmem:[%s326 + $0xf0] sm:$0xf]
      %v583 = vld [vmem:[%s326 + $0xf4] sm:$0xf]
      %v584 = vld [vmem:[%s326 + $0xf8] sm:$0xf]
      %v585 = vld [vmem:[%s326 + $0xfc] sm:$0xf]
      %v586 = vld [vmem:[%s1] sm:$0xf]
      %v587 = vld [vmem:[%s1 + $0x4] sm:$0xf]
      %v588 = vld [vmem:[%s1 + $0x8] sm:$0xf]
      %v589 = vld [vmem:[%s1 + $0xc] sm:$0x3]
      %v590 = vld [vmem:[%s2] sm:$0x1]
      %v592 = vperm.slane %v590, 0
      %v658 = vunpack.c.l.b16 %v522
      %v659 = vunpack.c.l.b16 %v523
      %v660 = vunpack.c.l.b16 %v524
      %v661 = vunpack.c.l.b16 %v525
      %v662 = vunpack.c.l.b16 %v526
      %v663 = vunpack.c.l.b16 %v527
      %v664 = vunpack.c.l.b16 %v528
      %v665 = vunpack.c.l.b16 %v529
      %v666 = vunpack.c.l.b16 %v530
      %v667 = vunpack.c.l.b16 %v531
      %v668 = vunpack.c.l.b16 %v532
      %v669 = vunpack.c.l.b16 %v533
      %v670 = vunpack.c.l.b16 %v534
      %v671 = vunpack.c.l.b16 %v535
      %v672 = vunpack.c.l.b16 %v536
      %v673 = vunpack.c.l.b16 %v537
      %v674 = vunpack.c.l.b16 %v538
      %v675 = vunpack.c.l.b16 %v539
      %v676 = vunpack.c.l.b16 %v540
      %v677 = vunpack.c.l.b16 %v541
      %v678 = vunpack.c.l.b16 %v542
      %v679 = vunpack.c.l.b16 %v543
      %v680 = vunpack.c.l.b16 %v544
      %v681 = vunpack.c.l.b16 %v545
      %v682 = vunpack.c.l.b16 %v546
      %v683 = vunpack.c.l.b16 %v547
      %v684 = vunpack.c.l.b16 %v548
      %v685 = vunpack.c.l.b16 %v549
      %v686 = vunpack.c.l.b16 %v550
      %v687 = vunpack.c.l.b16 %v551
      %v688 = vunpack.c.l.b16 %v552
      %v689 = vunpack.c.l.b16 %v553
      %v690 = vunpack.c.l.b16 %v554
      %v691 = vunpack.c.l.b16 %v555
      %v692 = vunpack.c.l.b16 %v556
      %v693 = vunpack.c.l.b16 %v557
      %v694 = vunpack.c.l.b16 %v558
      %v695 = vunpack.c.l.b16 %v559
      %v696 = vunpack.c.l.b16 %v560
      %v697 = vunpack.c.l.b16 %v561
      %v698 = vunpack.c.l.b16 %v562
      %v699 = vunpack.c.l.b16 %v563
      %v700 = vunpack.c.l.b16 %v564
      %v701 = vunpack.c.l.b16 %v565
      %v702 = vunpack.c.l.b16 %v566
      %v703 = vunpack.c.l.b16 %v567
      %v704 = vunpack.c.l.b16 %v568
      %v705 = vunpack.c.l.b16 %v569
      %v706 = vunpack.c.l.b16 %v570
      %v707 = vunpack.c.l.b16 %v571
      %v708 = vunpack.c.l.b16 %v572
      %v709 = vunpack.c.l.b16 %v573
      %v710 = vunpack.c.l.b16 %v574
      %v711 = vunpack.c.l.b16 %v575
      %v712 = vunpack.c.l.b16 %v576
      %v713 = vunpack.c.l.b16 %v577
      %v714 = vunpack.c.l.b16 %v578
      %v715 = vunpack.c.l.b16 %v579
      %v716 = vunpack.c.l.b16 %v580
      %v717 = vunpack.c.l.b16 %v581
      %v718 = vunpack.c.l.b16 %v582
      %v719 = vunpack.c.l.b16 %v583
      %v720 = vunpack.c.l.b16 %v584
      %v721 = vunpack.c.l.b16 %v585
      %v722 = vpack.c.b16 %v659, %v658
      %v723 = vpack.c.b16 %v661, %v660
      %v724 = vpack.c.b16 %v663, %v662
      %v725 = vpack.c.b16 %v665, %v664
      %v726 = vpack.c.b16 %v667, %v666
      %v727 = vpack.c.b16 %v669, %v668
      %v728 = vpack.c.b16 %v671, %v670
      %v729 = vpack.c.b16 %v673, %v672
      %v730 = vpack.c.b16 %v675, %v674
      %v731 = vpack.c.b16 %v677, %v676
      %v732 = vpack.c.b16 %v679, %v678
      %v733 = vpack.c.b16 %v681, %v680
      %v734 = vpack.c.b16 %v683, %v682
      %v735 = vpack.c.b16 %v685, %v684
      %v736 = vpack.c.b16 %v687, %v686
      %v737 = vpack.c.b16 %v689, %v688
      %v738 = vpack.c.b16 %v691, %v690
      %v739 = vpack.c.b16 %v693, %v692
      %v740 = vpack.c.b16 %v695, %v694
      %v741 = vpack.c.b16 %v697, %v696
      %v742 = vpack.c.b16 %v699, %v698
      %v743 = vpack.c.b16 %v701, %v700
      %v744 = vpack.c.b16 %v703, %v702
      %v745 = vpack.c.b16 %v705, %v704
      %v746 = vpack.c.b16 %v707, %v706
      %v747 = vpack.c.b16 %v709, %v708
      %v748 = vpack.c.b16 %v711, %v710
      %v749 = vpack.c.b16 %v713, %v712
      %v750 = vpack.c.b16 %v715, %v714
      %v751 = vpack.c.b16 %v717, %v716
      %v752 = vpack.c.b16 %v719, %v718
      %v753 = vpack.c.b16 %v721, %v720
      %v758 = vunpack.c.l.b16 %v586
      %v759 = vunpack.c.l.b16 %v587
      %v760 = vunpack.c.l.b16 %v588
      %v761 = vunpack.c.l.b16 %v589
      %v762 = vpack.c.b16 %v759, %v758
      %v763 = vpack.c.b16 %v761, %v760
      %vm765 = vcmask 220160
      %v767 = vsel %vm765, %v722, 0
      %v770 = vsel %vm765, %v723, 0
      %v773 = vsel %vm765, %v724, 0
      %v776 = vsel %vm765, %v725, 0
      %v779 = vsel %vm765, %v726, 0
      %v782 = vsel %vm765, %v727, 0
      %v785 = vsel %vm765, %v728, 0
      %v788 = vsel %vm765, %v729, 0
      %v791 = vsel %vm765, %v730, 0
      %v794 = vsel %vm765, %v731, 0
      %v797 = vsel %vm765, %v732, 0
      %v800 = vsel %vm765, %v733, 0
      %v803 = vsel %vm765, %v734, 0
      %v806 = vsel %vm765, %v735, 0
      %v809 = vsel %vm765, %v736, 0
      %v812 = vsel %vm765, %v737, 0
      %v815 = vsel %vm765, %v738, 0
      %v818 = vsel %vm765, %v739, 0
      %v821 = vsel %vm765, %v740, 0
      %v824 = vsel %vm765, %v741, 0
      %v827 = vsel %vm765, %v742, 0
      %v830 = vsel %vm765, %v743, 0
      %v833 = vsel %vm765, %v744, 0
      %v836 = vsel %vm765, %v745, 0
      %v839 = vsel %vm765, %v746, 0
      %v842 = vsel %vm765, %v747, 0
      %v845 = vsel %vm765, %v748, 0
      %v848 = vsel %vm765, %v749, 0
      %v851 = vsel %vm765, %v750, 0
      %v854 = vsel %vm765, %v751, 0
      %v857 = vsel %vm765, %v752, 0
      %v860 = vsel %vm765, %v753, 0
      %vm862 = vcmask 1044480
      %vm863 = vcmask 1045504
      %v864 = vsel %vm862, 4294967295, 65535
      %v865 = vsel %vm863, %v864, 0
      %v867 = vand.u32 %v763, %v865
      %869 = vmatpush.bf16.msra.mxu0 0
      %870 = vmatpush.bf16.msra.mxu0 0
      %871 = vmatpush.bf16.msra.mxu0 0
      %872 = vmatpush.bf16.msra.mxu0 0
      %873 = vmatpush.bf16.msra.mxu0 0
      %874 = vmatpush.bf16.msra.mxu0 0
      %875 = vmatpush.bf16.msra.mxu0 %v867
      %876 = vmatpush.bf16.msra.mxu0 %v762
      %877 = vmatmul.bf16.gmra.mxu0 %v767
      %v878 = vpop.f32.mrf.mxu0
      %v879 = vadd.f32 %v592, %v878
      %v880 = vpop.f32.mrf.mxu0
      %v881 = vadd.f32 %v592, %v880
      %882 = vmatmul.bf16.gmra.mxu0 %v770
      %v883 = vpop.f32.mrf.mxu0
      %v884 = vadd.f32 %v592, %v883
      %v885 = vpop.f32.mrf.mxu0
      %v886 = vadd.f32 %v592, %v885
      %887 = vmatmul.bf16.gmra.mxu0 %v773
      %v888 = vpop.f32.mrf.mxu0
      %v889 = vadd.f32 %v592, %v888
      %v890 = vpop.f32.mrf.mxu0
      %v891 = vadd.f32 %v592, %v890
      %892 = vmatmul.bf16.gmra.mxu0 %v776
      %v893 = vpop.f32.mrf.mxu0
      %v894 = vadd.f32 %v592, %v893
      %v895 = vpop.f32.mrf.mxu0
      %v896 = vadd.f32 %v592, %v895
      %897 = vmatmul.bf16.gmra.mxu0 %v779
      %v898 = vpop.f32.mrf.mxu0
      %v899 = vadd.f32 %v592, %v898
      %v900 = vpop.f32.mrf.mxu0
      %v901 = vadd.f32 %v592, %v900
      %902 = vmatmul.bf16.gmra.mxu0 %v782
      %v903 = vpop.f32.mrf.mxu0
      %v904 = vadd.f32 %v592, %v903
      %v905 = vpop.f32.mrf.mxu0
      %v906 = vadd.f32 %v592, %v905
      %907 = vmatmul.bf16.gmra.mxu0 %v785
      %v908 = vpop.f32.mrf.mxu0
      %v909 = vadd.f32 %v592, %v908
      %v910 = vpop.f32.mrf.mxu0
      %v911 = vadd.f32 %v592, %v910
      %912 = vmatmul.bf16.gmra.mxu0 %v788
      %v913 = vpop.f32.mrf.mxu0
      %v914 = vadd.f32 %v592, %v913
      %v915 = vpop.f32.mrf.mxu0
      %v916 = vadd.f32 %v592, %v915
      %917 = vmatmul.bf16.gmra.mxu0 %v791
      %v918 = vpop.f32.mrf.mxu0
      %v919 = vadd.f32 %v592, %v918
      %v920 = vpop.f32.mrf.mxu0
      %v921 = vadd.f32 %v592, %v920
      %922 = vmatmul.bf16.gmra.mxu0 %v794
      %v923 = vpop.f32.mrf.mxu0
      %v924 = vadd.f32 %v592, %v923
      %v925 = vpop.f32.mrf.mxu0
      %v926 = vadd.f32 %v592, %v925
      %927 = vmatmul.bf16.gmra.mxu0 %v797
      %v928 = vpop.f32.mrf.mxu0
      %v929 = vadd.f32 %v592, %v928
      %v930 = vpop.f32.mrf.mxu0
      %v931 = vadd.f32 %v592, %v930
      %932 = vmatmul.bf16.gmra.mxu0 %v800
      %v933 = vpop.f32.mrf.mxu0
      %v934 = vadd.f32 %v592, %v933
      %v935 = vpop.f32.mrf.mxu0
      %v936 = vadd.f32 %v592, %v935
      %937 = vmatmul.bf16.gmra.mxu0 %v803
      %v938 = vpop.f32.mrf.mxu0
      %v939 = vadd.f32 %v592, %v938
      %v940 = vpop.f32.mrf.mxu0
      %v941 = vadd.f32 %v592, %v940
      %942 = vmatmul.bf16.gmra.mxu0 %v806
      %v943 = vpop.f32.mrf.mxu0
      %v944 = vadd.f32 %v592, %v943
      %v945 = vpop.f32.mrf.mxu0
      %v946 = vadd.f32 %v592, %v945
      %947 = vmatmul.bf16.gmra.mxu0 %v809
      %v948 = vpop.f32.mrf.mxu0
      %v949 = vadd.f32 %v592, %v948
      %v950 = vpop.f32.mrf.mxu0
      %v951 = vadd.f32 %v592, %v950
      %952 = vmatmul.bf16.gmra.mxu0 %v812
      %v953 = vpop.f32.mrf.mxu0
      %v954 = vadd.f32 %v592, %v953
      %v955 = vpop.f32.mrf.mxu0
      %v956 = vadd.f32 %v592, %v955
      %957 = vmatmul.bf16.gmra.mxu0 %v815
      %v958 = vpop.f32.mrf.mxu0
      %v959 = vadd.f32 %v592, %v958
      %v960 = vpop.f32.mrf.mxu0
      %v961 = vadd.f32 %v592, %v960
      %962 = vmatmul.bf16.gmra.mxu0 %v818
      %v963 = vpop.f32.mrf.mxu0
      %v964 = vadd.f32 %v592, %v963
      %v965 = vpop.f32.mrf.mxu0
      %v966 = vadd.f32 %v592, %v965
      %967 = vmatmul.bf16.gmra.mxu0 %v821
      %v968 = vpop.f32.mrf.mxu0
      %v969 = vadd.f32 %v592, %v968
      %v970 = vpop.f32.mrf.mxu0
      %v971 = vadd.f32 %v592, %v970
      %972 = vmatmul.bf16.gmra.mxu0 %v824
      %v973 = vpop.f32.mrf.mxu0
      %v974 = vadd.f32 %v592, %v973
      %v975 = vpop.f32.mrf.mxu0
      %v976 = vadd.f32 %v592, %v975
      %977 = vmatmul.bf16.gmra.mxu0 %v827
      %v978 = vpop.f32.mrf.mxu0
      %v979 = vadd.f32 %v592, %v978
      %v980 = vpop.f32.mrf.mxu0
      %v981 = vadd.f32 %v592, %v980
      %982 = vmatmul.bf16.gmra.mxu0 %v830
      %v983 = vpop.f32.mrf.mxu0
      %v984 = vadd.f32 %v592, %v983
      %v985 = vpop.f32.mrf.mxu0
      %v986 = vadd.f32 %v592, %v985
      %987 = vmatmul.bf16.gmra.mxu0 %v833
      %v988 = vpop.f32.mrf.mxu0
      %v989 = vadd.f32 %v592, %v988
      %v990 = vpop.f32.mrf.mxu0
      %v991 = vadd.f32 %v592, %v990
      %992 = vmatmul.bf16.gmra.mxu0 %v836
      %v993 = vpop.f32.mrf.mxu0
      %v994 = vadd.f32 %v592, %v993
      %v995 = vpop.f32.mrf.mxu0
      %v996 = vadd.f32 %v592, %v995
      %997 = vmatmul.bf16.gmra.mxu0 %v839
      %v998 = vpop.f32.mrf.mxu0
      %v999 = vadd.f32 %v592, %v998
      %v1000 = vpop.f32.mrf.mxu0
      %v1001 = vadd.f32 %v592, %v1000
      %1002 = vmatmul.bf16.gmra.mxu0 %v842
      %v1003 = vpop.f32.mrf.mxu0
      %v1004 = vadd.f32 %v592, %v1003
      %v1005 = vpop.f32.mrf.mxu0
      %v1006 = vadd.f32 %v592, %v1005
      %1007 = vmatmul.bf16.gmra.mxu0 %v845
      %v1008 = vpop.f32.mrf.mxu0
      %v1009 = vadd.f32 %v592, %v1008
      %v1010 = vpop.f32.mrf.mxu0
      %v1011 = vadd.f32 %v592, %v1010
      %1012 = vmatmul.bf16.gmra.mxu0 %v848
      %v1013 = vpop.f32.mrf.mxu0
      %v1014 = vadd.f32 %v592, %v1013
      %v1015 = vpop.f32.mrf.mxu0
      %v1016 = vadd.f32 %v592, %v1015
      %1017 = vmatmul.bf16.gmra.mxu0 %v851
      %v1018 = vpop.f32.mrf.mxu0
      %v1019 = vadd.f32 %v592, %v1018
      %v1020 = vpop.f32.mrf.mxu0
      %v1021 = vadd.f32 %v592, %v1020
      %1022 = vmatmul.bf16.gmra.mxu0 %v854
      %v1023 = vpop.f32.mrf.mxu0
      %v1024 = vadd.f32 %v592, %v1023
      %v1025 = vpop.f32.mrf.mxu0
      %v1026 = vadd.f32 %v592, %v1025
      %1027 = vmatmul.bf16.gmra.mxu0 %v857
      %v1028 = vpop.f32.mrf.mxu0
      %v1029 = vadd.f32 %v592, %v1028
      %v1030 = vpop.f32.mrf.mxu0
      %v1031 = vadd.f32 %v592, %v1030
      %1032 = vmatmul.bf16.gmra.mxu0 %v860
      %v1033 = vpop.f32.mrf.mxu0
      %v1034 = vadd.f32 %v592, %v1033
      %v1035 = vpop.f32.mrf.mxu0
      %v1036 = vadd.f32 %v592, %v1035
      %1037 = vdwg.mxu0
      %v1038 = vmax.f32 %v879, 0.0
      %v1039 = vmax.f32 %v881, 0.0
      %v1040 = vmax.f32 %v884, 0.0
      %v1041 = vmax.f32 %v886, 0.0
      %v1042 = vmax.f32 %v889, 0.0
      %v1043 = vmax.f32 %v891, 0.0
      %v1044 = vmax.f32 %v894, 0.0
      %v1045 = vmax.f32 %v896, 0.0
      %v1046 = vmax.f32 %v899, 0.0
      %v1047 = vmax.f32 %v901, 0.0
      %v1048 = vmax.f32 %v904, 0.0
      %v1049 = vmax.f32 %v906, 0.0
      %v1050 = vmax.f32 %v909, 0.0
      %v1051 = vmax.f32 %v911, 0.0
      %v1052 = vmax.f32 %v914, 0.0
      %v1053 = vmax.f32 %v916, 0.0
      %v1054 = vmax.f32 %v919, 0.0
      %v1055 = vmax.f32 %v921, 0.0
      %v1056 = vmax.f32 %v924, 0.0
      %v1057 = vmax.f32 %v926, 0.0
      %v1058 = vmax.f32 %v929, 0.0
      %v1059 = vmax.f32 %v931, 0.0
      %v1060 = vmax.f32 %v934, 0.0
      %v1061 = vmax.f32 %v936, 0.0
      %v1062 = vmax.f32 %v939, 0.0
      %v1063 = vmax.f32 %v941, 0.0
      %v1064 = vmax.f32 %v944, 0.0
      %v1065 = vmax.f32 %v946, 0.0
      %v1066 = vmax.f32 %v949, 0.0
      %v1067 = vmax.f32 %v951, 0.0
      %v1068 = vmax.f32 %v954, 0.0
      %v1069 = vmax.f32 %v956, 0.0
      %v1070 = vmax.f32 %v959, 0.0
      %v1071 = vmax.f32 %v961, 0.0
      %v1072 = vmax.f32 %v964, 0.0
      %v1073 = vmax.f32 %v966, 0.0
      %v1074 = vmax.f32 %v969, 0.0
      %v1075 = vmax.f32 %v971, 0.0
      %v1076 = vmax.f32 %v974, 0.0
      %v1077 = vmax.f32 %v976, 0.0
      %v1078 = vmax.f32 %v979, 0.0
      %v1079 = vmax.f32 %v981, 0.0
      %v1080 = vmax.f32 %v984, 0.0
      %v1081 = vmax.f32 %v986, 0.0
      %v1082 = vmax.f32 %v989, 0.0
      %v1083 = vmax.f32 %v991, 0.0
      %v1084 = vmax.f32 %v994, 0.0
      %v1085 = vmax.f32 %v996, 0.0
      %v1086 = vmax.f32 %v999, 0.0
      %v1087 = vmax.f32 %v1001, 0.0
      %v1088 = vmax.f32 %v1004, 0.0
      %v1089 = vmax.f32 %v1006, 0.0
      %v1090 = vmax.f32 %v1009, 0.0
      %v1091 = vmax.f32 %v1011, 0.0
      %v1092 = vmax.f32 %v1014, 0.0
      %v1093 = vmax.f32 %v1016, 0.0
      %v1094 = vmax.f32 %v1019, 0.0
      %v1095 = vmax.f32 %v1021, 0.0
      %v1096 = vmax.f32 %v1024, 0.0
      %v1097 = vmax.f32 %v1026, 0.0
      %v1098 = vmax.f32 %v1029, 0.0
      %v1099 = vmax.f32 %v1031, 0.0
      %v1100 = vmax.f32 %v1034, 0.0
      %v1101 = vmax.f32 %v1036, 0.0
      %s1102 = scalar_lea.vmem [#allocation2], 24
      %1103 = vst.msk [vmem:[%s1102 + $0x1] sm:$0xff] %vm332, %v1038
      %1104 = vst.msk [vmem:[%s1102 + $0x9] sm:$0xff] %vm332, %v1039
      %1105 = vst.msk [vmem:[%s1102 + $0x19] sm:$0xff] %vm332, %v1040
      %1106 = vst.msk [vmem:[%s1102 + $0x21] sm:$0xff] %vm332, %v1041
      %1107 = vst.msk [vmem:[%s1102 + $0x31] sm:$0xff] %vm332, %v1042
      %1108 = vst.msk [vmem:[%s1102 + $0x39] sm:$0xff] %vm332, %v1043
      %1109 = vst.msk [vmem:[%s1102 + $0x49] sm:$0xff] %vm332, %v1044
      %1110 = vst.msk [vmem:[%s1102 + $0x51] sm:$0xff] %vm332, %v1045
      %1111 = vst.msk [vmem:[%s1102 + $0x61] sm:$0xff] %vm332, %v1046
      %1112 = vst.msk [vmem:[%s1102 + $0x69] sm:$0xff] %vm332, %v1047
      %1113 = vst.msk [vmem:[%s1102 + $0x79] sm:$0xff] %vm332, %v1048
      %1114 = vst.msk [vmem:[%s1102 + $0x81] sm:$0xff] %vm332, %v1049
      %1115 = vst.msk [vmem:[%s1102 + $0x91] sm:$0xff] %vm332, %v1050
      %1116 = vst.msk [vmem:[%s1102 + $0x99] sm:$0xff] %vm332, %v1051
      %1117 = vst.msk [vmem:[%s1102 + $0xa9] sm:$0xff] %vm332, %v1052
      %1118 = vst.msk [vmem:[%s1102 + $0xb1] sm:$0xff] %vm332, %v1053
      %1119 = vst.msk [vmem:[%s1102 + $0xc1] sm:$0xff] %vm332, %v1054
      %1120 = vst.msk [vmem:[%s1102 + $0xc9] sm:$0xff] %vm332, %v1055
      %1121 = vst.msk [vmem:[%s1102 + $0xd9] sm:$0xff] %vm332, %v1056
      %1122 = vst.msk [vmem:[%s1102 + $0xe1] sm:$0xff] %vm332, %v1057
      %1123 = vst.msk [vmem:[%s1102 + $0xf1] sm:$0xff] %vm332, %v1058
      %1124 = vst.msk [vmem:[%s1102 + $0xf9] sm:$0xff] %vm332, %v1059
      %1125 = vst.msk [vmem:[%s1102 + $0x109] sm:$0xff] %vm332, %v1060
      %1126 = vst.msk [vmem:[%s1102 + $0x111] sm:$0xff] %vm332, %v1061
      %1127 = vst.msk [vmem:[%s1102 + $0x121] sm:$0xff] %vm332, %v1062
      %1128 = vst.msk [vmem:[%s1102 + $0x129] sm:$0xff] %vm332, %v1063
      %1129 = vst.msk [vmem:[%s1102 + $0x139] sm:$0xff] %vm332, %v1064
      %1130 = vst.msk [vmem:[%s1102 + $0x141] sm:$0xff] %vm332, %v1065
      %1131 = vst.msk [vmem:[%s1102 + $0x151] sm:$0xff] %vm332, %v1066
      %1132 = vst.msk [vmem:[%s1102 + $0x159] sm:$0xff] %vm332, %v1067
      %1133 = vst.msk [vmem:[%s1102 + $0x169] sm:$0xff] %vm332, %v1068
      %1134 = vst.msk [vmem:[%s1102 + $0x171] sm:$0xff] %vm332, %v1069
      %1135 = vst.msk [vmem:[%s1102 + $0x1b1] sm:$0xff] %vm332, %v1070
      %1136 = vst.msk [vmem:[%s1102 + $0x1b9] sm:$0xff] %vm332, %v1071
      %1137 = vst.msk [vmem:[%s1102 + $0x1c9] sm:$0xff] %vm332, %v1072
      %1138 = vst.msk [vmem:[%s1102 + $0x1d1] sm:$0xff] %vm332, %v1073
      %1139 = vst.msk [vmem:[%s1102 + $0x1e1] sm:$0xff] %vm332, %v1074
      %1140 = vst.msk [vmem:[%s1102 + $0x1e9] sm:$0xff] %vm332, %v1075
      %1141 = vst.msk [vmem:[%s1102 + $0x1f9] sm:$0xff] %vm332, %v1076
      %1142 = vst.msk [vmem:[%s1102 + $0x201] sm:$0xff] %vm332, %v1077
      %1143 = vst.msk [vmem:[%s1102 + $0x211] sm:$0xff] %vm332, %v1078
      %1144 = vst.msk [vmem:[%s1102 + $0x219] sm:$0xff] %vm332, %v1079
      %1145 = vst.msk [vmem:[%s1102 + $0x229] sm:$0xff] %vm332, %v1080
      %1146 = vst.msk [vmem:[%s1102 + $0x231] sm:$0xff] %vm332, %v1081
      %1147 = vst.msk [vmem:[%s1102 + $0x241] sm:$0xff] %vm332, %v1082
      %1148 = vst.msk [vmem:[%s1102 + $0x249] sm:$0xff] %vm332, %v1083
      %1149 = vst.msk [vmem:[%s1102 + $0x259] sm:$0xff] %vm332, %v1084
      %1150 = vst.msk [vmem:[%s1102 + $0x261] sm:$0xff] %vm332, %v1085
      %1151 = vst.msk [vmem:[%s1102 + $0x271] sm:$0xff] %vm332, %v1086
      %1152 = vst.msk [vmem:[%s1102 + $0x279] sm:$0xff] %vm332, %v1087
      %1153 = vst.msk [vmem:[%s1102 + $0x289] sm:$0xff] %vm332, %v1088
      %1154 = vst.msk [vmem:[%s1102 + $0x291] sm:$0xff] %vm332, %v1089
      %1155 = vst.msk [vmem:[%s1102 + $0x2a1] sm:$0xff] %vm332, %v1090
      %1156 = vst.msk [vmem:[%s1102 + $0x2a9] sm:$0xff] %vm332, %v1091
      %1157 = vst.msk [vmem:[%s1102 + $0x2b9] sm:$0xff] %vm332, %v1092
      %1158 = vst.msk [vmem:[%s1102 + $0x2c1] sm:$0xff] %vm332, %v1093
      %1159 = vst.msk [vmem:[%s1102 + $0x2d1] sm:$0xff] %vm332, %v1094
      %1160 = vst.msk [vmem:[%s1102 + $0x2d9] sm:$0xff] %vm332, %v1095
      %1161 = vst.msk [vmem:[%s1102 + $0x2e9] sm:$0xff] %vm332, %v1096
      %1162 = vst.msk [vmem:[%s1102 + $0x2f1] sm:$0xff] %vm332, %v1097
      %1163 = vst.msk [vmem:[%s1102 + $0x301] sm:$0xff] %vm332, %v1098
      %1164 = vst.msk [vmem:[%s1102 + $0x309] sm:$0xff] %vm332, %v1099
      %1165 = vst.msk [vmem:[%s1102 + $0x319] sm:$0xff] %vm332, %v1100
      %1166 = vst.msk [vmem:[%s1102 + $0x321] sm:$0xff] %vm332, %v1101
      %v1167 = vld [vmem:[#allocation2] sm:$0xff]
      %v1168 = vld [vmem:[#allocation2 + $0x8] sm:$0xff]
      %v1169 = vld [vmem:[#allocation2 + $0x18] sm:$0xff]
      %v1170 = vld [vmem:[#allocation2 + $0x20] sm:$0xff]
      %v1171 = vld [vmem:[#allocation2 + $0x30] sm:$0xff]
      %v1172 = vld [vmem:[#allocation2 + $0x38] sm:$0xff]
      %v1173 = vld [vmem:[#allocation2 + $0x48] sm:$0xff]
      %v1174 = vld [vmem:[#allocation2 + $0x50] sm:$0xff]
      %v1175 = vld [vmem:[#allocation2 + $0x60] sm:$0xff]
      %v1176 = vld [vmem:[#allocation2 + $0x68] sm:$0xff]
      %v1177 = vld [vmem:[#allocation2 + $0x78] sm:$0xff]
      %v1178 = vld [vmem:[#allocation2 + $0x80] sm:$0xff]
      %v1179 = vld [vmem:[#allocation2 + $0x90] sm:$0xff]
      %v1180 = vld [vmem:[#allocation2 + $0x98] sm:$0xff]
      %v1181 = vld [vmem:[#allocation2 + $0xa8] sm:$0xff]
      %v1182 = vld [vmem:[#allocation2 + $0xb0] sm:$0xff]
      %v1183 = vld [vmem:[#allocation2 + $0xc0] sm:$0xff]
      %v1184 = vld [vmem:[#allocation2 + $0xc8] sm:$0xff]
      %v1185 = vld [vmem:[#allocation2 + $0xd8] sm:$0xff]
      %v1186 = vld [vmem:[#allocation2 + $0xe0] sm:$0xff]
      %v1187 = vld [vmem:[#allocation2 + $0xf0] sm:$0xff]
      %v1188 = vld [vmem:[#allocation2 + $0xf8] sm:$0xff]
      %v1189 = vld [vmem:[#allocation2 + $0x108] sm:$0xff]
      %v1190 = vld [vmem:[#allocation2 + $0x110] sm:$0xff]
      %v1191 = vld [vmem:[#allocation2 + $0x120] sm:$0xff]
      %v1192 = vld [vmem:[#allocation2 + $0x128] sm:$0xff]
      %v1193 = vld [vmem:[#allocation2 + $0x138] sm:$0xff]
      %v1194 = vld [vmem:[#allocation2 + $0x140] sm:$0xff]
      %v1195 = vld [vmem:[#allocation2 + $0x150] sm:$0xff]
      %v1196 = vld [vmem:[#allocation2 + $0x158] sm:$0xff]
      %v1197 = vld [vmem:[#allocation2 + $0x168] sm:$0xff]
      %v1198 = vld [vmem:[#allocation2 + $0x170] sm:$0xff]
      %v1199 = vpack.c.bf16 %v1167, %v1167
      %v1200 = vpack.c.bf16 %v1168, %v1168
      %v1201 = vpack.c.bf16 %v1169, %v1169
      %v1202 = vpack.c.bf16 %v1170, %v1170
      %v1203 = vpack.c.bf16 %v1171, %v1171
      %v1204 = vpack.c.bf16 %v1172, %v1172
      %v1205 = vpack.c.bf16 %v1173, %v1173
      %v1206 = vpack.c.bf16 %v1174, %v1174
      %v1207 = vpack.c.bf16 %v1175, %v1175
      %v1208 = vpack.c.bf16 %v1176, %v1176
      %v1209 = vpack.c.bf16 %v1177, %v1177
      %v1210 = vpack.c.bf16 %v1178, %v1178
      %v1211 = vpack.c.bf16 %v1179, %v1179
      %v1212 = vpack.c.bf16 %v1180, %v1180
      %v1213 = vpack.c.bf16 %v1181, %v1181
      %v1214 = vpack.c.bf16 %v1182, %v1182
      %v1215 = vpack.c.bf16 %v1183, %v1183
      %v1216 = vpack.c.bf16 %v1184, %v1184
      %v1217 = vpack.c.bf16 %v1185, %v1185
      %v1218 = vpack.c.bf16 %v1186, %v1186
      %v1219 = vpack.c.bf16 %v1187, %v1187
      %v1220 = vpack.c.bf16 %v1188, %v1188
      %v1221 = vpack.c.bf16 %v1189, %v1189
      %v1222 = vpack.c.bf16 %v1190, %v1190
      %v1223 = vpack.c.bf16 %v1191, %v1191
      %v1224 = vpack.c.bf16 %v1192, %v1192
      %v1225 = vpack.c.bf16 %v1193, %v1193
      %v1226 = vpack.c.bf16 %v1194, %v1194
      %v1227 = vpack.c.bf16 %v1195, %v1195
      %v1228 = vpack.c.bf16 %v1196, %v1196
      %v1229 = vpack.c.bf16 %v1197, %v1197
      %v1230 = vpack.c.bf16 %v1198, %v1198
      %v1231 = vld [vmem:[#allocation2 + $0x1] sm:$0xff]
      %v1232 = vld [vmem:[#allocation2 + $0x9] sm:$0xff]
      %v1233 = vld [vmem:[#allocation2 + $0x19] sm:$0xff]
      %v1234 = vld [vmem:[#allocation2 + $0x21] sm:$0xff]
      %v1235 = vld [vmem:[#allocation2 + $0x31] sm:$0xff]
      %v1236 = vld [vmem:[#allocation2 + $0x39] sm:$0xff]
      %v1237 = vld [vmem:[#allocation2 + $0x49] sm:$0xff]
      %v1238 = vld [vmem:[#allocation2 + $0x51] sm:$0xff]
      %v1239 = vld [vmem:[#allocation2 + $0x61] sm:$0xff]
      %v1240 = vld [vmem:[#allocation2 + $0x69] sm:$0xff]
      %v1241 = vld [vmem:[#allocation2 + $0x79] sm:$0xff]
      %v1242 = vld [vmem:[#allocation2 + $0x81] sm:$0xff]
      %v1243 = vld [vmem:[#allocation2 + $0x91] sm:$0xff]
      %v1244 = vld [vmem:[#allocation2 + $0x99] sm:$0xff]
      %v1245 = vld [vmem:[#allocation2 + $0xa9] sm:$0xff]
      %v1246 = vld [vmem:[#allocation2 + $0xb1] sm:$0xff]
      %v1247 = vld [vmem:[#allocation2 + $0xc1] sm:$0xff]
      %v1248 = vld [vmem:[#allocation2 + $0xc9] sm:$0xff]
      %v1249 = vld [vmem:[#allocation2 + $0xd9] sm:$0xff]
      %v1250 = vld [vmem:[#allocation2 + $0xe1] sm:$0xff]
      %v1251 = vld [vmem:[#allocation2 + $0xf1] sm:$0xff]
      %v1252 = vld [vmem:[#allocation2 + $0xf9] sm:$0xff]
      %v1253 = vld [vmem:[#allocation2 + $0x109] sm:$0xff]
      %v1254 = vld [vmem:[#allocation2 + $0x111] sm:$0xff]
      %v1255 = vld [vmem:[#allocation2 + $0x121] sm:$0xff]
      %v1256 = vld [vmem:[#allocation2 + $0x129] sm:$0xff]
      %v1257 = vld [vmem:[#allocation2 + $0x139] sm:$0xff]
      %v1258 = vld [vmem:[#allocation2 + $0x141] sm:$0xff]
      %v1259 = vld [vmem:[#allocation2 + $0x151] sm:$0xff]
      %v1260 = vld [vmem:[#allocation2 + $0x159] sm:$0xff]
      %v1261 = vld [vmem:[#allocation2 + $0x169] sm:$0xff]
      %v1262 = vld [vmem:[#allocation2 + $0x171] sm:$0xff]
      %v1263 = vpack.c.bf16 %v1231, %v1231
      %v1264 = vpack.c.bf16 %v1232, %v1232
      %v1265 = vpack.c.bf16 %v1233, %v1233
      %v1266 = vpack.c.bf16 %v1234, %v1234
      %v1267 = vpack.c.bf16 %v1235, %v1235
      %v1268 = vpack.c.bf16 %v1236, %v1236
      %v1269 = vpack.c.bf16 %v1237, %v1237
      %v1270 = vpack.c.bf16 %v1238, %v1238
      %v1271 = vpack.c.bf16 %v1239, %v1239
      %v1272 = vpack.c.bf16 %v1240, %v1240
      %v1273 = vpack.c.bf16 %v1241, %v1241
      %v1274 = vpack.c.bf16 %v1242, %v1242
      %v1275 = vpack.c.bf16 %v1243, %v1243
      %v1276 = vpack.c.bf16 %v1244, %v1244
      %v1277 = vpack.c.bf16 %v1245, %v1245
      %v1278 = vpack.c.bf16 %v1246, %v1246
      %v1279 = vpack.c.bf16 %v1247, %v1247
      %v1280 = vpack.c.bf16 %v1248, %v1248
      %v1281 = vpack.c.bf16 %v1249, %v1249
      %v1282 = vpack.c.bf16 %v1250, %v1250
      %v1283 = vpack.c.bf16 %v1251, %v1251
      %v1284 = vpack.c.bf16 %v1252, %v1252
      %v1285 = vpack.c.bf16 %v1253, %v1253
      %v1286 = vpack.c.bf16 %v1254, %v1254
      %v1287 = vpack.c.bf16 %v1255, %v1255
      %v1288 = vpack.c.bf16 %v1256, %v1256
      %v1289 = vpack.c.bf16 %v1257, %v1257
      %v1290 = vpack.c.bf16 %v1258, %v1258
      %v1291 = vpack.c.bf16 %v1259, %v1259
      %v1292 = vpack.c.bf16 %v1260, %v1260
      %v1293 = vpack.c.bf16 %v1261, %v1261
      %v1294 = vpack.c.bf16 %v1262, %v1262
      %v1295 = vld [vmem:[#allocation2 + $0x2] sm:$0xff]
      %v1296 = vld [vmem:[#allocation2 + $0xa] sm:$0xff]
      %v1297 = vld [vmem:[#allocation2 + $0x1a] sm:$0xff]
      %v1298 = vld [vmem:[#allocation2 + $0x22] sm:$0xff]
      %v1299 = vld [vmem:[#allocation2 + $0x32] sm:$0xff]
      %v1300 = vld [vmem:[#allocation2 + $0x3a] sm:$0xff]
      %v1301 = vld [vmem:[#allocation2 + $0x4a] sm:$0xff]
      %v1302 = vld [vmem:[#allocation2 + $0x52] sm:$0xff]
      %v1303 = vld [vmem:[#allocation2 + $0x62] sm:$0xff]
      %v1304 = vld [vmem:[#allocation2 + $0x6a] sm:$0xff]
      %v1305 = vld [vmem:[#allocation2 + $0x7a] sm:$0xff]
      %v1306 = vld [vmem:[#allocation2 + $0x82] sm:$0xff]
      %v1307 = vld [vmem:[#allocation2 + $0x92] sm:$0xff]
      %v1308 = vld [vmem:[#allocation2 + $0x9a] sm:$0xff]
      %v1309 = vld [vmem:[#allocation2 + $0xaa] sm:$0xff]
      %v1310 = vld [vmem:[#allocation2 + $0xb2] sm:$0xff]
      %v1311 = vld [vmem:[#allocation2 + $0xc2] sm:$0xff]
      %v1312 = vld [vmem:[#allocation2 + $0xca] sm:$0xff]
      %v1313 = vld [vmem:[#allocation2 + $0xda] sm:$0xff]
      %v1314 = vld [vmem:[#allocation2 + $0xe2] sm:$0xff]
      %v1315 = vld [vmem:[#allocation2 + $0xf2] sm:$0xff]
      %v1316 = vld [vmem:[#allocation2 + $0xfa] sm:$0xff]
      %v1317 = vld [vmem:[#allocation2 + $0x10a] sm:$0xff]
      %v1318 = vld [vmem:[#allocation2 + $0x112] sm:$0xff]
      %v1319 = vld [vmem:[#allocation2 + $0x122] sm:$0xff]
      %v1320 = vld [vmem:[#allocation2 + $0x12a] sm:$0xff]
      %v1321 = vld [vmem:[#allocation2 + $0x13a] sm:$0xff]
      %v1322 = vld [vmem:[#allocation2 + $0x142] sm:$0xff]
      %v1323 = vld [vmem:[#allocation2 + $0x152] sm:$0xff]
      %v1324 = vld [vmem:[#allocation2 + $0x15a] sm:$0xff]
      %v1325 = vld [vmem:[#allocation2 + $0x16a] sm:$0xff]
      %v1326 = vld [vmem:[#allocation2 + $0x172] sm:$0xff]
      %v1327 = vpack.c.bf16 %v1295, %v1295
      %v1328 = vpack.c.bf16 %v1296, %v1296
      %v1329 = vpack.c.bf16 %v1297, %v1297
      %v1330 = vpack.c.bf16 %v1298, %v1298
      %v1331 = vpack.c.bf16 %v1299, %v1299
      %v1332 = vpack.c.bf16 %v1300, %v1300
      %v1333 = vpack.c.bf16 %v1301, %v1301
      %v1334 = vpack.c.bf16 %v1302, %v1302
      %v1335 = vpack.c.bf16 %v1303, %v1303
      %v1336 = vpack.c.bf16 %v1304, %v1304
      %v1337 = vpack.c.bf16 %v1305, %v1305
      %v1338 = vpack.c.bf16 %v1306, %v1306
      %v1339 = vpack.c.bf16 %v1307, %v1307
      %v1340 = vpack.c.bf16 %v1308, %v1308
      %v1341 = vpack.c.bf16 %v1309, %v1309
      %v1342 = vpack.c.bf16 %v1310, %v1310
      %v1343 = vpack.c.bf16 %v1311, %v1311
      %v1344 = vpack.c.bf16 %v1312, %v1312
      %v1345 = vpack.c.bf16 %v1313, %v1313
      %v1346 = vpack.c.bf16 %v1314, %v1314
      %v1347 = vpack.c.bf16 %v1315, %v1315
      %v1348 = vpack.c.bf16 %v1316, %v1316
      %v1349 = vpack.c.bf16 %v1317, %v1317
      %v1350 = vpack.c.bf16 %v1318, %v1318
      %v1351 = vpack.c.bf16 %v1319, %v1319
      %v1352 = vpack.c.bf16 %v1320, %v1320
      %v1353 = vpack.c.bf16 %v1321, %v1321
      %v1354 = vpack.c.bf16 %v1322, %v1322
      %v1355 = vpack.c.bf16 %v1323, %v1323
      %v1356 = vpack.c.bf16 %v1324, %v1324
      %v1357 = vpack.c.bf16 %v1325, %v1325
      %v1358 = vpack.c.bf16 %v1326, %v1326
      %v1359 = vld [vmem:[%s1102] sm:$0xff]
      %v1360 = vld [vmem:[%s1102 + $0x8] sm:$0xff]
      %v1361 = vld [vmem:[%s1102 + $0x18] sm:$0xff]
      %v1362 = vld [vmem:[%s1102 + $0x20] sm:$0xff]
      %v1363 = vld [vmem:[%s1102 + $0x30] sm:$0xff]
      %v1364 = vld [vmem:[%s1102 + $0x38] sm:$0xff]
      %v1365 = vld [vmem:[%s1102 + $0x48] sm:$0xff]
      %v1366 = vld [vmem:[%s1102 + $0x50] sm:$0xff]
      %v1367 = vld [vmem:[%s1102 + $0x60] sm:$0xff]
      %v1368 = vld [vmem:[%s1102 + $0x68] sm:$0xff]
      %v1369 = vld [vmem:[%s1102 + $0x78] sm:$0xff]
      %v1370 = vld [vmem:[%s1102 + $0x80] sm:$0xff]
      %v1371 = vld [vmem:[%s1102 + $0x90] sm:$0xff]
      %v1372 = vld [vmem:[%s1102 + $0x98] sm:$0xff]
      %v1373 = vld [vmem:[%s1102 + $0xa8] sm:$0xff]
      %v1374 = vld [vmem:[%s1102 + $0xb0] sm:$0xff]
      %v1375 = vld [vmem:[%s1102 + $0xc0] sm:$0xff]
      %v1376 = vld [vmem:[%s1102 + $0xc8] sm:$0xff]
      %v1377 = vld [vmem:[%s1102 + $0xd8] sm:$0xff]
      %v1378 = vld [vmem:[%s1102 + $0xe0] sm:$0xff]
      %v1379 = vld [vmem:[%s1102 + $0xf0] sm:$0xff]
      %v1380 = vld [vmem:[%s1102 + $0xf8] sm:$0xff]
      %v1381 = vld [vmem:[%s1102 + $0x108] sm:$0xff]
      %v1382 = vld [vmem:[%s1102 + $0x110] sm:$0xff]
      %v1383 = vld [vmem:[%s1102 + $0x120] sm:$0xff]
      %v1384 = vld [vmem:[%s1102 + $0x128] sm:$0xff]
      %v1385 = vld [vmem:[%s1102 + $0x138] sm:$0xff]
      %v1386 = vld [vmem:[%s1102 + $0x140] sm:$0xff]
      %v1387 = vld [vmem:[%s1102 + $0x150] sm:$0xff]
      %v1388 = vld [vmem:[%s1102 + $0x158] sm:$0xff]
      %v1389 = vld [vmem:[%s1102 + $0x168] sm:$0xff]
      %v1390 = vld [vmem:[%s1102 + $0x170] sm:$0xff]
      %v1391 = vpack.c.bf16 %v1359, %v1359
      %v1392 = vpack.c.bf16 %v1360, %v1360
      %v1393 = vpack.c.bf16 %v1361, %v1361
      %v1394 = vpack.c.bf16 %v1362, %v1362
      %v1395 = vpack.c.bf16 %v1363, %v1363
      %v1396 = vpack.c.bf16 %v1364, %v1364
      %v1397 = vpack.c.bf16 %v1365, %v1365
      %v1398 = vpack.c.bf16 %v1366, %v1366
      %v1399 = vpack.c.bf16 %v1367, %v1367
      %v1400 = vpack.c.bf16 %v1368, %v1368
      %v1401 = vpack.c.bf16 %v1369, %v1369
      %v1402 = vpack.c.bf16 %v1370, %v1370
      %v1403 = vpack.c.bf16 %v1371, %v1371
      %v1404 = vpack.c.bf16 %v1372, %v1372
      %v1405 = vpack.c.bf16 %v1373, %v1373
      %v1406 = vpack.c.bf16 %v1374, %v1374
      %v1407 = vpack.c.bf16 %v1375, %v1375
      %v1408 = vpack.c.bf16 %v1376, %v1376
      %v1409 = vpack.c.bf16 %v1377, %v1377
      %v1410 = vpack.c.bf16 %v1378, %v1378
      %v1411 = vpack.c.bf16 %v1379, %v1379
      %v1412 = vpack.c.bf16 %v1380, %v1380
      %v1413 = vpack.c.bf16 %v1381, %v1381
      %v1414 = vpack.c.bf16 %v1382, %v1382
      %v1415 = vpack.c.bf16 %v1383, %v1383
      %v1416 = vpack.c.bf16 %v1384, %v1384
      %v1417 = vpack.c.bf16 %v1385, %v1385
      %v1418 = vpack.c.bf16 %v1386, %v1386
      %v1419 = vpack.c.bf16 %v1387, %v1387
      %v1420 = vpack.c.bf16 %v1388, %v1388
      %v1421 = vpack.c.bf16 %v1389, %v1389
      %v1422 = vpack.c.bf16 %v1390, %v1390
      %v1423 = vld [vmem:[%s1102 + $0x1] sm:$0xff]
      %v1424 = vld [vmem:[%s1102 + $0x9] sm:$0xff]
      %v1425 = vld [vmem:[%s1102 + $0x19] sm:$0xff]
      %v1426 = vld [vmem:[%s1102 + $0x21] sm:$0xff]
      %v1427 = vld [vmem:[%s1102 + $0x31] sm:$0xff]
      %v1428 = vld [vmem:[%s1102 + $0x39] sm:$0xff]
      %v1429 = vld [vmem:[%s1102 + $0x49] sm:$0xff]
      %v1430 = vld [vmem:[%s1102 + $0x51] sm:$0xff]
      %v1431 = vld [vmem:[%s1102 + $0x61] sm:$0xff]
      %v1432 = vld [vmem:[%s1102 + $0x69] sm:$0xff]
      %v1433 = vld [vmem:[%s1102 + $0x79] sm:$0xff]
      %v1434 = vld [vmem:[%s1102 + $0x81] sm:$0xff]
      %v1435 = vld [vmem:[%s1102 + $0x91] sm:$0xff]
      %v1436 = vld [vmem:[%s1102 + $0x99] sm:$0xff]
      %v1437 = vld [vmem:[%s1102 + $0xa9] sm:$0xff]
      %v1438 = vld [vmem:[%s1102 + $0xb1] sm:$0xff]
      %v1439 = vld [vmem:[%s1102 + $0xc1] sm:$0xff]
      %v1440 = vld [vmem:[%s1102 + $0xc9] sm:$0xff]
      %v1441 = vld [vmem:[%s1102 + $0xd9] sm:$0xff]
      %v1442 = vld [vmem:[%s1102 + $0xe1] sm:$0xff]
      %v1443 = vld [vmem:[%s1102 + $0xf1] sm:$0xff]
      %v1444 = vld [vmem:[%s1102 + $0xf9] sm:$0xff]
      %v1445 = vld [vmem:[%s1102 + $0x109] sm:$0xff]
      %v1446 = vld [vmem:[%s1102 + $0x111] sm:$0xff]
      %v1447 = vld [vmem:[%s1102 + $0x121] sm:$0xff]
      %v1448 = vld [vmem:[%s1102 + $0x129] sm:$0xff]
      %v1449 = vld [vmem:[%s1102 + $0x139] sm:$0xff]
      %v1450 = vld [vmem:[%s1102 + $0x141] sm:$0xff]
      %v1451 = vld [vmem:[%s1102 + $0x151] sm:$0xff]
      %v1452 = vld [vmem:[%s1102 + $0x159] sm:$0xff]
      %v1453 = vld [vmem:[%s1102 + $0x169] sm:$0xff]
      %v1454 = vld [vmem:[%s1102 + $0x171] sm:$0xff]
      %v1455 = vpack.c.bf16 %v1423, %v1423
      %v1456 = vpack.c.bf16 %v1424, %v1424
      %v1457 = vpack.c.bf16 %v1425, %v1425
      %v1458 = vpack.c.bf16 %v1426, %v1426
      %v1459 = vpack.c.bf16 %v1427, %v1427
      %v1460 = vpack.c.bf16 %v1428, %v1428
      %v1461 = vpack.c.bf16 %v1429, %v1429
      %v1462 = vpack.c.bf16 %v1430, %v1430
      %v1463 = vpack.c.bf16 %v1431, %v1431
      %v1464 = vpack.c.bf16 %v1432, %v1432
      %v1465 = vpack.c.bf16 %v1433, %v1433
      %v1466 = vpack.c.bf16 %v1434, %v1434
      %v1467 = vpack.c.bf16 %v1435, %v1435
      %v1468 = vpack.c.bf16 %v1436, %v1436
      %v1469 = vpack.c.bf16 %v1437, %v1437
      %v1470 = vpack.c.bf16 %v1438, %v1438
      %v1471 = vpack.c.bf16 %v1439, %v1439
      %v1472 = vpack.c.bf16 %v1440, %v1440
      %v1473 = vpack.c.bf16 %v1441, %v1441
      %v1474 = vpack.c.bf16 %v1442, %v1442
      %v1475 = vpack.c.bf16 %v1443, %v1443
      %v1476 = vpack.c.bf16 %v1444, %v1444
      %v1477 = vpack.c.bf16 %v1445, %v1445
      %v1478 = vpack.c.bf16 %v1446, %v1446
      %v1479 = vpack.c.bf16 %v1447, %v1447
      %v1480 = vpack.c.bf16 %v1448, %v1448
      %v1481 = vpack.c.bf16 %v1449, %v1449
      %v1482 = vpack.c.bf16 %v1450, %v1450
      %v1483 = vpack.c.bf16 %v1451, %v1451
      %v1484 = vpack.c.bf16 %v1452, %v1452
      %v1485 = vpack.c.bf16 %v1453, %v1453
      %v1486 = vpack.c.bf16 %v1454, %v1454
      %v1487 = vld [vmem:[%s1102 + $0x2] sm:$0xff]
      %v1488 = vld [vmem:[%s1102 + $0xa] sm:$0xff]
      %v1489 = vld [vmem:[%s1102 + $0x1a] sm:$0xff]
      %v1490 = vld [vmem:[%s1102 + $0x22] sm:$0xff]
      %v1491 = vld [vmem:[%s1102 + $0x32] sm:$0xff]
      %v1492 = vld [vmem:[%s1102 + $0x3a] sm:$0xff]
      %v1493 = vld [vmem:[%s1102 + $0x4a] sm:$0xff]
      %v1494 = vld [vmem:[%s1102 + $0x52] sm:$0xff]
      %v1495 = vld [vmem:[%s1102 + $0x62] sm:$0xff]
      %v1496 = vld [vmem:[%s1102 + $0x6a] sm:$0xff]
      %v1497 = vld [vmem:[%s1102 + $0x7a] sm:$0xff]
      %v1498 = vld [vmem:[%s1102 + $0x82] sm:$0xff]
      %v1499 = vld [vmem:[%s1102 + $0x92] sm:$0xff]
      %v1500 = vld [vmem:[%s1102 + $0x9a] sm:$0xff]
      %v1501 = vld [vmem:[%s1102 + $0xaa] sm:$0xff]
      %v1502 = vld [vmem:[%s1102 + $0xb2] sm:$0xff]
      %v1503 = vld [vmem:[%s1102 + $0xc2] sm:$0xff]
      %v1504 = vld [vmem:[%s1102 + $0xca] sm:$0xff]
      %v1505 = vld [vmem:[%s1102 + $0xda] sm:$0xff]
      %v1506 = vld [vmem:[%s1102 + $0xe2] sm:$0xff]
      %v1507 = vld [vmem:[%s1102 + $0xf2] sm:$0xff]
      %v1508 = vld [vmem:[%s1102 + $0xfa] sm:$0xff]
      %v1509 = vld [vmem:[%s1102 + $0x10a] sm:$0xff]
      %v1510 = vld [vmem:[%s1102 + $0x112] sm:$0xff]
      %v1511 = vld [vmem:[%s1102 + $0x122] sm:$0xff]
      %v1512 = vld [vmem:[%s1102 + $0x12a] sm:$0xff]
      %v1513 = vld [vmem:[%s1102 + $0x13a] sm:$0xff]
      %v1514 = vld [vmem:[%s1102 + $0x142] sm:$0xff]
      %v1515 = vld [vmem:[%s1102 + $0x152] sm:$0xff]
      %v1516 = vld [vmem:[%s1102 + $0x15a] sm:$0xff]
      %v1517 = vld [vmem:[%s1102 + $0x16a] sm:$0xff]
      %v1518 = vld [vmem:[%s1102 + $0x172] sm:$0xff]
      %v1519 = vpack.c.bf16 %v1487, %v1487
      %v1520 = vpack.c.bf16 %v1488, %v1488
      %v1521 = vpack.c.bf16 %v1489, %v1489
      %v1522 = vpack.c.bf16 %v1490, %v1490
      %v1523 = vpack.c.bf16 %v1491, %v1491
      %v1524 = vpack.c.bf16 %v1492, %v1492
      %v1525 = vpack.c.bf16 %v1493, %v1493
      %v1526 = vpack.c.bf16 %v1494, %v1494
      %v1527 = vpack.c.bf16 %v1495, %v1495
      %v1528 = vpack.c.bf16 %v1496, %v1496
      %v1529 = vpack.c.bf16 %v1497, %v1497
      %v1530 = vpack.c.bf16 %v1498, %v1498
      %v1531 = vpack.c.bf16 %v1499, %v1499
      %v1532 = vpack.c.bf16 %v1500, %v1500
      %v1533 = vpack.c.bf16 %v1501, %v1501
      %v1534 = vpack.c.bf16 %v1502, %v1502
      %v1535 = vpack.c.bf16 %v1503, %v1503
      %v1536 = vpack.c.bf16 %v1504, %v1504
      %v1537 = vpack.c.bf16 %v1505, %v1505
      %v1538 = vpack.c.bf16 %v1506, %v1506
      %v1539 = vpack.c.bf16 %v1507, %v1507
      %v1540 = vpack.c.bf16 %v1508, %v1508
      %v1541 = vpack.c.bf16 %v1509, %v1509
      %v1542 = vpack.c.bf16 %v1510, %v1510
      %v1543 = vpack.c.bf16 %v1511, %v1511
      %v1544 = vpack.c.bf16 %v1512, %v1512
      %v1545 = vpack.c.bf16 %v1513, %v1513
      %v1546 = vpack.c.bf16 %v1514, %v1514
      %v1547 = vpack.c.bf16 %v1515, %v1515
      %v1548 = vpack.c.bf16 %v1516, %v1516
      %v1549 = vpack.c.bf16 %v1517, %v1517
      %v1550 = vpack.c.bf16 %v1518, %v1518
      %s1551 = scalar_lea.vmem [#allocation2], 48
      %v1552 = vld [vmem:[%s1551] sm:$0xff]
      %v1553 = vld [vmem:[%s1551 + $0x8] sm:$0xff]
      %v1554 = vld [vmem:[%s1551 + $0x18] sm:$0xff]
      %v1555 = vld [vmem:[%s1551 + $0x20] sm:$0xff]
      %v1556 = vld [vmem:[%s1551 + $0x30] sm:$0xff]
      %v1557 = vld [vmem:[%s1551 + $0x38] sm:$0xff]
      %v1558 = vld [vmem:[%s1551 + $0x48] sm:$0xff]
      %v1559 = vld [vmem:[%s1551 + $0x50] sm:$0xff]
      %v1560 = vld [vmem:[%s1551 + $0x60] sm:$0xff]
      %v1561 = vld [vmem:[%s1551 + $0x68] sm:$0xff]
      %v1562 = vld [vmem:[%s1551 + $0x78] sm:$0xff]
      %v1563 = vld [vmem:[%s1551 + $0x80] sm:$0xff]
      %v1564 = vld [vmem:[%s1551 + $0x90] sm:$0xff]
      %v1565 = vld [vmem:[%s1551 + $0x98] sm:$0xff]
      %v1566 = vld [vmem:[%s1551 + $0xa8] sm:$0xff]
      %v1567 = vld [vmem:[%s1551 + $0xb0] sm:$0xff]
      %v1568 = vld [vmem:[%s1551 + $0xc0] sm:$0xff]
      %v1569 = vld [vmem:[%s1551 + $0xc8] sm:$0xff]
      %v1570 = vld [vmem:[%s1551 + $0xd8] sm:$0xff]
      %v1571 = vld [vmem:[%s1551 + $0xe0] sm:$0xff]
      %v1572 = vld [vmem:[%s1551 + $0xf0] sm:$0xff]
      %v1573 = vld [vmem:[%s1551 + $0xf8] sm:$0xff]
      %v1574 = vld [vmem:[%s1551 + $0x108] sm:$0xff]
      %v1575 = vld [vmem:[%s1551 + $0x110] sm:$0xff]
      %v1576 = vld [vmem:[%s1551 + $0x120] sm:$0xff]
      %v1577 = vld [vmem:[%s1551 + $0x128] sm:$0xff]
      %v1578 = vld [vmem:[%s1551 + $0x138] sm:$0xff]
      %v1579 = vld [vmem:[%s1551 + $0x140] sm:$0xff]
      %v1580 = vld [vmem:[%s1551 + $0x150] sm:$0xff]
      %v1581 = vld [vmem:[%s1551 + $0x158] sm:$0xff]
      %v1582 = vld [vmem:[%s1551 + $0x168] sm:$0xff]
      %v1583 = vld [vmem:[%s1551 + $0x170] sm:$0xff]
      %v1584 = vpack.c.bf16 %v1552, %v1552
      %v1585 = vpack.c.bf16 %v1553, %v1553
      %v1586 = vpack.c.bf16 %v1554, %v1554
      %v1587 = vpack.c.bf16 %v1555, %v1555
      %v1588 = vpack.c.bf16 %v1556, %v1556
      %v1589 = vpack.c.bf16 %v1557, %v1557
      %v1590 = vpack.c.bf16 %v1558, %v1558
      %v1591 = vpack.c.bf16 %v1559, %v1559
      %v1592 = vpack.c.bf16 %v1560, %v1560
      %v1593 = vpack.c.bf16 %v1561, %v1561
      %v1594 = vpack.c.bf16 %v1562, %v1562
      %v1595 = vpack.c.bf16 %v1563, %v1563
      %v1596 = vpack.c.bf16 %v1564, %v1564
      %v1597 = vpack.c.bf16 %v1565, %v1565
      %v1598 = vpack.c.bf16 %v1566, %v1566
      %v1599 = vpack.c.bf16 %v1567, %v1567
      %v1600 = vpack.c.bf16 %v1568, %v1568
      %v1601 = vpack.c.bf16 %v1569, %v1569
      %v1602 = vpack.c.bf16 %v1570, %v1570
      %v1603 = vpack.c.bf16 %v1571, %v1571
      %v1604 = vpack.c.bf16 %v1572, %v1572
      %v1605 = vpack.c.bf16 %v1573, %v1573
      %v1606 = vpack.c.bf16 %v1574, %v1574
      %v1607 = vpack.c.bf16 %v1575, %v1575
      %v1608 = vpack.c.bf16 %v1576, %v1576
      %v1609 = vpack.c.bf16 %v1577, %v1577
      %v1610 = vpack.c.bf16 %v1578, %v1578
      %v1611 = vpack.c.bf16 %v1579, %v1579
      %v1612 = vpack.c.bf16 %v1580, %v1580
      %v1613 = vpack.c.bf16 %v1581, %v1581
      %v1614 = vpack.c.bf16 %v1582, %v1582
      %v1615 = vpack.c.bf16 %v1583, %v1583
      %v1616 = vld [vmem:[%s1551 + $0x1] sm:$0xff]
      %v1617 = vld [vmem:[%s1551 + $0x9] sm:$0xff]
      %v1618 = vld [vmem:[%s1551 + $0x19] sm:$0xff]
      %v1619 = vld [vmem:[%s1551 + $0x21] sm:$0xff]
      %v1620 = vld [vmem:[%s1551 + $0x31] sm:$0xff]
      %v1621 = vld [vmem:[%s1551 + $0x39] sm:$0xff]
      %v1622 = vld [vmem:[%s1551 + $0x49] sm:$0xff]
      %v1623 = vld [vmem:[%s1551 + $0x51] sm:$0xff]
      %v1624 = vld [vmem:[%s1551 + $0x61] sm:$0xff]
      %v1625 = vld [vmem:[%s1551 + $0x69] sm:$0xff]
      %v1626 = vld [vmem:[%s1551 + $0x79] sm:$0xff]
      %v1627 = vld [vmem:[%s1551 + $0x81] sm:$0xff]
      %v1628 = vld [vmem:[%s1551 + $0x91] sm:$0xff]
      %v1629 = vld [vmem:[%s1551 + $0x99] sm:$0xff]
      %v1630 = vld [vmem:[%s1551 + $0xa9] sm:$0xff]
      %v1631 = vld [vmem:[%s1551 + $0xb1] sm:$0xff]
      %v1632 = vld [vmem:[%s1551 + $0xc1] sm:$0xff]
      %v1633 = vld [vmem:[%s1551 + $0xc9] sm:$0xff]
      %v1634 = vld [vmem:[%s1551 + $0xd9] sm:$0xff]
      %v1635 = vld [vmem:[%s1551 + $0xe1] sm:$0xff]
      %v1636 = vld [vmem:[%s1551 + $0xf1] sm:$0xff]
      %v1637 = vld [vmem:[%s1551 + $0xf9] sm:$0xff]
      %v1638 = vld [vmem:[%s1551 + $0x109] sm:$0xff]
      %v1639 = vld [vmem:[%s1551 + $0x111] sm:$0xff]
      %v1640 = vld [vmem:[%s1551 + $0x121] sm:$0xff]
      %v1641 = vld [vmem:[%s1551 + $0x129] sm:$0xff]
      %v1642 = vld [vmem:[%s1551 + $0x139] sm:$0xff]
      %v1643 = vld [vmem:[%s1551 + $0x141] sm:$0xff]
      %v1644 = vld [vmem:[%s1551 + $0x151] sm:$0xff]
      %v1645 = vld [vmem:[%s1551 + $0x159] sm:$0xff]
      %v1646 = vld [vmem:[%s1551 + $0x169] sm:$0xff]
      %v1647 = vld [vmem:[%s1551 + $0x171] sm:$0xff]
      %v1648 = vpack.c.bf16 %v1616, %v1616
      %v1649 = vpack.c.bf16 %v1617, %v1617
      %v1650 = vpack.c.bf16 %v1618, %v1618
      %v1651 = vpack.c.bf16 %v1619, %v1619
      %v1652 = vpack.c.bf16 %v1620, %v1620
      %v1653 = vpack.c.bf16 %v1621, %v1621
      %v1654 = vpack.c.bf16 %v1622, %v1622
      %v1655 = vpack.c.bf16 %v1623, %v1623
      %v1656 = vpack.c.bf16 %v1624, %v1624
      %v1657 = vpack.c.bf16 %v1625, %v1625
      %v1658 = vpack.c.bf16 %v1626, %v1626
      %v1659 = vpack.c.bf16 %v1627, %v1627
      %v1660 = vpack.c.bf16 %v1628, %v1628
      %v1661 = vpack.c.bf16 %v1629, %v1629
      %v1662 = vpack.c.bf16 %v1630, %v1630
      %v1663 = vpack.c.bf16 %v1631, %v1631
      %v1664 = vpack.c.bf16 %v1632, %v1632
      %v1665 = vpack.c.bf16 %v1633, %v1633
      %v1666 = vpack.c.bf16 %v1634, %v1634
      %v1667 = vpack.c.bf16 %v1635, %v1635
      %v1668 = vpack.c.bf16 %v1636, %v1636
      %v1669 = vpack.c.bf16 %v1637, %v1637
      %v1670 = vpack.c.bf16 %v1638, %v1638
      %v1671 = vpack.c.bf16 %v1639, %v1639
      %v1672 = vpack.c.bf16 %v1640, %v1640
      %v1673 = vpack.c.bf16 %v1641, %v1641
      %v1674 = vpack.c.bf16 %v1642, %v1642
      %v1675 = vpack.c.bf16 %v1643, %v1643
      %v1676 = vpack.c.bf16 %v1644, %v1644
      %v1677 = vpack.c.bf16 %v1645, %v1645
      %v1678 = vpack.c.bf16 %v1646, %v1646
      %v1679 = vpack.c.bf16 %v1647, %v1647
      %v1680 = vld [vmem:[%s1551 + $0x2] sm:$0xff]
      %v1681 = vld [vmem:[%s1551 + $0xa] sm:$0xff]
      %v1682 = vld [vmem:[%s1551 + $0x1a] sm:$0xff]
      %v1683 = vld [vmem:[%s1551 + $0x22] sm:$0xff]
      %v1684 = vld [vmem:[%s1551 + $0x32] sm:$0xff]
      %v1685 = vld [vmem:[%s1551 + $0x3a] sm:$0xff]
      %v1686 = vld [vmem:[%s1551 + $0x4a] sm:$0xff]
      %v1687 = vld [vmem:[%s1551 + $0x52] sm:$0xff]
      %v1688 = vld [vmem:[%s1551 + $0x62] sm:$0xff]
      %v1689 = vld [vmem:[%s1551 + $0x6a] sm:$0xff]
      %v1690 = vld [vmem:[%s1551 + $0x7a] sm:$0xff]
      %v1691 = vld [vmem:[%s1551 + $0x82] sm:$0xff]
      %v1692 = vld [vmem:[%s1551 + $0x92] sm:$0xff]
      %v1693 = vld [vmem:[%s1551 + $0x9a] sm:$0xff]
      %v1694 = vld [vmem:[%s1551 + $0xaa] sm:$0xff]
      %v1695 = vld [vmem:[%s1551 + $0xb2] sm:$0xff]
      %v1696 = vld [vmem:[%s1551 + $0xc2] sm:$0xff]
      %v1697 = vld [vmem:[%s1551 + $0xca] sm:$0xff]
      %v1698 = vld [vmem:[%s1551 + $0xda] sm:$0xff]
      %v1699 = vld [vmem:[%s1551 + $0xe2] sm:$0xff]
      %v1700 = vld [vmem:[%s1551 + $0xf2] sm:$0xff]
      %v1701 = vld [vmem:[%s1551 + $0xfa] sm:$0xff]
      %v1702 = vld [vmem:[%s1551 + $0x10a] sm:$0xff]
      %v1703 = vld [vmem:[%s1551 + $0x112] sm:$0xff]
      %v1704 = vld [vmem:[%s1551 + $0x122] sm:$0xff]
      %v1705 = vld [vmem:[%s1551 + $0x12a] sm:$0xff]
      %v1706 = vld [vmem:[%s1551 + $0x13a] sm:$0xff]
      %v1707 = vld [vmem:[%s1551 + $0x142] sm:$0xff]
      %v1708 = vld [vmem:[%s1551 + $0x152] sm:$0xff]
      %v1709 = vld [vmem:[%s1551 + $0x15a] sm:$0xff]
      %v1710 = vld [vmem:[%s1551 + $0x16a] sm:$0xff]
      %v1711 = vld [vmem:[%s1551 + $0x172] sm:$0xff]
      %v1712 = vpack.c.bf16 %v1680, %v1680
      %v1713 = vpack.c.bf16 %v1681, %v1681
      %v1714 = vpack.c.bf16 %v1682, %v1682
      %v1715 = vpack.c.bf16 %v1683, %v1683
      %v1716 = vpack.c.bf16 %v1684, %v1684
      %v1717 = vpack.c.bf16 %v1685, %v1685
      %v1718 = vpack.c.bf16 %v1686, %v1686
      %v1719 = vpack.c.bf16 %v1687, %v1687
      %v1720 = vpack.c.bf16 %v1688, %v1688
      %v1721 = vpack.c.bf16 %v1689, %v1689
      %v1722 = vpack.c.bf16 %v1690, %v1690
      %v1723 = vpack.c.bf16 %v1691, %v1691
      %v1724 = vpack.c.bf16 %v1692, %v1692
      %v1725 = vpack.c.bf16 %v1693, %v1693
      %v1726 = vpack.c.bf16 %v1694, %v1694
      %v1727 = vpack.c.bf16 %v1695, %v1695
      %v1728 = vpack.c.bf16 %v1696, %v1696
      %v1729 = vpack.c.bf16 %v1697, %v1697
      %v1730 = vpack.c.bf16 %v1698, %v1698
      %v1731 = vpack.c.bf16 %v1699, %v1699
      %v1732 = vpack.c.bf16 %v1700, %v1700
      %v1733 = vpack.c.bf16 %v1701, %v1701
      %v1734 = vpack.c.bf16 %v1702, %v1702
      %v1735 = vpack.c.bf16 %v1703, %v1703
      %v1736 = vpack.c.bf16 %v1704, %v1704
      %v1737 = vpack.c.bf16 %v1705, %v1705
      %v1738 = vpack.c.bf16 %v1706, %v1706
      %v1739 = vpack.c.bf16 %v1707, %v1707
      %v1740 = vpack.c.bf16 %v1708, %v1708
      %v1741 = vpack.c.bf16 %v1709, %v1709
      %v1742 = vpack.c.bf16 %v1710, %v1710
      %v1743 = vpack.c.bf16 %v1711, %v1711
      %v1776 = vunpack.c.l.b16 %v1199
      %v1777 = vunpack.c.l.b16 %v1200
      %v1778 = vunpack.c.l.b16 %v1201
      %v1779 = vunpack.c.l.b16 %v1202
      %v1780 = vunpack.c.l.b16 %v1203
      %v1781 = vunpack.c.l.b16 %v1204
      %v1782 = vunpack.c.l.b16 %v1205
      %v1783 = vunpack.c.l.b16 %v1206
      %v1784 = vunpack.c.l.b16 %v1207
      %v1785 = vunpack.c.l.b16 %v1208
      %v1786 = vunpack.c.l.b16 %v1209
      %v1787 = vunpack.c.l.b16 %v1210
      %v1788 = vunpack.c.l.b16 %v1211
      %v1789 = vunpack.c.l.b16 %v1212
      %v1790 = vunpack.c.l.b16 %v1213
      %v1791 = vunpack.c.l.b16 %v1214
      %v1792 = vunpack.c.l.b16 %v1215
      %v1793 = vunpack.c.l.b16 %v1216
      %v1794 = vunpack.c.l.b16 %v1217
      %v1795 = vunpack.c.l.b16 %v1218
      %v1796 = vunpack.c.l.b16 %v1219
      %v1797 = vunpack.c.l.b16 %v1220
      %v1798 = vunpack.c.l.b16 %v1221
      %v1799 = vunpack.c.l.b16 %v1222
      %v1800 = vunpack.c.l.b16 %v1223
      %v1801 = vunpack.c.l.b16 %v1224
      %v1802 = vunpack.c.l.b16 %v1225
      %v1803 = vunpack.c.l.b16 %v1226
      %v1804 = vunpack.c.l.b16 %v1227
      %v1805 = vunpack.c.l.b16 %v1228
      %v1806 = vunpack.c.l.b16 %v1229
      %v1807 = vunpack.c.l.b16 %v1230
      %v1808 = vpack.c.b16 %v1777, %v1776
      %v1809 = vpack.c.b16 %v1779, %v1778
      %v1810 = vpack.c.b16 %v1781, %v1780
      %v1811 = vpack.c.b16 %v1783, %v1782
      %v1812 = vpack.c.b16 %v1785, %v1784
      %v1813 = vpack.c.b16 %v1787, %v1786
      %v1814 = vpack.c.b16 %v1789, %v1788
      %v1815 = vpack.c.b16 %v1791, %v1790
      %v1816 = vpack.c.b16 %v1793, %v1792
      %v1817 = vpack.c.b16 %v1795, %v1794
      %v1818 = vpack.c.b16 %v1797, %v1796
      %v1819 = vpack.c.b16 %v1799, %v1798
      %v1820 = vpack.c.b16 %v1801, %v1800
      %v1821 = vpack.c.b16 %v1803, %v1802
      %v1822 = vpack.c.b16 %v1805, %v1804
      %v1823 = vpack.c.b16 %v1807, %v1806
      %v1856 = vunpack.c.l.b16 %v1263
      %v1857 = vunpack.c.l.b16 %v1264
      %v1858 = vunpack.c.l.b16 %v1265
      %v1859 = vunpack.c.l.b16 %v1266
      %v1860 = vunpack.c.l.b16 %v1267
      %v1861 = vunpack.c.l.b16 %v1268
      %v1862 = vunpack.c.l.b16 %v1269
      %v1863 = vunpack.c.l.b16 %v1270
      %v1864 = vunpack.c.l.b16 %v1271
      %v1865 = vunpack.c.l.b16 %v1272
      %v1866 = vunpack.c.l.b16 %v1273
      %v1867 = vunpack.c.l.b16 %v1274
      %v1868 = vunpack.c.l.b16 %v1275
      %v1869 = vunpack.c.l.b16 %v1276
      %v1870 = vunpack.c.l.b16 %v1277
      %v1871 = vunpack.c.l.b16 %v1278
      %v1872 = vunpack.c.l.b16 %v1279
      %v1873 = vunpack.c.l.b16 %v1280
      %v1874 = vunpack.c.l.b16 %v1281
      %v1875 = vunpack.c.l.b16 %v1282
      %v1876 = vunpack.c.l.b16 %v1283
      %v1877 = vunpack.c.l.b16 %v1284
      %v1878 = vunpack.c.l.b16 %v1285
      %v1879 = vunpack.c.l.b16 %v1286
      %v1880 = vunpack.c.l.b16 %v1287
      %v1881 = vunpack.c.l.b16 %v1288
      %v1882 = vunpack.c.l.b16 %v1289
      %v1883 = vunpack.c.l.b16 %v1290
      %v1884 = vunpack.c.l.b16 %v1291
      %v1885 = vunpack.c.l.b16 %v1292
      %v1886 = vunpack.c.l.b16 %v1293
      %v1887 = vunpack.c.l.b16 %v1294
      %v1888 = vpack.c.b16 %v1857, %v1856
      %v1889 = vpack.c.b16 %v1859, %v1858
      %v1890 = vpack.c.b16 %v1861, %v1860
      %v1891 = vpack.c.b16 %v1863, %v1862
      %v1892 = vpack.c.b16 %v1865, %v1864
      %v1893 = vpack.c.b16 %v1867, %v1866
      %v1894 = vpack.c.b16 %v1869, %v1868
      %v1895 = vpack.c.b16 %v1871, %v1870
      %v1896 = vpack.c.b16 %v1873, %v1872
      %v1897 = vpack.c.b16 %v1875, %v1874
      %v1898 = vpack.c.b16 %v1877, %v1876
      %v1899 = vpack.c.b16 %v1879, %v1878
      %v1900 = vpack.c.b16 %v1881, %v1880
      %v1901 = vpack.c.b16 %v1883, %v1882
      %v1902 = vpack.c.b16 %v1885, %v1884
      %v1903 = vpack.c.b16 %v1887, %v1886
      %1904 = vrot.lane.b32.xlu0 %v1888, 64
      %v1905 = vpop.permute.xlu0 %1904
      %1906 = vrot.lane.b32.xlu0 %v1889, 64
      %v1907 = vpop.permute.xlu0 %1906
      %1908 = vrot.lane.b32.xlu0 %v1890, 64
      %v1909 = vpop.permute.xlu0 %1908
      %1910 = vrot.lane.b32.xlu0 %v1891, 64
      %v1911 = vpop.permute.xlu0 %1910
      %1912 = vrot.lane.b32.xlu0 %v1892, 64
      %v1913 = vpop.permute.xlu0 %1912
      %1914 = vrot.lane.b32.xlu0 %v1893, 64
      %v1915 = vpop.permute.xlu0 %1914
      %1916 = vrot.lane.b32.xlu0 %v1894, 64
      %v1917 = vpop.permute.xlu0 %1916
      %1918 = vrot.lane.b32.xlu0 %v1895, 64
      %v1919 = vpop.permute.xlu0 %1918
      %1920 = vrot.lane.b32.xlu0 %v1896, 64
      %v1921 = vpop.permute.xlu0 %1920
      %1922 = vrot.lane.b32.xlu0 %v1897, 64
      %v1923 = vpop.permute.xlu0 %1922
      %1924 = vrot.lane.b32.xlu0 %v1898, 64
      %v1925 = vpop.permute.xlu0 %1924
      %1926 = vrot.lane.b32.xlu0 %v1899, 64
      %v1927 = vpop.permute.xlu0 %1926
      %1928 = vrot.lane.b32.xlu0 %v1900, 64
      %v1929 = vpop.permute.xlu0 %1928
      %1930 = vrot.lane.b32.xlu0 %v1901, 64
      %v1931 = vpop.permute.xlu0 %1930
      %1932 = vrot.lane.b32.xlu0 %v1902, 64
      %v1933 = vpop.permute.xlu0 %1932
      %1934 = vrot.lane.b32.xlu0 %v1903, 64
      %v1935 = vpop.permute.xlu0 %1934
      %v1968 = vunpack.c.l.b16 %v1327
      %v1969 = vunpack.c.l.b16 %v1328
      %v1970 = vunpack.c.l.b16 %v1329
      %v1971 = vunpack.c.l.b16 %v1330
      %v1972 = vunpack.c.l.b16 %v1331
      %v1973 = vunpack.c.l.b16 %v1332
      %v1974 = vunpack.c.l.b16 %v1333
      %v1975 = vunpack.c.l.b16 %v1334
      %v1976 = vunpack.c.l.b16 %v1335
      %v1977 = vunpack.c.l.b16 %v1336
      %v1978 = vunpack.c.l.b16 %v1337
      %v1979 = vunpack.c.l.b16 %v1338
      %v1980 = vunpack.c.l.b16 %v1339
      %v1981 = vunpack.c.l.b16 %v1340
      %v1982 = vunpack.c.l.b16 %v1341
      %v1983 = vunpack.c.l.b16 %v1342
      %v1984 = vunpack.c.l.b16 %v1343
      %v1985 = vunpack.c.l.b16 %v1344
      %v1986 = vunpack.c.l.b16 %v1345
      %v1987 = vunpack.c.l.b16 %v1346
      %v1988 = vunpack.c.l.b16 %v1347
      %v1989 = vunpack.c.l.b16 %v1348
      %v1990 = vunpack.c.l.b16 %v1349
      %v1991 = vunpack.c.l.b16 %v1350
      %v1992 = vunpack.c.l.b16 %v1351
      %v1993 = vunpack.c.l.b16 %v1352
      %v1994 = vunpack.c.l.b16 %v1353
      %v1995 = vunpack.c.l.b16 %v1354
      %v1996 = vunpack.c.l.b16 %v1355
      %v1997 = vunpack.c.l.b16 %v1356
      %v1998 = vunpack.c.l.b16 %v1357
      %v1999 = vunpack.c.l.b16 %v1358
      %v2000 = vpack.c.b16 %v1969, %v1968
      %v2001 = vpack.c.b16 %v1971, %v1970
      %v2002 = vpack.c.b16 %v1973, %v1972
      %v2003 = vpack.c.b16 %v1975, %v1974
      %v2004 = vpack.c.b16 %v1977, %v1976
      %v2005 = vpack.c.b16 %v1979, %v1978
      %v2006 = vpack.c.b16 %v1981, %v1980
      %v2007 = vpack.c.b16 %v1983, %v1982
      %v2008 = vpack.c.b16 %v1985, %v1984
      %v2009 = vpack.c.b16 %v1987, %v1986
      %v2010 = vpack.c.b16 %v1989, %v1988
      %v2011 = vpack.c.b16 %v1991, %v1990
      %v2012 = vpack.c.b16 %v1993, %v1992
      %v2013 = vpack.c.b16 %v1995, %v1994
      %v2014 = vpack.c.b16 %v1997, %v1996
      %v2015 = vpack.c.b16 %v1999, %v1998
      %v2048 = vunpack.c.l.b16 %v1391
      %v2049 = vunpack.c.l.b16 %v1392
      %v2050 = vunpack.c.l.b16 %v1393
      %v2051 = vunpack.c.l.b16 %v1394
      %v2052 = vunpack.c.l.b16 %v1395
      %v2053 = vunpack.c.l.b16 %v1396
      %v2054 = vunpack.c.l.b16 %v1397
      %v2055 = vunpack.c.l.b16 %v1398
      %v2056 = vunpack.c.l.b16 %v1399
      %v2057 = vunpack.c.l.b16 %v1400
      %v2058 = vunpack.c.l.b16 %v1401
      %v2059 = vunpack.c.l.b16 %v1402
      %v2060 = vunpack.c.l.b16 %v1403
      %v2061 = vunpack.c.l.b16 %v1404
      %v2062 = vunpack.c.l.b16 %v1405
      %v2063 = vunpack.c.l.b16 %v1406
      %v2064 = vunpack.c.l.b16 %v1407
      %v2065 = vunpack.c.l.b16 %v1408
      %v2066 = vunpack.c.l.b16 %v1409
      %v2067 = vunpack.c.l.b16 %v1410
      %v2068 = vunpack.c.l.b16 %v1411
      %v2069 = vunpack.c.l.b16 %v1412
      %v2070 = vunpack.c.l.b16 %v1413
      %v2071 = vunpack.c.l.b16 %v1414
      %v2072 = vunpack.c.l.b16 %v1415
      %v2073 = vunpack.c.l.b16 %v1416
      %v2074 = vunpack.c.l.b16 %v1417
      %v2075 = vunpack.c.l.b16 %v1418
      %v2076 = vunpack.c.l.b16 %v1419
      %v2077 = vunpack.c.l.b16 %v1420
      %v2078 = vunpack.c.l.b16 %v1421
      %v2079 = vunpack.c.l.b16 %v1422
      %v2080 = vpack.c.b16 %v2049, %v2048
      %v2081 = vpack.c.b16 %v2051, %v2050
      %v2082 = vpack.c.b16 %v2053, %v2052
      %v2083 = vpack.c.b16 %v2055, %v2054
      %v2084 = vpack.c.b16 %v2057, %v2056
      %v2085 = vpack.c.b16 %v2059, %v2058
      %v2086 = vpack.c.b16 %v2061, %v2060
      %v2087 = vpack.c.b16 %v2063, %v2062
      %v2088 = vpack.c.b16 %v2065, %v2064
      %v2089 = vpack.c.b16 %v2067, %v2066
      %v2090 = vpack.c.b16 %v2069, %v2068
      %v2091 = vpack.c.b16 %v2071, %v2070
      %v2092 = vpack.c.b16 %v2073, %v2072
      %v2093 = vpack.c.b16 %v2075, %v2074
      %v2094 = vpack.c.b16 %v2077, %v2076
      %v2095 = vpack.c.b16 %v2079, %v2078
      %2096 = vrot.lane.b32.xlu0 %v2080, 64
      %v2097 = vpop.permute.xlu0 %2096
      %2098 = vrot.lane.b32.xlu0 %v2081, 64
      %v2099 = vpop.permute.xlu0 %2098
      %2100 = vrot.lane.b32.xlu0 %v2082, 64
      %v2101 = vpop.permute.xlu0 %2100
      %2102 = vrot.lane.b32.xlu0 %v2083, 64
      %v2103 = vpop.permute.xlu0 %2102
      %2104 = vrot.lane.b32.xlu0 %v2084, 64
      %v2105 = vpop.permute.xlu0 %2104
      %2106 = vrot.lane.b32.xlu0 %v2085, 64
      %v2107 = vpop.permute.xlu0 %2106
      %2108 = vrot.lane.b32.xlu0 %v2086, 64
      %v2109 = vpop.permute.xlu0 %2108
      %2110 = vrot.lane.b32.xlu0 %v2087, 64
      %v2111 = vpop.permute.xlu0 %2110
      %2112 = vrot.lane.b32.xlu0 %v2088, 64
      %v2113 = vpop.permute.xlu0 %2112
      %2114 = vrot.lane.b32.xlu0 %v2089, 64
      %v2115 = vpop.permute.xlu0 %2114
      %2116 = vrot.lane.b32.xlu0 %v2090, 64
      %v2117 = vpop.permute.xlu0 %2116
      %2118 = vrot.lane.b32.xlu0 %v2091, 64
      %v2119 = vpop.permute.xlu0 %2118
      %2120 = vrot.lane.b32.xlu0 %v2092, 64
      %v2121 = vpop.permute.xlu0 %2120
      %2122 = vrot.lane.b32.xlu0 %v2093, 64
      %v2123 = vpop.permute.xlu0 %2122
      %2124 = vrot.lane.b32.xlu0 %v2094, 64
      %v2125 = vpop.permute.xlu0 %2124
      %2126 = vrot.lane.b32.xlu0 %v2095, 64
      %v2127 = vpop.permute.xlu0 %2126
      %v2160 = vunpack.c.l.b16 %v1455
      %v2161 = vunpack.c.l.b16 %v1456
      %v2162 = vunpack.c.l.b16 %v1457
      %v2163 = vunpack.c.l.b16 %v1458
      %v2164 = vunpack.c.l.b16 %v1459
      %v2165 = vunpack.c.l.b16 %v1460
      %v2166 = vunpack.c.l.b16 %v1461
      %v2167 = vunpack.c.l.b16 %v1462
      %v2168 = vunpack.c.l.b16 %v1463
      %v2169 = vunpack.c.l.b16 %v1464
      %v2170 = vunpack.c.l.b16 %v1465
      %v2171 = vunpack.c.l.b16 %v1466
      %v2172 = vunpack.c.l.b16 %v1467
      %v2173 = vunpack.c.l.b16 %v1468
      %v2174 = vunpack.c.l.b16 %v1469
      %v2175 = vunpack.c.l.b16 %v1470
      %v2176 = vunpack.c.l.b16 %v1471
      %v2177 = vunpack.c.l.b16 %v1472
      %v2178 = vunpack.c.l.b16 %v1473
      %v2179 = vunpack.c.l.b16 %v1474
      %v2180 = vunpack.c.l.b16 %v1475
      %v2181 = vunpack.c.l.b16 %v1476
      %v2182 = vunpack.c.l.b16 %v1477
      %v2183 = vunpack.c.l.b16 %v1478
      %v2184 = vunpack.c.l.b16 %v1479
      %v2185 = vunpack.c.l.b16 %v1480
      %v2186 = vunpack.c.l.b16 %v1481
      %v2187 = vunpack.c.l.b16 %v1482
      %v2188 = vunpack.c.l.b16 %v1483
      %v2189 = vunpack.c.l.b16 %v1484
      %v2190 = vunpack.c.l.b16 %v1485
      %v2191 = vunpack.c.l.b16 %v1486
      %v2192 = vpack.c.b16 %v2161, %v2160
      %v2193 = vpack.c.b16 %v2163, %v2162
      %v2194 = vpack.c.b16 %v2165, %v2164
      %v2195 = vpack.c.b16 %v2167, %v2166
      %v2196 = vpack.c.b16 %v2169, %v2168
      %v2197 = vpack.c.b16 %v2171, %v2170
      %v2198 = vpack.c.b16 %v2173, %v2172
      %v2199 = vpack.c.b16 %v2175, %v2174
      %v2200 = vpack.c.b16 %v2177, %v2176
      %v2201 = vpack.c.b16 %v2179, %v2178
      %v2202 = vpack.c.b16 %v2181, %v2180
      %v2203 = vpack.c.b16 %v2183, %v2182
      %v2204 = vpack.c.b16 %v2185, %v2184
      %v2205 = vpack.c.b16 %v2187, %v2186
      %v2206 = vpack.c.b16 %v2189, %v2188
      %v2207 = vpack.c.b16 %v2191, %v2190
      %v2240 = vunpack.c.l.b16 %v1519
      %v2241 = vunpack.c.l.b16 %v1520
      %v2242 = vunpack.c.l.b16 %v1521
      %v2243 = vunpack.c.l.b16 %v1522
      %v2244 = vunpack.c.l.b16 %v1523
      %v2245 = vunpack.c.l.b16 %v1524
      %v2246 = vunpack.c.l.b16 %v1525
      %v2247 = vunpack.c.l.b16 %v1526
      %v2248 = vunpack.c.l.b16 %v1527
      %v2249 = vunpack.c.l.b16 %v1528
      %v2250 = vunpack.c.l.b16 %v1529
      %v2251 = vunpack.c.l.b16 %v1530
      %v2252 = vunpack.c.l.b16 %v1531
      %v2253 = vunpack.c.l.b16 %v1532
      %v2254 = vunpack.c.l.b16 %v1533
      %v2255 = vunpack.c.l.b16 %v1534
      %v2256 = vunpack.c.l.b16 %v1535
      %v2257 = vunpack.c.l.b16 %v1536
      %v2258 = vunpack.c.l.b16 %v1537
      %v2259 = vunpack.c.l.b16 %v1538
      %v2260 = vunpack.c.l.b16 %v1539
      %v2261 = vunpack.c.l.b16 %v1540
      %v2262 = vunpack.c.l.b16 %v1541
      %v2263 = vunpack.c.l.b16 %v1542
      %v2264 = vunpack.c.l.b16 %v1543
      %v2265 = vunpack.c.l.b16 %v1544
      %v2266 = vunpack.c.l.b16 %v1545
      %v2267 = vunpack.c.l.b16 %v1546
      %v2268 = vunpack.c.l.b16 %v1547
      %v2269 = vunpack.c.l.b16 %v1548
      %v2270 = vunpack.c.l.b16 %v1549
      %v2271 = vunpack.c.l.b16 %v1550
      %v2272 = vpack.c.b16 %v2241, %v2240
      %v2273 = vpack.c.b16 %v2243, %v2242
      %v2274 = vpack.c.b16 %v2245, %v2244
      %v2275 = vpack.c.b16 %v2247, %v2246
      %v2276 = vpack.c.b16 %v2249, %v2248
      %v2277 = vpack.c.b16 %v2251, %v2250
      %v2278 = vpack.c.b16 %v2253, %v2252
      %v2279 = vpack.c.b16 %v2255, %v2254
      %v2280 = vpack.c.b16 %v2257, %v2256
      %v2281 = vpack.c.b16 %v2259, %v2258
      %v2282 = vpack.c.b16 %v2261, %v2260
      %v2283 = vpack.c.b16 %v2263, %v2262
      %v2284 = vpack.c.b16 %v2265, %v2264
      %v2285 = vpack.c.b16 %v2267, %v2266
      %v2286 = vpack.c.b16 %v2269, %v2268
      %v2287 = vpack.c.b16 %v2271, %v2270
      %2288 = vrot.lane.b32.xlu0 %v2272, 64
      %v2289 = vpop.permute.xlu0 %2288
      %2290 = vrot.lane.b32.xlu0 %v2273, 64
      %v2291 = vpop.permute.xlu0 %2290
      %2292 = vrot.lane.b32.xlu0 %v2274, 64
      %v2293 = vpop.permute.xlu0 %2292
      %2294 = vrot.lane.b32.xlu0 %v2275, 64
      %v2295 = vpop.permute.xlu0 %2294
      %2296 = vrot.lane.b32.xlu0 %v2276, 64
      %v2297 = vpop.permute.xlu0 %2296
      %2298 = vrot.lane.b32.xlu0 %v2277, 64
      %v2299 = vpop.permute.xlu0 %2298
      %2300 = vrot.lane.b32.xlu0 %v2278, 64
      %v2301 = vpop.permute.xlu0 %2300
      %2302 = vrot.lane.b32.xlu0 %v2279, 64
      %v2303 = vpop.permute.xlu0 %2302
      %2304 = vrot.lane.b32.xlu0 %v2280, 64
      %v2305 = vpop.permute.xlu0 %2304
      %2306 = vrot.lane.b32.xlu0 %v2281, 64
      %v2307 = vpop.permute.xlu0 %2306
      %2308 = vrot.lane.b32.xlu0 %v2282, 64
      %v2309 = vpop.permute.xlu0 %2308
      %2310 = vrot.lane.b32.xlu0 %v2283, 64
      %v2311 = vpop.permute.xlu0 %2310
      %2312 = vrot.lane.b32.xlu0 %v2284, 64
      %v2313 = vpop.permute.xlu0 %2312
      %2314 = vrot.lane.b32.xlu0 %v2285, 64
      %v2315 = vpop.permute.xlu0 %2314
      %2316 = vrot.lane.b32.xlu0 %v2286, 64
      %v2317 = vpop.permute.xlu0 %2316
      %2318 = vrot.lane.b32.xlu0 %v2287, 64
      %v2319 = vpop.permute.xlu0 %2318
      %v2352 = vunpack.c.l.b16 %v1584
      %v2353 = vunpack.c.l.b16 %v1585
      %v2354 = vunpack.c.l.b16 %v1586
      %v2355 = vunpack.c.l.b16 %v1587
      %v2356 = vunpack.c.l.b16 %v1588
      %v2357 = vunpack.c.l.b16 %v1589
      %v2358 = vunpack.c.l.b16 %v1590
      %v2359 = vunpack.c.l.b16 %v1591
      %v2360 = vunpack.c.l.b16 %v1592
      %v2361 = vunpack.c.l.b16 %v1593
      %v2362 = vunpack.c.l.b16 %v1594
      %v2363 = vunpack.c.l.b16 %v1595
      %v2364 = vunpack.c.l.b16 %v1596
      %v2365 = vunpack.c.l.b16 %v1597
      %v2366 = vunpack.c.l.b16 %v1598
      %v2367 = vunpack.c.l.b16 %v1599
      %v2368 = vunpack.c.l.b16 %v1600
      %v2369 = vunpack.c.l.b16 %v1601
      %v2370 = vunpack.c.l.b16 %v1602
      %v2371 = vunpack.c.l.b16 %v1603
      %v2372 = vunpack.c.l.b16 %v1604
      %v2373 = vunpack.c.l.b16 %v1605
      %v2374 = vunpack.c.l.b16 %v1606
      %v2375 = vunpack.c.l.b16 %v1607
      %v2376 = vunpack.c.l.b16 %v1608
      %v2377 = vunpack.c.l.b16 %v1609
      %v2378 = vunpack.c.l.b16 %v1610
      %v2379 = vunpack.c.l.b16 %v1611
      %v2380 = vunpack.c.l.b16 %v1612
      %v2381 = vunpack.c.l.b16 %v1613
      %v2382 = vunpack.c.l.b16 %v1614
      %v2383 = vunpack.c.l.b16 %v1615
      %v2384 = vpack.c.b16 %v2353, %v2352
      %v2385 = vpack.c.b16 %v2355, %v2354
      %v2386 = vpack.c.b16 %v2357, %v2356
      %v2387 = vpack.c.b16 %v2359, %v2358
      %v2388 = vpack.c.b16 %v2361, %v2360
      %v2389 = vpack.c.b16 %v2363, %v2362
      %v2390 = vpack.c.b16 %v2365, %v2364
      %v2391 = vpack.c.b16 %v2367, %v2366
      %v2392 = vpack.c.b16 %v2369, %v2368
      %v2393 = vpack.c.b16 %v2371, %v2370
      %v2394 = vpack.c.b16 %v2373, %v2372
      %v2395 = vpack.c.b16 %v2375, %v2374
      %v2396 = vpack.c.b16 %v2377, %v2376
      %v2397 = vpack.c.b16 %v2379, %v2378
      %v2398 = vpack.c.b16 %v2381, %v2380
      %v2399 = vpack.c.b16 %v2383, %v2382
      %v2432 = vunpack.c.l.b16 %v1648
      %v2433 = vunpack.c.l.b16 %v1649
      %v2434 = vunpack.c.l.b16 %v1650
      %v2435 = vunpack.c.l.b16 %v1651
      %v2436 = vunpack.c.l.b16 %v1652
      %v2437 = vunpack.c.l.b16 %v1653
      %v2438 = vunpack.c.l.b16 %v1654
      %v2439 = vunpack.c.l.b16 %v1655
      %v2440 = vunpack.c.l.b16 %v1656
      %v2441 = vunpack.c.l.b16 %v1657
      %v2442 = vunpack.c.l.b16 %v1658
      %v2443 = vunpack.c.l.b16 %v1659
      %v2444 = vunpack.c.l.b16 %v1660
      %v2445 = vunpack.c.l.b16 %v1661
      %v2446 = vunpack.c.l.b16 %v1662
      %v2447 = vunpack.c.l.b16 %v1663
      %v2448 = vunpack.c.l.b16 %v1664
      %v2449 = vunpack.c.l.b16 %v1665
      %v2450 = vunpack.c.l.b16 %v1666
      %v2451 = vunpack.c.l.b16 %v1667
      %v2452 = vunpack.c.l.b16 %v1668
      %v2453 = vunpack.c.l.b16 %v1669
      %v2454 = vunpack.c.l.b16 %v1670
      %v2455 = vunpack.c.l.b16 %v1671
      %v2456 = vunpack.c.l.b16 %v1672
      %v2457 = vunpack.c.l.b16 %v1673
      %v2458 = vunpack.c.l.b16 %v1674
      %v2459 = vunpack.c.l.b16 %v1675
      %v2460 = vunpack.c.l.b16 %v1676
      %v2461 = vunpack.c.l.b16 %v1677
      %v2462 = vunpack.c.l.b16 %v1678
      %v2463 = vunpack.c.l.b16 %v1679
      %v2464 = vpack.c.b16 %v2433, %v2432
      %v2465 = vpack.c.b16 %v2435, %v2434
      %v2466 = vpack.c.b16 %v2437, %v2436
      %v2467 = vpack.c.b16 %v2439, %v2438
      %v2468 = vpack.c.b16 %v2441, %v2440
      %v2469 = vpack.c.b16 %v2443, %v2442
      %v2470 = vpack.c.b16 %v2445, %v2444
      %v2471 = vpack.c.b16 %v2447, %v2446
      %v2472 = vpack.c.b16 %v2449, %v2448
      %v2473 = vpack.c.b16 %v2451, %v2450
      %v2474 = vpack.c.b16 %v2453, %v2452
      %v2475 = vpack.c.b16 %v2455, %v2454
      %v2476 = vpack.c.b16 %v2457, %v2456
      %v2477 = vpack.c.b16 %v2459, %v2458
      %v2478 = vpack.c.b16 %v2461, %v2460
      %v2479 = vpack.c.b16 %v2463, %v2462
      %2480 = vrot.lane.b32.xlu0 %v2464, 64
      %v2481 = vpop.permute.xlu0 %2480
      %2482 = vrot.lane.b32.xlu0 %v2465, 64
      %v2483 = vpop.permute.xlu0 %2482
      %2484 = vrot.lane.b32.xlu0 %v2466, 64
      %v2485 = vpop.permute.xlu0 %2484
      %2486 = vrot.lane.b32.xlu0 %v2467, 64
      %v2487 = vpop.permute.xlu0 %2486
      %2488 = vrot.lane.b32.xlu0 %v2468, 64
      %v2489 = vpop.permute.xlu0 %2488
      %2490 = vrot.lane.b32.xlu0 %v2469, 64
      %v2491 = vpop.permute.xlu0 %2490
      %2492 = vrot.lane.b32.xlu0 %v2470, 64
      %v2493 = vpop.permute.xlu0 %2492
      %2494 = vrot.lane.b32.xlu0 %v2471, 64
      %v2495 = vpop.permute.xlu0 %2494
      %2496 = vrot.lane.b32.xlu0 %v2472, 64
      %v2497 = vpop.permute.xlu0 %2496
      %2498 = vrot.lane.b32.xlu0 %v2473, 64
      %v2499 = vpop.permute.xlu0 %2498
      %2500 = vrot.lane.b32.xlu0 %v2474, 64
      %v2501 = vpop.permute.xlu0 %2500
      %2502 = vrot.lane.b32.xlu0 %v2475, 64
      %v2503 = vpop.permute.xlu0 %2502
      %2504 = vrot.lane.b32.xlu0 %v2476, 64
      %v2505 = vpop.permute.xlu0 %2504
      %2506 = vrot.lane.b32.xlu0 %v2477, 64
      %v2507 = vpop.permute.xlu0 %2506
      %2508 = vrot.lane.b32.xlu0 %v2478, 64
      %v2509 = vpop.permute.xlu0 %2508
      %2510 = vrot.lane.b32.xlu0 %v2479, 64
      %v2511 = vpop.permute.xlu0 %2510
      %v2544 = vunpack.c.l.b16 %v1712
      %v2545 = vunpack.c.l.b16 %v1713
      %v2546 = vunpack.c.l.b16 %v1714
      %v2547 = vunpack.c.l.b16 %v1715
      %v2548 = vunpack.c.l.b16 %v1716
      %v2549 = vunpack.c.l.b16 %v1717
      %v2550 = vunpack.c.l.b16 %v1718
      %v2551 = vunpack.c.l.b16 %v1719
      %v2552 = vunpack.c.l.b16 %v1720
      %v2553 = vunpack.c.l.b16 %v1721
      %v2554 = vunpack.c.l.b16 %v1722
      %v2555 = vunpack.c.l.b16 %v1723
      %v2556 = vunpack.c.l.b16 %v1724
      %v2557 = vunpack.c.l.b16 %v1725
      %v2558 = vunpack.c.l.b16 %v1726
      %v2559 = vunpack.c.l.b16 %v1727
      %v2560 = vunpack.c.l.b16 %v1728
      %v2561 = vunpack.c.l.b16 %v1729
      %v2562 = vunpack.c.l.b16 %v1730
      %v2563 = vunpack.c.l.b16 %v1731
      %v2564 = vunpack.c.l.b16 %v1732
      %v2565 = vunpack.c.l.b16 %v1733
      %v2566 = vunpack.c.l.b16 %v1734
      %v2567 = vunpack.c.l.b16 %v1735
      %v2568 = vunpack.c.l.b16 %v1736
      %v2569 = vunpack.c.l.b16 %v1737
      %v2570 = vunpack.c.l.b16 %v1738
      %v2571 = vunpack.c.l.b16 %v1739
      %v2572 = vunpack.c.l.b16 %v1740
      %v2573 = vunpack.c.l.b16 %v1741
      %v2574 = vunpack.c.l.b16 %v1742
      %v2575 = vunpack.c.l.b16 %v1743
      %v2576 = vpack.c.b16 %v2545, %v2544
      %v2577 = vpack.c.b16 %v2547, %v2546
      %v2578 = vpack.c.b16 %v2549, %v2548
      %v2579 = vpack.c.b16 %v2551, %v2550
      %v2580 = vpack.c.b16 %v2553, %v2552
      %v2581 = vpack.c.b16 %v2555, %v2554
      %v2582 = vpack.c.b16 %v2557, %v2556
      %v2583 = vpack.c.b16 %v2559, %v2558
      %v2584 = vpack.c.b16 %v2561, %v2560
      %v2585 = vpack.c.b16 %v2563, %v2562
      %v2586 = vpack.c.b16 %v2565, %v2564
      %v2587 = vpack.c.b16 %v2567, %v2566
      %v2588 = vpack.c.b16 %v2569, %v2568
      %v2589 = vpack.c.b16 %v2571, %v2570
      %v2590 = vpack.c.b16 %v2573, %v2572
      %v2591 = vpack.c.b16 %v2575, %v2574
      %v2594 = vsel %vm332, %v1808, %v1905
      %v2598 = vsel %vm332, %v1809, %v1907
      %v2602 = vsel %vm332, %v1810, %v1909
      %v2606 = vsel %vm332, %v1811, %v1911
      %v2610 = vsel %vm332, %v1812, %v1913
      %v2614 = vsel %vm332, %v1813, %v1915
      %v2618 = vsel %vm332, %v1814, %v1917
      %v2622 = vsel %vm332, %v1815, %v1919
      %v2626 = vsel %vm332, %v1816, %v1921
      %v2630 = vsel %vm332, %v1817, %v1923
      %v2634 = vsel %vm332, %v1818, %v1925
      %v2638 = vsel %vm332, %v1819, %v1927
      %v2642 = vsel %vm332, %v1820, %v1929
      %v2646 = vsel %vm332, %v1821, %v1931
      %v2650 = vsel %vm332, %v1822, %v1933
      %v2654 = vsel %vm332, %v1823, %v1935
      %v2658 = vsel %vm332, %v2000, %v2097
      %v2662 = vsel %vm332, %v2001, %v2099
      %v2666 = vsel %vm332, %v2002, %v2101
      %v2670 = vsel %vm332, %v2003, %v2103
      %v2674 = vsel %vm332, %v2004, %v2105
      %v2678 = vsel %vm332, %v2005, %v2107
      %v2682 = vsel %vm332, %v2006, %v2109
      %v2686 = vsel %vm332, %v2007, %v2111
      %v2690 = vsel %vm332, %v2008, %v2113
      %v2694 = vsel %vm332, %v2009, %v2115
      %v2698 = vsel %vm332, %v2010, %v2117
      %v2702 = vsel %vm332, %v2011, %v2119
      %v2706 = vsel %vm332, %v2012, %v2121
      %v2710 = vsel %vm332, %v2013, %v2123
      %v2714 = vsel %vm332, %v2014, %v2125
      %v2718 = vsel %vm332, %v2015, %v2127
      %v2722 = vsel %vm332, %v2192, %v2289
      %v2726 = vsel %vm332, %v2193, %v2291
      %v2730 = vsel %vm332, %v2194, %v2293
      %v2734 = vsel %vm332, %v2195, %v2295
      %v2738 = vsel %vm332, %v2196, %v2297
      %v2742 = vsel %vm332, %v2197, %v2299
      %v2746 = vsel %vm332, %v2198, %v2301
      %v2750 = vsel %vm332, %v2199, %v2303
      %v2754 = vsel %vm332, %v2200, %v2305
      %v2758 = vsel %vm332, %v2201, %v2307
      %v2762 = vsel %vm332, %v2202, %v2309
      %v2766 = vsel %vm332, %v2203, %v2311
      %v2770 = vsel %vm332, %v2204, %v2313
      %v2774 = vsel %vm332, %v2205, %v2315
      %v2778 = vsel %vm332, %v2206, %v2317
      %v2782 = vsel %vm332, %v2207, %v2319
      %v2786 = vsel %vm332, %v2384, %v2481
      %v2790 = vsel %vm332, %v2385, %v2483
      %v2794 = vsel %vm332, %v2386, %v2485
      %v2798 = vsel %vm332, %v2387, %v2487
      %v2802 = vsel %vm332, %v2388, %v2489
      %v2806 = vsel %vm332, %v2389, %v2491
      %v2810 = vsel %vm332, %v2390, %v2493
      %v2814 = vsel %vm332, %v2391, %v2495
      %v2818 = vsel %vm332, %v2392, %v2497
      %v2822 = vsel %vm332, %v2393, %v2499
      %v2826 = vsel %vm332, %v2394, %v2501
      %v2830 = vsel %vm332, %v2395, %v2503
      %v2834 = vsel %vm332, %v2396, %v2505
      %v2838 = vsel %vm332, %v2397, %v2507
      %v2842 = vsel %vm332, %v2398, %v2509
      %v2846 = vsel %vm332, %v2399, %v2511
      %s2848 = scalar_lea.vmem [#allocation2], 432
      %v2849 = vld [vmem:[%s2848] sm:$0xff]
      %v2850 = vld [vmem:[%s2848 + $0x8] sm:$0xff]
      %v2851 = vld [vmem:[%s2848 + $0x18] sm:$0xff]
      %v2852 = vld [vmem:[%s2848 + $0x20] sm:$0xff]
      %v2853 = vld [vmem:[%s2848 + $0x30] sm:$0xff]
      %v2854 = vld [vmem:[%s2848 + $0x38] sm:$0xff]
      %v2855 = vld [vmem:[%s2848 + $0x48] sm:$0xff]
      %v2856 = vld [vmem:[%s2848 + $0x50] sm:$0xff]
      %v2857 = vld [vmem:[%s2848 + $0x60] sm:$0xff]
      %v2858 = vld [vmem:[%s2848 + $0x68] sm:$0xff]
      %v2859 = vld [vmem:[%s2848 + $0x78] sm:$0xff]
      %v2860 = vld [vmem:[%s2848 + $0x80] sm:$0xff]
      %v2861 = vld [vmem:[%s2848 + $0x90] sm:$0xff]
      %v2862 = vld [vmem:[%s2848 + $0x98] sm:$0xff]
      %v2863 = vld [vmem:[%s2848 + $0xa8] sm:$0xff]
      %v2864 = vld [vmem:[%s2848 + $0xb0] sm:$0xff]
      %v2865 = vld [vmem:[%s2848 + $0xc0] sm:$0xff]
      %v2866 = vld [vmem:[%s2848 + $0xc8] sm:$0xff]
      %v2867 = vld [vmem:[%s2848 + $0xd8] sm:$0xff]
      %v2868 = vld [vmem:[%s2848 + $0xe0] sm:$0xff]
      %v2869 = vld [vmem:[%s2848 + $0xf0] sm:$0xff]
      %v2870 = vld [vmem:[%s2848 + $0xf8] sm:$0xff]
      %v2871 = vld [vmem:[%s2848 + $0x108] sm:$0xff]
      %v2872 = vld [vmem:[%s2848 + $0x110] sm:$0xff]
      %v2873 = vld [vmem:[%s2848 + $0x120] sm:$0xff]
      %v2874 = vld [vmem:[%s2848 + $0x128] sm:$0xff]
      %v2875 = vld [vmem:[%s2848 + $0x138] sm:$0xff]
      %v2876 = vld [vmem:[%s2848 + $0x140] sm:$0xff]
      %v2877 = vld [vmem:[%s2848 + $0x150] sm:$0xff]
      %v2878 = vld [vmem:[%s2848 + $0x158] sm:$0xff]
      %v2879 = vld [vmem:[%s2848 + $0x168] sm:$0xff]
      %v2880 = vld [vmem:[%s2848 + $0x170] sm:$0xff]
      %v2881 = vpack.c.bf16 %v2849, %v2849
      %v2882 = vpack.c.bf16 %v2850, %v2850
      %v2883 = vpack.c.bf16 %v2851, %v2851
      %v2884 = vpack.c.bf16 %v2852, %v2852
      %v2885 = vpack.c.bf16 %v2853, %v2853
      %v2886 = vpack.c.bf16 %v2854, %v2854
      %v2887 = vpack.c.bf16 %v2855, %v2855
      %v2888 = vpack.c.bf16 %v2856, %v2856
      %v2889 = vpack.c.bf16 %v2857, %v2857
      %v2890 = vpack.c.bf16 %v2858, %v2858
      %v2891 = vpack.c.bf16 %v2859, %v2859
      %v2892 = vpack.c.bf16 %v2860, %v2860
      %v2893 = vpack.c.bf16 %v2861, %v2861
      %v2894 = vpack.c.bf16 %v2862, %v2862
      %v2895 = vpack.c.bf16 %v2863, %v2863
      %v2896 = vpack.c.bf16 %v2864, %v2864
      %v2897 = vpack.c.bf16 %v2865, %v2865
      %v2898 = vpack.c.bf16 %v2866, %v2866
      %v2899 = vpack.c.bf16 %v2867, %v2867
      %v2900 = vpack.c.bf16 %v2868, %v2868
      %v2901 = vpack.c.bf16 %v2869, %v2869
      %v2902 = vpack.c.bf16 %v2870, %v2870
      %v2903 = vpack.c.bf16 %v2871, %v2871
      %v2904 = vpack.c.bf16 %v2872, %v2872
      %v2905 = vpack.c.bf16 %v2873, %v2873
      %v2906 = vpack.c.bf16 %v2874, %v2874
      %v2907 = vpack.c.bf16 %v2875, %v2875
      %v2908 = vpack.c.bf16 %v2876, %v2876
      %v2909 = vpack.c.bf16 %v2877, %v2877
      %v2910 = vpack.c.bf16 %v2878, %v2878
      %v2911 = vpack.c.bf16 %v2879, %v2879
      %v2912 = vpack.c.bf16 %v2880, %v2880
      %v2913 = vld [vmem:[%s2848 + $0x1] sm:$0xff]
      %v2914 = vld [vmem:[%s2848 + $0x9] sm:$0xff]
      %v2915 = vld [vmem:[%s2848 + $0x19] sm:$0xff]
      %v2916 = vld [vmem:[%s2848 + $0x21] sm:$0xff]
      %v2917 = vld [vmem:[%s2848 + $0x31] sm:$0xff]
      %v2918 = vld [vmem:[%s2848 + $0x39] sm:$0xff]
      %v2919 = vld [vmem:[%s2848 + $0x49] sm:$0xff]
      %v2920 = vld [vmem:[%s2848 + $0x51] sm:$0xff]
      %v2921 = vld [vmem:[%s2848 + $0x61] sm:$0xff]
      %v2922 = vld [vmem:[%s2848 + $0x69] sm:$0xff]
      %v2923 = vld [vmem:[%s2848 + $0x79] sm:$0xff]
      %v2924 = vld [vmem:[%s2848 + $0x81] sm:$0xff]
      %v2925 = vld [vmem:[%s2848 + $0x91] sm:$0xff]
      %v2926 = vld [vmem:[%s2848 + $0x99] sm:$0xff]
      %v2927 = vld [vmem:[%s2848 + $0xa9] sm:$0xff]
      %v2928 = vld [vmem:[%s2848 + $0xb1] sm:$0xff]
      %v2929 = vld [vmem:[%s2848 + $0xc1] sm:$0xff]
      %v2930 = vld [vmem:[%s2848 + $0xc9] sm:$0xff]
      %v2931 = vld [vmem:[%s2848 + $0xd9] sm:$0xff]
      %v2932 = vld [vmem:[%s2848 + $0xe1] sm:$0xff]
      %v2933 = vld [vmem:[%s2848 + $0xf1] sm:$0xff]
      %v2934 = vld [vmem:[%s2848 + $0xf9] sm:$0xff]
      %v2935 = vld [vmem:[%s2848 + $0x109] sm:$0xff]
      %v2936 = vld [vmem:[%s2848 + $0x111] sm:$0xff]
      %v2937 = vld [vmem:[%s2848 + $0x121] sm:$0xff]
      %v2938 = vld [vmem:[%s2848 + $0x129] sm:$0xff]
      %v2939 = vld [vmem:[%s2848 + $0x139] sm:$0xff]
      %v2940 = vld [vmem:[%s2848 + $0x141] sm:$0xff]
      %v2941 = vld [vmem:[%s2848 + $0x151] sm:$0xff]
      %v2942 = vld [vmem:[%s2848 + $0x159] sm:$0xff]
      %v2943 = vld [vmem:[%s2848 + $0x169] sm:$0xff]
      %v2944 = vld [vmem:[%s2848 + $0x171] sm:$0xff]
      %v2945 = vpack.c.bf16 %v2913, %v2913
      %v2946 = vpack.c.bf16 %v2914, %v2914
      %v2947 = vpack.c.bf16 %v2915, %v2915
      %v2948 = vpack.c.bf16 %v2916, %v2916
      %v2949 = vpack.c.bf16 %v2917, %v2917
      %v2950 = vpack.c.bf16 %v2918, %v2918
      %v2951 = vpack.c.bf16 %v2919, %v2919
      %v2952 = vpack.c.bf16 %v2920, %v2920
      %v2953 = vpack.c.bf16 %v2921, %v2921
      %v2954 = vpack.c.bf16 %v2922, %v2922
      %v2955 = vpack.c.bf16 %v2923, %v2923
      %v2956 = vpack.c.bf16 %v2924, %v2924
      %v2957 = vpack.c.bf16 %v2925, %v2925
      %v2958 = vpack.c.bf16 %v2926, %v2926
      %v2959 = vpack.c.bf16 %v2927, %v2927
      %v2960 = vpack.c.bf16 %v2928, %v2928
      %v2961 = vpack.c.bf16 %v2929, %v2929
      %v2962 = vpack.c.bf16 %v2930, %v2930
      %v2963 = vpack.c.bf16 %v2931, %v2931
      %v2964 = vpack.c.bf16 %v2932, %v2932
      %v2965 = vpack.c.bf16 %v2933, %v2933
      %v2966 = vpack.c.bf16 %v2934, %v2934
      %v2967 = vpack.c.bf16 %v2935, %v2935
      %v2968 = vpack.c.bf16 %v2936, %v2936
      %v2969 = vpack.c.bf16 %v2937, %v2937
      %v2970 = vpack.c.bf16 %v2938, %v2938
      %v2971 = vpack.c.bf16 %v2939, %v2939
      %v2972 = vpack.c.bf16 %v2940, %v2940
      %v2973 = vpack.c.bf16 %v2941, %v2941
      %v2974 = vpack.c.bf16 %v2942, %v2942
      %v2975 = vpack.c.bf16 %v2943, %v2943
      %v2976 = vpack.c.bf16 %v2944, %v2944
      %v2977 = vld [vmem:[%s2848 + $0x2] sm:$0xff]
      %v2978 = vld [vmem:[%s2848 + $0xa] sm:$0xff]
      %v2979 = vld [vmem:[%s2848 + $0x1a] sm:$0xff]
      %v2980 = vld [vmem:[%s2848 + $0x22] sm:$0xff]
      %v2981 = vld [vmem:[%s2848 + $0x32] sm:$0xff]
      %v2982 = vld [vmem:[%s2848 + $0x3a] sm:$0xff]
      %v2983 = vld [vmem:[%s2848 + $0x4a] sm:$0xff]
      %v2984 = vld [vmem:[%s2848 + $0x52] sm:$0xff]
      %v2985 = vld [vmem:[%s2848 + $0x62] sm:$0xff]
      %v2986 = vld [vmem:[%s2848 + $0x6a] sm:$0xff]
      %v2987 = vld [vmem:[%s2848 + $0x7a] sm:$0xff]
      %v2988 = vld [vmem:[%s2848 + $0x82] sm:$0xff]
      %v2989 = vld [vmem:[%s2848 + $0x92] sm:$0xff]
      %v2990 = vld [vmem:[%s2848 + $0x9a] sm:$0xff]
      %v2991 = vld [vmem:[%s2848 + $0xaa] sm:$0xff]
      %v2992 = vld [vmem:[%s2848 + $0xb2] sm:$0xff]
      %v2993 = vld [vmem:[%s2848 + $0xc2] sm:$0xff]
      %v2994 = vld [vmem:[%s2848 + $0xca] sm:$0xff]
      %v2995 = vld [vmem:[%s2848 + $0xda] sm:$0xff]
      %v2996 = vld [vmem:[%s2848 + $0xe2] sm:$0xff]
      %v2997 = vld [vmem:[%s2848 + $0xf2] sm:$0xff]
      %v2998 = vld [vmem:[%s2848 + $0xfa] sm:$0xff]
      %v2999 = vld [vmem:[%s2848 + $0x10a] sm:$0xff]
      %v3000 = vld [vmem:[%s2848 + $0x112] sm:$0xff]
      %v3001 = vld [vmem:[%s2848 + $0x122] sm:$0xff]
      %v3002 = vld [vmem:[%s2848 + $0x12a] sm:$0xff]
      %v3003 = vld [vmem:[%s2848 + $0x13a] sm:$0xff]
      %v3004 = vld [vmem:[%s2848 + $0x142] sm:$0xff]
      %v3005 = vld [vmem:[%s2848 + $0x152] sm:$0xff]
      %v3006 = vld [vmem:[%s2848 + $0x15a] sm:$0xff]
      %v3007 = vld [vmem:[%s2848 + $0x16a] sm:$0xff]
      %v3008 = vld [vmem:[%s2848 + $0x172] sm:$0xff]
      %v3009 = vpack.c.bf16 %v2977, %v2977
      %v3010 = vpack.c.bf16 %v2978, %v2978
      %v3011 = vpack.c.bf16 %v2979, %v2979
      %v3012 = vpack.c.bf16 %v2980, %v2980
      %v3013 = vpack.c.bf16 %v2981, %v2981
      %v3014 = vpack.c.bf16 %v2982, %v2982
      %v3015 = vpack.c.bf16 %v2983, %v2983
      %v3016 = vpack.c.bf16 %v2984, %v2984
      %v3017 = vpack.c.bf16 %v2985, %v2985
      %v3018 = vpack.c.bf16 %v2986, %v2986
      %v3019 = vpack.c.bf16 %v2987, %v2987
      %v3020 = vpack.c.bf16 %v2988, %v2988
      %v3021 = vpack.c.bf16 %v2989, %v2989
      %v3022 = vpack.c.bf16 %v2990, %v2990
      %v3023 = vpack.c.bf16 %v2991, %v2991
      %v3024 = vpack.c.bf16 %v2992, %v2992
      %v3025 = vpack.c.bf16 %v2993, %v2993
      %v3026 = vpack.c.bf16 %v2994, %v2994
      %v3027 = vpack.c.bf16 %v2995, %v2995
      %v3028 = vpack.c.bf16 %v2996, %v2996
      %v3029 = vpack.c.bf16 %v2997, %v2997
      %v3030 = vpack.c.bf16 %v2998, %v2998
      %v3031 = vpack.c.bf16 %v2999, %v2999
      %v3032 = vpack.c.bf16 %v3000, %v3000
      %v3033 = vpack.c.bf16 %v3001, %v3001
      %v3034 = vpack.c.bf16 %v3002, %v3002
      %v3035 = vpack.c.bf16 %v3003, %v3003
      %v3036 = vpack.c.bf16 %v3004, %v3004
      %v3037 = vpack.c.bf16 %v3005, %v3005
      %v3038 = vpack.c.bf16 %v3006, %v3006
      %v3039 = vpack.c.bf16 %v3007, %v3007
      %v3040 = vpack.c.bf16 %v3008, %v3008
      %s3041 = scalar_lea.vmem [#allocation2], 456
      %v3042 = vld [vmem:[%s3041] sm:$0xff]
      %v3043 = vld [vmem:[%s3041 + $0x8] sm:$0xff]
      %v3044 = vld [vmem:[%s3041 + $0x18] sm:$0xff]
      %v3045 = vld [vmem:[%s3041 + $0x20] sm:$0xff]
      %v3046 = vld [vmem:[%s3041 + $0x30] sm:$0xff]
      %v3047 = vld [vmem:[%s3041 + $0x38] sm:$0xff]
      %v3048 = vld [vmem:[%s3041 + $0x48] sm:$0xff]
      %v3049 = vld [vmem:[%s3041 + $0x50] sm:$0xff]
      %v3050 = vld [vmem:[%s3041 + $0x60] sm:$0xff]
      %v3051 = vld [vmem:[%s3041 + $0x68] sm:$0xff]
      %v3052 = vld [vmem:[%s3041 + $0x78] sm:$0xff]
      %v3053 = vld [vmem:[%s3041 + $0x80] sm:$0xff]
      %v3054 = vld [vmem:[%s3041 + $0x90] sm:$0xff]
      %v3055 = vld [vmem:[%s3041 + $0x98] sm:$0xff]
      %v3056 = vld [vmem:[%s3041 + $0xa8] sm:$0xff]
      %v3057 = vld [vmem:[%s3041 + $0xb0] sm:$0xff]
      %v3058 = vld [vmem:[%s3041 + $0xc0] sm:$0xff]
      %v3059 = vld [vmem:[%s3041 + $0xc8] sm:$0xff]
      %v3060 = vld [vmem:[%s3041 + $0xd8] sm:$0xff]
      %v3061 = vld [vmem:[%s3041 + $0xe0] sm:$0xff]
      %v3062 = vld [vmem:[%s3041 + $0xf0] sm:$0xff]
      %v3063 = vld [vmem:[%s3041 + $0xf8] sm:$0xff]
      %v3064 = vld [vmem:[%s3041 + $0x108] sm:$0xff]
      %v3065 = vld [vmem:[%s3041 + $0x110] sm:$0xff]
      %v3066 = vld [vmem:[%s3041 + $0x120] sm:$0xff]
      %v3067 = vld [vmem:[%s3041 + $0x128] sm:$0xff]
      %v3068 = vld [vmem:[%s3041 + $0x138] sm:$0xff]
      %v3069 = vld [vmem:[%s3041 + $0x140] sm:$0xff]
      %v3070 = vld [vmem:[%s3041 + $0x150] sm:$0xff]
      %v3071 = vld [vmem:[%s3041 + $0x158] sm:$0xff]
      %v3072 = vld [vmem:[%s3041 + $0x168] sm:$0xff]
      %v3073 = vld [vmem:[%s3041 + $0x170] sm:$0xff]
      %v3074 = vpack.c.bf16 %v3042, %v3042
      %v3075 = vpack.c.bf16 %v3043, %v3043
      %v3076 = vpack.c.bf16 %v3044, %v3044
      %v3077 = vpack.c.bf16 %v3045, %v3045
      %v3078 = vpack.c.bf16 %v3046, %v3046
      %v3079 = vpack.c.bf16 %v3047, %v3047
      %v3080 = vpack.c.bf16 %v3048, %v3048
      %v3081 = vpack.c.bf16 %v3049, %v3049
      %v3082 = vpack.c.bf16 %v3050, %v3050
      %v3083 = vpack.c.bf16 %v3051, %v3051
      %v3084 = vpack.c.bf16 %v3052, %v3052
      %v3085 = vpack.c.bf16 %v3053, %v3053
      %v3086 = vpack.c.bf16 %v3054, %v3054
      %v3087 = vpack.c.bf16 %v3055, %v3055
      %v3088 = vpack.c.bf16 %v3056, %v3056
      %v3089 = vpack.c.bf16 %v3057, %v3057
      %v3090 = vpack.c.bf16 %v3058, %v3058
      %v3091 = vpack.c.bf16 %v3059, %v3059
      %v3092 = vpack.c.bf16 %v3060, %v3060
      %v3093 = vpack.c.bf16 %v3061, %v3061
      %v3094 = vpack.c.bf16 %v3062, %v3062
      %v3095 = vpack.c.bf16 %v3063, %v3063
      %v3096 = vpack.c.bf16 %v3064, %v3064
      %v3097 = vpack.c.bf16 %v3065, %v3065
      %v3098 = vpack.c.bf16 %v3066, %v3066
      %v3099 = vpack.c.bf16 %v3067, %v3067
      %v3100 = vpack.c.bf16 %v3068, %v3068
      %v3101 = vpack.c.bf16 %v3069, %v3069
      %v3102 = vpack.c.bf16 %v3070, %v3070
      %v3103 = vpack.c.bf16 %v3071, %v3071
      %v3104 = vpack.c.bf16 %v3072, %v3072
      %v3105 = vpack.c.bf16 %v3073, %v3073
      %v3106 = vld [vmem:[%s3041 + $0x1] sm:$0xff]
      %v3107 = vld [vmem:[%s3041 + $0x9] sm:$0xff]
      %v3108 = vld [vmem:[%s3041 + $0x19] sm:$0xff]
      %v3109 = vld [vmem:[%s3041 + $0x21] sm:$0xff]
      %v3110 = vld [vmem:[%s3041 + $0x31] sm:$0xff]
      %v3111 = vld [vmem:[%s3041 + $0x39] sm:$0xff]
      %v3112 = vld [vmem:[%s3041 + $0x49] sm:$0xff]
      %v3113 = vld [vmem:[%s3041 + $0x51] sm:$0xff]
      %v3114 = vld [vmem:[%s3041 + $0x61] sm:$0xff]
      %v3115 = vld [vmem:[%s3041 + $0x69] sm:$0xff]
      %v3116 = vld [vmem:[%s3041 + $0x79] sm:$0xff]
      %v3117 = vld [vmem:[%s3041 + $0x81] sm:$0xff]
      %v3118 = vld [vmem:[%s3041 + $0x91] sm:$0xff]
      %v3119 = vld [vmem:[%s3041 + $0x99] sm:$0xff]
      %v3120 = vld [vmem:[%s3041 + $0xa9] sm:$0xff]
      %v3121 = vld [vmem:[%s3041 + $0xb1] sm:$0xff]
      %v3122 = vld [vmem:[%s3041 + $0xc1] sm:$0xff]
      %v3123 = vld [vmem:[%s3041 + $0xc9] sm:$0xff]
      %v3124 = vld [vmem:[%s3041 + $0xd9] sm:$0xff]
      %v3125 = vld [vmem:[%s3041 + $0xe1] sm:$0xff]
      %v3126 = vld [vmem:[%s3041 + $0xf1] sm:$0xff]
      %v3127 = vld [vmem:[%s3041 + $0xf9] sm:$0xff]
      %v3128 = vld [vmem:[%s3041 + $0x109] sm:$0xff]
      %v3129 = vld [vmem:[%s3041 + $0x111] sm:$0xff]
      %v3130 = vld [vmem:[%s3041 + $0x121] sm:$0xff]
      %v3131 = vld [vmem:[%s3041 + $0x129] sm:$0xff]
      %v3132 = vld [vmem:[%s3041 + $0x139] sm:$0xff]
      %v3133 = vld [vmem:[%s3041 + $0x141] sm:$0xff]
      %v3134 = vld [vmem:[%s3041 + $0x151] sm:$0xff]
      %v3135 = vld [vmem:[%s3041 + $0x159] sm:$0xff]
      %v3136 = vld [vmem:[%s3041 + $0x169] sm:$0xff]
      %v3137 = vld [vmem:[%s3041 + $0x171] sm:$0xff]
      %v3138 = vpack.c.bf16 %v3106, %v3106
      %v3139 = vpack.c.bf16 %v3107, %v3107
      %v3140 = vpack.c.bf16 %v3108, %v3108
      %v3141 = vpack.c.bf16 %v3109, %v3109
      %v3142 = vpack.c.bf16 %v3110, %v3110
      %v3143 = vpack.c.bf16 %v3111, %v3111
      %v3144 = vpack.c.bf16 %v3112, %v3112
      %v3145 = vpack.c.bf16 %v3113, %v3113
      %v3146 = vpack.c.bf16 %v3114, %v3114
      %v3147 = vpack.c.bf16 %v3115, %v3115
      %v3148 = vpack.c.bf16 %v3116, %v3116
      %v3149 = vpack.c.bf16 %v3117, %v3117
      %v3150 = vpack.c.bf16 %v3118, %v3118
      %v3151 = vpack.c.bf16 %v3119, %v3119
      %v3152 = vpack.c.bf16 %v3120, %v3120
      %v3153 = vpack.c.bf16 %v3121, %v3121
      %v3154 = vpack.c.bf16 %v3122, %v3122
      %v3155 = vpack.c.bf16 %v3123, %v3123
      %v3156 = vpack.c.bf16 %v3124, %v3124
      %v3157 = vpack.c.bf16 %v3125, %v3125
      %v3158 = vpack.c.bf16 %v3126, %v3126
      %v3159 = vpack.c.bf16 %v3127, %v3127
      %v3160 = vpack.c.bf16 %v3128, %v3128
      %v3161 = vpack.c.bf16 %v3129, %v3129
      %v3162 = vpack.c.bf16 %v3130, %v3130
      %v3163 = vpack.c.bf16 %v3131, %v3131
      %v3164 = vpack.c.bf16 %v3132, %v3132
      %v3165 = vpack.c.bf16 %v3133, %v3133
      %v3166 = vpack.c.bf16 %v3134, %v3134
      %v3167 = vpack.c.bf16 %v3135, %v3135
      %v3168 = vpack.c.bf16 %v3136, %v3136
      %v3169 = vpack.c.bf16 %v3137, %v3137
      %v3170 = vld [vmem:[%s3041 + $0x2] sm:$0xff]
      %v3171 = vld [vmem:[%s3041 + $0xa] sm:$0xff]
      %v3172 = vld [vmem:[%s3041 + $0x1a] sm:$0xff]
      %v3173 = vld [vmem:[%s3041 + $0x22] sm:$0xff]
      %v3174 = vld [vmem:[%s3041 + $0x32] sm:$0xff]
      %v3175 = vld [vmem:[%s3041 + $0x3a] sm:$0xff]
      %v3176 = vld [vmem:[%s3041 + $0x4a] sm:$0xff]
      %v3177 = vld [vmem:[%s3041 + $0x52] sm:$0xff]
      %v3178 = vld [vmem:[%s3041 + $0x62] sm:$0xff]
      %v3179 = vld [vmem:[%s3041 + $0x6a] sm:$0xff]
      %v3180 = vld [vmem:[%s3041 + $0x7a] sm:$0xff]
      %v3181 = vld [vmem:[%s3041 + $0x82] sm:$0xff]
      %v3182 = vld [vmem:[%s3041 + $0x92] sm:$0xff]
      %v3183 = vld [vmem:[%s3041 + $0x9a] sm:$0xff]
      %v3184 = vld [vmem:[%s3041 + $0xaa] sm:$0xff]
      %v3185 = vld [vmem:[%s3041 + $0xb2] sm:$0xff]
      %v3186 = vld [vmem:[%s3041 + $0xc2] sm:$0xff]
      %v3187 = vld [vmem:[%s3041 + $0xca] sm:$0xff]
      %v3188 = vld [vmem:[%s3041 + $0xda] sm:$0xff]
      %v3189 = vld [vmem:[%s3041 + $0xe2] sm:$0xff]
      %v3190 = vld [vmem:[%s3041 + $0xf2] sm:$0xff]
      %v3191 = vld [vmem:[%s3041 + $0xfa] sm:$0xff]
      %v3192 = vld [vmem:[%s3041 + $0x10a] sm:$0xff]
      %v3193 = vld [vmem:[%s3041 + $0x112] sm:$0xff]
      %v3194 = vld [vmem:[%s3041 + $0x122] sm:$0xff]
      %v3195 = vld [vmem:[%s3041 + $0x12a] sm:$0xff]
      %v3196 = vld [vmem:[%s3041 + $0x13a] sm:$0xff]
      %v3197 = vld [vmem:[%s3041 + $0x142] sm:$0xff]
      %v3198 = vld [vmem:[%s3041 + $0x152] sm:$0xff]
      %v3199 = vld [vmem:[%s3041 + $0x15a] sm:$0xff]
      %v3200 = vld [vmem:[%s3041 + $0x16a] sm:$0xff]
      %v3201 = vld [vmem:[%s3041 + $0x172] sm:$0xff]
      %v3202 = vpack.c.bf16 %v3170, %v3170
      %v3203 = vpack.c.bf16 %v3171, %v3171
      %v3204 = vpack.c.bf16 %v3172, %v3172
      %v3205 = vpack.c.bf16 %v3173, %v3173
      %v3206 = vpack.c.bf16 %v3174, %v3174
      %v3207 = vpack.c.bf16 %v3175, %v3175
      %v3208 = vpack.c.bf16 %v3176, %v3176
      %v3209 = vpack.c.bf16 %v3177, %v3177
      %v3210 = vpack.c.bf16 %v3178, %v3178
      %v3211 = vpack.c.bf16 %v3179, %v3179
      %v3212 = vpack.c.bf16 %v3180, %v3180
      %v3213 = vpack.c.bf16 %v3181, %v3181
      %v3214 = vpack.c.bf16 %v3182, %v3182
      %v3215 = vpack.c.bf16 %v3183, %v3183
      %v3216 = vpack.c.bf16 %v3184, %v3184
      %v3217 = vpack.c.bf16 %v3185, %v3185
      %v3218 = vpack.c.bf16 %v3186, %v3186
      %v3219 = vpack.c.bf16 %v3187, %v3187
      %v3220 = vpack.c.bf16 %v3188, %v3188
      %v3221 = vpack.c.bf16 %v3189, %v3189
      %v3222 = vpack.c.bf16 %v3190, %v3190
      %v3223 = vpack.c.bf16 %v3191, %v3191
      %v3224 = vpack.c.bf16 %v3192, %v3192
      %v3225 = vpack.c.bf16 %v3193, %v3193
      %v3226 = vpack.c.bf16 %v3194, %v3194
      %v3227 = vpack.c.bf16 %v3195, %v3195
      %v3228 = vpack.c.bf16 %v3196, %v3196
      %v3229 = vpack.c.bf16 %v3197, %v3197
      %v3230 = vpack.c.bf16 %v3198, %v3198
      %v3231 = vpack.c.bf16 %v3199, %v3199
      %v3232 = vpack.c.bf16 %v3200, %v3200
      %v3233 = vpack.c.bf16 %v3201, %v3201
      %s3234 = scalar_lea.vmem [#allocation2], 480
      %v3235 = vld [vmem:[%s3234] sm:$0xff]
      %v3236 = vld [vmem:[%s3234 + $0x8] sm:$0xff]
      %v3237 = vld [vmem:[%s3234 + $0x18] sm:$0xff]
      %v3238 = vld [vmem:[%s3234 + $0x20] sm:$0xff]
      %v3239 = vld [vmem:[%s3234 + $0x30] sm:$0xff]
      %v3240 = vld [vmem:[%s3234 + $0x38] sm:$0xff]
      %v3241 = vld [vmem:[%s3234 + $0x48] sm:$0xff]
      %v3242 = vld [vmem:[%s3234 + $0x50] sm:$0xff]
      %v3243 = vld [vmem:[%s3234 + $0x60] sm:$0xff]
      %v3244 = vld [vmem:[%s3234 + $0x68] sm:$0xff]
      %v3245 = vld [vmem:[%s3234 + $0x78] sm:$0xff]
      %v3246 = vld [vmem:[%s3234 + $0x80] sm:$0xff]
      %v3247 = vld [vmem:[%s3234 + $0x90] sm:$0xff]
      %v3248 = vld [vmem:[%s3234 + $0x98] sm:$0xff]
      %v3249 = vld [vmem:[%s3234 + $0xa8] sm:$0xff]
      %v3250 = vld [vmem:[%s3234 + $0xb0] sm:$0xff]
      %v3251 = vld [vmem:[%s3234 + $0xc0] sm:$0xff]
      %v3252 = vld [vmem:[%s3234 + $0xc8] sm:$0xff]
      %v3253 = vld [vmem:[%s3234 + $0xd8] sm:$0xff]
      %v3254 = vld [vmem:[%s3234 + $0xe0] sm:$0xff]
      %v3255 = vld [vmem:[%s3234 + $0xf0] sm:$0xff]
      %v3256 = vld [vmem:[%s3234 + $0xf8] sm:$0xff]
      %v3257 = vld [vmem:[%s3234 + $0x108] sm:$0xff]
      %v3258 = vld [vmem:[%s3234 + $0x110] sm:$0xff]
      %v3259 = vld [vmem:[%s3234 + $0x120] sm:$0xff]
      %v3260 = vld [vmem:[%s3234 + $0x128] sm:$0xff]
      %v3261 = vld [vmem:[%s3234 + $0x138] sm:$0xff]
      %v3262 = vld [vmem:[%s3234 + $0x140] sm:$0xff]
      %v3263 = vld [vmem:[%s3234 + $0x150] sm:$0xff]
      %v3264 = vld [vmem:[%s3234 + $0x158] sm:$0xff]
      %v3265 = vld [vmem:[%s3234 + $0x168] sm:$0xff]
      %v3266 = vld [vmem:[%s3234 + $0x170] sm:$0xff]
      %v3267 = vpack.c.bf16 %v3235, %v3235
      %v3268 = vpack.c.bf16 %v3236, %v3236
      %v3269 = vpack.c.bf16 %v3237, %v3237
      %v3270 = vpack.c.bf16 %v3238, %v3238
      %v3271 = vpack.c.bf16 %v3239, %v3239
      %v3272 = vpack.c.bf16 %v3240, %v3240
      %v3273 = vpack.c.bf16 %v3241, %v3241
      %v3274 = vpack.c.bf16 %v3242, %v3242
      %v3275 = vpack.c.bf16 %v3243, %v3243
      %v3276 = vpack.c.bf16 %v3244, %v3244
      %v3277 = vpack.c.bf16 %v3245, %v3245
      %v3278 = vpack.c.bf16 %v3246, %v3246
      %v3279 = vpack.c.bf16 %v3247, %v3247
      %v3280 = vpack.c.bf16 %v3248, %v3248
      %v3281 = vpack.c.bf16 %v3249, %v3249
      %v3282 = vpack.c.bf16 %v3250, %v3250
      %v3283 = vpack.c.bf16 %v3251, %v3251
      %v3284 = vpack.c.bf16 %v3252, %v3252
      %v3285 = vpack.c.bf16 %v3253, %v3253
      %v3286 = vpack.c.bf16 %v3254, %v3254
      %v3287 = vpack.c.bf16 %v3255, %v3255
      %v3288 = vpack.c.bf16 %v3256, %v3256
      %v3289 = vpack.c.bf16 %v3257, %v3257
      %v3290 = vpack.c.bf16 %v3258, %v3258
      %v3291 = vpack.c.bf16 %v3259, %v3259
      %v3292 = vpack.c.bf16 %v3260, %v3260
      %v3293 = vpack.c.bf16 %v3261, %v3261
      %v3294 = vpack.c.bf16 %v3262, %v3262
      %v3295 = vpack.c.bf16 %v3263, %v3263
      %v3296 = vpack.c.bf16 %v3264, %v3264
      %v3297 = vpack.c.bf16 %v3265, %v3265
      %v3298 = vpack.c.bf16 %v3266, %v3266
      %v3299 = vld [vmem:[%s3234 + $0x1] sm:$0xff]
      %v3300 = vld [vmem:[%s3234 + $0x9] sm:$0xff]
      %v3301 = vld [vmem:[%s3234 + $0x19] sm:$0xff]
      %v3302 = vld [vmem:[%s3234 + $0x21] sm:$0xff]
      %v3303 = vld [vmem:[%s3234 + $0x31] sm:$0xff]
      %v3304 = vld [vmem:[%s3234 + $0x39] sm:$0xff]
      %v3305 = vld [vmem:[%s3234 + $0x49] sm:$0xff]
      %v3306 = vld [vmem:[%s3234 + $0x51] sm:$0xff]
      %v3307 = vld [vmem:[%s3234 + $0x61] sm:$0xff]
      %v3308 = vld [vmem:[%s3234 + $0x69] sm:$0xff]
      %v3309 = vld [vmem:[%s3234 + $0x79] sm:$0xff]
      %v3310 = vld [vmem:[%s3234 + $0x81] sm:$0xff]
      %v3311 = vld [vmem:[%s3234 + $0x91] sm:$0xff]
      %v3312 = vld [vmem:[%s3234 + $0x99] sm:$0xff]
      %v3313 = vld [vmem:[%s3234 + $0xa9] sm:$0xff]
      %v3314 = vld [vmem:[%s3234 + $0xb1] sm:$0xff]
      %v3315 = vld [vmem:[%s3234 + $0xc1] sm:$0xff]
      %v3316 = vld [vmem:[%s3234 + $0xc9] sm:$0xff]
      %v3317 = vld [vmem:[%s3234 + $0xd9] sm:$0xff]
      %v3318 = vld [vmem:[%s3234 + $0xe1] sm:$0xff]
      %v3319 = vld [vmem:[%s3234 + $0xf1] sm:$0xff]
      %v3320 = vld [vmem:[%s3234 + $0xf9] sm:$0xff]
      %v3321 = vld [vmem:[%s3234 + $0x109] sm:$0xff]
      %v3322 = vld [vmem:[%s3234 + $0x111] sm:$0xff]
      %v3323 = vld [vmem:[%s3234 + $0x121] sm:$0xff]
      %v3324 = vld [vmem:[%s3234 + $0x129] sm:$0xff]
      %v3325 = vld [vmem:[%s3234 + $0x139] sm:$0xff]
      %v3326 = vld [vmem:[%s3234 + $0x141] sm:$0xff]
      %v3327 = vld [vmem:[%s3234 + $0x151] sm:$0xff]
      %v3328 = vld [vmem:[%s3234 + $0x159] sm:$0xff]
      %v3329 = vld [vmem:[%s3234 + $0x169] sm:$0xff]
      %v3330 = vld [vmem:[%s3234 + $0x171] sm:$0xff]
      %v3331 = vpack.c.bf16 %v3299, %v3299
      %v3332 = vpack.c.bf16 %v3300, %v3300
      %v3333 = vpack.c.bf16 %v3301, %v3301
      %v3334 = vpack.c.bf16 %v3302, %v3302
      %v3335 = vpack.c.bf16 %v3303, %v3303
      %v3336 = vpack.c.bf16 %v3304, %v3304
      %v3337 = vpack.c.bf16 %v3305, %v3305
      %v3338 = vpack.c.bf16 %v3306, %v3306
      %v3339 = vpack.c.bf16 %v3307, %v3307
      %v3340 = vpack.c.bf16 %v3308, %v3308
      %v3341 = vpack.c.bf16 %v3309, %v3309
      %v3342 = vpack.c.bf16 %v3310, %v3310
      %v3343 = vpack.c.bf16 %v3311, %v3311
      %v3344 = vpack.c.bf16 %v3312, %v3312
      %v3345 = vpack.c.bf16 %v3313, %v3313
      %v3346 = vpack.c.bf16 %v3314, %v3314
      %v3347 = vpack.c.bf16 %v3315, %v3315
      %v3348 = vpack.c.bf16 %v3316, %v3316
      %v3349 = vpack.c.bf16 %v3317, %v3317
      %v3350 = vpack.c.bf16 %v3318, %v3318
      %v3351 = vpack.c.bf16 %v3319, %v3319
      %v3352 = vpack.c.bf16 %v3320, %v3320
      %v3353 = vpack.c.bf16 %v3321, %v3321
      %v3354 = vpack.c.bf16 %v3322, %v3322
      %v3355 = vpack.c.bf16 %v3323, %v3323
      %v3356 = vpack.c.bf16 %v3324, %v3324
      %v3357 = vpack.c.bf16 %v3325, %v3325
      %v3358 = vpack.c.bf16 %v3326, %v3326
      %v3359 = vpack.c.bf16 %v3327, %v3327
      %v3360 = vpack.c.bf16 %v3328, %v3328
      %v3361 = vpack.c.bf16 %v3329, %v3329
      %v3362 = vpack.c.bf16 %v3330, %v3330
      %v3363 = vld [vmem:[%s3234 + $0x2] sm:$0xff]
      %v3364 = vld [vmem:[%s3234 + $0xa] sm:$0xff]
      %v3365 = vld [vmem:[%s3234 + $0x1a] sm:$0xff]
      %v3366 = vld [vmem:[%s3234 + $0x22] sm:$0xff]
      %v3367 = vld [vmem:[%s3234 + $0x32] sm:$0xff]
      %v3368 = vld [vmem:[%s3234 + $0x3a] sm:$0xff]
      %v3369 = vld [vmem:[%s3234 + $0x4a] sm:$0xff]
      %v3370 = vld [vmem:[%s3234 + $0x52] sm:$0xff]
      %v3371 = vld [vmem:[%s3234 + $0x62] sm:$0xff]
      %v3372 = vld [vmem:[%s3234 + $0x6a] sm:$0xff]
      %v3373 = vld [vmem:[%s3234 + $0x7a] sm:$0xff]
      %v3374 = vld [vmem:[%s3234 + $0x82] sm:$0xff]
      %v3375 = vld [vmem:[%s3234 + $0x92] sm:$0xff]
      %v3376 = vld [vmem:[%s3234 + $0x9a] sm:$0xff]
      %v3377 = vld [vmem:[%s3234 + $0xaa] sm:$0xff]
      %v3378 = vld [vmem:[%s3234 + $0xb2] sm:$0xff]
      %v3379 = vld [vmem:[%s3234 + $0xc2] sm:$0xff]
      %v3380 = vld [vmem:[%s3234 + $0xca] sm:$0xff]
      %v3381 = vld [vmem:[%s3234 + $0xda] sm:$0xff]
      %v3382 = vld [vmem:[%s3234 + $0xe2] sm:$0xff]
      %v3383 = vld [vmem:[%s3234 + $0xf2] sm:$0xff]
      %v3384 = vld [vmem:[%s3234 + $0xfa] sm:$0xff]
      %v3385 = vld [vmem:[%s3234 + $0x10a] sm:$0xff]
      %v3386 = vld [vmem:[%s3234 + $0x112] sm:$0xff]
      %v3387 = vld [vmem:[%s3234 + $0x122] sm:$0xff]
      %v3388 = vld [vmem:[%s3234 + $0x12a] sm:$0xff]
      %v3389 = vld [vmem:[%s3234 + $0x13a] sm:$0xff]
      %v3390 = vld [vmem:[%s3234 + $0x142] sm:$0xff]
      %v3391 = vld [vmem:[%s3234 + $0x152] sm:$0xff]
      %v3392 = vld [vmem:[%s3234 + $0x15a] sm:$0xff]
      %v3393 = vld [vmem:[%s3234 + $0x16a] sm:$0xff]
      %v3394 = vld [vmem:[%s3234 + $0x172] sm:$0xff]
      %v3395 = vpack.c.bf16 %v3363, %v3363
      %v3396 = vpack.c.bf16 %v3364, %v3364
      %v3397 = vpack.c.bf16 %v3365, %v3365
      %v3398 = vpack.c.bf16 %v3366, %v3366
      %v3399 = vpack.c.bf16 %v3367, %v3367
      %v3400 = vpack.c.bf16 %v3368, %v3368
      %v3401 = vpack.c.bf16 %v3369, %v3369
      %v3402 = vpack.c.bf16 %v3370, %v3370
      %v3403 = vpack.c.bf16 %v3371, %v3371
      %v3404 = vpack.c.bf16 %v3372, %v3372
      %v3405 = vpack.c.bf16 %v3373, %v3373
      %v3406 = vpack.c.bf16 %v3374, %v3374
      %v3407 = vpack.c.bf16 %v3375, %v3375
      %v3408 = vpack.c.bf16 %v3376, %v3376
      %v3409 = vpack.c.bf16 %v3377, %v3377
      %v3410 = vpack.c.bf16 %v3378, %v3378
      %v3411 = vpack.c.bf16 %v3379, %v3379
      %v3412 = vpack.c.bf16 %v3380, %v3380
      %v3413 = vpack.c.bf16 %v3381, %v3381
      %v3414 = vpack.c.bf16 %v3382, %v3382
      %v3415 = vpack.c.bf16 %v3383, %v3383
      %v3416 = vpack.c.bf16 %v3384, %v3384
      %v3417 = vpack.c.bf16 %v3385, %v3385
      %v3418 = vpack.c.bf16 %v3386, %v3386
      %v3419 = vpack.c.bf16 %v3387, %v3387
      %v3420 = vpack.c.bf16 %v3388, %v3388
      %v3421 = vpack.c.bf16 %v3389, %v3389
      %v3422 = vpack.c.bf16 %v3390, %v3390
      %v3423 = vpack.c.bf16 %v3391, %v3391
      %v3424 = vpack.c.bf16 %v3392, %v3392
      %v3425 = vpack.c.bf16 %v3393, %v3393
      %v3426 = vpack.c.bf16 %v3394, %v3394
      %v3459 = vunpack.c.l.b16 %v2881
      %v3460 = vunpack.c.l.b16 %v2882
      %v3461 = vunpack.c.l.b16 %v2883
      %v3462 = vunpack.c.l.b16 %v2884
      %v3463 = vunpack.c.l.b16 %v2885
      %v3464 = vunpack.c.l.b16 %v2886
      %v3465 = vunpack.c.l.b16 %v2887
      %v3466 = vunpack.c.l.b16 %v2888
      %v3467 = vunpack.c.l.b16 %v2889
      %v3468 = vunpack.c.l.b16 %v2890
      %v3469 = vunpack.c.l.b16 %v2891
      %v3470 = vunpack.c.l.b16 %v2892
      %v3471 = vunpack.c.l.b16 %v2893
      %v3472 = vunpack.c.l.b16 %v2894
      %v3473 = vunpack.c.l.b16 %v2895
      %v3474 = vunpack.c.l.b16 %v2896
      %v3475 = vunpack.c.l.b16 %v2897
      %v3476 = vunpack.c.l.b16 %v2898
      %v3477 = vunpack.c.l.b16 %v2899
      %v3478 = vunpack.c.l.b16 %v2900
      %v3479 = vunpack.c.l.b16 %v2901
      %v3480 = vunpack.c.l.b16 %v2902
      %v3481 = vunpack.c.l.b16 %v2903
      %v3482 = vunpack.c.l.b16 %v2904
      %v3483 = vunpack.c.l.b16 %v2905
      %v3484 = vunpack.c.l.b16 %v2906
      %v3485 = vunpack.c.l.b16 %v2907
      %v3486 = vunpack.c.l.b16 %v2908
      %v3487 = vunpack.c.l.b16 %v2909
      %v3488 = vunpack.c.l.b16 %v2910
      %v3489 = vunpack.c.l.b16 %v2911
      %v3490 = vunpack.c.l.b16 %v2912
      %v3491 = vpack.c.b16 %v3460, %v3459
      %v3492 = vpack.c.b16 %v3462, %v3461
      %v3493 = vpack.c.b16 %v3464, %v3463
      %v3494 = vpack.c.b16 %v3466, %v3465
      %v3495 = vpack.c.b16 %v3468, %v3467
      %v3496 = vpack.c.b16 %v3470, %v3469
      %v3497 = vpack.c.b16 %v3472, %v3471
      %v3498 = vpack.c.b16 %v3474, %v3473
      %v3499 = vpack.c.b16 %v3476, %v3475
      %v3500 = vpack.c.b16 %v3478, %v3477
      %v3501 = vpack.c.b16 %v3480, %v3479
      %v3502 = vpack.c.b16 %v3482, %v3481
      %v3503 = vpack.c.b16 %v3484, %v3483
      %v3504 = vpack.c.b16 %v3486, %v3485
      %v3505 = vpack.c.b16 %v3488, %v3487
      %v3506 = vpack.c.b16 %v3490, %v3489
      %v3539 = vunpack.c.l.b16 %v2945
      %v3540 = vunpack.c.l.b16 %v2946
      %v3541 = vunpack.c.l.b16 %v2947
      %v3542 = vunpack.c.l.b16 %v2948
      %v3543 = vunpack.c.l.b16 %v2949
      %v3544 = vunpack.c.l.b16 %v2950
      %v3545 = vunpack.c.l.b16 %v2951
      %v3546 = vunpack.c.l.b16 %v2952
      %v3547 = vunpack.c.l.b16 %v2953
      %v3548 = vunpack.c.l.b16 %v2954
      %v3549 = vunpack.c.l.b16 %v2955
      %v3550 = vunpack.c.l.b16 %v2956
      %v3551 = vunpack.c.l.b16 %v2957
      %v3552 = vunpack.c.l.b16 %v2958
      %v3553 = vunpack.c.l.b16 %v2959
      %v3554 = vunpack.c.l.b16 %v2960
      %v3555 = vunpack.c.l.b16 %v2961
      %v3556 = vunpack.c.l.b16 %v2962
      %v3557 = vunpack.c.l.b16 %v2963
      %v3558 = vunpack.c.l.b16 %v2964
      %v3559 = vunpack.c.l.b16 %v2965
      %v3560 = vunpack.c.l.b16 %v2966
      %v3561 = vunpack.c.l.b16 %v2967
      %v3562 = vunpack.c.l.b16 %v2968
      %v3563 = vunpack.c.l.b16 %v2969
      %v3564 = vunpack.c.l.b16 %v2970
      %v3565 = vunpack.c.l.b16 %v2971
      %v3566 = vunpack.c.l.b16 %v2972
      %v3567 = vunpack.c.l.b16 %v2973
      %v3568 = vunpack.c.l.b16 %v2974
      %v3569 = vunpack.c.l.b16 %v2975
      %v3570 = vunpack.c.l.b16 %v2976
      %v3571 = vpack.c.b16 %v3540, %v3539
      %v3572 = vpack.c.b16 %v3542, %v3541
      %v3573 = vpack.c.b16 %v3544, %v3543
      %v3574 = vpack.c.b16 %v3546, %v3545
      %v3575 = vpack.c.b16 %v3548, %v3547
      %v3576 = vpack.c.b16 %v3550, %v3549
      %v3577 = vpack.c.b16 %v3552, %v3551
      %v3578 = vpack.c.b16 %v3554, %v3553
      %v3579 = vpack.c.b16 %v3556, %v3555
      %v3580 = vpack.c.b16 %v3558, %v3557
      %v3581 = vpack.c.b16 %v3560, %v3559
      %v3582 = vpack.c.b16 %v3562, %v3561
      %v3583 = vpack.c.b16 %v3564, %v3563
      %v3584 = vpack.c.b16 %v3566, %v3565
      %v3585 = vpack.c.b16 %v3568, %v3567
      %v3586 = vpack.c.b16 %v3570, %v3569
      %3587 = vrot.lane.b32.xlu0 %v3571, 64
      %v3588 = vpop.permute.xlu0 %3587
      %3589 = vrot.lane.b32.xlu0 %v3572, 64
      %v3590 = vpop.permute.xlu0 %3589
      %3591 = vrot.lane.b32.xlu0 %v3573, 64
      %v3592 = vpop.permute.xlu0 %3591
      %3593 = vrot.lane.b32.xlu0 %v3574, 64
      %v3594 = vpop.permute.xlu0 %3593
      %3595 = vrot.lane.b32.xlu0 %v3575, 64
      %v3596 = vpop.permute.xlu0 %3595
      %3597 = vrot.lane.b32.xlu0 %v3576, 64
      %v3598 = vpop.permute.xlu0 %3597
      %3599 = vrot.lane.b32.xlu0 %v3577, 64
      %v3600 = vpop.permute.xlu0 %3599
      %3601 = vrot.lane.b32.xlu0 %v3578, 64
      %v3602 = vpop.permute.xlu0 %3601
      %3603 = vrot.lane.b32.xlu0 %v3579, 64
      %v3604 = vpop.permute.xlu0 %3603
      %3605 = vrot.lane.b32.xlu0 %v3580, 64
      %v3606 = vpop.permute.xlu0 %3605
      %3607 = vrot.lane.b32.xlu0 %v3581, 64
      %v3608 = vpop.permute.xlu0 %3607
      %3609 = vrot.lane.b32.xlu0 %v3582, 64
      %v3610 = vpop.permute.xlu0 %3609
      %3611 = vrot.lane.b32.xlu0 %v3583, 64
      %v3612 = vpop.permute.xlu0 %3611
      %3613 = vrot.lane.b32.xlu0 %v3584, 64
      %v3614 = vpop.permute.xlu0 %3613
      %3615 = vrot.lane.b32.xlu0 %v3585, 64
      %v3616 = vpop.permute.xlu0 %3615
      %3617 = vrot.lane.b32.xlu0 %v3586, 64
      %v3618 = vpop.permute.xlu0 %3617
      %v3651 = vunpack.c.l.b16 %v3009
      %v3652 = vunpack.c.l.b16 %v3010
      %v3653 = vunpack.c.l.b16 %v3011
      %v3654 = vunpack.c.l.b16 %v3012
      %v3655 = vunpack.c.l.b16 %v3013
      %v3656 = vunpack.c.l.b16 %v3014
      %v3657 = vunpack.c.l.b16 %v3015
      %v3658 = vunpack.c.l.b16 %v3016
      %v3659 = vunpack.c.l.b16 %v3017
      %v3660 = vunpack.c.l.b16 %v3018
      %v3661 = vunpack.c.l.b16 %v3019
      %v3662 = vunpack.c.l.b16 %v3020
      %v3663 = vunpack.c.l.b16 %v3021
      %v3664 = vunpack.c.l.b16 %v3022
      %v3665 = vunpack.c.l.b16 %v3023
      %v3666 = vunpack.c.l.b16 %v3024
      %v3667 = vunpack.c.l.b16 %v3025
      %v3668 = vunpack.c.l.b16 %v3026
      %v3669 = vunpack.c.l.b16 %v3027
      %v3670 = vunpack.c.l.b16 %v3028
      %v3671 = vunpack.c.l.b16 %v3029
      %v3672 = vunpack.c.l.b16 %v3030
      %v3673 = vunpack.c.l.b16 %v3031
      %v3674 = vunpack.c.l.b16 %v3032
      %v3675 = vunpack.c.l.b16 %v3033
      %v3676 = vunpack.c.l.b16 %v3034
      %v3677 = vunpack.c.l.b16 %v3035
      %v3678 = vunpack.c.l.b16 %v3036
      %v3679 = vunpack.c.l.b16 %v3037
      %v3680 = vunpack.c.l.b16 %v3038
      %v3681 = vunpack.c.l.b16 %v3039
      %v3682 = vunpack.c.l.b16 %v3040
      %v3683 = vpack.c.b16 %v3652, %v3651
      %v3684 = vpack.c.b16 %v3654, %v3653
      %v3685 = vpack.c.b16 %v3656, %v3655
      %v3686 = vpack.c.b16 %v3658, %v3657
      %v3687 = vpack.c.b16 %v3660, %v3659
      %v3688 = vpack.c.b16 %v3662, %v3661
      %v3689 = vpack.c.b16 %v3664, %v3663
      %v3690 = vpack.c.b16 %v3666, %v3665
      %v3691 = vpack.c.b16 %v3668, %v3667
      %v3692 = vpack.c.b16 %v3670, %v3669
      %v3693 = vpack.c.b16 %v3672, %v3671
      %v3694 = vpack.c.b16 %v3674, %v3673
      %v3695 = vpack.c.b16 %v3676, %v3675
      %v3696 = vpack.c.b16 %v3678, %v3677
      %v3697 = vpack.c.b16 %v3680, %v3679
      %v3698 = vpack.c.b16 %v3682, %v3681
      %v3731 = vunpack.c.l.b16 %v3074
      %v3732 = vunpack.c.l.b16 %v3075
      %v3733 = vunpack.c.l.b16 %v3076
      %v3734 = vunpack.c.l.b16 %v3077
      %v3735 = vunpack.c.l.b16 %v3078
      %v3736 = vunpack.c.l.b16 %v3079
      %v3737 = vunpack.c.l.b16 %v3080
      %v3738 = vunpack.c.l.b16 %v3081
      %v3739 = vunpack.c.l.b16 %v3082
      %v3740 = vunpack.c.l.b16 %v3083
      %v3741 = vunpack.c.l.b16 %v3084
      %v3742 = vunpack.c.l.b16 %v3085
      %v3743 = vunpack.c.l.b16 %v3086
      %v3744 = vunpack.c.l.b16 %v3087
      %v3745 = vunpack.c.l.b16 %v3088
      %v3746 = vunpack.c.l.b16 %v3089
      %v3747 = vunpack.c.l.b16 %v3090
      %v3748 = vunpack.c.l.b16 %v3091
      %v3749 = vunpack.c.l.b16 %v3092
      %v3750 = vunpack.c.l.b16 %v3093
      %v3751 = vunpack.c.l.b16 %v3094
      %v3752 = vunpack.c.l.b16 %v3095
      %v3753 = vunpack.c.l.b16 %v3096
      %v3754 = vunpack.c.l.b16 %v3097
      %v3755 = vunpack.c.l.b16 %v3098
      %v3756 = vunpack.c.l.b16 %v3099
      %v3757 = vunpack.c.l.b16 %v3100
      %v3758 = vunpack.c.l.b16 %v3101
      %v3759 = vunpack.c.l.b16 %v3102
      %v3760 = vunpack.c.l.b16 %v3103
      %v3761 = vunpack.c.l.b16 %v3104
      %v3762 = vunpack.c.l.b16 %v3105
      %v3763 = vpack.c.b16 %v3732, %v3731
      %v3764 = vpack.c.b16 %v3734, %v3733
      %v3765 = vpack.c.b16 %v3736, %v3735
      %v3766 = vpack.c.b16 %v3738, %v3737
      %v3767 = vpack.c.b16 %v3740, %v3739
      %v3768 = vpack.c.b16 %v3742, %v3741
      %v3769 = vpack.c.b16 %v3744, %v3743
      %v3770 = vpack.c.b16 %v3746, %v3745
      %v3771 = vpack.c.b16 %v3748, %v3747
      %v3772 = vpack.c.b16 %v3750, %v3749
      %v3773 = vpack.c.b16 %v3752, %v3751
      %v3774 = vpack.c.b16 %v3754, %v3753
      %v3775 = vpack.c.b16 %v3756, %v3755
      %v3776 = vpack.c.b16 %v3758, %v3757
      %v3777 = vpack.c.b16 %v3760, %v3759
      %v3778 = vpack.c.b16 %v3762, %v3761
      %3779 = vrot.lane.b32.xlu0 %v3763, 64
      %v3780 = vpop.permute.xlu0 %3779
      %3781 = vrot.lane.b32.xlu0 %v3764, 64
      %v3782 = vpop.permute.xlu0 %3781
      %3783 = vrot.lane.b32.xlu0 %v3765, 64
      %v3784 = vpop.permute.xlu0 %3783
      %3785 = vrot.lane.b32.xlu0 %v3766, 64
      %v3786 = vpop.permute.xlu0 %3785
      %3787 = vrot.lane.b32.xlu0 %v3767, 64
      %v3788 = vpop.permute.xlu0 %3787
      %3789 = vrot.lane.b32.xlu0 %v3768, 64
      %v3790 = vpop.permute.xlu0 %3789
      %3791 = vrot.lane.b32.xlu0 %v3769, 64
      %v3792 = vpop.permute.xlu0 %3791
      %3793 = vrot.lane.b32.xlu0 %v3770, 64
      %v3794 = vpop.permute.xlu0 %3793
      %3795 = vrot.lane.b32.xlu0 %v3771, 64
      %v3796 = vpop.permute.xlu0 %3795
      %3797 = vrot.lane.b32.xlu0 %v3772, 64
      %v3798 = vpop.permute.xlu0 %3797
      %3799 = vrot.lane.b32.xlu0 %v3773, 64
      %v3800 = vpop.permute.xlu0 %3799
      %3801 = vrot.lane.b32.xlu0 %v3774, 64
      %v3802 = vpop.permute.xlu0 %3801
      %3803 = vrot.lane.b32.xlu0 %v3775, 64
      %v3804 = vpop.permute.xlu0 %3803
      %3805 = vrot.lane.b32.xlu0 %v3776, 64
      %v3806 = vpop.permute.xlu0 %3805
      %3807 = vrot.lane.b32.xlu0 %v3777, 64
      %v3808 = vpop.permute.xlu0 %3807
      %3809 = vrot.lane.b32.xlu0 %v3778, 64
      %v3810 = vpop.permute.xlu0 %3809
      %v3843 = vunpack.c.l.b16 %v3138
      %v3844 = vunpack.c.l.b16 %v3139
      %v3845 = vunpack.c.l.b16 %v3140
      %v3846 = vunpack.c.l.b16 %v3141
      %v3847 = vunpack.c.l.b16 %v3142
      %v3848 = vunpack.c.l.b16 %v3143
      %v3849 = vunpack.c.l.b16 %v3144
      %v3850 = vunpack.c.l.b16 %v3145
      %v3851 = vunpack.c.l.b16 %v3146
      %v3852 = vunpack.c.l.b16 %v3147
      %v3853 = vunpack.c.l.b16 %v3148
      %v3854 = vunpack.c.l.b16 %v3149
      %v3855 = vunpack.c.l.b16 %v3150
      %v3856 = vunpack.c.l.b16 %v3151
      %v3857 = vunpack.c.l.b16 %v3152
      %v3858 = vunpack.c.l.b16 %v3153
      %v3859 = vunpack.c.l.b16 %v3154
      %v3860 = vunpack.c.l.b16 %v3155
      %v3861 = vunpack.c.l.b16 %v3156
      %v3862 = vunpack.c.l.b16 %v3157
      %v3863 = vunpack.c.l.b16 %v3158
      %v3864 = vunpack.c.l.b16 %v3159
      %v3865 = vunpack.c.l.b16 %v3160
      %v3866 = vunpack.c.l.b16 %v3161
      %v3867 = vunpack.c.l.b16 %v3162
      %v3868 = vunpack.c.l.b16 %v3163
      %v3869 = vunpack.c.l.b16 %v3164
      %v3870 = vunpack.c.l.b16 %v3165
      %v3871 = vunpack.c.l.b16 %v3166
      %v3872 = vunpack.c.l.b16 %v3167
      %v3873 = vunpack.c.l.b16 %v3168
      %v3874 = vunpack.c.l.b16 %v3169
      %v3875 = vpack.c.b16 %v3844, %v3843
      %v3876 = vpack.c.b16 %v3846, %v3845
      %v3877 = vpack.c.b16 %v3848, %v3847
      %v3878 = vpack.c.b16 %v3850, %v3849
      %v3879 = vpack.c.b16 %v3852, %v3851
      %v3880 = vpack.c.b16 %v3854, %v3853
      %v3881 = vpack.c.b16 %v3856, %v3855
      %v3882 = vpack.c.b16 %v3858, %v3857
      %v3883 = vpack.c.b16 %v3860, %v3859
      %v3884 = vpack.c.b16 %v3862, %v3861
      %v3885 = vpack.c.b16 %v3864, %v3863
      %v3886 = vpack.c.b16 %v3866, %v3865
      %v3887 = vpack.c.b16 %v3868, %v3867
      %v3888 = vpack.c.b16 %v3870, %v3869
      %v3889 = vpack.c.b16 %v3872, %v3871
      %v3890 = vpack.c.b16 %v3874, %v3873
      %v3923 = vunpack.c.l.b16 %v3202
      %v3924 = vunpack.c.l.b16 %v3203
      %v3925 = vunpack.c.l.b16 %v3204
      %v3926 = vunpack.c.l.b16 %v3205
      %v3927 = vunpack.c.l.b16 %v3206
      %v3928 = vunpack.c.l.b16 %v3207
      %v3929 = vunpack.c.l.b16 %v3208
      %v3930 = vunpack.c.l.b16 %v3209
      %v3931 = vunpack.c.l.b16 %v3210
      %v3932 = vunpack.c.l.b16 %v3211
      %v3933 = vunpack.c.l.b16 %v3212
      %v3934 = vunpack.c.l.b16 %v3213
      %v3935 = vunpack.c.l.b16 %v3214
      %v3936 = vunpack.c.l.b16 %v3215
      %v3937 = vunpack.c.l.b16 %v3216
      %v3938 = vunpack.c.l.b16 %v3217
      %v3939 = vunpack.c.l.b16 %v3218
      %v3940 = vunpack.c.l.b16 %v3219
      %v3941 = vunpack.c.l.b16 %v3220
      %v3942 = vunpack.c.l.b16 %v3221
      %v3943 = vunpack.c.l.b16 %v3222
      %v3944 = vunpack.c.l.b16 %v3223
      %v3945 = vunpack.c.l.b16 %v3224
      %v3946 = vunpack.c.l.b16 %v3225
      %v3947 = vunpack.c.l.b16 %v3226
      %v3948 = vunpack.c.l.b16 %v3227
      %v3949 = vunpack.c.l.b16 %v3228
      %v3950 = vunpack.c.l.b16 %v3229
      %v3951 = vunpack.c.l.b16 %v3230
      %v3952 = vunpack.c.l.b16 %v3231
      %v3953 = vunpack.c.l.b16 %v3232
      %v3954 = vunpack.c.l.b16 %v3233
      %v3955 = vpack.c.b16 %v3924, %v3923
      %v3956 = vpack.c.b16 %v3926, %v3925
      %v3957 = vpack.c.b16 %v3928, %v3927
      %v3958 = vpack.c.b16 %v3930, %v3929
      %v3959 = vpack.c.b16 %v3932, %v3931
      %v3960 = vpack.c.b16 %v3934, %v3933
      %v3961 = vpack.c.b16 %v3936, %v3935
      %v3962 = vpack.c.b16 %v3938, %v3937
      %v3963 = vpack.c.b16 %v3940, %v3939
      %v3964 = vpack.c.b16 %v3942, %v3941
      %v3965 = vpack.c.b16 %v3944, %v3943
      %v3966 = vpack.c.b16 %v3946, %v3945
      %v3967 = vpack.c.b16 %v3948, %v3947
      %v3968 = vpack.c.b16 %v3950, %v3949
      %v3969 = vpack.c.b16 %v3952, %v3951
      %v3970 = vpack.c.b16 %v3954, %v3953
      %3971 = vrot.lane.b32.xlu0 %v3955, 64
      %v3972 = vpop.permute.xlu0 %3971
      %3973 = vrot.lane.b32.xlu0 %v3956, 64
      %v3974 = vpop.permute.xlu0 %3973
      %3975 = vrot.lane.b32.xlu0 %v3957, 64
      %v3976 = vpop.permute.xlu0 %3975
      %3977 = vrot.lane.b32.xlu0 %v3958, 64
      %v3978 = vpop.permute.xlu0 %3977
      %3979 = vrot.lane.b32.xlu0 %v3959, 64
      %v3980 = vpop.permute.xlu0 %3979
      %3981 = vrot.lane.b32.xlu0 %v3960, 64
      %v3982 = vpop.permute.xlu0 %3981
      %3983 = vrot.lane.b32.xlu0 %v3961, 64
      %v3984 = vpop.permute.xlu0 %3983
      %3985 = vrot.lane.b32.xlu0 %v3962, 64
      %v3986 = vpop.permute.xlu0 %3985
      %3987 = vrot.lane.b32.xlu0 %v3963, 64
      %v3988 = vpop.permute.xlu0 %3987
      %3989 = vrot.lane.b32.xlu0 %v3964, 64
      %v3990 = vpop.permute.xlu0 %3989
      %3991 = vrot.lane.b32.xlu0 %v3965, 64
      %v3992 = vpop.permute.xlu0 %3991
      %3993 = vrot.lane.b32.xlu0 %v3966, 64
      %v3994 = vpop.permute.xlu0 %3993
      %3995 = vrot.lane.b32.xlu0 %v3967, 64
      %v3996 = vpop.permute.xlu0 %3995
      %3997 = vrot.lane.b32.xlu0 %v3968, 64
      %v3998 = vpop.permute.xlu0 %3997
      %3999 = vrot.lane.b32.xlu0 %v3969, 64
      %v4000 = vpop.permute.xlu0 %3999
      %4001 = vrot.lane.b32.xlu0 %v3970, 64
      %v4002 = vpop.permute.xlu0 %4001
      %v4035 = vunpack.c.l.b16 %v3267
      %v4036 = vunpack.c.l.b16 %v3268
      %v4037 = vunpack.c.l.b16 %v3269
      %v4038 = vunpack.c.l.b16 %v3270
      %v4039 = vunpack.c.l.b16 %v3271
      %v4040 = vunpack.c.l.b16 %v3272
      %v4041 = vunpack.c.l.b16 %v3273
      %v4042 = vunpack.c.l.b16 %v3274
      %v4043 = vunpack.c.l.b16 %v3275
      %v4044 = vunpack.c.l.b16 %v3276
      %v4045 = vunpack.c.l.b16 %v3277
      %v4046 = vunpack.c.l.b16 %v3278
      %v4047 = vunpack.c.l.b16 %v3279
      %v4048 = vunpack.c.l.b16 %v3280
      %v4049 = vunpack.c.l.b16 %v3281
      %v4050 = vunpack.c.l.b16 %v3282
      %v4051 = vunpack.c.l.b16 %v3283
      %v4052 = vunpack.c.l.b16 %v3284
      %v4053 = vunpack.c.l.b16 %v3285
      %v4054 = vunpack.c.l.b16 %v3286
      %v4055 = vunpack.c.l.b16 %v3287
      %v4056 = vunpack.c.l.b16 %v3288
      %v4057 = vunpack.c.l.b16 %v3289
      %v4058 = vunpack.c.l.b16 %v3290
      %v4059 = vunpack.c.l.b16 %v3291
      %v4060 = vunpack.c.l.b16 %v3292
      %v4061 = vunpack.c.l.b16 %v3293
      %v4062 = vunpack.c.l.b16 %v3294
      %v4063 = vunpack.c.l.b16 %v3295
      %v4064 = vunpack.c.l.b16 %v3296
      %v4065 = vunpack.c.l.b16 %v3297
      %v4066 = vunpack.c.l.b16 %v3298
      %v4067 = vpack.c.b16 %v4036, %v4035
      %v4068 = vpack.c.b16 %v4038, %v4037
      %v4069 = vpack.c.b16 %v4040, %v4039
      %v4070 = vpack.c.b16 %v4042, %v4041
      %v4071 = vpack.c.b16 %v4044, %v4043
      %v4072 = vpack.c.b16 %v4046, %v4045
      %v4073 = vpack.c.b16 %v4048, %v4047
      %v4074 = vpack.c.b16 %v4050, %v4049
      %v4075 = vpack.c.b16 %v4052, %v4051
      %v4076 = vpack.c.b16 %v4054, %v4053
      %v4077 = vpack.c.b16 %v4056, %v4055
      %v4078 = vpack.c.b16 %v4058, %v4057
      %v4079 = vpack.c.b16 %v4060, %v4059
      %v4080 = vpack.c.b16 %v4062, %v4061
      %v4081 = vpack.c.b16 %v4064, %v4063
      %v4082 = vpack.c.b16 %v4066, %v4065
      %v4115 = vunpack.c.l.b16 %v3331
      %v4116 = vunpack.c.l.b16 %v3332
      %v4117 = vunpack.c.l.b16 %v3333
      %v4118 = vunpack.c.l.b16 %v3334
      %v4119 = vunpack.c.l.b16 %v3335
      %v4120 = vunpack.c.l.b16 %v3336
      %v4121 = vunpack.c.l.b16 %v3337
      %v4122 = vunpack.c.l.b16 %v3338
      %v4123 = vunpack.c.l.b16 %v3339
      %v4124 = vunpack.c.l.b16 %v3340
      %v4125 = vunpack.c.l.b16 %v3341
      %v4126 = vunpack.c.l.b16 %v3342
      %v4127 = vunpack.c.l.b16 %v3343
      %v4128 = vunpack.c.l.b16 %v3344
      %v4129 = vunpack.c.l.b16 %v3345
      %v4130 = vunpack.c.l.b16 %v3346
      %v4131 = vunpack.c.l.b16 %v3347
      %v4132 = vunpack.c.l.b16 %v3348
      %v4133 = vunpack.c.l.b16 %v3349
      %v4134 = vunpack.c.l.b16 %v3350
      %v4135 = vunpack.c.l.b16 %v3351
      %v4136 = vunpack.c.l.b16 %v3352
      %v4137 = vunpack.c.l.b16 %v3353
      %v4138 = vunpack.c.l.b16 %v3354
      %v4139 = vunpack.c.l.b16 %v3355
      %v4140 = vunpack.c.l.b16 %v3356
      %v4141 = vunpack.c.l.b16 %v3357
      %v4142 = vunpack.c.l.b16 %v3358
      %v4143 = vunpack.c.l.b16 %v3359
      %v4144 = vunpack.c.l.b16 %v3360
      %v4145 = vunpack.c.l.b16 %v3361
      %v4146 = vunpack.c.l.b16 %v3362
      %v4147 = vpack.c.b16 %v4116, %v4115
      %v4148 = vpack.c.b16 %v4118, %v4117
      %v4149 = vpack.c.b16 %v4120, %v4119
      %v4150 = vpack.c.b16 %v4122, %v4121
      %v4151 = vpack.c.b16 %v4124, %v4123
      %v4152 = vpack.c.b16 %v4126, %v4125
      %v4153 = vpack.c.b16 %v4128, %v4127
      %v4154 = vpack.c.b16 %v4130, %v4129
      %v4155 = vpack.c.b16 %v4132, %v4131
      %v4156 = vpack.c.b16 %v4134, %v4133
      %v4157 = vpack.c.b16 %v4136, %v4135
      %v4158 = vpack.c.b16 %v4138, %v4137
      %v4159 = vpack.c.b16 %v4140, %v4139
      %v4160 = vpack.c.b16 %v4142, %v4141
      %v4161 = vpack.c.b16 %v4144, %v4143
      %v4162 = vpack.c.b16 %v4146, %v4145
      %4163 = vrot.lane.b32.xlu0 %v4147, 64
      %v4164 = vpop.permute.xlu0 %4163
      %4165 = vrot.lane.b32.xlu0 %v4148, 64
      %v4166 = vpop.permute.xlu0 %4165
      %4167 = vrot.lane.b32.xlu0 %v4149, 64
      %v4168 = vpop.permute.xlu0 %4167
      %4169 = vrot.lane.b32.xlu0 %v4150, 64
      %v4170 = vpop.permute.xlu0 %4169
      %4171 = vrot.lane.b32.xlu0 %v4151, 64
      %v4172 = vpop.permute.xlu0 %4171
      %4173 = vrot.lane.b32.xlu0 %v4152, 64
      %v4174 = vpop.permute.xlu0 %4173
      %4175 = vrot.lane.b32.xlu0 %v4153, 64
      %v4176 = vpop.permute.xlu0 %4175
      %4177 = vrot.lane.b32.xlu0 %v4154, 64
      %v4178 = vpop.permute.xlu0 %4177
      %4179 = vrot.lane.b32.xlu0 %v4155, 64
      %v4180 = vpop.permute.xlu0 %4179
      %4181 = vrot.lane.b32.xlu0 %v4156, 64
      %v4182 = vpop.permute.xlu0 %4181
      %4183 = vrot.lane.b32.xlu0 %v4157, 64
      %v4184 = vpop.permute.xlu0 %4183
      %4185 = vrot.lane.b32.xlu0 %v4158, 64
      %v4186 = vpop.permute.xlu0 %4185
      %4187 = vrot.lane.b32.xlu0 %v4159, 64
      %v4188 = vpop.permute.xlu0 %4187
      %4189 = vrot.lane.b32.xlu0 %v4160, 64
      %v4190 = vpop.permute.xlu0 %4189
      %4191 = vrot.lane.b32.xlu0 %v4161, 64
      %v4192 = vpop.permute.xlu0 %4191
      %4193 = vrot.lane.b32.xlu0 %v4162, 64
      %v4194 = vpop.permute.xlu0 %4193
      %v4227 = vunpack.c.l.b16 %v3395
      %v4228 = vunpack.c.l.b16 %v3396
      %v4229 = vunpack.c.l.b16 %v3397
      %v4230 = vunpack.c.l.b16 %v3398
      %v4231 = vunpack.c.l.b16 %v3399
      %v4232 = vunpack.c.l.b16 %v3400
      %v4233 = vunpack.c.l.b16 %v3401
      %v4234 = vunpack.c.l.b16 %v3402
      %v4235 = vunpack.c.l.b16 %v3403
      %v4236 = vunpack.c.l.b16 %v3404
      %v4237 = vunpack.c.l.b16 %v3405
      %v4238 = vunpack.c.l.b16 %v3406
      %v4239 = vunpack.c.l.b16 %v3407
      %v4240 = vunpack.c.l.b16 %v3408
      %v4241 = vunpack.c.l.b16 %v3409
      %v4242 = vunpack.c.l.b16 %v3410
      %v4243 = vunpack.c.l.b16 %v3411
      %v4244 = vunpack.c.l.b16 %v3412
      %v4245 = vunpack.c.l.b16 %v3413
      %v4246 = vunpack.c.l.b16 %v3414
      %v4247 = vunpack.c.l.b16 %v3415
      %v4248 = vunpack.c.l.b16 %v3416
      %v4249 = vunpack.c.l.b16 %v3417
      %v4250 = vunpack.c.l.b16 %v3418
      %v4251 = vunpack.c.l.b16 %v3419
      %v4252 = vunpack.c.l.b16 %v3420
      %v4253 = vunpack.c.l.b16 %v3421
      %v4254 = vunpack.c.l.b16 %v3422
      %v4255 = vunpack.c.l.b16 %v3423
      %v4256 = vunpack.c.l.b16 %v3424
      %v4257 = vunpack.c.l.b16 %v3425
      %v4258 = vunpack.c.l.b16 %v3426
      %v4259 = vpack.c.b16 %v4228, %v4227
      %v4260 = vpack.c.b16 %v4230, %v4229
      %v4261 = vpack.c.b16 %v4232, %v4231
      %v4262 = vpack.c.b16 %v4234, %v4233
      %v4263 = vpack.c.b16 %v4236, %v4235
      %v4264 = vpack.c.b16 %v4238, %v4237
      %v4265 = vpack.c.b16 %v4240, %v4239
      %v4266 = vpack.c.b16 %v4242, %v4241
      %v4267 = vpack.c.b16 %v4244, %v4243
      %v4268 = vpack.c.b16 %v4246, %v4245
      %v4269 = vpack.c.b16 %v4248, %v4247
      %v4270 = vpack.c.b16 %v4250, %v4249
      %v4271 = vpack.c.b16 %v4252, %v4251
      %v4272 = vpack.c.b16 %v4254, %v4253
      %v4273 = vpack.c.b16 %v4256, %v4255
      %v4274 = vpack.c.b16 %v4258, %v4257
      %v4277 = vsel %vm332, %v3491, %v3588
      %v4281 = vsel %vm332, %v3492, %v3590
      %v4285 = vsel %vm332, %v3493, %v3592
      %v4289 = vsel %vm332, %v3494, %v3594
      %v4293 = vsel %vm332, %v3495, %v3596
      %v4297 = vsel %vm332, %v3496, %v3598
      %v4301 = vsel %vm332, %v3497, %v3600
      %v4305 = vsel %vm332, %v3498, %v3602
      %v4309 = vsel %vm332, %v3499, %v3604
      %v4313 = vsel %vm332, %v3500, %v3606
      %v4317 = vsel %vm332, %v3501, %v3608
      %v4321 = vsel %vm332, %v3502, %v3610
      %v4325 = vsel %vm332, %v3503, %v3612
      %v4329 = vsel %vm332, %v3504, %v3614
      %v4333 = vsel %vm332, %v3505, %v3616
      %v4337 = vsel %vm332, %v3506, %v3618
      %v4341 = vsel %vm332, %v3683, %v3780
      %v4345 = vsel %vm332, %v3684, %v3782
      %v4349 = vsel %vm332, %v3685, %v3784
      %v4353 = vsel %vm332, %v3686, %v3786
      %v4357 = vsel %vm332, %v3687, %v3788
      %v4361 = vsel %vm332, %v3688, %v3790
      %v4365 = vsel %vm332, %v3689, %v3792
      %v4369 = vsel %vm332, %v3690, %v3794
      %v4373 = vsel %vm332, %v3691, %v3796
      %v4377 = vsel %vm332, %v3692, %v3798
      %v4381 = vsel %vm332, %v3693, %v3800
      %v4385 = vsel %vm332, %v3694, %v3802
      %v4389 = vsel %vm332, %v3695, %v3804
      %v4393 = vsel %vm332, %v3696, %v3806
      %v4397 = vsel %vm332, %v3697, %v3808
      %v4401 = vsel %vm332, %v3698, %v3810
      %v4405 = vsel %vm332, %v3875, %v3972
      %v4409 = vsel %vm332, %v3876, %v3974
      %v4413 = vsel %vm332, %v3877, %v3976
      %v4417 = vsel %vm332, %v3878, %v3978
      %v4421 = vsel %vm332, %v3879, %v3980
      %v4425 = vsel %vm332, %v3880, %v3982
      %v4429 = vsel %vm332, %v3881, %v3984
      %v4433 = vsel %vm332, %v3882, %v3986
      %v4437 = vsel %vm332, %v3883, %v3988
      %v4441 = vsel %vm332, %v3884, %v3990
      %v4445 = vsel %vm332, %v3885, %v3992
      %v4449 = vsel %vm332, %v3886, %v3994
      %v4453 = vsel %vm332, %v3887, %v3996
      %v4457 = vsel %vm332, %v3888, %v3998
      %v4461 = vsel %vm332, %v3889, %v4000
      %v4465 = vsel %vm332, %v3890, %v4002
      %v4469 = vsel %vm332, %v4067, %v4164
      %v4473 = vsel %vm332, %v4068, %v4166
      %v4477 = vsel %vm332, %v4069, %v4168
      %v4481 = vsel %vm332, %v4070, %v4170
      %v4485 = vsel %vm332, %v4071, %v4172
      %v4489 = vsel %vm332, %v4072, %v4174
      %v4493 = vsel %vm332, %v4073, %v4176
      %v4497 = vsel %vm332, %v4074, %v4178
      %v4501 = vsel %vm332, %v4075, %v4180
      %v4505 = vsel %vm332, %v4076, %v4182
      %v4509 = vsel %vm332, %v4077, %v4184
      %v4513 = vsel %vm332, %v4078, %v4186
      %v4517 = vsel %vm332, %v4079, %v4188
      %v4521 = vsel %vm332, %v4080, %v4190
      %v4525 = vsel %vm332, %v4081, %v4192
      %v4529 = vsel %vm332, %v4082, %v4194
      %v4531 = vld [vmem:[%s3] sm:$0xf]
      %v4532 = vld [vmem:[%s3 + $0x4] sm:$0xf]
      %v4533 = vld [vmem:[%s3 + $0x8] sm:$0xf]
      %v4534 = vld [vmem:[%s3 + $0xc] sm:$0xf]
      %v4535 = vld [vmem:[%s3 + $0x10] sm:$0xf]
      %v4536 = vld [vmem:[%s3 + $0x14] sm:$0xf]
      %v4537 = vld [vmem:[%s3 + $0x18] sm:$0xf]
      %v4538 = vld [vmem:[%s3 + $0x1c] sm:$0xf]
      %v4539 = vld [vmem:[%s3 + $0x20] sm:$0xf]
      %v4540 = vld [vmem:[%s3 + $0x24] sm:$0xf]
      %v4541 = vld [vmem:[%s3 + $0x28] sm:$0xf]
      %v4542 = vld [vmem:[%s3 + $0x2c] sm:$0xf]
      %v4543 = vld [vmem:[%s3 + $0x30] sm:$0xf]
      %v4544 = vld [vmem:[%s3 + $0x34] sm:$0xf]
      %v4545 = vld [vmem:[%s3 + $0x38] sm:$0xf]
      %v4546 = vld [vmem:[%s3 + $0x3c] sm:$0xf]
      %v4547 = vld [vmem:[%s3 + $0x40] sm:$0xf]
      %v4548 = vld [vmem:[%s3 + $0x44] sm:$0xf]
      %v4549 = vld [vmem:[%s3 + $0x48] sm:$0xf]
      %v4550 = vld [vmem:[%s3 + $0x4c] sm:$0xf]
      %v4551 = vld [vmem:[%s3 + $0x50] sm:$0xf]
      %v4552 = vld [vmem:[%s3 + $0x54] sm:$0xf]
      %v4553 = vld [vmem:[%s3 + $0x58] sm:$0xf]
      %v4554 = vld [vmem:[%s3 + $0x5c] sm:$0xf]
      %v4555 = vld [vmem:[%s3 + $0x60] sm:$0xf]
      %v4556 = vld [vmem:[%s3 + $0x64] sm:$0xf]
      %v4557 = vld [vmem:[%s3 + $0x68] sm:$0xf]
      %v4558 = vld [vmem:[%s3 + $0x6c] sm:$0xf]
      %v4559 = vld [vmem:[%s3 + $0x70] sm:$0xf]
      %v4560 = vld [vmem:[%s3 + $0x74] sm:$0xf]
      %v4561 = vld [vmem:[%s3 + $0x78] sm:$0xf]
      %v4562 = vld [vmem:[%s3 + $0x7c] sm:$0xf]
      %v4563 = vld [vmem:[%s3 + $0x80] sm:$0xf]
      %v4564 = vld [vmem:[%s3 + $0x84] sm:$0xf]
      %v4565 = vld [vmem:[%s3 + $0x88] sm:$0xf]
      %v4566 = vld [vmem:[%s3 + $0x8c] sm:$0xf]
      %v4567 = vld [vmem:[%s3 + $0x90] sm:$0xf]
      %v4568 = vld [vmem:[%s3 + $0x94] sm:$0xf]
      %v4569 = vld [vmem:[%s3 + $0x98] sm:$0xf]
      %v4570 = vld [vmem:[%s3 + $0x9c] sm:$0xf]
      %v4571 = vld [vmem:[%s3 + $0xa0] sm:$0xf]
      %v4572 = vld [vmem:[%s3 + $0xa4] sm:$0xf]
      %v4573 = vld [vmem:[%s3 + $0xa8] sm:$0xf]
      %v4574 = vld [vmem:[%s3 + $0xac] sm:$0xf]
      %v4575 = vld [vmem:[%s3 + $0xb0] sm:$0xf]
      %v4576 = vld [vmem:[%s3 + $0xb4] sm:$0xf]
      %v4577 = vld [vmem:[%s3 + $0xb8] sm:$0xf]
      %v4578 = vld [vmem:[%s3 + $0xbc] sm:$0xf]
      %v4579 = vld [vmem:[%s3 + $0xc0] sm:$0xf]
      %v4580 = vld [vmem:[%s3 + $0xc4] sm:$0xf]
      %v4581 = vld [vmem:[%s3 + $0xc8] sm:$0xf]
      %v4582 = vld [vmem:[%s3 + $0xcc] sm:$0xf]
      %v4583 = vld [vmem:[%s3 + $0xd0] sm:$0xf]
      %v4584 = vld [vmem:[%s3 + $0xd4] sm:$0xf]
      %v4585 = vld [vmem:[%s3 + $0xd8] sm:$0xf]
      %v4586 = vld [vmem:[%s3 + $0xdc] sm:$0xf]
      %v4587 = vld [vmem:[%s3 + $0xe0] sm:$0xf]
      %v4588 = vld [vmem:[%s3 + $0xe4] sm:$0xf]
      %v4589 = vld [vmem:[%s3 + $0xe8] sm:$0xf]
      %v4590 = vld [vmem:[%s3 + $0xec] sm:$0xf]
      %v4591 = vld [vmem:[%s3 + $0xf0] sm:$0xf]
      %v4592 = vld [vmem:[%s3 + $0xf4] sm:$0xf]
      %v4593 = vld [vmem:[%s3 + $0xf8] sm:$0xf]
      %v4594 = vld [vmem:[%s3 + $0xfc] sm:$0xf]
      %v4595 = vld [vmem:[%s3 + $0x100] sm:$0xf]
      %v4596 = vld [vmem:[%s3 + $0x104] sm:$0xf]
      %v4597 = vld [vmem:[%s3 + $0x108] sm:$0xf]
      %v4598 = vld [vmem:[%s3 + $0x10c] sm:$0xf]
      %v4599 = vld [vmem:[%s3 + $0x110] sm:$0xf]
      %v4600 = vld [vmem:[%s3 + $0x114] sm:$0xf]
      %v4601 = vld [vmem:[%s3 + $0x118] sm:$0xf]
      %v4602 = vld [vmem:[%s3 + $0x11c] sm:$0xf]
      %v4603 = vld [vmem:[%s4] sm:$0x1]
      %v4605 = vperm.slane %v4603, 0
      %v4679 = vunpack.c.l.b16 %v4531
      %v4680 = vunpack.c.l.b16 %v4532
      %v4681 = vunpack.c.l.b16 %v4533
      %v4682 = vunpack.c.l.b16 %v4534
      %v4683 = vunpack.c.l.b16 %v4535
      %v4684 = vunpack.c.l.b16 %v4536
      %v4685 = vunpack.c.l.b16 %v4537
      %v4686 = vunpack.c.l.b16 %v4538
      %v4687 = vunpack.c.l.b16 %v4539
      %v4688 = vunpack.c.l.b16 %v4540
      %v4689 = vunpack.c.l.b16 %v4541
      %v4690 = vunpack.c.l.b16 %v4542
      %v4691 = vunpack.c.l.b16 %v4543
      %v4692 = vunpack.c.l.b16 %v4544
      %v4693 = vunpack.c.l.b16 %v4545
      %v4694 = vunpack.c.l.b16 %v4546
      %v4695 = vunpack.c.l.b16 %v4547
      %v4696 = vunpack.c.l.b16 %v4548
      %v4697 = vunpack.c.l.b16 %v4549
      %v4698 = vunpack.c.l.b16 %v4550
      %v4699 = vunpack.c.l.b16 %v4551
      %v4700 = vunpack.c.l.b16 %v4552
      %v4701 = vunpack.c.l.b16 %v4553
      %v4702 = vunpack.c.l.b16 %v4554
      %v4703 = vunpack.c.l.b16 %v4555
      %v4704 = vunpack.c.l.b16 %v4556
      %v4705 = vunpack.c.l.b16 %v4557
      %v4706 = vunpack.c.l.b16 %v4558
      %v4707 = vunpack.c.l.b16 %v4559
      %v4708 = vunpack.c.l.b16 %v4560
      %v4709 = vunpack.c.l.b16 %v4561
      %v4710 = vunpack.c.l.b16 %v4562
      %v4711 = vunpack.c.l.b16 %v4563
      %v4712 = vunpack.c.l.b16 %v4564
      %v4713 = vunpack.c.l.b16 %v4565
      %v4714 = vunpack.c.l.b16 %v4566
      %v4715 = vunpack.c.l.b16 %v4567
      %v4716 = vunpack.c.l.b16 %v4568
      %v4717 = vunpack.c.l.b16 %v4569
      %v4718 = vunpack.c.l.b16 %v4570
      %v4719 = vunpack.c.l.b16 %v4571
      %v4720 = vunpack.c.l.b16 %v4572
      %v4721 = vunpack.c.l.b16 %v4573
      %v4722 = vunpack.c.l.b16 %v4574
      %v4723 = vunpack.c.l.b16 %v4575
      %v4724 = vunpack.c.l.b16 %v4576
      %v4725 = vunpack.c.l.b16 %v4577
      %v4726 = vunpack.c.l.b16 %v4578
      %v4727 = vunpack.c.l.b16 %v4579
      %v4728 = vunpack.c.l.b16 %v4580
      %v4729 = vunpack.c.l.b16 %v4581
      %v4730 = vunpack.c.l.b16 %v4582
      %v4731 = vunpack.c.l.b16 %v4583
      %v4732 = vunpack.c.l.b16 %v4584
      %v4733 = vunpack.c.l.b16 %v4585
      %v4734 = vunpack.c.l.b16 %v4586
      %v4735 = vunpack.c.l.b16 %v4587
      %v4736 = vunpack.c.l.b16 %v4588
      %v4737 = vunpack.c.l.b16 %v4589
      %v4738 = vunpack.c.l.b16 %v4590
      %v4739 = vunpack.c.l.b16 %v4591
      %v4740 = vunpack.c.l.b16 %v4592
      %v4741 = vunpack.c.l.b16 %v4593
      %v4742 = vunpack.c.l.b16 %v4594
      %v4743 = vunpack.c.l.b16 %v4595
      %v4744 = vunpack.c.l.b16 %v4596
      %v4745 = vunpack.c.l.b16 %v4597
      %v4746 = vunpack.c.l.b16 %v4598
      %v4747 = vunpack.c.l.b16 %v4599
      %v4748 = vunpack.c.l.b16 %v4600
      %v4749 = vunpack.c.l.b16 %v4601
      %v4750 = vunpack.c.l.b16 %v4602
      %v4751 = vpack.c.b16 %v4680, %v4679
      %v4752 = vpack.c.b16 %v4682, %v4681
      %v4753 = vpack.c.b16 %v4684, %v4683
      %v4754 = vpack.c.b16 %v4686, %v4685
      %v4755 = vpack.c.b16 %v4688, %v4687
      %v4756 = vpack.c.b16 %v4690, %v4689
      %v4757 = vpack.c.b16 %v4692, %v4691
      %v4758 = vpack.c.b16 %v4694, %v4693
      %v4759 = vpack.c.b16 %v4696, %v4695
      %v4760 = vpack.c.b16 %v4698, %v4697
      %v4761 = vpack.c.b16 %v4700, %v4699
      %v4762 = vpack.c.b16 %v4702, %v4701
      %v4763 = vpack.c.b16 %v4704, %v4703
      %v4764 = vpack.c.b16 %v4706, %v4705
      %v4765 = vpack.c.b16 %v4708, %v4707
      %v4766 = vpack.c.b16 %v4710, %v4709
      %v4767 = vpack.c.b16 %v4712, %v4711
      %v4768 = vpack.c.b16 %v4714, %v4713
      %v4769 = vpack.c.b16 %v4716, %v4715
      %v4770 = vpack.c.b16 %v4718, %v4717
      %v4771 = vpack.c.b16 %v4720, %v4719
      %v4772 = vpack.c.b16 %v4722, %v4721
      %v4773 = vpack.c.b16 %v4724, %v4723
      %v4774 = vpack.c.b16 %v4726, %v4725
      %v4775 = vpack.c.b16 %v4728, %v4727
      %v4776 = vpack.c.b16 %v4730, %v4729
      %v4777 = vpack.c.b16 %v4732, %v4731
      %v4778 = vpack.c.b16 %v4734, %v4733
      %v4779 = vpack.c.b16 %v4736, %v4735
      %v4780 = vpack.c.b16 %v4738, %v4737
      %v4781 = vpack.c.b16 %v4740, %v4739
      %v4782 = vpack.c.b16 %v4742, %v4741
      %v4783 = vpack.c.b16 %v4744, %v4743
      %v4784 = vpack.c.b16 %v4746, %v4745
      %v4785 = vpack.c.b16 %v4748, %v4747
      %v4786 = vpack.c.b16 %v4750, %v4749
      %v4824 = vsel %vm332, %v2576, 0
      %v4827 = vsel %vm332, %v2577, 0
      %v4830 = vsel %vm332, %v2578, 0
      %v4833 = vsel %vm332, %v2579, 0
      %v4836 = vsel %vm332, %v2580, 0
      %v4839 = vsel %vm332, %v2581, 0
      %v4842 = vsel %vm332, %v2582, 0
      %v4845 = vsel %vm332, %v2583, 0
      %v4848 = vsel %vm332, %v2584, 0
      %v4851 = vsel %vm332, %v2585, 0
      %v4854 = vsel %vm332, %v2586, 0
      %v4857 = vsel %vm332, %v2587, 0
      %v4860 = vsel %vm332, %v2588, 0
      %v4863 = vsel %vm332, %v2589, 0
      %v4866 = vsel %vm332, %v2590, 0
      %v4869 = vsel %vm332, %v2591, 0
      %v4872 = vsel %vm332, %v4259, 0
      %v4875 = vsel %vm332, %v4260, 0
      %v4878 = vsel %vm332, %v4261, 0
      %v4881 = vsel %vm332, %v4262, 0
      %v4884 = vsel %vm332, %v4263, 0
      %v4887 = vsel %vm332, %v4264, 0
      %v4890 = vsel %vm332, %v4265, 0
      %v4893 = vsel %vm332, %v4266, 0
      %v4896 = vsel %vm332, %v4267, 0
      %v4899 = vsel %vm332, %v4268, 0
      %v4902 = vsel %vm332, %v4269, 0
      %v4905 = vsel %vm332, %v4270, 0
      %v4908 = vsel %vm332, %v4271, 0
      %v4911 = vsel %vm332, %v4272, 0
      %v4914 = vsel %vm332, %v4273, 0
      %v4917 = vsel %vm332, %v4274, 0
      %4919 = vmatpush.bf16.msra.mxu0 %v4758
      %4920 = vmatpush.bf16.msra.mxu0 %v4757
      %4921 = vmatpush.bf16.msra.mxu0 %v4756
      %4922 = vmatpush.bf16.msra.mxu0 %v4755
      %4923 = vmatpush.bf16.msra.mxu0 %v4754
      %4924 = vmatpush.bf16.msra.mxu0 %v4753
      %4925 = vmatpush.bf16.msra.mxu0 %v4752
      %4926 = vmatpush.bf16.msra.mxu0 %v4751
      %4927 = vmatmul.bf16.gmra.mxu0 %v2594
      %v4928 = vpop.f32.mrf.mxu0
      %v4929 = vadd.f32 %v4605, %v4928
      %v4930 = vpop.f32.mrf.mxu0
      %v4931 = vadd.f32 %v4605, %v4930
      %4932 = vmatmul.bf16.gmra.mxu0 %v2598
      %v4933 = vpop.f32.mrf.mxu0
      %v4934 = vadd.f32 %v4605, %v4933
      %v4935 = vpop.f32.mrf.mxu0
      %v4936 = vadd.f32 %v4605, %v4935
      %4937 = vmatmul.bf16.gmra.mxu0 %v2602
      %v4938 = vpop.f32.mrf.mxu0
      %v4939 = vadd.f32 %v4605, %v4938
      %v4940 = vpop.f32.mrf.mxu0
      %v4941 = vadd.f32 %v4605, %v4940
      %4942 = vmatmul.bf16.gmra.mxu0 %v2606
      %v4943 = vpop.f32.mrf.mxu0
      %v4944 = vadd.f32 %v4605, %v4943
      %v4945 = vpop.f32.mrf.mxu0
      %v4946 = vadd.f32 %v4605, %v4945
      %4947 = vmatmul.bf16.gmra.mxu0 %v2610
      %v4948 = vpop.f32.mrf.mxu0
      %v4949 = vadd.f32 %v4605, %v4948
      %v4950 = vpop.f32.mrf.mxu0
      %v4951 = vadd.f32 %v4605, %v4950
      %4952 = vmatmul.bf16.gmra.mxu0 %v2614
      %v4953 = vpop.f32.mrf.mxu0
      %v4954 = vadd.f32 %v4605, %v4953
      %v4955 = vpop.f32.mrf.mxu0
      %v4956 = vadd.f32 %v4605, %v4955
      %4957 = vmatmul.bf16.gmra.mxu0 %v2618
      %v4958 = vpop.f32.mrf.mxu0
      %v4959 = vadd.f32 %v4605, %v4958
      %v4960 = vpop.f32.mrf.mxu0
      %v4961 = vadd.f32 %v4605, %v4960
      %4962 = vmatmul.bf16.gmra.mxu0 %v2622
      %v4963 = vpop.f32.mrf.mxu0
      %v4964 = vadd.f32 %v4605, %v4963
      %v4965 = vpop.f32.mrf.mxu0
      %v4966 = vadd.f32 %v4605, %v4965
      %4967 = vmatmul.bf16.gmra.mxu0 %v2626
      %v4968 = vpop.f32.mrf.mxu0
      %v4969 = vadd.f32 %v4605, %v4968
      %v4970 = vpop.f32.mrf.mxu0
      %v4971 = vadd.f32 %v4605, %v4970
      %4972 = vmatmul.bf16.gmra.mxu0 %v2630
      %v4973 = vpop.f32.mrf.mxu0
      %v4974 = vadd.f32 %v4605, %v4973
      %v4975 = vpop.f32.mrf.mxu0
      %v4976 = vadd.f32 %v4605, %v4975
      %4977 = vmatmul.bf16.gmra.mxu0 %v2634
      %v4978 = vpop.f32.mrf.mxu0
      %v4979 = vadd.f32 %v4605, %v4978
      %v4980 = vpop.f32.mrf.mxu0
      %v4981 = vadd.f32 %v4605, %v4980
      %4982 = vmatmul.bf16.gmra.mxu0 %v2638
      %v4983 = vpop.f32.mrf.mxu0
      %v4984 = vadd.f32 %v4605, %v4983
      %v4985 = vpop.f32.mrf.mxu0
      %v4986 = vadd.f32 %v4605, %v4985
      %4987 = vmatmul.bf16.gmra.mxu0 %v2642
      %v4988 = vpop.f32.mrf.mxu0
      %v4989 = vadd.f32 %v4605, %v4988
      %v4990 = vpop.f32.mrf.mxu0
      %v4991 = vadd.f32 %v4605, %v4990
      %4992 = vmatmul.bf16.gmra.mxu0 %v2646
      %v4993 = vpop.f32.mrf.mxu0
      %v4994 = vadd.f32 %v4605, %v4993
      %v4995 = vpop.f32.mrf.mxu0
      %v4996 = vadd.f32 %v4605, %v4995
      %4997 = vmatmul.bf16.gmra.mxu0 %v2650
      %v4998 = vpop.f32.mrf.mxu0
      %v4999 = vadd.f32 %v4605, %v4998
      %v5000 = vpop.f32.mrf.mxu0
      %v5001 = vadd.f32 %v4605, %v5000
      %5002 = vmatmul.bf16.gmra.mxu0 %v2654
      %v5003 = vpop.f32.mrf.mxu0
      %v5004 = vadd.f32 %v4605, %v5003
      %v5005 = vpop.f32.mrf.mxu0
      %v5006 = vadd.f32 %v4605, %v5005
      %5007 = vmatmul.bf16.gmra.mxu0 %v4277
      %v5008 = vpop.f32.mrf.mxu0
      %v5009 = vadd.f32 %v4605, %v5008
      %v5010 = vpop.f32.mrf.mxu0
      %v5011 = vadd.f32 %v4605, %v5010
      %5012 = vmatmul.bf16.gmra.mxu0 %v4281
      %v5013 = vpop.f32.mrf.mxu0
      %v5014 = vadd.f32 %v4605, %v5013
      %v5015 = vpop.f32.mrf.mxu0
      %v5016 = vadd.f32 %v4605, %v5015
      %5017 = vmatmul.bf16.gmra.mxu0 %v4285
      %v5018 = vpop.f32.mrf.mxu0
      %v5019 = vadd.f32 %v4605, %v5018
      %v5020 = vpop.f32.mrf.mxu0
      %v5021 = vadd.f32 %v4605, %v5020
      %5022 = vmatmul.bf16.gmra.mxu0 %v4289
      %v5023 = vpop.f32.mrf.mxu0
      %v5024 = vadd.f32 %v4605, %v5023
      %v5025 = vpop.f32.mrf.mxu0
      %v5026 = vadd.f32 %v4605, %v5025
      %5027 = vmatmul.bf16.gmra.mxu0 %v4293
      %v5028 = vpop.f32.mrf.mxu0
      %v5029 = vadd.f32 %v4605, %v5028
      %v5030 = vpop.f32.mrf.mxu0
      %v5031 = vadd.f32 %v4605, %v5030
      %5032 = vmatmul.bf16.gmra.mxu0 %v4297
      %v5033 = vpop.f32.mrf.mxu0
      %v5034 = vadd.f32 %v4605, %v5033
      %v5035 = vpop.f32.mrf.mxu0
      %v5036 = vadd.f32 %v4605, %v5035
      %5037 = vmatmul.bf16.gmra.mxu0 %v4301
      %v5038 = vpop.f32.mrf.mxu0
      %v5039 = vadd.f32 %v4605, %v5038
      %v5040 = vpop.f32.mrf.mxu0
      %v5041 = vadd.f32 %v4605, %v5040
      %5042 = vmatmul.bf16.gmra.mxu0 %v4305
      %v5043 = vpop.f32.mrf.mxu0
      %v5044 = vadd.f32 %v4605, %v5043
      %v5045 = vpop.f32.mrf.mxu0
      %v5046 = vadd.f32 %v4605, %v5045
      %5047 = vmatmul.bf16.gmra.mxu0 %v4309
      %v5048 = vpop.f32.mrf.mxu0
      %v5049 = vadd.f32 %v4605, %v5048
      %v5050 = vpop.f32.mrf.mxu0
      %v5051 = vadd.f32 %v4605, %v5050
      %5052 = vmatmul.bf16.gmra.mxu0 %v4313
      %v5053 = vpop.f32.mrf.mxu0
      %v5054 = vadd.f32 %v4605, %v5053
      %v5055 = vpop.f32.mrf.mxu0
      %v5056 = vadd.f32 %v4605, %v5055
      %5057 = vmatmul.bf16.gmra.mxu0 %v4317
      %v5058 = vpop.f32.mrf.mxu0
      %v5059 = vadd.f32 %v4605, %v5058
      %v5060 = vpop.f32.mrf.mxu0
      %v5061 = vadd.f32 %v4605, %v5060
      %5062 = vmatmul.bf16.gmra.mxu0 %v4321
      %v5063 = vpop.f32.mrf.mxu0
      %v5064 = vadd.f32 %v4605, %v5063
      %v5065 = vpop.f32.mrf.mxu0
      %v5066 = vadd.f32 %v4605, %v5065
      %5067 = vmatmul.bf16.gmra.mxu0 %v4325
      %v5068 = vpop.f32.mrf.mxu0
      %v5069 = vadd.f32 %v4605, %v5068
      %v5070 = vpop.f32.mrf.mxu0
      %v5071 = vadd.f32 %v4605, %v5070
      %5072 = vmatmul.bf16.gmra.mxu0 %v4329
      %v5073 = vpop.f32.mrf.mxu0
      %v5074 = vadd.f32 %v4605, %v5073
      %v5075 = vpop.f32.mrf.mxu0
      %v5076 = vadd.f32 %v4605, %v5075
      %5077 = vmatmul.bf16.gmra.mxu0 %v4333
      %v5078 = vpop.f32.mrf.mxu0
      %v5079 = vadd.f32 %v4605, %v5078
      %v5080 = vpop.f32.mrf.mxu0
      %v5081 = vadd.f32 %v4605, %v5080
      %5082 = vmatmul.bf16.gmra.mxu0 %v4337
      %v5083 = vpop.f32.mrf.mxu0
      %v5084 = vadd.f32 %v4605, %v5083
      %v5085 = vpop.f32.mrf.mxu0
      %v5086 = vadd.f32 %v4605, %v5085
      %5087 = vdwg.mxu0
      %5088 = vmatpush.bf16.msra.mxu0 %v4766
      %5089 = vmatpush.bf16.msra.mxu0 %v4765
      %5090 = vmatpush.bf16.msra.mxu0 %v4764
      %5091 = vmatpush.bf16.msra.mxu0 %v4763
      %5092 = vmatpush.bf16.msra.mxu0 %v4762
      %5093 = vmatpush.bf16.msra.mxu0 %v4761
      %5094 = vmatpush.bf16.msra.mxu0 %v4760
      %5095 = vmatpush.bf16.msra.mxu0 %v4759
      %5096 = vmatmul.bf16.gmra.mxu0 %v2658
      %v5097 = vpop.f32.mrf.mxu0
      %v5098 = vadd.f32 %v4929, %v5097
      %v5099 = vpop.f32.mrf.mxu0
      %v5100 = vadd.f32 %v4931, %v5099
      %5101 = vmatmul.bf16.gmra.mxu0 %v2662
      %v5102 = vpop.f32.mrf.mxu0
      %v5103 = vadd.f32 %v4934, %v5102
      %v5104 = vpop.f32.mrf.mxu0
      %v5105 = vadd.f32 %v4936, %v5104
      %5106 = vmatmul.bf16.gmra.mxu0 %v2666
      %v5107 = vpop.f32.mrf.mxu0
      %v5108 = vadd.f32 %v4939, %v5107
      %v5109 = vpop.f32.mrf.mxu0
      %v5110 = vadd.f32 %v4941, %v5109
      %5111 = vmatmul.bf16.gmra.mxu0 %v2670
      %v5112 = vpop.f32.mrf.mxu0
      %v5113 = vadd.f32 %v4944, %v5112
      %v5114 = vpop.f32.mrf.mxu0
      %v5115 = vadd.f32 %v4946, %v5114
      %5116 = vmatmul.bf16.gmra.mxu0 %v2674
      %v5117 = vpop.f32.mrf.mxu0
      %v5118 = vadd.f32 %v4949, %v5117
      %v5119 = vpop.f32.mrf.mxu0
      %v5120 = vadd.f32 %v4951, %v5119
      %5121 = vmatmul.bf16.gmra.mxu0 %v2678
      %v5122 = vpop.f32.mrf.mxu0
      %v5123 = vadd.f32 %v4954, %v5122
      %v5124 = vpop.f32.mrf.mxu0
      %v5125 = vadd.f32 %v4956, %v5124
      %5126 = vmatmul.bf16.gmra.mxu0 %v2682
      %v5127 = vpop.f32.mrf.mxu0
      %v5128 = vadd.f32 %v4959, %v5127
      %v5129 = vpop.f32.mrf.mxu0
      %v5130 = vadd.f32 %v4961, %v5129
      %5131 = vmatmul.bf16.gmra.mxu0 %v2686
      %v5132 = vpop.f32.mrf.mxu0
      %v5133 = vadd.f32 %v4964, %v5132
      %v5134 = vpop.f32.mrf.mxu0
      %v5135 = vadd.f32 %v4966, %v5134
      %5136 = vmatmul.bf16.gmra.mxu0 %v2690
      %v5137 = vpop.f32.mrf.mxu0
      %v5138 = vadd.f32 %v4969, %v5137
      %v5139 = vpop.f32.mrf.mxu0
      %v5140 = vadd.f32 %v4971, %v5139
      %5141 = vmatmul.bf16.gmra.mxu0 %v2694
      %v5142 = vpop.f32.mrf.mxu0
      %v5143 = vadd.f32 %v4974, %v5142
      %v5144 = vpop.f32.mrf.mxu0
      %v5145 = vadd.f32 %v4976, %v5144
      %5146 = vmatmul.bf16.gmra.mxu0 %v2698
      %v5147 = vpop.f32.mrf.mxu0
      %v5148 = vadd.f32 %v4979, %v5147
      %v5149 = vpop.f32.mrf.mxu0
      %v5150 = vadd.f32 %v4981, %v5149
      %5151 = vmatmul.bf16.gmra.mxu0 %v2702
      %v5152 = vpop.f32.mrf.mxu0
      %v5153 = vadd.f32 %v4984, %v5152
      %v5154 = vpop.f32.mrf.mxu0
      %v5155 = vadd.f32 %v4986, %v5154
      %5156 = vmatmul.bf16.gmra.mxu0 %v2706
      %v5157 = vpop.f32.mrf.mxu0
      %v5158 = vadd.f32 %v4989, %v5157
      %v5159 = vpop.f32.mrf.mxu0
      %v5160 = vadd.f32 %v4991, %v5159
      %5161 = vmatmul.bf16.gmra.mxu0 %v2710
      %v5162 = vpop.f32.mrf.mxu0
      %v5163 = vadd.f32 %v4994, %v5162
      %v5164 = vpop.f32.mrf.mxu0
      %v5165 = vadd.f32 %v4996, %v5164
      %5166 = vmatmul.bf16.gmra.mxu0 %v2714
      %v5167 = vpop.f32.mrf.mxu0
      %v5168 = vadd.f32 %v4999, %v5167
      %v5169 = vpop.f32.mrf.mxu0
      %v5170 = vadd.f32 %v5001, %v5169
      %5171 = vmatmul.bf16.gmra.mxu0 %v2718
      %v5172 = vpop.f32.mrf.mxu0
      %v5173 = vadd.f32 %v5004, %v5172
      %v5174 = vpop.f32.mrf.mxu0
      %v5175 = vadd.f32 %v5006, %v5174
      %5176 = vmatmul.bf16.gmra.mxu0 %v4341
      %v5177 = vpop.f32.mrf.mxu0
      %v5178 = vadd.f32 %v5009, %v5177
      %v5179 = vpop.f32.mrf.mxu0
      %v5180 = vadd.f32 %v5011, %v5179
      %5181 = vmatmul.bf16.gmra.mxu0 %v4345
      %v5182 = vpop.f32.mrf.mxu0
      %v5183 = vadd.f32 %v5014, %v5182
      %v5184 = vpop.f32.mrf.mxu0
      %v5185 = vadd.f32 %v5016, %v5184
      %5186 = vmatmul.bf16.gmra.mxu0 %v4349
      %v5187 = vpop.f32.mrf.mxu0
      %v5188 = vadd.f32 %v5019, %v5187
      %v5189 = vpop.f32.mrf.mxu0
      %v5190 = vadd.f32 %v5021, %v5189
      %5191 = vmatmul.bf16.gmra.mxu0 %v4353
      %v5192 = vpop.f32.mrf.mxu0
      %v5193 = vadd.f32 %v5024, %v5192
      %v5194 = vpop.f32.mrf.mxu0
      %v5195 = vadd.f32 %v5026, %v5194
      %5196 = vmatmul.bf16.gmra.mxu0 %v4357
      %v5197 = vpop.f32.mrf.mxu0
      %v5198 = vadd.f32 %v5029, %v5197
      %v5199 = vpop.f32.mrf.mxu0
      %v5200 = vadd.f32 %v5031, %v5199
      %5201 = vmatmul.bf16.gmra.mxu0 %v4361
      %v5202 = vpop.f32.mrf.mxu0
      %v5203 = vadd.f32 %v5034, %v5202
      %v5204 = vpop.f32.mrf.mxu0
      %v5205 = vadd.f32 %v5036, %v5204
      %5206 = vmatmul.bf16.gmra.mxu0 %v4365
      %v5207 = vpop.f32.mrf.mxu0
      %v5208 = vadd.f32 %v5039, %v5207
      %v5209 = vpop.f32.mrf.mxu0
      %v5210 = vadd.f32 %v5041, %v5209
      %5211 = vmatmul.bf16.gmra.mxu0 %v4369
      %v5212 = vpop.f32.mrf.mxu0
      %v5213 = vadd.f32 %v5044, %v5212
      %v5214 = vpop.f32.mrf.mxu0
      %v5215 = vadd.f32 %v5046, %v5214
      %5216 = vmatmul.bf16.gmra.mxu0 %v4373
      %v5217 = vpop.f32.mrf.mxu0
      %v5218 = vadd.f32 %v5049, %v5217
      %v5219 = vpop.f32.mrf.mxu0
      %v5220 = vadd.f32 %v5051, %v5219
      %5221 = vmatmul.bf16.gmra.mxu0 %v4377
      %v5222 = vpop.f32.mrf.mxu0
      %v5223 = vadd.f32 %v5054, %v5222
      %v5224 = vpop.f32.mrf.mxu0
      %v5225 = vadd.f32 %v5056, %v5224
      %5226 = vmatmul.bf16.gmra.mxu0 %v4381
      %v5227 = vpop.f32.mrf.mxu0
      %v5228 = vadd.f32 %v5059, %v5227
      %v5229 = vpop.f32.mrf.mxu0
      %v5230 = vadd.f32 %v5061, %v5229
      %5231 = vmatmul.bf16.gmra.mxu0 %v4385
      %v5232 = vpop.f32.mrf.mxu0
      %v5233 = vadd.f32 %v5064, %v5232
      %v5234 = vpop.f32.mrf.mxu0
      %v5235 = vadd.f32 %v5066, %v5234
      %5236 = vmatmul.bf16.gmra.mxu0 %v4389
      %v5237 = vpop.f32.mrf.mxu0
      %v5238 = vadd.f32 %v5069, %v5237
      %v5239 = vpop.f32.mrf.mxu0
      %v5240 = vadd.f32 %v5071, %v5239
      %5241 = vmatmul.bf16.gmra.mxu0 %v4393
      %v5242 = vpop.f32.mrf.mxu0
      %v5243 = vadd.f32 %v5074, %v5242
      %v5244 = vpop.f32.mrf.mxu0
      %v5245 = vadd.f32 %v5076, %v5244
      %5246 = vmatmul.bf16.gmra.mxu0 %v4397
      %v5247 = vpop.f32.mrf.mxu0
      %v5248 = vadd.f32 %v5079, %v5247
      %v5249 = vpop.f32.mrf.mxu0
      %v5250 = vadd.f32 %v5081, %v5249
      %5251 = vmatmul.bf16.gmra.mxu0 %v4401
      %v5252 = vpop.f32.mrf.mxu0
      %v5253 = vadd.f32 %v5084, %v5252
      %v5254 = vpop.f32.mrf.mxu0
      %v5255 = vadd.f32 %v5086, %v5254
      %5256 = vdwg.mxu0
      %5257 = vmatpush.bf16.msra.mxu0 %v4774
      %5258 = vmatpush.bf16.msra.mxu0 %v4773
      %5259 = vmatpush.bf16.msra.mxu0 %v4772
      %5260 = vmatpush.bf16.msra.mxu0 %v4771
      %5261 = vmatpush.bf16.msra.mxu0 %v4770
      %5262 = vmatpush.bf16.msra.mxu0 %v4769
      %5263 = vmatpush.bf16.msra.mxu0 %v4768
      %5264 = vmatpush.bf16.msra.mxu0 %v4767
      %5265 = vmatmul.bf16.gmra.mxu0 %v2722
      %v5266 = vpop.f32.mrf.mxu0
      %v5267 = vadd.f32 %v5098, %v5266
      %v5268 = vpop.f32.mrf.mxu0
      %v5269 = vadd.f32 %v5100, %v5268
      %5270 = vmatmul.bf16.gmra.mxu0 %v2726
      %v5271 = vpop.f32.mrf.mxu0
      %v5272 = vadd.f32 %v5103, %v5271
      %v5273 = vpop.f32.mrf.mxu0
      %v5274 = vadd.f32 %v5105, %v5273
      %5275 = vmatmul.bf16.gmra.mxu0 %v2730
      %v5276 = vpop.f32.mrf.mxu0
      %v5277 = vadd.f32 %v5108, %v5276
      %v5278 = vpop.f32.mrf.mxu0
      %v5279 = vadd.f32 %v5110, %v5278
      %5280 = vmatmul.bf16.gmra.mxu0 %v2734
      %v5281 = vpop.f32.mrf.mxu0
      %v5282 = vadd.f32 %v5113, %v5281
      %v5283 = vpop.f32.mrf.mxu0
      %v5284 = vadd.f32 %v5115, %v5283
      %5285 = vmatmul.bf16.gmra.mxu0 %v2738
      %v5286 = vpop.f32.mrf.mxu0
      %v5287 = vadd.f32 %v5118, %v5286
      %v5288 = vpop.f32.mrf.mxu0
      %v5289 = vadd.f32 %v5120, %v5288
      %5290 = vmatmul.bf16.gmra.mxu0 %v2742
      %v5291 = vpop.f32.mrf.mxu0
      %v5292 = vadd.f32 %v5123, %v5291
      %v5293 = vpop.f32.mrf.mxu0
      %v5294 = vadd.f32 %v5125, %v5293
      %5295 = vmatmul.bf16.gmra.mxu0 %v2746
      %v5296 = vpop.f32.mrf.mxu0
      %v5297 = vadd.f32 %v5128, %v5296
      %v5298 = vpop.f32.mrf.mxu0
      %v5299 = vadd.f32 %v5130, %v5298
      %5300 = vmatmul.bf16.gmra.mxu0 %v2750
      %v5301 = vpop.f32.mrf.mxu0
      %v5302 = vadd.f32 %v5133, %v5301
      %v5303 = vpop.f32.mrf.mxu0
      %v5304 = vadd.f32 %v5135, %v5303
      %5305 = vmatmul.bf16.gmra.mxu0 %v2754
      %v5306 = vpop.f32.mrf.mxu0
      %v5307 = vadd.f32 %v5138, %v5306
      %v5308 = vpop.f32.mrf.mxu0
      %v5309 = vadd.f32 %v5140, %v5308
      %5310 = vmatmul.bf16.gmra.mxu0 %v2758
      %v5311 = vpop.f32.mrf.mxu0
      %v5312 = vadd.f32 %v5143, %v5311
      %v5313 = vpop.f32.mrf.mxu0
      %v5314 = vadd.f32 %v5145, %v5313
      %5315 = vmatmul.bf16.gmra.mxu0 %v2762
      %v5316 = vpop.f32.mrf.mxu0
      %v5317 = vadd.f32 %v5148, %v5316
      %v5318 = vpop.f32.mrf.mxu0
      %v5319 = vadd.f32 %v5150, %v5318
      %5320 = vmatmul.bf16.gmra.mxu0 %v2766
      %v5321 = vpop.f32.mrf.mxu0
      %v5322 = vadd.f32 %v5153, %v5321
      %v5323 = vpop.f32.mrf.mxu0
      %v5324 = vadd.f32 %v5155, %v5323
      %5325 = vmatmul.bf16.gmra.mxu0 %v2770
      %v5326 = vpop.f32.mrf.mxu0
      %v5327 = vadd.f32 %v5158, %v5326
      %v5328 = vpop.f32.mrf.mxu0
      %v5329 = vadd.f32 %v5160, %v5328
      %5330 = vmatmul.bf16.gmra.mxu0 %v2774
      %v5331 = vpop.f32.mrf.mxu0
      %v5332 = vadd.f32 %v5163, %v5331
      %v5333 = vpop.f32.mrf.mxu0
      %v5334 = vadd.f32 %v5165, %v5333
      %5335 = vmatmul.bf16.gmra.mxu0 %v2778
      %v5336 = vpop.f32.mrf.mxu0
      %v5337 = vadd.f32 %v5168, %v5336
      %v5338 = vpop.f32.mrf.mxu0
      %v5339 = vadd.f32 %v5170, %v5338
      %5340 = vmatmul.bf16.gmra.mxu0 %v2782
      %v5341 = vpop.f32.mrf.mxu0
      %v5342 = vadd.f32 %v5173, %v5341
      %v5343 = vpop.f32.mrf.mxu0
      %v5344 = vadd.f32 %v5175, %v5343
      %5345 = vmatmul.bf16.gmra.mxu0 %v4405
      %v5346 = vpop.f32.mrf.mxu0
      %v5347 = vadd.f32 %v5178, %v5346
      %v5348 = vpop.f32.mrf.mxu0
      %v5349 = vadd.f32 %v5180, %v5348
      %5350 = vmatmul.bf16.gmra.mxu0 %v4409
      %v5351 = vpop.f32.mrf.mxu0
      %v5352 = vadd.f32 %v5183, %v5351
      %v5353 = vpop.f32.mrf.mxu0
      %v5354 = vadd.f32 %v5185, %v5353
      %5355 = vmatmul.bf16.gmra.mxu0 %v4413
      %v5356 = vpop.f32.mrf.mxu0
      %v5357 = vadd.f32 %v5188, %v5356
      %v5358 = vpop.f32.mrf.mxu0
      %v5359 = vadd.f32 %v5190, %v5358
      %5360 = vmatmul.bf16.gmra.mxu0 %v4417
      %v5361 = vpop.f32.mrf.mxu0
      %v5362 = vadd.f32 %v5193, %v5361
      %v5363 = vpop.f32.mrf.mxu0
      %v5364 = vadd.f32 %v5195, %v5363
      %5365 = vmatmul.bf16.gmra.mxu0 %v4421
      %v5366 = vpop.f32.mrf.mxu0
      %v5367 = vadd.f32 %v5198, %v5366
      %v5368 = vpop.f32.mrf.mxu0
      %v5369 = vadd.f32 %v5200, %v5368
      %5370 = vmatmul.bf16.gmra.mxu0 %v4425
      %v5371 = vpop.f32.mrf.mxu0
      %v5372 = vadd.f32 %v5203, %v5371
      %v5373 = vpop.f32.mrf.mxu0
      %v5374 = vadd.f32 %v5205, %v5373
      %5375 = vmatmul.bf16.gmra.mxu0 %v4429
      %v5376 = vpop.f32.mrf.mxu0
      %v5377 = vadd.f32 %v5208, %v5376
      %v5378 = vpop.f32.mrf.mxu0
      %v5379 = vadd.f32 %v5210, %v5378
      %5380 = vmatmul.bf16.gmra.mxu0 %v4433
      %v5381 = vpop.f32.mrf.mxu0
      %v5382 = vadd.f32 %v5213, %v5381
      %v5383 = vpop.f32.mrf.mxu0
      %v5384 = vadd.f32 %v5215, %v5383
      %5385 = vmatmul.bf16.gmra.mxu0 %v4437
      %v5386 = vpop.f32.mrf.mxu0
      %v5387 = vadd.f32 %v5218, %v5386
      %v5388 = vpop.f32.mrf.mxu0
      %v5389 = vadd.f32 %v5220, %v5388
      %5390 = vmatmul.bf16.gmra.mxu0 %v4441
      %v5391 = vpop.f32.mrf.mxu0
      %v5392 = vadd.f32 %v5223, %v5391
      %v5393 = vpop.f32.mrf.mxu0
      %v5394 = vadd.f32 %v5225, %v5393
      %5395 = vmatmul.bf16.gmra.mxu0 %v4445
      %v5396 = vpop.f32.mrf.mxu0
      %v5397 = vadd.f32 %v5228, %v5396
      %v5398 = vpop.f32.mrf.mxu0
      %v5399 = vadd.f32 %v5230, %v5398
      %5400 = vmatmul.bf16.gmra.mxu0 %v4449
      %v5401 = vpop.f32.mrf.mxu0
      %v5402 = vadd.f32 %v5233, %v5401
      %v5403 = vpop.f32.mrf.mxu0
      %v5404 = vadd.f32 %v5235, %v5403
      %5405 = vmatmul.bf16.gmra.mxu0 %v4453
      %v5406 = vpop.f32.mrf.mxu0
      %v5407 = vadd.f32 %v5238, %v5406
      %v5408 = vpop.f32.mrf.mxu0
      %v5409 = vadd.f32 %v5240, %v5408
      %5410 = vmatmul.bf16.gmra.mxu0 %v4457
      %v5411 = vpop.f32.mrf.mxu0
      %v5412 = vadd.f32 %v5243, %v5411
      %v5413 = vpop.f32.mrf.mxu0
      %v5414 = vadd.f32 %v5245, %v5413
      %5415 = vmatmul.bf16.gmra.mxu0 %v4461
      %v5416 = vpop.f32.mrf.mxu0
      %v5417 = vadd.f32 %v5248, %v5416
      %v5418 = vpop.f32.mrf.mxu0
      %v5419 = vadd.f32 %v5250, %v5418
      %5420 = vmatmul.bf16.gmra.mxu0 %v4465
      %v5421 = vpop.f32.mrf.mxu0
      %v5422 = vadd.f32 %v5253, %v5421
      %v5423 = vpop.f32.mrf.mxu0
      %v5424 = vadd.f32 %v5255, %v5423
      %5425 = vdwg.mxu0
      %5426 = vmatpush.bf16.msra.mxu0 %v4782
      %5427 = vmatpush.bf16.msra.mxu0 %v4781
      %5428 = vmatpush.bf16.msra.mxu0 %v4780
      %5429 = vmatpush.bf16.msra.mxu0 %v4779
      %5430 = vmatpush.bf16.msra.mxu0 %v4778
      %5431 = vmatpush.bf16.msra.mxu0 %v4777
      %5432 = vmatpush.bf16.msra.mxu0 %v4776
      %5433 = vmatpush.bf16.msra.mxu0 %v4775
      %5434 = vmatmul.bf16.gmra.mxu0 %v2786
      %v5435 = vpop.f32.mrf.mxu0
      %v5436 = vadd.f32 %v5267, %v5435
      %v5437 = vpop.f32.mrf.mxu0
      %v5438 = vadd.f32 %v5269, %v5437
      %5439 = vmatmul.bf16.gmra.mxu0 %v2790
      %v5440 = vpop.f32.mrf.mxu0
      %v5441 = vadd.f32 %v5272, %v5440
      %v5442 = vpop.f32.mrf.mxu0
      %v5443 = vadd.f32 %v5274, %v5442
      %5444 = vmatmul.bf16.gmra.mxu0 %v2794
      %v5445 = vpop.f32.mrf.mxu0
      %v5446 = vadd.f32 %v5277, %v5445
      %v5447 = vpop.f32.mrf.mxu0
      %v5448 = vadd.f32 %v5279, %v5447
      %5449 = vmatmul.bf16.gmra.mxu0 %v2798
      %v5450 = vpop.f32.mrf.mxu0
      %v5451 = vadd.f32 %v5282, %v5450
      %v5452 = vpop.f32.mrf.mxu0
      %v5453 = vadd.f32 %v5284, %v5452
      %5454 = vmatmul.bf16.gmra.mxu0 %v2802
      %v5455 = vpop.f32.mrf.mxu0
      %v5456 = vadd.f32 %v5287, %v5455
      %v5457 = vpop.f32.mrf.mxu0
      %v5458 = vadd.f32 %v5289, %v5457
      %5459 = vmatmul.bf16.gmra.mxu0 %v2806
      %v5460 = vpop.f32.mrf.mxu0
      %v5461 = vadd.f32 %v5292, %v5460
      %v5462 = vpop.f32.mrf.mxu0
      %v5463 = vadd.f32 %v5294, %v5462
      %5464 = vmatmul.bf16.gmra.mxu0 %v2810
      %v5465 = vpop.f32.mrf.mxu0
      %v5466 = vadd.f32 %v5297, %v5465
      %v5467 = vpop.f32.mrf.mxu0
      %v5468 = vadd.f32 %v5299, %v5467
      %5469 = vmatmul.bf16.gmra.mxu0 %v2814
      %v5470 = vpop.f32.mrf.mxu0
      %v5471 = vadd.f32 %v5302, %v5470
      %v5472 = vpop.f32.mrf.mxu0
      %v5473 = vadd.f32 %v5304, %v5472
      %5474 = vmatmul.bf16.gmra.mxu0 %v2818
      %v5475 = vpop.f32.mrf.mxu0
      %v5476 = vadd.f32 %v5307, %v5475
      %v5477 = vpop.f32.mrf.mxu0
      %v5478 = vadd.f32 %v5309, %v5477
      %5479 = vmatmul.bf16.gmra.mxu0 %v2822
      %v5480 = vpop.f32.mrf.mxu0
      %v5481 = vadd.f32 %v5312, %v5480
      %v5482 = vpop.f32.mrf.mxu0
      %v5483 = vadd.f32 %v5314, %v5482
      %5484 = vmatmul.bf16.gmra.mxu0 %v2826
      %v5485 = vpop.f32.mrf.mxu0
      %v5486 = vadd.f32 %v5317, %v5485
      %v5487 = vpop.f32.mrf.mxu0
      %v5488 = vadd.f32 %v5319, %v5487
      %5489 = vmatmul.bf16.gmra.mxu0 %v2830
      %v5490 = vpop.f32.mrf.mxu0
      %v5491 = vadd.f32 %v5322, %v5490
      %v5492 = vpop.f32.mrf.mxu0
      %v5493 = vadd.f32 %v5324, %v5492
      %5494 = vmatmul.bf16.gmra.mxu0 %v2834
      %v5495 = vpop.f32.mrf.mxu0
      %v5496 = vadd.f32 %v5327, %v5495
      %v5497 = vpop.f32.mrf.mxu0
      %v5498 = vadd.f32 %v5329, %v5497
      %5499 = vmatmul.bf16.gmra.mxu0 %v2838
      %v5500 = vpop.f32.mrf.mxu0
      %v5501 = vadd.f32 %v5332, %v5500
      %v5502 = vpop.f32.mrf.mxu0
      %v5503 = vadd.f32 %v5334, %v5502
      %5504 = vmatmul.bf16.gmra.mxu0 %v2842
      %v5505 = vpop.f32.mrf.mxu0
      %v5506 = vadd.f32 %v5337, %v5505
      %v5507 = vpop.f32.mrf.mxu0
      %v5508 = vadd.f32 %v5339, %v5507
      %5509 = vmatmul.bf16.gmra.mxu0 %v2846
      %v5510 = vpop.f32.mrf.mxu0
      %v5511 = vadd.f32 %v5342, %v5510
      %v5512 = vpop.f32.mrf.mxu0
      %v5513 = vadd.f32 %v5344, %v5512
      %5514 = vmatmul.bf16.gmra.mxu0 %v4469
      %v5515 = vpop.f32.mrf.mxu0
      %v5516 = vadd.f32 %v5347, %v5515
      %v5517 = vpop.f32.mrf.mxu0
      %v5518 = vadd.f32 %v5349, %v5517
      %5519 = vmatmul.bf16.gmra.mxu0 %v4473
      %v5520 = vpop.f32.mrf.mxu0
      %v5521 = vadd.f32 %v5352, %v5520
      %v5522 = vpop.f32.mrf.mxu0
      %v5523 = vadd.f32 %v5354, %v5522
      %5524 = vmatmul.bf16.gmra.mxu0 %v4477
      %v5525 = vpop.f32.mrf.mxu0
      %v5526 = vadd.f32 %v5357, %v5525
      %v5527 = vpop.f32.mrf.mxu0
      %v5528 = vadd.f32 %v5359, %v5527
      %5529 = vmatmul.bf16.gmra.mxu0 %v4481
      %v5530 = vpop.f32.mrf.mxu0
      %v5531 = vadd.f32 %v5362, %v5530
      %v5532 = vpop.f32.mrf.mxu0
      %v5533 = vadd.f32 %v5364, %v5532
      %5534 = vmatmul.bf16.gmra.mxu0 %v4485
      %v5535 = vpop.f32.mrf.mxu0
      %v5536 = vadd.f32 %v5367, %v5535
      %v5537 = vpop.f32.mrf.mxu0
      %v5538 = vadd.f32 %v5369, %v5537
      %5539 = vmatmul.bf16.gmra.mxu0 %v4489
      %v5540 = vpop.f32.mrf.mxu0
      %v5541 = vadd.f32 %v5372, %v5540
      %v5542 = vpop.f32.mrf.mxu0
      %v5543 = vadd.f32 %v5374, %v5542
      %5544 = vmatmul.bf16.gmra.mxu0 %v4493
      %v5545 = vpop.f32.mrf.mxu0
      %v5546 = vadd.f32 %v5377, %v5545
      %v5547 = vpop.f32.mrf.mxu0
      %v5548 = vadd.f32 %v5379, %v5547
      %5549 = vmatmul.bf16.gmra.mxu0 %v4497
      %v5550 = vpop.f32.mrf.mxu0
      %v5551 = vadd.f32 %v5382, %v5550
      %v5552 = vpop.f32.mrf.mxu0
      %v5553 = vadd.f32 %v5384, %v5552
      %5554 = vmatmul.bf16.gmra.mxu0 %v4501
      %v5555 = vpop.f32.mrf.mxu0
      %v5556 = vadd.f32 %v5387, %v5555
      %v5557 = vpop.f32.mrf.mxu0
      %v5558 = vadd.f32 %v5389, %v5557
      %5559 = vmatmul.bf16.gmra.mxu0 %v4505
      %v5560 = vpop.f32.mrf.mxu0
      %v5561 = vadd.f32 %v5392, %v5560
      %v5562 = vpop.f32.mrf.mxu0
      %v5563 = vadd.f32 %v5394, %v5562
      %5564 = vmatmul.bf16.gmra.mxu0 %v4509
      %v5565 = vpop.f32.mrf.mxu0
      %v5566 = vadd.f32 %v5397, %v5565
      %v5567 = vpop.f32.mrf.mxu0
      %v5568 = vadd.f32 %v5399, %v5567
      %5569 = vmatmul.bf16.gmra.mxu0 %v4513
      %v5570 = vpop.f32.mrf.mxu0
      %v5571 = vadd.f32 %v5402, %v5570
      %v5572 = vpop.f32.mrf.mxu0
      %v5573 = vadd.f32 %v5404, %v5572
      %5574 = vmatmul.bf16.gmra.mxu0 %v4517
      %v5575 = vpop.f32.mrf.mxu0
      %v5576 = vadd.f32 %v5407, %v5575
      %v5577 = vpop.f32.mrf.mxu0
      %v5578 = vadd.f32 %v5409, %v5577
      %5579 = vmatmul.bf16.gmra.mxu0 %v4521
      %v5580 = vpop.f32.mrf.mxu0
      %v5581 = vadd.f32 %v5412, %v5580
      %v5582 = vpop.f32.mrf.mxu0
      %v5583 = vadd.f32 %v5414, %v5582
      %5584 = vmatmul.bf16.gmra.mxu0 %v4525
      %v5585 = vpop.f32.mrf.mxu0
      %v5586 = vadd.f32 %v5417, %v5585
      %v5587 = vpop.f32.mrf.mxu0
      %v5588 = vadd.f32 %v5419, %v5587
      %5589 = vmatmul.bf16.gmra.mxu0 %v4529
      %v5590 = vpop.f32.mrf.mxu0
      %v5591 = vadd.f32 %v5422, %v5590
      %v5592 = vpop.f32.mrf.mxu0
      %v5593 = vadd.f32 %v5424, %v5592
      %5594 = vdwg.mxu0
      %5595 = vmatpush.bf16.msra.mxu0 0
      %5596 = vmatpush.bf16.msra.mxu0 0
      %5597 = vmatpush.bf16.msra.mxu0 0
      %5598 = vmatpush.bf16.msra.mxu0 0
      %5599 = vmatpush.bf16.msra.mxu0 %v4786
      %5600 = vmatpush.bf16.msra.mxu0 %v4785
      %5601 = vmatpush.bf16.msra.mxu0 %v4784
      %5602 = vmatpush.bf16.msra.mxu0 %v4783
      %5603 = vmatmul.bf16.gmra.mxu0 %v4824
      %v5604 = vpop.f32.mrf.mxu0
      %v5605 = vadd.f32 %v5436, %v5604
      %v5606 = vpop.f32.mrf.mxu0
      %v5607 = vadd.f32 %v5438, %v5606
      %5608 = vmatmul.bf16.gmra.mxu0 %v4827
      %v5609 = vpop.f32.mrf.mxu0
      %v5610 = vadd.f32 %v5441, %v5609
      %v5611 = vpop.f32.mrf.mxu0
      %v5612 = vadd.f32 %v5443, %v5611
      %5613 = vmatmul.bf16.gmra.mxu0 %v4830
      %v5614 = vpop.f32.mrf.mxu0
      %v5615 = vadd.f32 %v5446, %v5614
      %v5616 = vpop.f32.mrf.mxu0
      %v5617 = vadd.f32 %v5448, %v5616
      %5618 = vmatmul.bf16.gmra.mxu0 %v4833
      %v5619 = vpop.f32.mrf.mxu0
      %v5620 = vadd.f32 %v5451, %v5619
      %v5621 = vpop.f32.mrf.mxu0
      %v5622 = vadd.f32 %v5453, %v5621
      %5623 = vmatmul.bf16.gmra.mxu0 %v4836
      %v5624 = vpop.f32.mrf.mxu0
      %v5625 = vadd.f32 %v5456, %v5624
      %v5626 = vpop.f32.mrf.mxu0
      %v5627 = vadd.f32 %v5458, %v5626
      %5628 = vmatmul.bf16.gmra.mxu0 %v4839
      %v5629 = vpop.f32.mrf.mxu0
      %v5630 = vadd.f32 %v5461, %v5629
      %v5631 = vpop.f32.mrf.mxu0
      %v5632 = vadd.f32 %v5463, %v5631
      %5633 = vmatmul.bf16.gmra.mxu0 %v4842
      %v5634 = vpop.f32.mrf.mxu0
      %v5635 = vadd.f32 %v5466, %v5634
      %v5636 = vpop.f32.mrf.mxu0
      %v5637 = vadd.f32 %v5468, %v5636
      %5638 = vmatmul.bf16.gmra.mxu0 %v4845
      %v5639 = vpop.f32.mrf.mxu0
      %v5640 = vadd.f32 %v5471, %v5639
      %v5641 = vpop.f32.mrf.mxu0
      %v5642 = vadd.f32 %v5473, %v5641
      %5643 = vmatmul.bf16.gmra.mxu0 %v4848
      %v5644 = vpop.f32.mrf.mxu0
      %v5645 = vadd.f32 %v5476, %v5644
      %v5646 = vpop.f32.mrf.mxu0
      %v5647 = vadd.f32 %v5478, %v5646
      %5648 = vmatmul.bf16.gmra.mxu0 %v4851
      %v5649 = vpop.f32.mrf.mxu0
      %v5650 = vadd.f32 %v5481, %v5649
      %v5651 = vpop.f32.mrf.mxu0
      %v5652 = vadd.f32 %v5483, %v5651
      %5653 = vmatmul.bf16.gmra.mxu0 %v4854
      %v5654 = vpop.f32.mrf.mxu0
      %v5655 = vadd.f32 %v5486, %v5654
      %v5656 = vpop.f32.mrf.mxu0
      %v5657 = vadd.f32 %v5488, %v5656
      %5658 = vmatmul.bf16.gmra.mxu0 %v4857
      %v5659 = vpop.f32.mrf.mxu0
      %v5660 = vadd.f32 %v5491, %v5659
      %v5661 = vpop.f32.mrf.mxu0
      %v5662 = vadd.f32 %v5493, %v5661
      %5663 = vmatmul.bf16.gmra.mxu0 %v4860
      %v5664 = vpop.f32.mrf.mxu0
      %v5665 = vadd.f32 %v5496, %v5664
      %v5666 = vpop.f32.mrf.mxu0
      %v5667 = vadd.f32 %v5498, %v5666
      %5668 = vmatmul.bf16.gmra.mxu0 %v4863
      %v5669 = vpop.f32.mrf.mxu0
      %v5670 = vadd.f32 %v5501, %v5669
      %v5671 = vpop.f32.mrf.mxu0
      %v5672 = vadd.f32 %v5503, %v5671
      %5673 = vmatmul.bf16.gmra.mxu0 %v4866
      %v5674 = vpop.f32.mrf.mxu0
      %v5675 = vadd.f32 %v5506, %v5674
      %v5676 = vpop.f32.mrf.mxu0
      %v5677 = vadd.f32 %v5508, %v5676
      %5678 = vmatmul.bf16.gmra.mxu0 %v4869
      %v5679 = vpop.f32.mrf.mxu0
      %v5680 = vadd.f32 %v5511, %v5679
      %v5681 = vpop.f32.mrf.mxu0
      %v5682 = vadd.f32 %v5513, %v5681
      %5683 = vmatmul.bf16.gmra.mxu0 %v4872
      %v5684 = vpop.f32.mrf.mxu0
      %v5685 = vadd.f32 %v5516, %v5684
      %v5686 = vpop.f32.mrf.mxu0
      %v5687 = vadd.f32 %v5518, %v5686
      %5688 = vmatmul.bf16.gmra.mxu0 %v4875
      %v5689 = vpop.f32.mrf.mxu0
      %v5690 = vadd.f32 %v5521, %v5689
      %v5691 = vpop.f32.mrf.mxu0
      %v5692 = vadd.f32 %v5523, %v5691
      %5693 = vmatmul.bf16.gmra.mxu0 %v4878
      %v5694 = vpop.f32.mrf.mxu0
      %v5695 = vadd.f32 %v5526, %v5694
      %v5696 = vpop.f32.mrf.mxu0
      %v5697 = vadd.f32 %v5528, %v5696
      %5698 = vmatmul.bf16.gmra.mxu0 %v4881
      %v5699 = vpop.f32.mrf.mxu0
      %v5700 = vadd.f32 %v5531, %v5699
      %v5701 = vpop.f32.mrf.mxu0
      %v5702 = vadd.f32 %v5533, %v5701
      %5703 = vmatmul.bf16.gmra.mxu0 %v4884
      %v5704 = vpop.f32.mrf.mxu0
      %v5705 = vadd.f32 %v5536, %v5704
      %v5706 = vpop.f32.mrf.mxu0
      %v5707 = vadd.f32 %v5538, %v5706
      %5708 = vmatmul.bf16.gmra.mxu0 %v4887
      %v5709 = vpop.f32.mrf.mxu0
      %v5710 = vadd.f32 %v5541, %v5709
      %v5711 = vpop.f32.mrf.mxu0
      %v5712 = vadd.f32 %v5543, %v5711
      %5713 = vmatmul.bf16.gmra.mxu0 %v4890
      %v5714 = vpop.f32.mrf.mxu0
      %v5715 = vadd.f32 %v5546, %v5714
      %v5716 = vpop.f32.mrf.mxu0
      %v5717 = vadd.f32 %v5548, %v5716
      %5718 = vmatmul.bf16.gmra.mxu0 %v4893
      %v5719 = vpop.f32.mrf.mxu0
      %v5720 = vadd.f32 %v5551, %v5719
      %v5721 = vpop.f32.mrf.mxu0
      %v5722 = vadd.f32 %v5553, %v5721
      %5723 = vmatmul.bf16.gmra.mxu0 %v4896
      %v5724 = vpop.f32.mrf.mxu0
      %v5725 = vadd.f32 %v5556, %v5724
      %v5726 = vpop.f32.mrf.mxu0
      %v5727 = vadd.f32 %v5558, %v5726
      %5728 = vmatmul.bf16.gmra.mxu0 %v4899
      %v5729 = vpop.f32.mrf.mxu0
      %v5730 = vadd.f32 %v5561, %v5729
      %v5731 = vpop.f32.mrf.mxu0
      %v5732 = vadd.f32 %v5563, %v5731
      %5733 = vmatmul.bf16.gmra.mxu0 %v4902
      %v5734 = vpop.f32.mrf.mxu0
      %v5735 = vadd.f32 %v5566, %v5734
      %v5736 = vpop.f32.mrf.mxu0
      %v5737 = vadd.f32 %v5568, %v5736
      %5738 = vmatmul.bf16.gmra.mxu0 %v4905
      %v5739 = vpop.f32.mrf.mxu0
      %v5740 = vadd.f32 %v5571, %v5739
      %v5741 = vpop.f32.mrf.mxu0
      %v5742 = vadd.f32 %v5573, %v5741
      %5743 = vmatmul.bf16.gmra.mxu0 %v4908
      %v5744 = vpop.f32.mrf.mxu0
      %v5745 = vadd.f32 %v5576, %v5744
      %v5746 = vpop.f32.mrf.mxu0
      %v5747 = vadd.f32 %v5578, %v5746
      %5748 = vmatmul.bf16.gmra.mxu0 %v4911
      %v5749 = vpop.f32.mrf.mxu0
      %v5750 = vadd.f32 %v5581, %v5749
      %v5751 = vpop.f32.mrf.mxu0
      %v5752 = vadd.f32 %v5583, %v5751
      %5753 = vmatmul.bf16.gmra.mxu0 %v4914
      %v5754 = vpop.f32.mrf.mxu0
      %v5755 = vadd.f32 %v5586, %v5754
      %v5756 = vpop.f32.mrf.mxu0
      %v5757 = vadd.f32 %v5588, %v5756
      %5758 = vmatmul.bf16.gmra.mxu0 %v4917
      %v5759 = vpop.f32.mrf.mxu0
      %v5760 = vadd.f32 %v5591, %v5759
      %v5761 = vpop.f32.mrf.mxu0
      %v5762 = vadd.f32 %v5593, %v5761
      %5763 = vdwg.mxu0
      %v5764 = vmax.f32 %v5605, 0.0
      %v5765 = vmax.f32 %v5607, 0.0
      %v5766 = vmax.f32 %v5610, 0.0
      %v5767 = vmax.f32 %v5612, 0.0
      %v5768 = vmax.f32 %v5615, 0.0
      %v5769 = vmax.f32 %v5617, 0.0
      %v5770 = vmax.f32 %v5620, 0.0
      %v5771 = vmax.f32 %v5622, 0.0
      %v5772 = vmax.f32 %v5625, 0.0
      %v5773 = vmax.f32 %v5627, 0.0
      %v5774 = vmax.f32 %v5630, 0.0
      %v5775 = vmax.f32 %v5632, 0.0
      %v5776 = vmax.f32 %v5635, 0.0
      %v5777 = vmax.f32 %v5637, 0.0
      %v5778 = vmax.f32 %v5640, 0.0
      %v5779 = vmax.f32 %v5642, 0.0
      %v5780 = vmax.f32 %v5645, 0.0
      %v5781 = vmax.f32 %v5647, 0.0
      %v5782 = vmax.f32 %v5650, 0.0
      %v5783 = vmax.f32 %v5652, 0.0
      %v5784 = vmax.f32 %v5655, 0.0
      %v5785 = vmax.f32 %v5657, 0.0
      %v5786 = vmax.f32 %v5660, 0.0
      %v5787 = vmax.f32 %v5662, 0.0
      %v5788 = vmax.f32 %v5665, 0.0
      %v5789 = vmax.f32 %v5667, 0.0
      %v5790 = vmax.f32 %v5670, 0.0
      %v5791 = vmax.f32 %v5672, 0.0
      %v5792 = vmax.f32 %v5675, 0.0
      %v5793 = vmax.f32 %v5677, 0.0
      %v5794 = vmax.f32 %v5680, 0.0
      %v5795 = vmax.f32 %v5682, 0.0
      %v5796 = vmax.f32 %v5685, 0.0
      %v5797 = vmax.f32 %v5687, 0.0
      %v5798 = vmax.f32 %v5690, 0.0
      %v5799 = vmax.f32 %v5692, 0.0
      %v5800 = vmax.f32 %v5695, 0.0
      %v5801 = vmax.f32 %v5697, 0.0
      %v5802 = vmax.f32 %v5700, 0.0
      %v5803 = vmax.f32 %v5702, 0.0
      %v5804 = vmax.f32 %v5705, 0.0
      %v5805 = vmax.f32 %v5707, 0.0
      %v5806 = vmax.f32 %v5710, 0.0
      %v5807 = vmax.f32 %v5712, 0.0
      %v5808 = vmax.f32 %v5715, 0.0
      %v5809 = vmax.f32 %v5717, 0.0
      %v5810 = vmax.f32 %v5720, 0.0
      %v5811 = vmax.f32 %v5722, 0.0
      %v5812 = vmax.f32 %v5725, 0.0
      %v5813 = vmax.f32 %v5727, 0.0
      %v5814 = vmax.f32 %v5730, 0.0
      %v5815 = vmax.f32 %v5732, 0.0
      %v5816 = vmax.f32 %v5735, 0.0
      %v5817 = vmax.f32 %v5737, 0.0
      %v5818 = vmax.f32 %v5740, 0.0
      %v5819 = vmax.f32 %v5742, 0.0
      %v5820 = vmax.f32 %v5745, 0.0
      %v5821 = vmax.f32 %v5747, 0.0
      %v5822 = vmax.f32 %v5750, 0.0
      %v5823 = vmax.f32 %v5752, 0.0
      %v5824 = vmax.f32 %v5755, 0.0
      %v5825 = vmax.f32 %v5757, 0.0
      %v5826 = vmax.f32 %v5760, 0.0
      %v5827 = vmax.f32 %v5762, 0.0
      %5828 = vst.msk [vmem:[#allocation3] sm:$0xff] %vm332, %v5764
      %5829 = vst.msk [vmem:[#allocation3 + $0x8] sm:$0xff] %vm332, %v5765
      %5830 = vst.msk [vmem:[#allocation3 + $0x10] sm:$0xff] %vm332, %v5766
      %5831 = vst.msk [vmem:[#allocation3 + $0x18] sm:$0xff] %vm332, %v5767
      %5832 = vst.msk [vmem:[#allocation3 + $0x20] sm:$0xff] %vm332, %v5768
      %5833 = vst.msk [vmem:[#allocation3 + $0x28] sm:$0xff] %vm332, %v5769
      %5834 = vst.msk [vmem:[#allocation3 + $0x30] sm:$0xff] %vm332, %v5770
      %5835 = vst.msk [vmem:[#allocation3 + $0x38] sm:$0xff] %vm332, %v5771
      %5836 = vst.msk [vmem:[#allocation3 + $0x40] sm:$0xff] %vm332, %v5772
      %5837 = vst.msk [vmem:[#allocation3 + $0x48] sm:$0xff] %vm332, %v5773
      %5838 = vst.msk [vmem:[#allocation3 + $0x50] sm:$0xff] %vm332, %v5774
      %5839 = vst.msk [vmem:[#allocation3 + $0x58] sm:$0xff] %vm332, %v5775
      %5840 = vst.msk [vmem:[#allocation3 + $0x60] sm:$0xff] %vm332, %v5776
      %5841 = vst.msk [vmem:[#allocation3 + $0x68] sm:$0xff] %vm332, %v5777
      %5842 = vst.msk [vmem:[#allocation3 + $0x70] sm:$0xff] %vm332, %v5778
      %5843 = vst.msk [vmem:[#allocation3 + $0x78] sm:$0xff] %vm332, %v5779
      %5844 = vst.msk [vmem:[#allocation3 + $0x80] sm:$0xff] %vm332, %v5780
      %5845 = vst.msk [vmem:[#allocation3 + $0x88] sm:$0xff] %vm332, %v5781
      %5846 = vst.msk [vmem:[#allocation3 + $0x90] sm:$0xff] %vm332, %v5782
      %5847 = vst.msk [vmem:[#allocation3 + $0x98] sm:$0xff] %vm332, %v5783
      %5848 = vst.msk [vmem:[#allocation3 + $0xa0] sm:$0xff] %vm332, %v5784
      %5849 = vst.msk [vmem:[#allocation3 + $0xa8] sm:$0xff] %vm332, %v5785
      %5850 = vst.msk [vmem:[#allocation3 + $0xb0] sm:$0xff] %vm332, %v5786
      %5851 = vst.msk [vmem:[#allocation3 + $0xb8] sm:$0xff] %vm332, %v5787
      %5852 = vst.msk [vmem:[#allocation3 + $0xc0] sm:$0xff] %vm332, %v5788
      %5853 = vst.msk [vmem:[#allocation3 + $0xc8] sm:$0xff] %vm332, %v5789
      %5854 = vst.msk [vmem:[#allocation3 + $0xd0] sm:$0xff] %vm332, %v5790
      %5855 = vst.msk [vmem:[#allocation3 + $0xd8] sm:$0xff] %vm332, %v5791
      %5856 = vst.msk [vmem:[#allocation3 + $0xe0] sm:$0xff] %vm332, %v5792
      %5857 = vst.msk [vmem:[#allocation3 + $0xe8] sm:$0xff] %vm332, %v5793
      %5858 = vst.msk [vmem:[#allocation3 + $0xf0] sm:$0xff] %vm332, %v5794
      %5859 = vst.msk [vmem:[#allocation3 + $0xf8] sm:$0xff] %vm332, %v5795
      %5860 = vst.msk [vmem:[#allocation3 + $0x100] sm:$0xff] %vm332, %v5796
      %5861 = vst.msk [vmem:[#allocation3 + $0x108] sm:$0xff] %vm332, %v5797
      %5862 = vst.msk [vmem:[#allocation3 + $0x110] sm:$0xff] %vm332, %v5798
      %5863 = vst.msk [vmem:[#allocation3 + $0x118] sm:$0xff] %vm332, %v5799
      %5864 = vst.msk [vmem:[#allocation3 + $0x120] sm:$0xff] %vm332, %v5800
      %5865 = vst.msk [vmem:[#allocation3 + $0x128] sm:$0xff] %vm332, %v5801
      %5866 = vst.msk [vmem:[#allocation3 + $0x130] sm:$0xff] %vm332, %v5802
      %5867 = vst.msk [vmem:[#allocation3 + $0x138] sm:$0xff] %vm332, %v5803
      %5868 = vst.msk [vmem:[#allocation3 + $0x140] sm:$0xff] %vm332, %v5804
      %5869 = vst.msk [vmem:[#allocation3 + $0x148] sm:$0xff] %vm332, %v5805
      %5870 = vst.msk [vmem:[#allocation3 + $0x150] sm:$0xff] %vm332, %v5806
      %5871 = vst.msk [vmem:[#allocation3 + $0x158] sm:$0xff] %vm332, %v5807
      %5872 = vst.msk [vmem:[#allocation3 + $0x160] sm:$0xff] %vm332, %v5808
      %5873 = vst.msk [vmem:[#allocation3 + $0x168] sm:$0xff] %vm332, %v5809
      %5874 = vst.msk [vmem:[#allocation3 + $0x170] sm:$0xff] %vm332, %v5810
      %5875 = vst.msk [vmem:[#allocation3 + $0x178] sm:$0xff] %vm332, %v5811
      %5876 = vst.msk [vmem:[#allocation3 + $0x180] sm:$0xff] %vm332, %v5812
      %5877 = vst.msk [vmem:[#allocation3 + $0x188] sm:$0xff] %vm332, %v5813
      %5878 = vst.msk [vmem:[#allocation3 + $0x190] sm:$0xff] %vm332, %v5814
      %5879 = vst.msk [vmem:[#allocation3 + $0x198] sm:$0xff] %vm332, %v5815
      %5880 = vst.msk [vmem:[#allocation3 + $0x1a0] sm:$0xff] %vm332, %v5816
      %5881 = vst.msk [vmem:[#allocation3 + $0x1a8] sm:$0xff] %vm332, %v5817
      %5882 = vst.msk [vmem:[#allocation3 + $0x1b0] sm:$0xff] %vm332, %v5818
      %5883 = vst.msk [vmem:[#allocation3 + $0x1b8] sm:$0xff] %vm332, %v5819
      %5884 = vst.msk [vmem:[#allocation3 + $0x1c0] sm:$0xff] %vm332, %v5820
      %5885 = vst.msk [vmem:[#allocation3 + $0x1c8] sm:$0xff] %vm332, %v5821
      %5886 = vst.msk [vmem:[#allocation3 + $0x1d0] sm:$0xff] %vm332, %v5822
      %5887 = vst.msk [vmem:[#allocation3 + $0x1d8] sm:$0xff] %vm332, %v5823
      %5888 = vst.msk [vmem:[#allocation3 + $0x1e0] sm:$0xff] %vm332, %v5824
      %5889 = vst.msk [vmem:[#allocation3 + $0x1e8] sm:$0xff] %vm332, %v5825
      %5890 = vst.msk [vmem:[#allocation3 + $0x1f0] sm:$0xff] %vm332, %v5826
      %5891 = vst.msk [vmem:[#allocation3 + $0x1f8] sm:$0xff] %vm332, %v5827
      %v5892 = vld [vmem:[#allocation3] ss:$2 sm:$0xff]
      %s5893 = scalar_lea.vmem [#allocation3], 16
      %v5894 = vld [vmem:[%s5893] ss:$2 sm:$0xff]
      %s5895 = scalar_lea.vmem [#allocation3], 32
      %v5896 = vld [vmem:[%s5895] ss:$2 sm:$0xff]
      %s5897 = scalar_lea.vmem [#allocation3], 48
      %v5898 = vld [vmem:[%s5897] ss:$2 sm:$0xff]
      %s5899 = scalar_lea.vmem [#allocation3], 64
      %v5900 = vld [vmem:[%s5899] ss:$2 sm:$0xff]
      %s5901 = scalar_lea.vmem [#allocation3], 80
      %v5902 = vld [vmem:[%s5901] ss:$2 sm:$0xff]
      %s5903 = scalar_lea.vmem [#allocation3], 96
      %v5904 = vld [vmem:[%s5903] ss:$2 sm:$0xff]
      %s5905 = scalar_lea.vmem [#allocation3], 112
      %v5906 = vld [vmem:[%s5905] ss:$2 sm:$0xff]
      %s5907 = scalar_lea.vmem [#allocation3], 128
      %v5908 = vld [vmem:[%s5907] ss:$2 sm:$0xff]
      %s5909 = scalar_lea.vmem [#allocation3], 144
      %v5910 = vld [vmem:[%s5909] ss:$2 sm:$0xff]
      %s5911 = scalar_lea.vmem [#allocation3], 160
      %v5912 = vld [vmem:[%s5911] ss:$2 sm:$0xff]
      %s5913 = scalar_lea.vmem [#allocation3], 176
      %v5914 = vld [vmem:[%s5913] ss:$2 sm:$0xff]
      %s5915 = scalar_lea.vmem [#allocation3], 192
      %v5916 = vld [vmem:[%s5915] ss:$2 sm:$0xff]
      %s5917 = scalar_lea.vmem [#allocation3], 208
      %v5918 = vld [vmem:[%s5917] ss:$2 sm:$0xff]
      %s5919 = scalar_lea.vmem [#allocation3], 224
      %v5920 = vld [vmem:[%s5919] ss:$2 sm:$0xff]
      %s5921 = scalar_lea.vmem [#allocation3], 240
      %v5922 = vld [vmem:[%s5921] ss:$2 sm:$0xff]
      %s5923 = scalar_lea.vmem [#allocation3], 256
      %v5924 = vld [vmem:[%s5923] ss:$2 sm:$0xff]
      %s5925 = scalar_lea.vmem [#allocation3], 272
      %v5926 = vld [vmem:[%s5925] ss:$2 sm:$0xff]
      %s5927 = scalar_lea.vmem [#allocation3], 288
      %v5928 = vld [vmem:[%s5927] ss:$2 sm:$0xff]
      %s5929 = scalar_lea.vmem [#allocation3], 304
      %v5930 = vld [vmem:[%s5929] ss:$2 sm:$0xff]
      %s5931 = scalar_lea.vmem [#allocation3], 320
      %v5932 = vld [vmem:[%s5931] ss:$2 sm:$0xff]
      %s5933 = scalar_lea.vmem [#allocation3], 336
      %v5934 = vld [vmem:[%s5933] ss:$2 sm:$0xff]
      %s5935 = scalar_lea.vmem [#allocation3], 352
      %v5936 = vld [vmem:[%s5935] ss:$2 sm:$0xff]
      %s5937 = scalar_lea.vmem [#allocation3], 368
      %v5938 = vld [vmem:[%s5937] ss:$2 sm:$0xff]
      %s5939 = scalar_lea.vmem [#allocation3], 384
      %v5940 = vld [vmem:[%s5939] ss:$2 sm:$0xff]
      %s5941 = scalar_lea.vmem [#allocation3], 400
      %v5942 = vld [vmem:[%s5941] ss:$2 sm:$0xff]
      %s5943 = scalar_lea.vmem [#allocation3], 416
      %v5944 = vld [vmem:[%s5943] ss:$2 sm:$0xff]
      %s5945 = scalar_lea.vmem [#allocation3], 432
      %v5946 = vld [vmem:[%s5945] ss:$2 sm:$0xff]
      %s5947 = scalar_lea.vmem [#allocation3], 448
      %v5948 = vld [vmem:[%s5947] ss:$2 sm:$0xff]
      %s5949 = scalar_lea.vmem [#allocation3], 464
      %v5950 = vld [vmem:[%s5949] ss:$2 sm:$0xff]
      %s5951 = scalar_lea.vmem [#allocation3], 480
      %v5952 = vld [vmem:[%s5951] ss:$2 sm:$0xff]
      %s5953 = scalar_lea.vmem [#allocation3], 496
      %v5954 = vld [vmem:[%s5953] ss:$2 sm:$0xff]
      %s5955 = scalar_lea.vmem [#allocation3], 1
      %v5956 = vld [vmem:[%s5955] ss:$2 sm:$0xff]
      %s5957 = scalar_lea.vmem [#allocation3], 17
      %v5958 = vld [vmem:[%s5957] ss:$2 sm:$0xff]
      %s5959 = scalar_lea.vmem [#allocation3], 33
      %v5960 = vld [vmem:[%s5959] ss:$2 sm:$0xff]
      %s5961 = scalar_lea.vmem [#allocation3], 49
      %v5962 = vld [vmem:[%s5961] ss:$2 sm:$0xff]
      %s5963 = scalar_lea.vmem [#allocation3], 65
      %v5964 = vld [vmem:[%s5963] ss:$2 sm:$0xff]
      %s5965 = scalar_lea.vmem [#allocation3], 81
      %v5966 = vld [vmem:[%s5965] ss:$2 sm:$0xff]
      %s5967 = scalar_lea.vmem [#allocation3], 97
      %v5968 = vld [vmem:[%s5967] ss:$2 sm:$0xff]
      %s5969 = scalar_lea.vmem [#allocation3], 113
      %v5970 = vld [vmem:[%s5969] ss:$2 sm:$0xff]
      %s5971 = scalar_lea.vmem [#allocation3], 129
      %v5972 = vld [vmem:[%s5971] ss:$2 sm:$0xff]
      %s5973 = scalar_lea.vmem [#allocation3], 145
      %v5974 = vld [vmem:[%s5973] ss:$2 sm:$0xff]
      %s5975 = scalar_lea.vmem [#allocation3], 161
      %v5976 = vld [vmem:[%s5975] ss:$2 sm:$0xff]
      %s5977 = scalar_lea.vmem [#allocation3], 177
      %v5978 = vld [vmem:[%s5977] ss:$2 sm:$0xff]
      %s5979 = scalar_lea.vmem [#allocation3], 193
      %v5980 = vld [vmem:[%s5979] ss:$2 sm:$0xff]
      %s5981 = scalar_lea.vmem [#allocation3], 209
      %v5982 = vld [vmem:[%s5981] ss:$2 sm:$0xff]
      %s5983 = scalar_lea.vmem [#allocation3], 225
      %v5984 = vld [vmem:[%s5983] ss:$2 sm:$0xff]
      %s5985 = scalar_lea.vmem [#allocation3], 241
      %v5986 = vld [vmem:[%s5985] ss:$2 sm:$0xff]
      %s5987 = scalar_lea.vmem [#allocation3], 257
      %v5988 = vld [vmem:[%s5987] ss:$2 sm:$0xff]
      %s5989 = scalar_lea.vmem [#allocation3], 273
      %v5990 = vld [vmem:[%s5989] ss:$2 sm:$0xff]
      %s5991 = scalar_lea.vmem [#allocation3], 289
      %v5992 = vld [vmem:[%s5991] ss:$2 sm:$0xff]
      %s5993 = scalar_lea.vmem [#allocation3], 305
      %v5994 = vld [vmem:[%s5993] ss:$2 sm:$0xff]
      %s5995 = scalar_lea.vmem [#allocation3], 321
      %v5996 = vld [vmem:[%s5995] ss:$2 sm:$0xff]
      %s5997 = scalar_lea.vmem [#allocation3], 337
      %v5998 = vld [vmem:[%s5997] ss:$2 sm:$0xff]
      %s5999 = scalar_lea.vmem [#allocation3], 353
      %v6000 = vld [vmem:[%s5999] ss:$2 sm:$0xff]
      %s6001 = scalar_lea.vmem [#allocation3], 369
      %v6002 = vld [vmem:[%s6001] ss:$2 sm:$0xff]
      %s6003 = scalar_lea.vmem [#allocation3], 385
      %v6004 = vld [vmem:[%s6003] ss:$2 sm:$0xff]
      %s6005 = scalar_lea.vmem [#allocation3], 401
      %v6006 = vld [vmem:[%s6005] ss:$2 sm:$0xff]
      %s6007 = scalar_lea.vmem [#allocation3], 417
      %v6008 = vld [vmem:[%s6007] ss:$2 sm:$0xff]
      %s6009 = scalar_lea.vmem [#allocation3], 433
      %v6010 = vld [vmem:[%s6009] ss:$2 sm:$0xff]
      %s6011 = scalar_lea.vmem [#allocation3], 449
      %v6012 = vld [vmem:[%s6011] ss:$2 sm:$0xff]
      %s6013 = scalar_lea.vmem [#allocation3], 465
      %v6014 = vld [vmem:[%s6013] ss:$2 sm:$0xff]
      %s6015 = scalar_lea.vmem [#allocation3], 481
      %v6016 = vld [vmem:[%s6015] ss:$2 sm:$0xff]
      %s6017 = scalar_lea.vmem [#allocation3], 497
      %v6018 = vld [vmem:[%s6017] ss:$2 sm:$0xff]
      %v6019 = vmax.f32 %v5892, %v5956
      %v6020 = vmax.f32 %v5894, %v5958
      %v6021 = vmax.f32 %v5896, %v5960
      %v6022 = vmax.f32 %v5898, %v5962
      %v6023 = vmax.f32 %v5900, %v5964
      %v6024 = vmax.f32 %v5902, %v5966
      %v6025 = vmax.f32 %v5904, %v5968
      %v6026 = vmax.f32 %v5906, %v5970
      %v6027 = vmax.f32 %v5908, %v5972
      %v6028 = vmax.f32 %v5910, %v5974
      %v6029 = vmax.f32 %v5912, %v5976
      %v6030 = vmax.f32 %v5914, %v5978
      %v6031 = vmax.f32 %v5916, %v5980
      %v6032 = vmax.f32 %v5918, %v5982
      %v6033 = vmax.f32 %v5920, %v5984
      %v6034 = vmax.f32 %v5922, %v5986
      %v6035 = vmax.f32 %v5924, %v5988
      %v6036 = vmax.f32 %v5926, %v5990
      %v6037 = vmax.f32 %v5928, %v5992
      %v6038 = vmax.f32 %v5930, %v5994
      %v6039 = vmax.f32 %v5932, %v5996
      %v6040 = vmax.f32 %v5934, %v5998
      %v6041 = vmax.f32 %v5936, %v6000
      %v6042 = vmax.f32 %v5938, %v6002
      %v6043 = vmax.f32 %v5940, %v6004
      %v6044 = vmax.f32 %v5942, %v6006
      %v6045 = vmax.f32 %v5944, %v6008
      %v6046 = vmax.f32 %v5946, %v6010
      %v6047 = vmax.f32 %v5948, %v6012
      %v6048 = vmax.f32 %v5950, %v6014
      %v6049 = vmax.f32 %v5952, %v6016
      %v6050 = vmax.f32 %v5954, %v6018
      %v6051 = vmax.f32 %v6019, %v6020
      %v6052 = vmax.f32 %v6021, %v6022
      %v6053 = vmax.f32 %v6023, %v6024
      %v6054 = vmax.f32 %v6025, %v6026
      %v6055 = vmax.f32 %v6027, %v6028
      %v6056 = vmax.f32 %v6029, %v6030
      %v6057 = vmax.f32 %v6031, %v6032
      %v6058 = vmax.f32 %v6033, %v6034
      %v6059 = vmax.f32 %v6035, %v6036
      %v6060 = vmax.f32 %v6037, %v6038
      %v6061 = vmax.f32 %v6039, %v6040
      %v6062 = vmax.f32 %v6041, %v6042
      %v6063 = vmax.f32 %v6043, %v6044
      %v6064 = vmax.f32 %v6045, %v6046
      %v6065 = vmax.f32 %v6047, %v6048
      %v6066 = vmax.f32 %v6049, %v6050
      %s6067 = scalar_lea.vmem [#allocation4], 16
      %6068 = vst.msk [vmem:[%s6067 + $0x1] sm:$0xff] %vm332, %v6051
      %6069 = vst.msk [vmem:[%s6067 + $0x11] sm:$0xff] %vm332, %v6052
      %6070 = vst.msk [vmem:[%s6067 + $0x21] sm:$0xff] %vm332, %v6053
      %6071 = vst.msk [vmem:[%s6067 + $0x31] sm:$0xff] %vm332, %v6054
      %6072 = vst.msk [vmem:[%s6067 + $0x41] sm:$0xff] %vm332, %v6055
      %6073 = vst.msk [vmem:[%s6067 + $0x51] sm:$0xff] %vm332, %v6056
      %6074 = vst.msk [vmem:[%s6067 + $0x61] sm:$0xff] %vm332, %v6057
      %6075 = vst.msk [vmem:[%s6067 + $0x71] sm:$0xff] %vm332, %v6058
      %6076 = vst.msk [vmem:[%s6067 + $0xa1] sm:$0xff] %vm332, %v6059
      %6077 = vst.msk [vmem:[%s6067 + $0xb1] sm:$0xff] %vm332, %v6060
      %6078 = vst.msk [vmem:[%s6067 + $0xc1] sm:$0xff] %vm332, %v6061
      %6079 = vst.msk [vmem:[%s6067 + $0xd1] sm:$0xff] %vm332, %v6062
      %6080 = vst.msk [vmem:[%s6067 + $0xe1] sm:$0xff] %vm332, %v6063
      %6081 = vst.msk [vmem:[%s6067 + $0xf1] sm:$0xff] %vm332, %v6064
      %6082 = vst.msk [vmem:[%s6067 + $0x101] sm:$0xff] %vm332, %v6065
      %6083 = vst.msk [vmem:[%s6067 + $0x111] sm:$0xff] %vm332, %v6066
      %v6084 = vld [vmem:[#allocation4] sm:$0xff]
      %v6085 = vld [vmem:[#allocation4 + $0x10] sm:$0xff]
      %v6086 = vld [vmem:[#allocation4 + $0x20] sm:$0xff]
      %v6087 = vld [vmem:[#allocation4 + $0x30] sm:$0xff]
      %v6088 = vld [vmem:[#allocation4 + $0x40] sm:$0xff]
      %v6089 = vld [vmem:[#allocation4 + $0x50] sm:$0xff]
      %v6090 = vld [vmem:[#allocation4 + $0x60] sm:$0xff]
      %v6091 = vld [vmem:[#allocation4 + $0x70] sm:$0xff]
      %v6092 = vpack.c.bf16 %v6084, %v6084
      %v6093 = vpack.c.bf16 %v6085, %v6085
      %v6094 = vpack.c.bf16 %v6086, %v6086
      %v6095 = vpack.c.bf16 %v6087, %v6087
      %v6096 = vpack.c.bf16 %v6088, %v6088
      %v6097 = vpack.c.bf16 %v6089, %v6089
      %v6098 = vpack.c.bf16 %v6090, %v6090
      %v6099 = vpack.c.bf16 %v6091, %v6091
      %v6100 = vld [vmem:[#allocation4 + $0x1] sm:$0xff]
      %v6101 = vld [vmem:[#allocation4 + $0x11] sm:$0xff]
      %v6102 = vld [vmem:[#allocation4 + $0x21] sm:$0xff]
      %v6103 = vld [vmem:[#allocation4 + $0x31] sm:$0xff]
      %v6104 = vld [vmem:[#allocation4 + $0x41] sm:$0xff]
      %v6105 = vld [vmem:[#allocation4 + $0x51] sm:$0xff]
      %v6106 = vld [vmem:[#allocation4 + $0x61] sm:$0xff]
      %v6107 = vld [vmem:[#allocation4 + $0x71] sm:$0xff]
      %v6108 = vpack.c.bf16 %v6100, %v6100
      %v6109 = vpack.c.bf16 %v6101, %v6101
      %v6110 = vpack.c.bf16 %v6102, %v6102
      %v6111 = vpack.c.bf16 %v6103, %v6103
      %v6112 = vpack.c.bf16 %v6104, %v6104
      %v6113 = vpack.c.bf16 %v6105, %v6105
      %v6114 = vpack.c.bf16 %v6106, %v6106
      %v6115 = vpack.c.bf16 %v6107, %v6107
      %v6116 = vld [vmem:[#allocation4 + $0x2] sm:$0xff]
      %v6117 = vld [vmem:[#allocation4 + $0x12] sm:$0xff]
      %v6118 = vld [vmem:[#allocation4 + $0x22] sm:$0xff]
      %v6119 = vld [vmem:[#allocation4 + $0x32] sm:$0xff]
      %v6120 = vld [vmem:[#allocation4 + $0x42] sm:$0xff]
      %v6121 = vld [vmem:[#allocation4 + $0x52] sm:$0xff]
      %v6122 = vld [vmem:[#allocation4 + $0x62] sm:$0xff]
      %v6123 = vld [vmem:[#allocation4 + $0x72] sm:$0xff]
      %v6124 = vpack.c.bf16 %v6116, %v6116
      %v6125 = vpack.c.bf16 %v6117, %v6117
      %v6126 = vpack.c.bf16 %v6118, %v6118
      %v6127 = vpack.c.bf16 %v6119, %v6119
      %v6128 = vpack.c.bf16 %v6120, %v6120
      %v6129 = vpack.c.bf16 %v6121, %v6121
      %v6130 = vpack.c.bf16 %v6122, %v6122
      %v6131 = vpack.c.bf16 %v6123, %v6123
      %v6132 = vld [vmem:[%s6067] sm:$0xff]
      %v6133 = vld [vmem:[%s6067 + $0x10] sm:$0xff]
      %v6134 = vld [vmem:[%s6067 + $0x20] sm:$0xff]
      %v6135 = vld [vmem:[%s6067 + $0x30] sm:$0xff]
      %v6136 = vld [vmem:[%s6067 + $0x40] sm:$0xff]
      %v6137 = vld [vmem:[%s6067 + $0x50] sm:$0xff]
      %v6138 = vld [vmem:[%s6067 + $0x60] sm:$0xff]
      %v6139 = vld [vmem:[%s6067 + $0x70] sm:$0xff]
      %v6140 = vpack.c.bf16 %v6132, %v6132
      %v6141 = vpack.c.bf16 %v6133, %v6133
      %v6142 = vpack.c.bf16 %v6134, %v6134
      %v6143 = vpack.c.bf16 %v6135, %v6135
      %v6144 = vpack.c.bf16 %v6136, %v6136
      %v6145 = vpack.c.bf16 %v6137, %v6137
      %v6146 = vpack.c.bf16 %v6138, %v6138
      %v6147 = vpack.c.bf16 %v6139, %v6139
      %v6148 = vld [vmem:[%s6067 + $0x1] sm:$0xff]
      %v6149 = vld [vmem:[%s6067 + $0x11] sm:$0xff]
      %v6150 = vld [vmem:[%s6067 + $0x21] sm:$0xff]
      %v6151 = vld [vmem:[%s6067 + $0x31] sm:$0xff]
      %v6152 = vld [vmem:[%s6067 + $0x41] sm:$0xff]
      %v6153 = vld [vmem:[%s6067 + $0x51] sm:$0xff]
      %v6154 = vld [vmem:[%s6067 + $0x61] sm:$0xff]
      %v6155 = vld [vmem:[%s6067 + $0x71] sm:$0xff]
      %v6156 = vpack.c.bf16 %v6148, %v6148
      %v6157 = vpack.c.bf16 %v6149, %v6149
      %v6158 = vpack.c.bf16 %v6150, %v6150
      %v6159 = vpack.c.bf16 %v6151, %v6151
      %v6160 = vpack.c.bf16 %v6152, %v6152
      %v6161 = vpack.c.bf16 %v6153, %v6153
      %v6162 = vpack.c.bf16 %v6154, %v6154
      %v6163 = vpack.c.bf16 %v6155, %v6155
      %v6164 = vld [vmem:[%s6067 + $0x2] sm:$0xff]
      %v6165 = vld [vmem:[%s6067 + $0x12] sm:$0xff]
      %v6166 = vld [vmem:[%s6067 + $0x22] sm:$0xff]
      %v6167 = vld [vmem:[%s6067 + $0x32] sm:$0xff]
      %v6168 = vld [vmem:[%s6067 + $0x42] sm:$0xff]
      %v6169 = vld [vmem:[%s6067 + $0x52] sm:$0xff]
      %v6170 = vld [vmem:[%s6067 + $0x62] sm:$0xff]
      %v6171 = vld [vmem:[%s6067 + $0x72] sm:$0xff]
      %v6172 = vpack.c.bf16 %v6164, %v6164
      %v6173 = vpack.c.bf16 %v6165, %v6165
      %v6174 = vpack.c.bf16 %v6166, %v6166
      %v6175 = vpack.c.bf16 %v6167, %v6167
      %v6176 = vpack.c.bf16 %v6168, %v6168
      %v6177 = vpack.c.bf16 %v6169, %v6169
      %v6178 = vpack.c.bf16 %v6170, %v6170
      %v6179 = vpack.c.bf16 %v6171, %v6171
      %s6180 = scalar_lea.vmem [#allocation4], 32
      %v6181 = vld [vmem:[%s6180] sm:$0xff]
      %v6182 = vld [vmem:[%s6180 + $0x10] sm:$0xff]
      %v6183 = vld [vmem:[%s6180 + $0x20] sm:$0xff]
      %v6184 = vld [vmem:[%s6180 + $0x30] sm:$0xff]
      %v6185 = vld [vmem:[%s6180 + $0x40] sm:$0xff]
      %v6186 = vld [vmem:[%s6180 + $0x50] sm:$0xff]
      %v6187 = vld [vmem:[%s6180 + $0x60] sm:$0xff]
      %v6188 = vld [vmem:[%s6180 + $0x70] sm:$0xff]
      %v6189 = vpack.c.bf16 %v6181, %v6181
      %v6190 = vpack.c.bf16 %v6182, %v6182
      %v6191 = vpack.c.bf16 %v6183, %v6183
      %v6192 = vpack.c.bf16 %v6184, %v6184
      %v6193 = vpack.c.bf16 %v6185, %v6185
      %v6194 = vpack.c.bf16 %v6186, %v6186
      %v6195 = vpack.c.bf16 %v6187, %v6187
      %v6196 = vpack.c.bf16 %v6188, %v6188
      %v6197 = vld [vmem:[%s6180 + $0x1] sm:$0xff]
      %v6198 = vld [vmem:[%s6180 + $0x11] sm:$0xff]
      %v6199 = vld [vmem:[%s6180 + $0x21] sm:$0xff]
      %v6200 = vld [vmem:[%s6180 + $0x31] sm:$0xff]
      %v6201 = vld [vmem:[%s6180 + $0x41] sm:$0xff]
      %v6202 = vld [vmem:[%s6180 + $0x51] sm:$0xff]
      %v6203 = vld [vmem:[%s6180 + $0x61] sm:$0xff]
      %v6204 = vld [vmem:[%s6180 + $0x71] sm:$0xff]
      %v6205 = vpack.c.bf16 %v6197, %v6197
      %v6206 = vpack.c.bf16 %v6198, %v6198
      %v6207 = vpack.c.bf16 %v6199, %v6199
      %v6208 = vpack.c.bf16 %v6200, %v6200
      %v6209 = vpack.c.bf16 %v6201, %v6201
      %v6210 = vpack.c.bf16 %v6202, %v6202
      %v6211 = vpack.c.bf16 %v6203, %v6203
      %v6212 = vpack.c.bf16 %v6204, %v6204
      %v6213 = vld [vmem:[%s6180 + $0x2] sm:$0xff]
      %v6214 = vld [vmem:[%s6180 + $0x12] sm:$0xff]
      %v6215 = vld [vmem:[%s6180 + $0x22] sm:$0xff]
      %v6216 = vld [vmem:[%s6180 + $0x32] sm:$0xff]
      %v6217 = vld [vmem:[%s6180 + $0x42] sm:$0xff]
      %v6218 = vld [vmem:[%s6180 + $0x52] sm:$0xff]
      %v6219 = vld [vmem:[%s6180 + $0x62] sm:$0xff]
      %v6220 = vld [vmem:[%s6180 + $0x72] sm:$0xff]
      %v6221 = vpack.c.bf16 %v6213, %v6213
      %v6222 = vpack.c.bf16 %v6214, %v6214
      %v6223 = vpack.c.bf16 %v6215, %v6215
      %v6224 = vpack.c.bf16 %v6216, %v6216
      %v6225 = vpack.c.bf16 %v6217, %v6217
      %v6226 = vpack.c.bf16 %v6218, %v6218
      %v6227 = vpack.c.bf16 %v6219, %v6219
      %v6228 = vpack.c.bf16 %v6220, %v6220
      %v6237 = vunpack.c.l.b16 %v6092
      %v6238 = vunpack.c.l.b16 %v6093
      %v6239 = vunpack.c.l.b16 %v6094
      %v6240 = vunpack.c.l.b16 %v6095
      %v6241 = vunpack.c.l.b16 %v6096
      %v6242 = vunpack.c.l.b16 %v6097
      %v6243 = vunpack.c.l.b16 %v6098
      %v6244 = vunpack.c.l.b16 %v6099
      %v6245 = vpack.c.b16 %v6238, %v6237
      %v6246 = vpack.c.b16 %v6240, %v6239
      %v6247 = vpack.c.b16 %v6242, %v6241
      %v6248 = vpack.c.b16 %v6244, %v6243
      %v6257 = vunpack.c.l.b16 %v6108
      %v6258 = vunpack.c.l.b16 %v6109
      %v6259 = vunpack.c.l.b16 %v6110
      %v6260 = vunpack.c.l.b16 %v6111
      %v6261 = vunpack.c.l.b16 %v6112
      %v6262 = vunpack.c.l.b16 %v6113
      %v6263 = vunpack.c.l.b16 %v6114
      %v6264 = vunpack.c.l.b16 %v6115
      %v6265 = vpack.c.b16 %v6258, %v6257
      %v6266 = vpack.c.b16 %v6260, %v6259
      %v6267 = vpack.c.b16 %v6262, %v6261
      %v6268 = vpack.c.b16 %v6264, %v6263
      %6269 = vrot.lane.b32.xlu0 %v6265, 64
      %v6270 = vpop.permute.xlu0 %6269
      %6271 = vrot.lane.b32.xlu0 %v6266, 64
      %v6272 = vpop.permute.xlu0 %6271
      %6273 = vrot.lane.b32.xlu0 %v6267, 64
      %v6274 = vpop.permute.xlu0 %6273
      %6275 = vrot.lane.b32.xlu0 %v6268, 64
      %v6276 = vpop.permute.xlu0 %6275
      %v6285 = vunpack.c.l.b16 %v6124
      %v6286 = vunpack.c.l.b16 %v6125
      %v6287 = vunpack.c.l.b16 %v6126
      %v6288 = vunpack.c.l.b16 %v6127
      %v6289 = vunpack.c.l.b16 %v6128
      %v6290 = vunpack.c.l.b16 %v6129
      %v6291 = vunpack.c.l.b16 %v6130
      %v6292 = vunpack.c.l.b16 %v6131
      %v6293 = vpack.c.b16 %v6286, %v6285
      %v6294 = vpack.c.b16 %v6288, %v6287
      %v6295 = vpack.c.b16 %v6290, %v6289
      %v6296 = vpack.c.b16 %v6292, %v6291
      %v6305 = vunpack.c.l.b16 %v6140
      %v6306 = vunpack.c.l.b16 %v6141
      %v6307 = vunpack.c.l.b16 %v6142
      %v6308 = vunpack.c.l.b16 %v6143
      %v6309 = vunpack.c.l.b16 %v6144
      %v6310 = vunpack.c.l.b16 %v6145
      %v6311 = vunpack.c.l.b16 %v6146
      %v6312 = vunpack.c.l.b16 %v6147
      %v6313 = vpack.c.b16 %v6306, %v6305
      %v6314 = vpack.c.b16 %v6308, %v6307
      %v6315 = vpack.c.b16 %v6310, %v6309
      %v6316 = vpack.c.b16 %v6312, %v6311
      %6317 = vrot.lane.b32.xlu0 %v6313, 64
      %v6318 = vpop.permute.xlu0 %6317
      %6319 = vrot.lane.b32.xlu0 %v6314, 64
      %v6320 = vpop.permute.xlu0 %6319
      %6321 = vrot.lane.b32.xlu0 %v6315, 64
      %v6322 = vpop.permute.xlu0 %6321
      %6323 = vrot.lane.b32.xlu0 %v6316, 64
      %v6324 = vpop.permute.xlu0 %6323
      %v6333 = vunpack.c.l.b16 %v6156
      %v6334 = vunpack.c.l.b16 %v6157
      %v6335 = vunpack.c.l.b16 %v6158
      %v6336 = vunpack.c.l.b16 %v6159
      %v6337 = vunpack.c.l.b16 %v6160
      %v6338 = vunpack.c.l.b16 %v6161
      %v6339 = vunpack.c.l.b16 %v6162
      %v6340 = vunpack.c.l.b16 %v6163
      %v6341 = vpack.c.b16 %v6334, %v6333
      %v6342 = vpack.c.b16 %v6336, %v6335
      %v6343 = vpack.c.b16 %v6338, %v6337
      %v6344 = vpack.c.b16 %v6340, %v6339
      %v6353 = vunpack.c.l.b16 %v6172
      %v6354 = vunpack.c.l.b16 %v6173
      %v6355 = vunpack.c.l.b16 %v6174
      %v6356 = vunpack.c.l.b16 %v6175
      %v6357 = vunpack.c.l.b16 %v6176
      %v6358 = vunpack.c.l.b16 %v6177
      %v6359 = vunpack.c.l.b16 %v6178
      %v6360 = vunpack.c.l.b16 %v6179
      %v6361 = vpack.c.b16 %v6354, %v6353
      %v6362 = vpack.c.b16 %v6356, %v6355
      %v6363 = vpack.c.b16 %v6358, %v6357
      %v6364 = vpack.c.b16 %v6360, %v6359
      %6365 = vrot.lane.b32.xlu0 %v6361, 64
      %v6366 = vpop.permute.xlu0 %6365
      %6367 = vrot.lane.b32.xlu0 %v6362, 64
      %v6368 = vpop.permute.xlu0 %6367
      %6369 = vrot.lane.b32.xlu0 %v6363, 64
      %v6370 = vpop.permute.xlu0 %6369
      %6371 = vrot.lane.b32.xlu0 %v6364, 64
      %v6372 = vpop.permute.xlu0 %6371
      %v6381 = vunpack.c.l.b16 %v6189
      %v6382 = vunpack.c.l.b16 %v6190
      %v6383 = vunpack.c.l.b16 %v6191
      %v6384 = vunpack.c.l.b16 %v6192
      %v6385 = vunpack.c.l.b16 %v6193
      %v6386 = vunpack.c.l.b16 %v6194
      %v6387 = vunpack.c.l.b16 %v6195
      %v6388 = vunpack.c.l.b16 %v6196
      %v6389 = vpack.c.b16 %v6382, %v6381
      %v6390 = vpack.c.b16 %v6384, %v6383
      %v6391 = vpack.c.b16 %v6386, %v6385
      %v6392 = vpack.c.b16 %v6388, %v6387
      %v6401 = vunpack.c.l.b16 %v6205
      %v6402 = vunpack.c.l.b16 %v6206
      %v6403 = vunpack.c.l.b16 %v6207
      %v6404 = vunpack.c.l.b16 %v6208
      %v6405 = vunpack.c.l.b16 %v6209
      %v6406 = vunpack.c.l.b16 %v6210
      %v6407 = vunpack.c.l.b16 %v6211
      %v6408 = vunpack.c.l.b16 %v6212
      %v6409 = vpack.c.b16 %v6402, %v6401
      %v6410 = vpack.c.b16 %v6404, %v6403
      %v6411 = vpack.c.b16 %v6406, %v6405
      %v6412 = vpack.c.b16 %v6408, %v6407
      %6413 = vrot.lane.b32.xlu0 %v6409, 64
      %v6414 = vpop.permute.xlu0 %6413
      %6415 = vrot.lane.b32.xlu0 %v6410, 64
      %v6416 = vpop.permute.xlu0 %6415
      %6417 = vrot.lane.b32.xlu0 %v6411, 64
      %v6418 = vpop.permute.xlu0 %6417
      %6419 = vrot.lane.b32.xlu0 %v6412, 64
      %v6420 = vpop.permute.xlu0 %6419
      %v6429 = vunpack.c.l.b16 %v6221
      %v6430 = vunpack.c.l.b16 %v6222
      %v6431 = vunpack.c.l.b16 %v6223
      %v6432 = vunpack.c.l.b16 %v6224
      %v6433 = vunpack.c.l.b16 %v6225
      %v6434 = vunpack.c.l.b16 %v6226
      %v6435 = vunpack.c.l.b16 %v6227
      %v6436 = vunpack.c.l.b16 %v6228
      %v6437 = vpack.c.b16 %v6430, %v6429
      %v6438 = vpack.c.b16 %v6432, %v6431
      %v6439 = vpack.c.b16 %v6434, %v6433
      %v6440 = vpack.c.b16 %v6436, %v6435
      %v6443 = vsel %vm332, %v6245, %v6270
      %v6447 = vsel %vm332, %v6246, %v6272
      %v6451 = vsel %vm332, %v6247, %v6274
      %v6455 = vsel %vm332, %v6248, %v6276
      %v6459 = vsel %vm332, %v6293, %v6318
      %v6463 = vsel %vm332, %v6294, %v6320
      %v6467 = vsel %vm332, %v6295, %v6322
      %v6471 = vsel %vm332, %v6296, %v6324
      %v6475 = vsel %vm332, %v6341, %v6366
      %v6479 = vsel %vm332, %v6342, %v6368
      %v6483 = vsel %vm332, %v6343, %v6370
      %v6487 = vsel %vm332, %v6344, %v6372
      %v6491 = vsel %vm332, %v6389, %v6414
      %v6495 = vsel %vm332, %v6390, %v6416
      %v6499 = vsel %vm332, %v6391, %v6418
      %v6503 = vsel %vm332, %v6392, %v6420
      %s6505 = scalar_lea.vmem [#allocation4], 160
      %v6506 = vld [vmem:[%s6505] sm:$0xff]
      %v6507 = vld [vmem:[%s6505 + $0x10] sm:$0xff]
      %v6508 = vld [vmem:[%s6505 + $0x20] sm:$0xff]
      %v6509 = vld [vmem:[%s6505 + $0x30] sm:$0xff]
      %v6510 = vld [vmem:[%s6505 + $0x40] sm:$0xff]
      %v6511 = vld [vmem:[%s6505 + $0x50] sm:$0xff]
      %v6512 = vld [vmem:[%s6505 + $0x60] sm:$0xff]
      %v6513 = vld [vmem:[%s6505 + $0x70] sm:$0xff]
      %v6514 = vpack.c.bf16 %v6506, %v6506
      %v6515 = vpack.c.bf16 %v6507, %v6507
      %v6516 = vpack.c.bf16 %v6508, %v6508
      %v6517 = vpack.c.bf16 %v6509, %v6509
      %v6518 = vpack.c.bf16 %v6510, %v6510
      %v6519 = vpack.c.bf16 %v6511, %v6511
      %v6520 = vpack.c.bf16 %v6512, %v6512
      %v6521 = vpack.c.bf16 %v6513, %v6513
      %v6522 = vld [vmem:[%s6505 + $0x1] sm:$0xff]
      %v6523 = vld [vmem:[%s6505 + $0x11] sm:$0xff]
      %v6524 = vld [vmem:[%s6505 + $0x21] sm:$0xff]
      %v6525 = vld [vmem:[%s6505 + $0x31] sm:$0xff]
      %v6526 = vld [vmem:[%s6505 + $0x41] sm:$0xff]
      %v6527 = vld [vmem:[%s6505 + $0x51] sm:$0xff]
      %v6528 = vld [vmem:[%s6505 + $0x61] sm:$0xff]
      %v6529 = vld [vmem:[%s6505 + $0x71] sm:$0xff]
      %v6530 = vpack.c.bf16 %v6522, %v6522
      %v6531 = vpack.c.bf16 %v6523, %v6523
      %v6532 = vpack.c.bf16 %v6524, %v6524
      %v6533 = vpack.c.bf16 %v6525, %v6525
      %v6534 = vpack.c.bf16 %v6526, %v6526
      %v6535 = vpack.c.bf16 %v6527, %v6527
      %v6536 = vpack.c.bf16 %v6528, %v6528
      %v6537 = vpack.c.bf16 %v6529, %v6529
      %v6538 = vld [vmem:[%s6505 + $0x2] sm:$0xff]
      %v6539 = vld [vmem:[%s6505 + $0x12] sm:$0xff]
      %v6540 = vld [vmem:[%s6505 + $0x22] sm:$0xff]
      %v6541 = vld [vmem:[%s6505 + $0x32] sm:$0xff]
      %v6542 = vld [vmem:[%s6505 + $0x42] sm:$0xff]
      %v6543 = vld [vmem:[%s6505 + $0x52] sm:$0xff]
      %v6544 = vld [vmem:[%s6505 + $0x62] sm:$0xff]
      %v6545 = vld [vmem:[%s6505 + $0x72] sm:$0xff]
      %v6546 = vpack.c.bf16 %v6538, %v6538
      %v6547 = vpack.c.bf16 %v6539, %v6539
      %v6548 = vpack.c.bf16 %v6540, %v6540
      %v6549 = vpack.c.bf16 %v6541, %v6541
      %v6550 = vpack.c.bf16 %v6542, %v6542
      %v6551 = vpack.c.bf16 %v6543, %v6543
      %v6552 = vpack.c.bf16 %v6544, %v6544
      %v6553 = vpack.c.bf16 %v6545, %v6545
      %s6554 = scalar_lea.vmem [#allocation4], 176
      %v6555 = vld [vmem:[%s6554] sm:$0xff]
      %v6556 = vld [vmem:[%s6554 + $0x10] sm:$0xff]
      %v6557 = vld [vmem:[%s6554 + $0x20] sm:$0xff]
      %v6558 = vld [vmem:[%s6554 + $0x30] sm:$0xff]
      %v6559 = vld [vmem:[%s6554 + $0x40] sm:$0xff]
      %v6560 = vld [vmem:[%s6554 + $0x50] sm:$0xff]
      %v6561 = vld [vmem:[%s6554 + $0x60] sm:$0xff]
      %v6562 = vld [vmem:[%s6554 + $0x70] sm:$0xff]
      %v6563 = vpack.c.bf16 %v6555, %v6555
      %v6564 = vpack.c.bf16 %v6556, %v6556
      %v6565 = vpack.c.bf16 %v6557, %v6557
      %v6566 = vpack.c.bf16 %v6558, %v6558
      %v6567 = vpack.c.bf16 %v6559, %v6559
      %v6568 = vpack.c.bf16 %v6560, %v6560
      %v6569 = vpack.c.bf16 %v6561, %v6561
      %v6570 = vpack.c.bf16 %v6562, %v6562
      %v6571 = vld [vmem:[%s6554 + $0x1] sm:$0xff]
      %v6572 = vld [vmem:[%s6554 + $0x11] sm:$0xff]
      %v6573 = vld [vmem:[%s6554 + $0x21] sm:$0xff]
      %v6574 = vld [vmem:[%s6554 + $0x31] sm:$0xff]
      %v6575 = vld [vmem:[%s6554 + $0x41] sm:$0xff]
      %v6576 = vld [vmem:[%s6554 + $0x51] sm:$0xff]
      %v6577 = vld [vmem:[%s6554 + $0x61] sm:$0xff]
      %v6578 = vld [vmem:[%s6554 + $0x71] sm:$0xff]
      %v6579 = vpack.c.bf16 %v6571, %v6571
      %v6580 = vpack.c.bf16 %v6572, %v6572
      %v6581 = vpack.c.bf16 %v6573, %v6573
      %v6582 = vpack.c.bf16 %v6574, %v6574
      %v6583 = vpack.c.bf16 %v6575, %v6575
      %v6584 = vpack.c.bf16 %v6576, %v6576
      %v6585 = vpack.c.bf16 %v6577, %v6577
      %v6586 = vpack.c.bf16 %v6578, %v6578
      %v6587 = vld [vmem:[%s6554 + $0x2] sm:$0xff]
      %v6588 = vld [vmem:[%s6554 + $0x12] sm:$0xff]
      %v6589 = vld [vmem:[%s6554 + $0x22] sm:$0xff]
      %v6590 = vld [vmem:[%s6554 + $0x32] sm:$0xff]
      %v6591 = vld [vmem:[%s6554 + $0x42] sm:$0xff]
      %v6592 = vld [vmem:[%s6554 + $0x52] sm:$0xff]
      %v6593 = vld [vmem:[%s6554 + $0x62] sm:$0xff]
      %v6594 = vld [vmem:[%s6554 + $0x72] sm:$0xff]
      %v6595 = vpack.c.bf16 %v6587, %v6587
      %v6596 = vpack.c.bf16 %v6588, %v6588
      %v6597 = vpack.c.bf16 %v6589, %v6589
      %v6598 = vpack.c.bf16 %v6590, %v6590
      %v6599 = vpack.c.bf16 %v6591, %v6591
      %v6600 = vpack.c.bf16 %v6592, %v6592
      %v6601 = vpack.c.bf16 %v6593, %v6593
      %v6602 = vpack.c.bf16 %v6594, %v6594
      %s6603 = scalar_lea.vmem [#allocation4], 192
      %v6604 = vld [vmem:[%s6603] sm:$0xff]
      %v6605 = vld [vmem:[%s6603 + $0x10] sm:$0xff]
      %v6606 = vld [vmem:[%s6603 + $0x20] sm:$0xff]
      %v6607 = vld [vmem:[%s6603 + $0x30] sm:$0xff]
      %v6608 = vld [vmem:[%s6603 + $0x40] sm:$0xff]
      %v6609 = vld [vmem:[%s6603 + $0x50] sm:$0xff]
      %v6610 = vld [vmem:[%s6603 + $0x60] sm:$0xff]
      %v6611 = vld [vmem:[%s6603 + $0x70] sm:$0xff]
      %v6612 = vpack.c.bf16 %v6604, %v6604
      %v6613 = vpack.c.bf16 %v6605, %v6605
      %v6614 = vpack.c.bf16 %v6606, %v6606
      %v6615 = vpack.c.bf16 %v6607, %v6607
      %v6616 = vpack.c.bf16 %v6608, %v6608
      %v6617 = vpack.c.bf16 %v6609, %v6609
      %v6618 = vpack.c.bf16 %v6610, %v6610
      %v6619 = vpack.c.bf16 %v6611, %v6611
      %v6620 = vld [vmem:[%s6603 + $0x1] sm:$0xff]
      %v6621 = vld [vmem:[%s6603 + $0x11] sm:$0xff]
      %v6622 = vld [vmem:[%s6603 + $0x21] sm:$0xff]
      %v6623 = vld [vmem:[%s6603 + $0x31] sm:$0xff]
      %v6624 = vld [vmem:[%s6603 + $0x41] sm:$0xff]
      %v6625 = vld [vmem:[%s6603 + $0x51] sm:$0xff]
      %v6626 = vld [vmem:[%s6603 + $0x61] sm:$0xff]
      %v6627 = vld [vmem:[%s6603 + $0x71] sm:$0xff]
      %v6628 = vpack.c.bf16 %v6620, %v6620
      %v6629 = vpack.c.bf16 %v6621, %v6621
      %v6630 = vpack.c.bf16 %v6622, %v6622
      %v6631 = vpack.c.bf16 %v6623, %v6623
      %v6632 = vpack.c.bf16 %v6624, %v6624
      %v6633 = vpack.c.bf16 %v6625, %v6625
      %v6634 = vpack.c.bf16 %v6626, %v6626
      %v6635 = vpack.c.bf16 %v6627, %v6627
      %v6636 = vld [vmem:[%s6603 + $0x2] sm:$0xff]
      %v6637 = vld [vmem:[%s6603 + $0x12] sm:$0xff]
      %v6638 = vld [vmem:[%s6603 + $0x22] sm:$0xff]
      %v6639 = vld [vmem:[%s6603 + $0x32] sm:$0xff]
      %v6640 = vld [vmem:[%s6603 + $0x42] sm:$0xff]
      %v6641 = vld [vmem:[%s6603 + $0x52] sm:$0xff]
      %v6642 = vld [vmem:[%s6603 + $0x62] sm:$0xff]
      %v6643 = vld [vmem:[%s6603 + $0x72] sm:$0xff]
      %v6644 = vpack.c.bf16 %v6636, %v6636
      %v6645 = vpack.c.bf16 %v6637, %v6637
      %v6646 = vpack.c.bf16 %v6638, %v6638
      %v6647 = vpack.c.bf16 %v6639, %v6639
      %v6648 = vpack.c.bf16 %v6640, %v6640
      %v6649 = vpack.c.bf16 %v6641, %v6641
      %v6650 = vpack.c.bf16 %v6642, %v6642
      %v6651 = vpack.c.bf16 %v6643, %v6643
      %v6660 = vunpack.c.l.b16 %v6514
      %v6661 = vunpack.c.l.b16 %v6515
      %v6662 = vunpack.c.l.b16 %v6516
      %v6663 = vunpack.c.l.b16 %v6517
      %v6664 = vunpack.c.l.b16 %v6518
      %v6665 = vunpack.c.l.b16 %v6519
      %v6666 = vunpack.c.l.b16 %v6520
      %v6667 = vunpack.c.l.b16 %v6521
      %v6668 = vpack.c.b16 %v6661, %v6660
      %v6669 = vpack.c.b16 %v6663, %v6662
      %v6670 = vpack.c.b16 %v6665, %v6664
      %v6671 = vpack.c.b16 %v6667, %v6666
      %v6680 = vunpack.c.l.b16 %v6530
      %v6681 = vunpack.c.l.b16 %v6531
      %v6682 = vunpack.c.l.b16 %v6532
      %v6683 = vunpack.c.l.b16 %v6533
      %v6684 = vunpack.c.l.b16 %v6534
      %v6685 = vunpack.c.l.b16 %v6535
      %v6686 = vunpack.c.l.b16 %v6536
      %v6687 = vunpack.c.l.b16 %v6537
      %v6688 = vpack.c.b16 %v6681, %v6680
      %v6689 = vpack.c.b16 %v6683, %v6682
      %v6690 = vpack.c.b16 %v6685, %v6684
      %v6691 = vpack.c.b16 %v6687, %v6686
      %6692 = vrot.lane.b32.xlu0 %v6688, 64
      %v6693 = vpop.permute.xlu0 %6692
      %6694 = vrot.lane.b32.xlu0 %v6689, 64
      %v6695 = vpop.permute.xlu0 %6694
      %6696 = vrot.lane.b32.xlu0 %v6690, 64
      %v6697 = vpop.permute.xlu0 %6696
      %6698 = vrot.lane.b32.xlu0 %v6691, 64
      %v6699 = vpop.permute.xlu0 %6698
      %v6708 = vunpack.c.l.b16 %v6546
      %v6709 = vunpack.c.l.b16 %v6547
      %v6710 = vunpack.c.l.b16 %v6548
      %v6711 = vunpack.c.l.b16 %v6549
      %v6712 = vunpack.c.l.b16 %v6550
      %v6713 = vunpack.c.l.b16 %v6551
      %v6714 = vunpack.c.l.b16 %v6552
      %v6715 = vunpack.c.l.b16 %v6553
      %v6716 = vpack.c.b16 %v6709, %v6708
      %v6717 = vpack.c.b16 %v6711, %v6710
      %v6718 = vpack.c.b16 %v6713, %v6712
      %v6719 = vpack.c.b16 %v6715, %v6714
      %v6728 = vunpack.c.l.b16 %v6563
      %v6729 = vunpack.c.l.b16 %v6564
      %v6730 = vunpack.c.l.b16 %v6565
      %v6731 = vunpack.c.l.b16 %v6566
      %v6732 = vunpack.c.l.b16 %v6567
      %v6733 = vunpack.c.l.b16 %v6568
      %v6734 = vunpack.c.l.b16 %v6569
      %v6735 = vunpack.c.l.b16 %v6570
      %v6736 = vpack.c.b16 %v6729, %v6728
      %v6737 = vpack.c.b16 %v6731, %v6730
      %v6738 = vpack.c.b16 %v6733, %v6732
      %v6739 = vpack.c.b16 %v6735, %v6734
      %6740 = vrot.lane.b32.xlu0 %v6736, 64
      %v6741 = vpop.permute.xlu0 %6740
      %6742 = vrot.lane.b32.xlu0 %v6737, 64
      %v6743 = vpop.permute.xlu0 %6742
      %6744 = vrot.lane.b32.xlu0 %v6738, 64
      %v6745 = vpop.permute.xlu0 %6744
      %6746 = vrot.lane.b32.xlu0 %v6739, 64
      %v6747 = vpop.permute.xlu0 %6746
      %v6756 = vunpack.c.l.b16 %v6579
      %v6757 = vunpack.c.l.b16 %v6580
      %v6758 = vunpack.c.l.b16 %v6581
      %v6759 = vunpack.c.l.b16 %v6582
      %v6760 = vunpack.c.l.b16 %v6583
      %v6761 = vunpack.c.l.b16 %v6584
      %v6762 = vunpack.c.l.b16 %v6585
      %v6763 = vunpack.c.l.b16 %v6586
      %v6764 = vpack.c.b16 %v6757, %v6756
      %v6765 = vpack.c.b16 %v6759, %v6758
      %v6766 = vpack.c.b16 %v6761, %v6760
      %v6767 = vpack.c.b16 %v6763, %v6762
      %v6776 = vunpack.c.l.b16 %v6595
      %v6777 = vunpack.c.l.b16 %v6596
      %v6778 = vunpack.c.l.b16 %v6597
      %v6779 = vunpack.c.l.b16 %v6598
      %v6780 = vunpack.c.l.b16 %v6599
      %v6781 = vunpack.c.l.b16 %v6600
      %v6782 = vunpack.c.l.b16 %v6601
      %v6783 = vunpack.c.l.b16 %v6602
      %v6784 = vpack.c.b16 %v6777, %v6776
      %v6785 = vpack.c.b16 %v6779, %v6778
      %v6786 = vpack.c.b16 %v6781, %v6780
      %v6787 = vpack.c.b16 %v6783, %v6782
      %6788 = vrot.lane.b32.xlu0 %v6784, 64
      %v6789 = vpop.permute.xlu0 %6788
      %6790 = vrot.lane.b32.xlu0 %v6785, 64
      %v6791 = vpop.permute.xlu0 %6790
      %6792 = vrot.lane.b32.xlu0 %v6786, 64
      %v6793 = vpop.permute.xlu0 %6792
      %6794 = vrot.lane.b32.xlu0 %v6787, 64
      %v6795 = vpop.permute.xlu0 %6794
      %v6804 = vunpack.c.l.b16 %v6612
      %v6805 = vunpack.c.l.b16 %v6613
      %v6806 = vunpack.c.l.b16 %v6614
      %v6807 = vunpack.c.l.b16 %v6615
      %v6808 = vunpack.c.l.b16 %v6616
      %v6809 = vunpack.c.l.b16 %v6617
      %v6810 = vunpack.c.l.b16 %v6618
      %v6811 = vunpack.c.l.b16 %v6619
      %v6812 = vpack.c.b16 %v6805, %v6804
      %v6813 = vpack.c.b16 %v6807, %v6806
      %v6814 = vpack.c.b16 %v6809, %v6808
      %v6815 = vpack.c.b16 %v6811, %v6810
      %v6824 = vunpack.c.l.b16 %v6628
      %v6825 = vunpack.c.l.b16 %v6629
      %v6826 = vunpack.c.l.b16 %v6630
      %v6827 = vunpack.c.l.b16 %v6631
      %v6828 = vunpack.c.l.b16 %v6632
      %v6829 = vunpack.c.l.b16 %v6633
      %v6830 = vunpack.c.l.b16 %v6634
      %v6831 = vunpack.c.l.b16 %v6635
      %v6832 = vpack.c.b16 %v6825, %v6824
      %v6833 = vpack.c.b16 %v6827, %v6826
      %v6834 = vpack.c.b16 %v6829, %v6828
      %v6835 = vpack.c.b16 %v6831, %v6830
      %6836 = vrot.lane.b32.xlu0 %v6832, 64
      %v6837 = vpop.permute.xlu0 %6836
      %6838 = vrot.lane.b32.xlu0 %v6833, 64
      %v6839 = vpop.permute.xlu0 %6838
      %6840 = vrot.lane.b32.xlu0 %v6834, 64
      %v6841 = vpop.permute.xlu0 %6840
      %6842 = vrot.lane.b32.xlu0 %v6835, 64
      %v6843 = vpop.permute.xlu0 %6842
      %v6852 = vunpack.c.l.b16 %v6644
      %v6853 = vunpack.c.l.b16 %v6645
      %v6854 = vunpack.c.l.b16 %v6646
      %v6855 = vunpack.c.l.b16 %v6647
      %v6856 = vunpack.c.l.b16 %v6648
      %v6857 = vunpack.c.l.b16 %v6649
      %v6858 = vunpack.c.l.b16 %v6650
      %v6859 = vunpack.c.l.b16 %v6651
      %v6860 = vpack.c.b16 %v6853, %v6852
      %v6861 = vpack.c.b16 %v6855, %v6854
      %v6862 = vpack.c.b16 %v6857, %v6856
      %v6863 = vpack.c.b16 %v6859, %v6858
      %v6866 = vsel %vm332, %v6668, %v6693
      %v6870 = vsel %vm332, %v6669, %v6695
      %v6874 = vsel %vm332, %v6670, %v6697
      %v6878 = vsel %vm332, %v6671, %v6699
      %v6882 = vsel %vm332, %v6716, %v6741
      %v6886 = vsel %vm332, %v6717, %v6743
      %v6890 = vsel %vm332, %v6718, %v6745
      %v6894 = vsel %vm332, %v6719, %v6747
      %v6898 = vsel %vm332, %v6764, %v6789
      %v6902 = vsel %vm332, %v6765, %v6791
      %v6906 = vsel %vm332, %v6766, %v6793
      %v6910 = vsel %vm332, %v6767, %v6795
      %v6914 = vsel %vm332, %v6812, %v6837
      %v6918 = vsel %vm332, %v6813, %v6839
      %v6922 = vsel %vm332, %v6814, %v6841
      %v6926 = vsel %vm332, %v6815, %v6843
      %v6928 = vld [vmem:[%s5] sm:$0xf]
      %v6929 = vld [vmem:[%s5 + $0x4] sm:$0xf]
      %v6930 = vld [vmem:[%s5 + $0x8] sm:$0xf]
      %v6931 = vld [vmem:[%s5 + $0xc] sm:$0xf]
      %v6932 = vld [vmem:[%s5 + $0x10] sm:$0xf]
      %v6933 = vld [vmem:[%s5 + $0x14] sm:$0xf]
      %v6934 = vld [vmem:[%s5 + $0x18] sm:$0xf]
      %v6935 = vld [vmem:[%s5 + $0x1c] sm:$0xf]
      %v6936 = vld [vmem:[%s5 + $0x20] sm:$0xf]
      %v6937 = vld [vmem:[%s5 + $0x24] sm:$0xf]
      %v6938 = vld [vmem:[%s5 + $0x28] sm:$0xf]
      %v6939 = vld [vmem:[%s5 + $0x2c] sm:$0xf]
      %v6940 = vld [vmem:[%s5 + $0x30] sm:$0xf]
      %v6941 = vld [vmem:[%s5 + $0x34] sm:$0xf]
      %v6942 = vld [vmem:[%s5 + $0x38] sm:$0xf]
      %v6943 = vld [vmem:[%s5 + $0x3c] sm:$0xf]
      %v6944 = vld [vmem:[%s5 + $0x40] sm:$0xf]
      %v6945 = vld [vmem:[%s5 + $0x44] sm:$0xf]
      %v6946 = vld [vmem:[%s5 + $0x48] sm:$0xf]
      %v6947 = vld [vmem:[%s5 + $0x4c] sm:$0xf]
      %v6948 = vld [vmem:[%s5 + $0x50] sm:$0xf]
      %v6949 = vld [vmem:[%s5 + $0x54] sm:$0xf]
      %v6950 = vld [vmem:[%s5 + $0x58] sm:$0xf]
      %v6951 = vld [vmem:[%s5 + $0x5c] sm:$0xf]
      %v6952 = vld [vmem:[%s5 + $0x60] sm:$0xf]
      %v6953 = vld [vmem:[%s5 + $0x64] sm:$0xf]
      %v6954 = vld [vmem:[%s5 + $0x68] sm:$0xf]
      %v6955 = vld [vmem:[%s5 + $0x6c] sm:$0xf]
      %v6956 = vld [vmem:[%s5 + $0x70] sm:$0xf]
      %v6957 = vld [vmem:[%s5 + $0x74] sm:$0xf]
      %v6958 = vld [vmem:[%s5 + $0x78] sm:$0xf]
      %v6959 = vld [vmem:[%s5 + $0x7c] sm:$0xf]
      %v6960 = vld [vmem:[%s5 + $0x80] sm:$0xf]
      %v6961 = vld [vmem:[%s5 + $0x84] sm:$0xf]
      %v6962 = vld [vmem:[%s5 + $0x88] sm:$0xf]
      %v6963 = vld [vmem:[%s5 + $0x8c] sm:$0xf]
      %v6964 = vld [vmem:[%s5 + $0x90] sm:$0xf]
      %v6965 = vld [vmem:[%s5 + $0x94] sm:$0xf]
      %v6966 = vld [vmem:[%s5 + $0x98] sm:$0xf]
      %v6967 = vld [vmem:[%s5 + $0x9c] sm:$0xf]
      %v6968 = vld [vmem:[%s5 + $0xa0] sm:$0xf]
      %v6969 = vld [vmem:[%s5 + $0xa4] sm:$0xf]
      %v6970 = vld [vmem:[%s5 + $0xa8] sm:$0xf]
      %v6971 = vld [vmem:[%s5 + $0xac] sm:$0xf]
      %v6972 = vld [vmem:[%s5 + $0xb0] sm:$0xf]
      %v6973 = vld [vmem:[%s5 + $0xb4] sm:$0xf]
      %v6974 = vld [vmem:[%s5 + $0xb8] sm:$0xf]
      %v6975 = vld [vmem:[%s5 + $0xbc] sm:$0xf]
      %v6976 = vld [vmem:[%s5 + $0xc0] sm:$0xf]
      %v6977 = vld [vmem:[%s5 + $0xc4] sm:$0xf]
      %v6978 = vld [vmem:[%s5 + $0xc8] sm:$0xf]
      %v6979 = vld [vmem:[%s5 + $0xcc] sm:$0xf]
      %v6980 = vld [vmem:[%s5 + $0xd0] sm:$0xf]
      %v6981 = vld [vmem:[%s5 + $0xd4] sm:$0xf]
      %v6982 = vld [vmem:[%s5 + $0xd8] sm:$0xf]
      %v6983 = vld [vmem:[%s5 + $0xdc] sm:$0xf]
      %v6984 = vld [vmem:[%s5 + $0xe0] sm:$0xf]
      %v6985 = vld [vmem:[%s5 + $0xe4] sm:$0xf]
      %v6986 = vld [vmem:[%s5 + $0xe8] sm:$0xf]
      %v6987 = vld [vmem:[%s5 + $0xec] sm:$0xf]
      %v6988 = vld [vmem:[%s5 + $0xf0] sm:$0xf]
      %v6989 = vld [vmem:[%s5 + $0xf4] sm:$0xf]
      %v6990 = vld [vmem:[%s5 + $0xf8] sm:$0xf]
      %v6991 = vld [vmem:[%s5 + $0xfc] sm:$0xf]
      %v6992 = vld [vmem:[%s5 + $0x100] sm:$0xf]
      %v6993 = vld [vmem:[%s5 + $0x104] sm:$0xf]
      %v6994 = vld [vmem:[%s5 + $0x108] sm:$0xf]
      %v6995 = vld [vmem:[%s5 + $0x10c] sm:$0xf]
      %v6996 = vld [vmem:[%s5 + $0x110] sm:$0xf]
      %v6997 = vld [vmem:[%s5 + $0x114] sm:$0xf]
      %v6998 = vld [vmem:[%s5 + $0x118] sm:$0xf]
      %v6999 = vld [vmem:[%s5 + $0x11c] sm:$0xf]
      %v7000 = vld [vmem:[%s6] sm:$0x1]
      %v7002 = vperm.slane %v7000, 0
      %v7076 = vunpack.c.l.b16 %v6928
      %v7077 = vunpack.c.l.b16 %v6929
      %v7078 = vunpack.c.l.b16 %v6930
      %v7079 = vunpack.c.l.b16 %v6931
      %v7080 = vunpack.c.l.b16 %v6932
      %v7081 = vunpack.c.l.b16 %v6933
      %v7082 = vunpack.c.l.b16 %v6934
      %v7083 = vunpack.c.l.b16 %v6935
      %v7084 = vunpack.c.l.b16 %v6936
      %v7085 = vunpack.c.l.b16 %v6937
      %v7086 = vunpack.c.l.b16 %v6938
      %v7087 = vunpack.c.l.b16 %v6939
      %v7088 = vunpack.c.l.b16 %v6940
      %v7089 = vunpack.c.l.b16 %v6941
      %v7090 = vunpack.c.l.b16 %v6942
      %v7091 = vunpack.c.l.b16 %v6943
      %v7092 = vunpack.c.l.b16 %v6944
      %v7093 = vunpack.c.l.b16 %v6945
      %v7094 = vunpack.c.l.b16 %v6946
      %v7095 = vunpack.c.l.b16 %v6947
      %v7096 = vunpack.c.l.b16 %v6948
      %v7097 = vunpack.c.l.b16 %v6949
      %v7098 = vunpack.c.l.b16 %v6950
      %v7099 = vunpack.c.l.b16 %v6951
      %v7100 = vunpack.c.l.b16 %v6952
      %v7101 = vunpack.c.l.b16 %v6953
      %v7102 = vunpack.c.l.b16 %v6954
      %v7103 = vunpack.c.l.b16 %v6955
      %v7104 = vunpack.c.l.b16 %v6956
      %v7105 = vunpack.c.l.b16 %v6957
      %v7106 = vunpack.c.l.b16 %v6958
      %v7107 = vunpack.c.l.b16 %v6959
      %v7108 = vunpack.c.l.b16 %v6960
      %v7109 = vunpack.c.l.b16 %v6961
      %v7110 = vunpack.c.l.b16 %v6962
      %v7111 = vunpack.c.l.b16 %v6963
      %v7112 = vunpack.c.l.b16 %v6964
      %v7113 = vunpack.c.l.b16 %v6965
      %v7114 = vunpack.c.l.b16 %v6966
      %v7115 = vunpack.c.l.b16 %v6967
      %v7116 = vunpack.c.l.b16 %v6968
      %v7117 = vunpack.c.l.b16 %v6969
      %v7118 = vunpack.c.l.b16 %v6970
      %v7119 = vunpack.c.l.b16 %v6971
      %v7120 = vunpack.c.l.b16 %v6972
      %v7121 = vunpack.c.l.b16 %v6973
      %v7122 = vunpack.c.l.b16 %v6974
      %v7123 = vunpack.c.l.b16 %v6975
      %v7124 = vunpack.c.l.b16 %v6976
      %v7125 = vunpack.c.l.b16 %v6977
      %v7126 = vunpack.c.l.b16 %v6978
      %v7127 = vunpack.c.l.b16 %v6979
      %v7128 = vunpack.c.l.b16 %v6980
      %v7129 = vunpack.c.l.b16 %v6981
      %v7130 = vunpack.c.l.b16 %v6982
      %v7131 = vunpack.c.l.b16 %v6983
      %v7132 = vunpack.c.l.b16 %v6984
      %v7133 = vunpack.c.l.b16 %v6985
      %v7134 = vunpack.c.l.b16 %v6986
      %v7135 = vunpack.c.l.b16 %v6987
      %v7136 = vunpack.c.l.b16 %v6988
      %v7137 = vunpack.c.l.b16 %v6989
      %v7138 = vunpack.c.l.b16 %v6990
      %v7139 = vunpack.c.l.b16 %v6991
      %v7140 = vunpack.c.l.b16 %v6992
      %v7141 = vunpack.c.l.b16 %v6993
      %v7142 = vunpack.c.l.b16 %v6994
      %v7143 = vunpack.c.l.b16 %v6995
      %v7144 = vunpack.c.l.b16 %v6996
      %v7145 = vunpack.c.l.b16 %v6997
      %v7146 = vunpack.c.l.b16 %v6998
      %v7147 = vunpack.c.l.b16 %v6999
      %v7148 = vpack.c.b16 %v7077, %v7076
      %v7149 = vpack.c.b16 %v7079, %v7078
      %v7150 = vpack.c.b16 %v7081, %v7080
      %v7151 = vpack.c.b16 %v7083, %v7082
      %v7152 = vpack.c.b16 %v7085, %v7084
      %v7153 = vpack.c.b16 %v7087, %v7086
      %v7154 = vpack.c.b16 %v7089, %v7088
      %v7155 = vpack.c.b16 %v7091, %v7090
      %v7156 = vpack.c.b16 %v7093, %v7092
      %v7157 = vpack.c.b16 %v7095, %v7094
      %v7158 = vpack.c.b16 %v7097, %v7096
      %v7159 = vpack.c.b16 %v7099, %v7098
      %v7160 = vpack.c.b16 %v7101, %v7100
      %v7161 = vpack.c.b16 %v7103, %v7102
      %v7162 = vpack.c.b16 %v7105, %v7104
      %v7163 = vpack.c.b16 %v7107, %v7106
      %v7164 = vpack.c.b16 %v7109, %v7108
      %v7165 = vpack.c.b16 %v7111, %v7110
      %v7166 = vpack.c.b16 %v7113, %v7112
      %v7167 = vpack.c.b16 %v7115, %v7114
      %v7168 = vpack.c.b16 %v7117, %v7116
      %v7169 = vpack.c.b16 %v7119, %v7118
      %v7170 = vpack.c.b16 %v7121, %v7120
      %v7171 = vpack.c.b16 %v7123, %v7122
      %v7172 = vpack.c.b16 %v7125, %v7124
      %v7173 = vpack.c.b16 %v7127, %v7126
      %v7174 = vpack.c.b16 %v7129, %v7128
      %v7175 = vpack.c.b16 %v7131, %v7130
      %v7176 = vpack.c.b16 %v7133, %v7132
      %v7177 = vpack.c.b16 %v7135, %v7134
      %v7178 = vpack.c.b16 %v7137, %v7136
      %v7179 = vpack.c.b16 %v7139, %v7138
      %v7180 = vpack.c.b16 %v7141, %v7140
      %v7181 = vpack.c.b16 %v7143, %v7142
      %v7182 = vpack.c.b16 %v7145, %v7144
      %v7183 = vpack.c.b16 %v7147, %v7146
      %v7221 = vsel %vm332, %v6437, 0
      %v7224 = vsel %vm332, %v6438, 0
      %v7227 = vsel %vm332, %v6439, 0
      %v7230 = vsel %vm332, %v6440, 0
      %v7233 = vsel %vm332, %v6860, 0
      %v7236 = vsel %vm332, %v6861, 0
      %v7239 = vsel %vm332, %v6862, 0
      %v7242 = vsel %vm332, %v6863, 0
      %7244 = vmatpush.bf16.msra.mxu0 %v7155
      %7245 = vmatpush.bf16.msra.mxu0 %v7154
      %7246 = vmatpush.bf16.msra.mxu0 %v7153
      %7247 = vmatpush.bf16.msra.mxu0 %v7152
      %7248 = vmatpush.bf16.msra.mxu0 %v7151
      %7249 = vmatpush.bf16.msra.mxu0 %v7150
      %7250 = vmatpush.bf16.msra.mxu0 %v7149
      %7251 = vmatpush.bf16.msra.mxu0 %v7148
      %7252 = vmatmul.bf16.gmra.mxu0 %v6443
      %v7253 = vpop.f32.mrf.mxu0
      %v7254 = vadd.f32 %v7002, %v7253
      %v7255 = vpop.f32.mrf.mxu0
      %v7256 = vadd.f32 %v7002, %v7255
      %7257 = vmatmul.bf16.gmra.mxu0 %v6447
      %v7258 = vpop.f32.mrf.mxu0
      %v7259 = vadd.f32 %v7002, %v7258
      %v7260 = vpop.f32.mrf.mxu0
      %v7261 = vadd.f32 %v7002, %v7260
      %7262 = vmatmul.bf16.gmra.mxu0 %v6451
      %v7263 = vpop.f32.mrf.mxu0
      %v7264 = vadd.f32 %v7002, %v7263
      %v7265 = vpop.f32.mrf.mxu0
      %v7266 = vadd.f32 %v7002, %v7265
      %7267 = vmatmul.bf16.gmra.mxu0 %v6455
      %v7268 = vpop.f32.mrf.mxu0
      %v7269 = vadd.f32 %v7002, %v7268
      %v7270 = vpop.f32.mrf.mxu0
      %v7271 = vadd.f32 %v7002, %v7270
      %7272 = vmatmul.bf16.gmra.mxu0 %v6866
      %v7273 = vpop.f32.mrf.mxu0
      %v7274 = vadd.f32 %v7002, %v7273
      %v7275 = vpop.f32.mrf.mxu0
      %v7276 = vadd.f32 %v7002, %v7275
      %7277 = vmatmul.bf16.gmra.mxu0 %v6870
      %v7278 = vpop.f32.mrf.mxu0
      %v7279 = vadd.f32 %v7002, %v7278
      %v7280 = vpop.f32.mrf.mxu0
      %v7281 = vadd.f32 %v7002, %v7280
      %7282 = vmatmul.bf16.gmra.mxu0 %v6874
      %v7283 = vpop.f32.mrf.mxu0
      %v7284 = vadd.f32 %v7002, %v7283
      %v7285 = vpop.f32.mrf.mxu0
      %v7286 = vadd.f32 %v7002, %v7285
      %7287 = vmatmul.bf16.gmra.mxu0 %v6878
      %v7288 = vpop.f32.mrf.mxu0
      %v7289 = vadd.f32 %v7002, %v7288
      %v7290 = vpop.f32.mrf.mxu0
      %v7291 = vadd.f32 %v7002, %v7290
      %7292 = vdwg.mxu0
      %7293 = vmatpush.bf16.msra.mxu0 %v7163
      %7294 = vmatpush.bf16.msra.mxu0 %v7162
      %7295 = vmatpush.bf16.msra.mxu0 %v7161
      %7296 = vmatpush.bf16.msra.mxu0 %v7160
      %7297 = vmatpush.bf16.msra.mxu0 %v7159
      %7298 = vmatpush.bf16.msra.mxu0 %v7158
      %7299 = vmatpush.bf16.msra.mxu0 %v7157
      %7300 = vmatpush.bf16.msra.mxu0 %v7156
      %7301 = vmatmul.bf16.gmra.mxu0 %v6459
      %v7302 = vpop.f32.mrf.mxu0
      %v7303 = vadd.f32 %v7254, %v7302
      %v7304 = vpop.f32.mrf.mxu0
      %v7305 = vadd.f32 %v7256, %v7304
      %7306 = vmatmul.bf16.gmra.mxu0 %v6463
      %v7307 = vpop.f32.mrf.mxu0
      %v7308 = vadd.f32 %v7259, %v7307
      %v7309 = vpop.f32.mrf.mxu0
      %v7310 = vadd.f32 %v7261, %v7309
      %7311 = vmatmul.bf16.gmra.mxu0 %v6467
      %v7312 = vpop.f32.mrf.mxu0
      %v7313 = vadd.f32 %v7264, %v7312
      %v7314 = vpop.f32.mrf.mxu0
      %v7315 = vadd.f32 %v7266, %v7314
      %7316 = vmatmul.bf16.gmra.mxu0 %v6471
      %v7317 = vpop.f32.mrf.mxu0
      %v7318 = vadd.f32 %v7269, %v7317
      %v7319 = vpop.f32.mrf.mxu0
      %v7320 = vadd.f32 %v7271, %v7319
      %7321 = vmatmul.bf16.gmra.mxu0 %v6882
      %v7322 = vpop.f32.mrf.mxu0
      %v7323 = vadd.f32 %v7274, %v7322
      %v7324 = vpop.f32.mrf.mxu0
      %v7325 = vadd.f32 %v7276, %v7324
      %7326 = vmatmul.bf16.gmra.mxu0 %v6886
      %v7327 = vpop.f32.mrf.mxu0
      %v7328 = vadd.f32 %v7279, %v7327
      %v7329 = vpop.f32.mrf.mxu0
      %v7330 = vadd.f32 %v7281, %v7329
      %7331 = vmatmul.bf16.gmra.mxu0 %v6890
      %v7332 = vpop.f32.mrf.mxu0
      %v7333 = vadd.f32 %v7284, %v7332
      %v7334 = vpop.f32.mrf.mxu0
      %v7335 = vadd.f32 %v7286, %v7334
      %7336 = vmatmul.bf16.gmra.mxu0 %v6894
      %v7337 = vpop.f32.mrf.mxu0
      %v7338 = vadd.f32 %v7289, %v7337
      %v7339 = vpop.f32.mrf.mxu0
      %v7340 = vadd.f32 %v7291, %v7339
      %7341 = vdwg.mxu0
      %7342 = vmatpush.bf16.msra.mxu0 %v7171
      %7343 = vmatpush.bf16.msra.mxu0 %v7170
      %7344 = vmatpush.bf16.msra.mxu0 %v7169
      %7345 = vmatpush.bf16.msra.mxu0 %v7168
      %7346 = vmatpush.bf16.msra.mxu0 %v7167
      %7347 = vmatpush.bf16.msra.mxu0 %v7166
      %7348 = vmatpush.bf16.msra.mxu0 %v7165
      %7349 = vmatpush.bf16.msra.mxu0 %v7164
      %7350 = vmatmul.bf16.gmra.mxu0 %v6475
      %v7351 = vpop.f32.mrf.mxu0
      %v7352 = vadd.f32 %v7303, %v7351
      %v7353 = vpop.f32.mrf.mxu0
      %v7354 = vadd.f32 %v7305, %v7353
      %7355 = vmatmul.bf16.gmra.mxu0 %v6479
      %v7356 = vpop.f32.mrf.mxu0
      %v7357 = vadd.f32 %v7308, %v7356
      %v7358 = vpop.f32.mrf.mxu0
      %v7359 = vadd.f32 %v7310, %v7358
      %7360 = vmatmul.bf16.gmra.mxu0 %v6483
      %v7361 = vpop.f32.mrf.mxu0
      %v7362 = vadd.f32 %v7313, %v7361
      %v7363 = vpop.f32.mrf.mxu0
      %v7364 = vadd.f32 %v7315, %v7363
      %7365 = vmatmul.bf16.gmra.mxu0 %v6487
      %v7366 = vpop.f32.mrf.mxu0
      %v7367 = vadd.f32 %v7318, %v7366
      %v7368 = vpop.f32.mrf.mxu0
      %v7369 = vadd.f32 %v7320, %v7368
      %7370 = vmatmul.bf16.gmra.mxu0 %v6898
      %v7371 = vpop.f32.mrf.mxu0
      %v7372 = vadd.f32 %v7323, %v7371
      %v7373 = vpop.f32.mrf.mxu0
      %v7374 = vadd.f32 %v7325, %v7373
      %7375 = vmatmul.bf16.gmra.mxu0 %v6902
      %v7376 = vpop.f32.mrf.mxu0
      %v7377 = vadd.f32 %v7328, %v7376
      %v7378 = vpop.f32.mrf.mxu0
      %v7379 = vadd.f32 %v7330, %v7378
      %7380 = vmatmul.bf16.gmra.mxu0 %v6906
      %v7381 = vpop.f32.mrf.mxu0
      %v7382 = vadd.f32 %v7333, %v7381
      %v7383 = vpop.f32.mrf.mxu0
      %v7384 = vadd.f32 %v7335, %v7383
      %7385 = vmatmul.bf16.gmra.mxu0 %v6910
      %v7386 = vpop.f32.mrf.mxu0
      %v7387 = vadd.f32 %v7338, %v7386
      %v7388 = vpop.f32.mrf.mxu0
      %v7389 = vadd.f32 %v7340, %v7388
      %7390 = vdwg.mxu0
      %7391 = vmatpush.bf16.msra.mxu0 %v7179
      %7392 = vmatpush.bf16.msra.mxu0 %v7178
      %7393 = vmatpush.bf16.msra.mxu0 %v7177
      %7394 = vmatpush.bf16.msra.mxu0 %v7176
      %7395 = vmatpush.bf16.msra.mxu0 %v7175
      %7396 = vmatpush.bf16.msra.mxu0 %v7174
      %7397 = vmatpush.bf16.msra.mxu0 %v7173
      %7398 = vmatpush.bf16.msra.mxu0 %v7172
      %7399 = vmatmul.bf16.gmra.mxu0 %v6491
      %v7400 = vpop.f32.mrf.mxu0
      %v7401 = vadd.f32 %v7352, %v7400
      %v7402 = vpop.f32.mrf.mxu0
      %v7403 = vadd.f32 %v7354, %v7402
      %7404 = vmatmul.bf16.gmra.mxu0 %v6495
      %v7405 = vpop.f32.mrf.mxu0
      %v7406 = vadd.f32 %v7357, %v7405
      %v7407 = vpop.f32.mrf.mxu0
      %v7408 = vadd.f32 %v7359, %v7407
      %7409 = vmatmul.bf16.gmra.mxu0 %v6499
      %v7410 = vpop.f32.mrf.mxu0
      %v7411 = vadd.f32 %v7362, %v7410
      %v7412 = vpop.f32.mrf.mxu0
      %v7413 = vadd.f32 %v7364, %v7412
      %7414 = vmatmul.bf16.gmra.mxu0 %v6503
      %v7415 = vpop.f32.mrf.mxu0
      %v7416 = vadd.f32 %v7367, %v7415
      %v7417 = vpop.f32.mrf.mxu0
      %v7418 = vadd.f32 %v7369, %v7417
      %7419 = vmatmul.bf16.gmra.mxu0 %v6914
      %v7420 = vpop.f32.mrf.mxu0
      %v7421 = vadd.f32 %v7372, %v7420
      %v7422 = vpop.f32.mrf.mxu0
      %v7423 = vadd.f32 %v7374, %v7422
      %7424 = vmatmul.bf16.gmra.mxu0 %v6918
      %v7425 = vpop.f32.mrf.mxu0
      %v7426 = vadd.f32 %v7377, %v7425
      %v7427 = vpop.f32.mrf.mxu0
      %v7428 = vadd.f32 %v7379, %v7427
      %7429 = vmatmul.bf16.gmra.mxu0 %v6922
      %v7430 = vpop.f32.mrf.mxu0
      %v7431 = vadd.f32 %v7382, %v7430
      %v7432 = vpop.f32.mrf.mxu0
      %v7433 = vadd.f32 %v7384, %v7432
      %7434 = vmatmul.bf16.gmra.mxu0 %v6926
      %v7435 = vpop.f32.mrf.mxu0
      %v7436 = vadd.f32 %v7387, %v7435
      %v7437 = vpop.f32.mrf.mxu0
      %v7438 = vadd.f32 %v7389, %v7437
      %7439 = vdwg.mxu0
      %7440 = vmatpush.bf16.msra.mxu0 0
      %7441 = vmatpush.bf16.msra.mxu0 0
      %7442 = vmatpush.bf16.msra.mxu0 0
      %7443 = vmatpush.bf16.msra.mxu0 0
      %7444 = vmatpush.bf16.msra.mxu0 %v7183
      %7445 = vmatpush.bf16.msra.mxu0 %v7182
      %7446 = vmatpush.bf16.msra.mxu0 %v7181
      %7447 = vmatpush.bf16.msra.mxu0 %v7180
      %7448 = vmatmul.bf16.gmra.mxu0 %v7221
      %v7449 = vpop.f32.mrf.mxu0
      %v7450 = vadd.f32 %v7401, %v7449
      %v7451 = vpop.f32.mrf.mxu0
      %v7452 = vadd.f32 %v7403, %v7451
      %7453 = vmatmul.bf16.gmra.mxu0 %v7224
      %v7454 = vpop.f32.mrf.mxu0
      %v7455 = vadd.f32 %v7406, %v7454
      %v7456 = vpop.f32.mrf.mxu0
      %v7457 = vadd.f32 %v7408, %v7456
      %7458 = vmatmul.bf16.gmra.mxu0 %v7227
      %v7459 = vpop.f32.mrf.mxu0
      %v7460 = vadd.f32 %v7411, %v7459
      %v7461 = vpop.f32.mrf.mxu0
      %v7462 = vadd.f32 %v7413, %v7461
      %7463 = vmatmul.bf16.gmra.mxu0 %v7230
      %v7464 = vpop.f32.mrf.mxu0
      %v7465 = vadd.f32 %v7416, %v7464
      %v7466 = vpop.f32.mrf.mxu0
      %v7467 = vadd.f32 %v7418, %v7466
      %7468 = vmatmul.bf16.gmra.mxu0 %v7233
      %v7469 = vpop.f32.mrf.mxu0
      %v7470 = vadd.f32 %v7421, %v7469
      %v7471 = vpop.f32.mrf.mxu0
      %v7472 = vadd.f32 %v7423, %v7471
      %7473 = vmatmul.bf16.gmra.mxu0 %v7236
      %v7474 = vpop.f32.mrf.mxu0
      %v7475 = vadd.f32 %v7426, %v7474
      %v7476 = vpop.f32.mrf.mxu0
      %v7477 = vadd.f32 %v7428, %v7476
      %7478 = vmatmul.bf16.gmra.mxu0 %v7239
      %v7479 = vpop.f32.mrf.mxu0
      %v7480 = vadd.f32 %v7431, %v7479
      %v7481 = vpop.f32.mrf.mxu0
      %v7482 = vadd.f32 %v7433, %v7481
      %7483 = vmatmul.bf16.gmra.mxu0 %v7242
      %v7484 = vpop.f32.mrf.mxu0
      %v7485 = vadd.f32 %v7436, %v7484
      %v7486 = vpop.f32.mrf.mxu0
      %v7487 = vadd.f32 %v7438, %v7486
      %7488 = vdwg.mxu0
      %v7489 = vmax.f32 %v7450, 0.0
      %v7490 = vmax.f32 %v7452, 0.0
      %v7491 = vmax.f32 %v7455, 0.0
      %v7492 = vmax.f32 %v7457, 0.0
      %v7493 = vmax.f32 %v7460, 0.0
      %v7494 = vmax.f32 %v7462, 0.0
      %v7495 = vmax.f32 %v7465, 0.0
      %v7496 = vmax.f32 %v7467, 0.0
      %v7497 = vmax.f32 %v7470, 0.0
      %v7498 = vmax.f32 %v7472, 0.0
      %v7499 = vmax.f32 %v7475, 0.0
      %v7500 = vmax.f32 %v7477, 0.0
      %v7501 = vmax.f32 %v7480, 0.0
      %v7502 = vmax.f32 %v7482, 0.0
      %v7503 = vmax.f32 %v7485, 0.0
      %v7504 = vmax.f32 %v7487, 0.0
      %s7505 = scalar_lea.vmem [#allocation5], 16
      %7506 = vst [vmem:[%s7505 + $0x1] sm:$0xff] %v7489
      %7507 = vst [vmem:[%s7505 + $0x11] sm:$0xff] %v7490
      %7508 = vst [vmem:[%s7505 + $0x21] sm:$0xff] %v7491
      %7509 = vst [vmem:[%s7505 + $0x31] sm:$0xff] %v7492
      %7510 = vst [vmem:[%s7505 + $0x41] sm:$0xff] %v7493
      %7511 = vst [vmem:[%s7505 + $0x51] sm:$0xff] %v7494
      %7512 = vst [vmem:[%s7505 + $0x61] sm:$0xff] %v7495
      %7513 = vst [vmem:[%s7505 + $0x71] sm:$0xff] %v7496
      %7514 = vst [vmem:[%s7505 + $0xa1] sm:$0xff] %v7497
      %7515 = vst [vmem:[%s7505 + $0xb1] sm:$0xff] %v7498
      %7516 = vst [vmem:[%s7505 + $0xc1] sm:$0xff] %v7499
      %7517 = vst [vmem:[%s7505 + $0xd1] sm:$0xff] %v7500
      %7518 = vst [vmem:[%s7505 + $0xe1] sm:$0xff] %v7501
      %7519 = vst [vmem:[%s7505 + $0xf1] sm:$0xff] %v7502
      %7520 = vst [vmem:[%s7505 + $0x101] sm:$0xff] %v7503
      %7521 = vst [vmem:[%s7505 + $0x111] sm:$0xff] %v7504
      %v7522 = vld [vmem:[#allocation5] sm:$0xff]
      %v7523 = vld [vmem:[#allocation5 + $0x10] sm:$0xff]
      %v7524 = vld [vmem:[#allocation5 + $0x20] sm:$0xff]
      %v7525 = vld [vmem:[#allocation5 + $0x30] sm:$0xff]
      %v7526 = vld [vmem:[#allocation5 + $0x40] sm:$0xff]
      %v7527 = vld [vmem:[#allocation5 + $0x50] sm:$0xff]
      %v7528 = vld [vmem:[#allocation5 + $0x60] sm:$0xff]
      %v7529 = vld [vmem:[#allocation5 + $0x70] sm:$0xff]
      %v7530 = vpack.c.bf16 %v7522, %v7522
      %v7531 = vpack.c.bf16 %v7523, %v7523
      %v7532 = vpack.c.bf16 %v7524, %v7524
      %v7533 = vpack.c.bf16 %v7525, %v7525
      %v7534 = vpack.c.bf16 %v7526, %v7526
      %v7535 = vpack.c.bf16 %v7527, %v7527
      %v7536 = vpack.c.bf16 %v7528, %v7528
      %v7537 = vpack.c.bf16 %v7529, %v7529
      %v7538 = vld [vmem:[#allocation5 + $0x1] sm:$0xff]
      %v7539 = vld [vmem:[#allocation5 + $0x11] sm:$0xff]
      %v7540 = vld [vmem:[#allocation5 + $0x21] sm:$0xff]
      %v7541 = vld [vmem:[#allocation5 + $0x31] sm:$0xff]
      %v7542 = vld [vmem:[#allocation5 + $0x41] sm:$0xff]
      %v7543 = vld [vmem:[#allocation5 + $0x51] sm:$0xff]
      %v7544 = vld [vmem:[#allocation5 + $0x61] sm:$0xff]
      %v7545 = vld [vmem:[#allocation5 + $0x71] sm:$0xff]
      %v7546 = vpack.c.bf16 %v7538, %v7538
      %v7547 = vpack.c.bf16 %v7539, %v7539
      %v7548 = vpack.c.bf16 %v7540, %v7540
      %v7549 = vpack.c.bf16 %v7541, %v7541
      %v7550 = vpack.c.bf16 %v7542, %v7542
      %v7551 = vpack.c.bf16 %v7543, %v7543
      %v7552 = vpack.c.bf16 %v7544, %v7544
      %v7553 = vpack.c.bf16 %v7545, %v7545
      %v7554 = vld [vmem:[#allocation5 + $0x2] sm:$0xff]
      %v7555 = vld [vmem:[#allocation5 + $0x12] sm:$0xff]
      %v7556 = vld [vmem:[#allocation5 + $0x22] sm:$0xff]
      %v7557 = vld [vmem:[#allocation5 + $0x32] sm:$0xff]
      %v7558 = vld [vmem:[#allocation5 + $0x42] sm:$0xff]
      %v7559 = vld [vmem:[#allocation5 + $0x52] sm:$0xff]
      %v7560 = vld [vmem:[#allocation5 + $0x62] sm:$0xff]
      %v7561 = vld [vmem:[#allocation5 + $0x72] sm:$0xff]
      %v7562 = vpack.c.bf16 %v7554, %v7554
      %v7563 = vpack.c.bf16 %v7555, %v7555
      %v7564 = vpack.c.bf16 %v7556, %v7556
      %v7565 = vpack.c.bf16 %v7557, %v7557
      %v7566 = vpack.c.bf16 %v7558, %v7558
      %v7567 = vpack.c.bf16 %v7559, %v7559
      %v7568 = vpack.c.bf16 %v7560, %v7560
      %v7569 = vpack.c.bf16 %v7561, %v7561
      %v7570 = vld [vmem:[%s7505] sm:$0xff]
      %v7571 = vld [vmem:[%s7505 + $0x10] sm:$0xff]
      %v7572 = vld [vmem:[%s7505 + $0x20] sm:$0xff]
      %v7573 = vld [vmem:[%s7505 + $0x30] sm:$0xff]
      %v7574 = vld [vmem:[%s7505 + $0x40] sm:$0xff]
      %v7575 = vld [vmem:[%s7505 + $0x50] sm:$0xff]
      %v7576 = vld [vmem:[%s7505 + $0x60] sm:$0xff]
      %v7577 = vld [vmem:[%s7505 + $0x70] sm:$0xff]
      %v7578 = vpack.c.bf16 %v7570, %v7570
      %v7579 = vpack.c.bf16 %v7571, %v7571
      %v7580 = vpack.c.bf16 %v7572, %v7572
      %v7581 = vpack.c.bf16 %v7573, %v7573
      %v7582 = vpack.c.bf16 %v7574, %v7574
      %v7583 = vpack.c.bf16 %v7575, %v7575
      %v7584 = vpack.c.bf16 %v7576, %v7576
      %v7585 = vpack.c.bf16 %v7577, %v7577
      %v7586 = vld [vmem:[%s7505 + $0x1] sm:$0xff]
      %v7587 = vld [vmem:[%s7505 + $0x11] sm:$0xff]
      %v7588 = vld [vmem:[%s7505 + $0x21] sm:$0xff]
      %v7589 = vld [vmem:[%s7505 + $0x31] sm:$0xff]
      %v7590 = vld [vmem:[%s7505 + $0x41] sm:$0xff]
      %v7591 = vld [vmem:[%s7505 + $0x51] sm:$0xff]
      %v7592 = vld [vmem:[%s7505 + $0x61] sm:$0xff]
      %v7593 = vld [vmem:[%s7505 + $0x71] sm:$0xff]
      %v7594 = vpack.c.bf16 %v7586, %v7586
      %v7595 = vpack.c.bf16 %v7587, %v7587
      %v7596 = vpack.c.bf16 %v7588, %v7588
      %v7597 = vpack.c.bf16 %v7589, %v7589
      %v7598 = vpack.c.bf16 %v7590, %v7590
      %v7599 = vpack.c.bf16 %v7591, %v7591
      %v7600 = vpack.c.bf16 %v7592, %v7592
      %v7601 = vpack.c.bf16 %v7593, %v7593
      %v7602 = vld [vmem:[%s7505 + $0x2] sm:$0xff]
      %v7603 = vld [vmem:[%s7505 + $0x12] sm:$0xff]
      %v7604 = vld [vmem:[%s7505 + $0x22] sm:$0xff]
      %v7605 = vld [vmem:[%s7505 + $0x32] sm:$0xff]
      %v7606 = vld [vmem:[%s7505 + $0x42] sm:$0xff]
      %v7607 = vld [vmem:[%s7505 + $0x52] sm:$0xff]
      %v7608 = vld [vmem:[%s7505 + $0x62] sm:$0xff]
      %v7609 = vld [vmem:[%s7505 + $0x72] sm:$0xff]
      %v7610 = vpack.c.bf16 %v7602, %v7602
      %v7611 = vpack.c.bf16 %v7603, %v7603
      %v7612 = vpack.c.bf16 %v7604, %v7604
      %v7613 = vpack.c.bf16 %v7605, %v7605
      %v7614 = vpack.c.bf16 %v7606, %v7606
      %v7615 = vpack.c.bf16 %v7607, %v7607
      %v7616 = vpack.c.bf16 %v7608, %v7608
      %v7617 = vpack.c.bf16 %v7609, %v7609
      %s7618 = scalar_lea.vmem [#allocation5], 32
      %v7619 = vld [vmem:[%s7618] sm:$0xff]
      %v7620 = vld [vmem:[%s7618 + $0x10] sm:$0xff]
      %v7621 = vld [vmem:[%s7618 + $0x20] sm:$0xff]
      %v7622 = vld [vmem:[%s7618 + $0x30] sm:$0xff]
      %v7623 = vld [vmem:[%s7618 + $0x40] sm:$0xff]
      %v7624 = vld [vmem:[%s7618 + $0x50] sm:$0xff]
      %v7625 = vld [vmem:[%s7618 + $0x60] sm:$0xff]
      %v7626 = vld [vmem:[%s7618 + $0x70] sm:$0xff]
      %v7627 = vpack.c.bf16 %v7619, %v7619
      %v7628 = vpack.c.bf16 %v7620, %v7620
      %v7629 = vpack.c.bf16 %v7621, %v7621
      %v7630 = vpack.c.bf16 %v7622, %v7622
      %v7631 = vpack.c.bf16 %v7623, %v7623
      %v7632 = vpack.c.bf16 %v7624, %v7624
      %v7633 = vpack.c.bf16 %v7625, %v7625
      %v7634 = vpack.c.bf16 %v7626, %v7626
      %v7635 = vld [vmem:[%s7618 + $0x1] sm:$0xff]
      %v7636 = vld [vmem:[%s7618 + $0x11] sm:$0xff]
      %v7637 = vld [vmem:[%s7618 + $0x21] sm:$0xff]
      %v7638 = vld [vmem:[%s7618 + $0x31] sm:$0xff]
      %v7639 = vld [vmem:[%s7618 + $0x41] sm:$0xff]
      %v7640 = vld [vmem:[%s7618 + $0x51] sm:$0xff]
      %v7641 = vld [vmem:[%s7618 + $0x61] sm:$0xff]
      %v7642 = vld [vmem:[%s7618 + $0x71] sm:$0xff]
      %v7643 = vpack.c.bf16 %v7635, %v7635
      %v7644 = vpack.c.bf16 %v7636, %v7636
      %v7645 = vpack.c.bf16 %v7637, %v7637
      %v7646 = vpack.c.bf16 %v7638, %v7638
      %v7647 = vpack.c.bf16 %v7639, %v7639
      %v7648 = vpack.c.bf16 %v7640, %v7640
      %v7649 = vpack.c.bf16 %v7641, %v7641
      %v7650 = vpack.c.bf16 %v7642, %v7642
      %v7651 = vld [vmem:[%s7618 + $0x2] sm:$0xff]
      %v7652 = vld [vmem:[%s7618 + $0x12] sm:$0xff]
      %v7653 = vld [vmem:[%s7618 + $0x22] sm:$0xff]
      %v7654 = vld [vmem:[%s7618 + $0x32] sm:$0xff]
      %v7655 = vld [vmem:[%s7618 + $0x42] sm:$0xff]
      %v7656 = vld [vmem:[%s7618 + $0x52] sm:$0xff]
      %v7657 = vld [vmem:[%s7618 + $0x62] sm:$0xff]
      %v7658 = vld [vmem:[%s7618 + $0x72] sm:$0xff]
      %v7659 = vpack.c.bf16 %v7651, %v7651
      %v7660 = vpack.c.bf16 %v7652, %v7652
      %v7661 = vpack.c.bf16 %v7653, %v7653
      %v7662 = vpack.c.bf16 %v7654, %v7654
      %v7663 = vpack.c.bf16 %v7655, %v7655
      %v7664 = vpack.c.bf16 %v7656, %v7656
      %v7665 = vpack.c.bf16 %v7657, %v7657
      %v7666 = vpack.c.bf16 %v7658, %v7658
      %v7675 = vunpack.c.l.b16 %v7530
      %v7676 = vunpack.c.l.b16 %v7531
      %v7677 = vunpack.c.l.b16 %v7532
      %v7678 = vunpack.c.l.b16 %v7533
      %v7679 = vunpack.c.l.b16 %v7534
      %v7680 = vunpack.c.l.b16 %v7535
      %v7681 = vunpack.c.l.b16 %v7536
      %v7682 = vunpack.c.l.b16 %v7537
      %v7683 = vpack.c.b16 %v7676, %v7675
      %v7684 = vpack.c.b16 %v7678, %v7677
      %v7685 = vpack.c.b16 %v7680, %v7679
      %v7686 = vpack.c.b16 %v7682, %v7681
      %v7699 = vunpack.c.l.b16 %v7546
      %v7700 = vunpack.c.l.b16 %v7547
      %v7701 = vunpack.c.l.b16 %v7548
      %v7702 = vunpack.c.l.b16 %v7549
      %v7703 = vunpack.c.l.b16 %v7550
      %v7704 = vunpack.c.l.b16 %v7551
      %v7705 = vunpack.c.l.b16 %v7552
      %v7706 = vunpack.c.l.b16 %v7553
      %v7707 = vpack.c.b16 %v7700, %v7699
      %v7708 = vpack.c.b16 %v7702, %v7701
      %v7709 = vpack.c.b16 %v7704, %v7703
      %v7710 = vpack.c.b16 %v7706, %v7705
      %v7723 = vunpack.c.l.b16 %v7562
      %v7724 = vunpack.c.l.b16 %v7563
      %v7725 = vunpack.c.l.b16 %v7564
      %v7726 = vunpack.c.l.b16 %v7565
      %v7727 = vunpack.c.l.b16 %v7566
      %v7728 = vunpack.c.l.b16 %v7567
      %v7729 = vunpack.c.l.b16 %v7568
      %v7730 = vunpack.c.l.b16 %v7569
      %v7731 = vpack.c.b16 %v7724, %v7723
      %v7732 = vpack.c.b16 %v7726, %v7725
      %v7733 = vpack.c.b16 %v7728, %v7727
      %v7734 = vpack.c.b16 %v7730, %v7729
      %v7747 = vunpack.c.l.b16 %v7578
      %v7748 = vunpack.c.l.b16 %v7579
      %v7749 = vunpack.c.l.b16 %v7580
      %v7750 = vunpack.c.l.b16 %v7581
      %v7751 = vunpack.c.l.b16 %v7582
      %v7752 = vunpack.c.l.b16 %v7583
      %v7753 = vunpack.c.l.b16 %v7584
      %v7754 = vunpack.c.l.b16 %v7585
      %v7755 = vpack.c.b16 %v7748, %v7747
      %v7756 = vpack.c.b16 %v7750, %v7749
      %v7757 = vpack.c.b16 %v7752, %v7751
      %v7758 = vpack.c.b16 %v7754, %v7753
      %v7771 = vunpack.c.l.b16 %v7594
      %v7772 = vunpack.c.l.b16 %v7595
      %v7773 = vunpack.c.l.b16 %v7596
      %v7774 = vunpack.c.l.b16 %v7597
      %v7775 = vunpack.c.l.b16 %v7598
      %v7776 = vunpack.c.l.b16 %v7599
      %v7777 = vunpack.c.l.b16 %v7600
      %v7778 = vunpack.c.l.b16 %v7601
      %v7779 = vpack.c.b16 %v7772, %v7771
      %v7780 = vpack.c.b16 %v7774, %v7773
      %v7781 = vpack.c.b16 %v7776, %v7775
      %v7782 = vpack.c.b16 %v7778, %v7777
      %v7795 = vunpack.c.l.b16 %v7610
      %v7796 = vunpack.c.l.b16 %v7611
      %v7797 = vunpack.c.l.b16 %v7612
      %v7798 = vunpack.c.l.b16 %v7613
      %v7799 = vunpack.c.l.b16 %v7614
      %v7800 = vunpack.c.l.b16 %v7615
      %v7801 = vunpack.c.l.b16 %v7616
      %v7802 = vunpack.c.l.b16 %v7617
      %v7803 = vpack.c.b16 %v7796, %v7795
      %v7804 = vpack.c.b16 %v7798, %v7797
      %v7805 = vpack.c.b16 %v7800, %v7799
      %v7806 = vpack.c.b16 %v7802, %v7801
      %v7819 = vunpack.c.l.b16 %v7627
      %v7820 = vunpack.c.l.b16 %v7628
      %v7821 = vunpack.c.l.b16 %v7629
      %v7822 = vunpack.c.l.b16 %v7630
      %v7823 = vunpack.c.l.b16 %v7631
      %v7824 = vunpack.c.l.b16 %v7632
      %v7825 = vunpack.c.l.b16 %v7633
      %v7826 = vunpack.c.l.b16 %v7634
      %v7827 = vpack.c.b16 %v7820, %v7819
      %v7828 = vpack.c.b16 %v7822, %v7821
      %v7829 = vpack.c.b16 %v7824, %v7823
      %v7830 = vpack.c.b16 %v7826, %v7825
      %v7843 = vunpack.c.l.b16 %v7643
      %v7844 = vunpack.c.l.b16 %v7644
      %v7845 = vunpack.c.l.b16 %v7645
      %v7846 = vunpack.c.l.b16 %v7646
      %v7847 = vunpack.c.l.b16 %v7647
      %v7848 = vunpack.c.l.b16 %v7648
      %v7849 = vunpack.c.l.b16 %v7649
      %v7850 = vunpack.c.l.b16 %v7650
      %v7851 = vpack.c.b16 %v7844, %v7843
      %v7852 = vpack.c.b16 %v7846, %v7845
      %v7853 = vpack.c.b16 %v7848, %v7847
      %v7854 = vpack.c.b16 %v7850, %v7849
      %v7867 = vunpack.c.l.b16 %v7659
      %v7868 = vunpack.c.l.b16 %v7660
      %v7869 = vunpack.c.l.b16 %v7661
      %v7870 = vunpack.c.l.b16 %v7662
      %v7871 = vunpack.c.l.b16 %v7663
      %v7872 = vunpack.c.l.b16 %v7664
      %v7873 = vunpack.c.l.b16 %v7665
      %v7874 = vunpack.c.l.b16 %v7666
      %v7875 = vpack.c.b16 %v7868, %v7867
      %v7876 = vpack.c.b16 %v7870, %v7869
      %v7877 = vpack.c.b16 %v7872, %v7871
      %v7878 = vpack.c.b16 %v7874, %v7873
      %s7883 = scalar_lea.vmem [#allocation5], 160
      %v7884 = vld [vmem:[%s7883] sm:$0xff]
      %v7885 = vld [vmem:[%s7883 + $0x10] sm:$0xff]
      %v7886 = vld [vmem:[%s7883 + $0x20] sm:$0xff]
      %v7887 = vld [vmem:[%s7883 + $0x30] sm:$0xff]
      %v7888 = vld [vmem:[%s7883 + $0x40] sm:$0xff]
      %v7889 = vld [vmem:[%s7883 + $0x50] sm:$0xff]
      %v7890 = vld [vmem:[%s7883 + $0x60] sm:$0xff]
      %v7891 = vld [vmem:[%s7883 + $0x70] sm:$0xff]
      %v7892 = vpack.c.bf16 %v7884, %v7884
      %v7893 = vpack.c.bf16 %v7885, %v7885
      %v7894 = vpack.c.bf16 %v7886, %v7886
      %v7895 = vpack.c.bf16 %v7887, %v7887
      %v7896 = vpack.c.bf16 %v7888, %v7888
      %v7897 = vpack.c.bf16 %v7889, %v7889
      %v7898 = vpack.c.bf16 %v7890, %v7890
      %v7899 = vpack.c.bf16 %v7891, %v7891
      %v7900 = vld [vmem:[%s7883 + $0x1] sm:$0xff]
      %v7901 = vld [vmem:[%s7883 + $0x11] sm:$0xff]
      %v7902 = vld [vmem:[%s7883 + $0x21] sm:$0xff]
      %v7903 = vld [vmem:[%s7883 + $0x31] sm:$0xff]
      %v7904 = vld [vmem:[%s7883 + $0x41] sm:$0xff]
      %v7905 = vld [vmem:[%s7883 + $0x51] sm:$0xff]
      %v7906 = vld [vmem:[%s7883 + $0x61] sm:$0xff]
      %v7907 = vld [vmem:[%s7883 + $0x71] sm:$0xff]
      %v7908 = vpack.c.bf16 %v7900, %v7900
      %v7909 = vpack.c.bf16 %v7901, %v7901
      %v7910 = vpack.c.bf16 %v7902, %v7902
      %v7911 = vpack.c.bf16 %v7903, %v7903
      %v7912 = vpack.c.bf16 %v7904, %v7904
      %v7913 = vpack.c.bf16 %v7905, %v7905
      %v7914 = vpack.c.bf16 %v7906, %v7906
      %v7915 = vpack.c.bf16 %v7907, %v7907
      %v7916 = vld [vmem:[%s7883 + $0x2] sm:$0xff]
      %v7917 = vld [vmem:[%s7883 + $0x12] sm:$0xff]
      %v7918 = vld [vmem:[%s7883 + $0x22] sm:$0xff]
      %v7919 = vld [vmem:[%s7883 + $0x32] sm:$0xff]
      %v7920 = vld [vmem:[%s7883 + $0x42] sm:$0xff]
      %v7921 = vld [vmem:[%s7883 + $0x52] sm:$0xff]
      %v7922 = vld [vmem:[%s7883 + $0x62] sm:$0xff]
      %v7923 = vld [vmem:[%s7883 + $0x72] sm:$0xff]
      %v7924 = vpack.c.bf16 %v7916, %v7916
      %v7925 = vpack.c.bf16 %v7917, %v7917
      %v7926 = vpack.c.bf16 %v7918, %v7918
      %v7927 = vpack.c.bf16 %v7919, %v7919
      %v7928 = vpack.c.bf16 %v7920, %v7920
      %v7929 = vpack.c.bf16 %v7921, %v7921
      %v7930 = vpack.c.bf16 %v7922, %v7922
      %v7931 = vpack.c.bf16 %v7923, %v7923
      %s7932 = scalar_lea.vmem [#allocation5], 176
      %v7933 = vld [vmem:[%s7932] sm:$0xff]
      %v7934 = vld [vmem:[%s7932 + $0x10] sm:$0xff]
      %v7935 = vld [vmem:[%s7932 + $0x20] sm:$0xff]
      %v7936 = vld [vmem:[%s7932 + $0x30] sm:$0xff]
      %v7937 = vld [vmem:[%s7932 + $0x40] sm:$0xff]
      %v7938 = vld [vmem:[%s7932 + $0x50] sm:$0xff]
      %v7939 = vld [vmem:[%s7932 + $0x60] sm:$0xff]
      %v7940 = vld [vmem:[%s7932 + $0x70] sm:$0xff]
      %v7941 = vpack.c.bf16 %v7933, %v7933
      %v7942 = vpack.c.bf16 %v7934, %v7934
      %v7943 = vpack.c.bf16 %v7935, %v7935
      %v7944 = vpack.c.bf16 %v7936, %v7936
      %v7945 = vpack.c.bf16 %v7937, %v7937
      %v7946 = vpack.c.bf16 %v7938, %v7938
      %v7947 = vpack.c.bf16 %v7939, %v7939
      %v7948 = vpack.c.bf16 %v7940, %v7940
      %v7949 = vld [vmem:[%s7932 + $0x1] sm:$0xff]
      %v7950 = vld [vmem:[%s7932 + $0x11] sm:$0xff]
      %v7951 = vld [vmem:[%s7932 + $0x21] sm:$0xff]
      %v7952 = vld [vmem:[%s7932 + $0x31] sm:$0xff]
      %v7953 = vld [vmem:[%s7932 + $0x41] sm:$0xff]
      %v7954 = vld [vmem:[%s7932 + $0x51] sm:$0xff]
      %v7955 = vld [vmem:[%s7932 + $0x61] sm:$0xff]
      %v7956 = vld [vmem:[%s7932 + $0x71] sm:$0xff]
      %v7957 = vpack.c.bf16 %v7949, %v7949
      %v7958 = vpack.c.bf16 %v7950, %v7950
      %v7959 = vpack.c.bf16 %v7951, %v7951
      %v7960 = vpack.c.bf16 %v7952, %v7952
      %v7961 = vpack.c.bf16 %v7953, %v7953
      %v7962 = vpack.c.bf16 %v7954, %v7954
      %v7963 = vpack.c.bf16 %v7955, %v7955
      %v7964 = vpack.c.bf16 %v7956, %v7956
      %v7965 = vld [vmem:[%s7932 + $0x2] sm:$0xff]
      %v7966 = vld [vmem:[%s7932 + $0x12] sm:$0xff]
      %v7967 = vld [vmem:[%s7932 + $0x22] sm:$0xff]
      %v7968 = vld [vmem:[%s7932 + $0x32] sm:$0xff]
      %v7969 = vld [vmem:[%s7932 + $0x42] sm:$0xff]
      %v7970 = vld [vmem:[%s7932 + $0x52] sm:$0xff]
      %v7971 = vld [vmem:[%s7932 + $0x62] sm:$0xff]
      %v7972 = vld [vmem:[%s7932 + $0x72] sm:$0xff]
      %v7973 = vpack.c.bf16 %v7965, %v7965
      %v7974 = vpack.c.bf16 %v7966, %v7966
      %v7975 = vpack.c.bf16 %v7967, %v7967
      %v7976 = vpack.c.bf16 %v7968, %v7968
      %v7977 = vpack.c.bf16 %v7969, %v7969
      %v7978 = vpack.c.bf16 %v7970, %v7970
      %v7979 = vpack.c.bf16 %v7971, %v7971
      %v7980 = vpack.c.bf16 %v7972, %v7972
      %s7981 = scalar_lea.vmem [#allocation5], 192
      %v7982 = vld [vmem:[%s7981] sm:$0xff]
      %v7983 = vld [vmem:[%s7981 + $0x10] sm:$0xff]
      %v7984 = vld [vmem:[%s7981 + $0x20] sm:$0xff]
      %v7985 = vld [vmem:[%s7981 + $0x30] sm:$0xff]
      %v7986 = vld [vmem:[%s7981 + $0x40] sm:$0xff]
      %v7987 = vld [vmem:[%s7981 + $0x50] sm:$0xff]
      %v7988 = vld [vmem:[%s7981 + $0x60] sm:$0xff]
      %v7989 = vld [vmem:[%s7981 + $0x70] sm:$0xff]
      %v7990 = vpack.c.bf16 %v7982, %v7982
      %v7991 = vpack.c.bf16 %v7983, %v7983
      %v7992 = vpack.c.bf16 %v7984, %v7984
      %v7993 = vpack.c.bf16 %v7985, %v7985
      %v7994 = vpack.c.bf16 %v7986, %v7986
      %v7995 = vpack.c.bf16 %v7987, %v7987
      %v7996 = vpack.c.bf16 %v7988, %v7988
      %v7997 = vpack.c.bf16 %v7989, %v7989
      %v7998 = vld [vmem:[%s7981 + $0x1] sm:$0xff]
      %v7999 = vld [vmem:[%s7981 + $0x11] sm:$0xff]
      %v8000 = vld [vmem:[%s7981 + $0x21] sm:$0xff]
      %v8001 = vld [vmem:[%s7981 + $0x31] sm:$0xff]
      %v8002 = vld [vmem:[%s7981 + $0x41] sm:$0xff]
      %v8003 = vld [vmem:[%s7981 + $0x51] sm:$0xff]
      %v8004 = vld [vmem:[%s7981 + $0x61] sm:$0xff]
      %v8005 = vld [vmem:[%s7981 + $0x71] sm:$0xff]
      %v8006 = vpack.c.bf16 %v7998, %v7998
      %v8007 = vpack.c.bf16 %v7999, %v7999
      %v8008 = vpack.c.bf16 %v8000, %v8000
      %v8009 = vpack.c.bf16 %v8001, %v8001
      %v8010 = vpack.c.bf16 %v8002, %v8002
      %v8011 = vpack.c.bf16 %v8003, %v8003
      %v8012 = vpack.c.bf16 %v8004, %v8004
      %v8013 = vpack.c.bf16 %v8005, %v8005
      %v8014 = vld [vmem:[%s7981 + $0x2] sm:$0xff]
      %v8015 = vld [vmem:[%s7981 + $0x12] sm:$0xff]
      %v8016 = vld [vmem:[%s7981 + $0x22] sm:$0xff]
      %v8017 = vld [vmem:[%s7981 + $0x32] sm:$0xff]
      %v8018 = vld [vmem:[%s7981 + $0x42] sm:$0xff]
      %v8019 = vld [vmem:[%s7981 + $0x52] sm:$0xff]
      %v8020 = vld [vmem:[%s7981 + $0x62] sm:$0xff]
      %v8021 = vld [vmem:[%s7981 + $0x72] sm:$0xff]
      %v8022 = vpack.c.bf16 %v8014, %v8014
      %v8023 = vpack.c.bf16 %v8015, %v8015
      %v8024 = vpack.c.bf16 %v8016, %v8016
      %v8025 = vpack.c.bf16 %v8017, %v8017
      %v8026 = vpack.c.bf16 %v8018, %v8018
      %v8027 = vpack.c.bf16 %v8019, %v8019
      %v8028 = vpack.c.bf16 %v8020, %v8020
      %v8029 = vpack.c.bf16 %v8021, %v8021
      %v8038 = vunpack.c.l.b16 %v7892
      %v8039 = vunpack.c.l.b16 %v7893
      %v8040 = vunpack.c.l.b16 %v7894
      %v8041 = vunpack.c.l.b16 %v7895
      %v8042 = vunpack.c.l.b16 %v7896
      %v8043 = vunpack.c.l.b16 %v7897
      %v8044 = vunpack.c.l.b16 %v7898
      %v8045 = vunpack.c.l.b16 %v7899
      %v8046 = vpack.c.b16 %v8039, %v8038
      %v8047 = vpack.c.b16 %v8041, %v8040
      %v8048 = vpack.c.b16 %v8043, %v8042
      %v8049 = vpack.c.b16 %v8045, %v8044
      %v8062 = vunpack.c.l.b16 %v7908
      %v8063 = vunpack.c.l.b16 %v7909
      %v8064 = vunpack.c.l.b16 %v7910
      %v8065 = vunpack.c.l.b16 %v7911
      %v8066 = vunpack.c.l.b16 %v7912
      %v8067 = vunpack.c.l.b16 %v7913
      %v8068 = vunpack.c.l.b16 %v7914
      %v8069 = vunpack.c.l.b16 %v7915
      %v8070 = vpack.c.b16 %v8063, %v8062
      %v8071 = vpack.c.b16 %v8065, %v8064
      %v8072 = vpack.c.b16 %v8067, %v8066
      %v8073 = vpack.c.b16 %v8069, %v8068
      %v8086 = vunpack.c.l.b16 %v7924
      %v8087 = vunpack.c.l.b16 %v7925
      %v8088 = vunpack.c.l.b16 %v7926
      %v8089 = vunpack.c.l.b16 %v7927
      %v8090 = vunpack.c.l.b16 %v7928
      %v8091 = vunpack.c.l.b16 %v7929
      %v8092 = vunpack.c.l.b16 %v7930
      %v8093 = vunpack.c.l.b16 %v7931
      %v8094 = vpack.c.b16 %v8087, %v8086
      %v8095 = vpack.c.b16 %v8089, %v8088
      %v8096 = vpack.c.b16 %v8091, %v8090
      %v8097 = vpack.c.b16 %v8093, %v8092
      %v8110 = vunpack.c.l.b16 %v7941
      %v8111 = vunpack.c.l.b16 %v7942
      %v8112 = vunpack.c.l.b16 %v7943
      %v8113 = vunpack.c.l.b16 %v7944
      %v8114 = vunpack.c.l.b16 %v7945
      %v8115 = vunpack.c.l.b16 %v7946
      %v8116 = vunpack.c.l.b16 %v7947
      %v8117 = vunpack.c.l.b16 %v7948
      %v8118 = vpack.c.b16 %v8111, %v8110
      %v8119 = vpack.c.b16 %v8113, %v8112
      %v8120 = vpack.c.b16 %v8115, %v8114
      %v8121 = vpack.c.b16 %v8117, %v8116
      %v8134 = vunpack.c.l.b16 %v7957
      %v8135 = vunpack.c.l.b16 %v7958
      %v8136 = vunpack.c.l.b16 %v7959
      %v8137 = vunpack.c.l.b16 %v7960
      %v8138 = vunpack.c.l.b16 %v7961
      %v8139 = vunpack.c.l.b16 %v7962
      %v8140 = vunpack.c.l.b16 %v7963
      %v8141 = vunpack.c.l.b16 %v7964
      %v8142 = vpack.c.b16 %v8135, %v8134
      %v8143 = vpack.c.b16 %v8137, %v8136
      %v8144 = vpack.c.b16 %v8139, %v8138
      %v8145 = vpack.c.b16 %v8141, %v8140
      %v8158 = vunpack.c.l.b16 %v7973
      %v8159 = vunpack.c.l.b16 %v7974
      %v8160 = vunpack.c.l.b16 %v7975
      %v8161 = vunpack.c.l.b16 %v7976
      %v8162 = vunpack.c.l.b16 %v7977
      %v8163 = vunpack.c.l.b16 %v7978
      %v8164 = vunpack.c.l.b16 %v7979
      %v8165 = vunpack.c.l.b16 %v7980
      %v8166 = vpack.c.b16 %v8159, %v8158
      %v8167 = vpack.c.b16 %v8161, %v8160
      %v8168 = vpack.c.b16 %v8163, %v8162
      %v8169 = vpack.c.b16 %v8165, %v8164
      %v8182 = vunpack.c.l.b16 %v7990
      %v8183 = vunpack.c.l.b16 %v7991
      %v8184 = vunpack.c.l.b16 %v7992
      %v8185 = vunpack.c.l.b16 %v7993
      %v8186 = vunpack.c.l.b16 %v7994
      %v8187 = vunpack.c.l.b16 %v7995
      %v8188 = vunpack.c.l.b16 %v7996
      %v8189 = vunpack.c.l.b16 %v7997
      %v8190 = vpack.c.b16 %v8183, %v8182
      %v8191 = vpack.c.b16 %v8185, %v8184
      %v8192 = vpack.c.b16 %v8187, %v8186
      %v8193 = vpack.c.b16 %v8189, %v8188
      %v8206 = vunpack.c.l.b16 %v8006
      %v8207 = vunpack.c.l.b16 %v8007
      %v8208 = vunpack.c.l.b16 %v8008
      %v8209 = vunpack.c.l.b16 %v8009
      %v8210 = vunpack.c.l.b16 %v8010
      %v8211 = vunpack.c.l.b16 %v8011
      %v8212 = vunpack.c.l.b16 %v8012
      %v8213 = vunpack.c.l.b16 %v8013
      %v8214 = vpack.c.b16 %v8207, %v8206
      %v8215 = vpack.c.b16 %v8209, %v8208
      %v8216 = vpack.c.b16 %v8211, %v8210
      %v8217 = vpack.c.b16 %v8213, %v8212
      %v8230 = vunpack.c.l.b16 %v8022
      %v8231 = vunpack.c.l.b16 %v8023
      %v8232 = vunpack.c.l.b16 %v8024
      %v8233 = vunpack.c.l.b16 %v8025
      %v8234 = vunpack.c.l.b16 %v8026
      %v8235 = vunpack.c.l.b16 %v8027
      %v8236 = vunpack.c.l.b16 %v8028
      %v8237 = vunpack.c.l.b16 %v8029
      %v8238 = vpack.c.b16 %v8231, %v8230
      %v8239 = vpack.c.b16 %v8233, %v8232
      %v8240 = vpack.c.b16 %v8235, %v8234
      %v8241 = vpack.c.b16 %v8237, %v8236
      %v8246 = vld [vmem:[%s7] sm:$0xf]
      %v8247 = vld [vmem:[%s7 + $0x4] sm:$0xf]
      %v8248 = vld [vmem:[%s7 + $0x8] sm:$0xf]
      %v8249 = vld [vmem:[%s7 + $0xc] sm:$0xf]
      %v8250 = vld [vmem:[%s7 + $0x10] sm:$0xf]
      %v8251 = vld [vmem:[%s7 + $0x14] sm:$0xf]
      %v8252 = vld [vmem:[%s7 + $0x18] sm:$0xf]
      %v8253 = vld [vmem:[%s7 + $0x1c] sm:$0xf]
      %v8254 = vld [vmem:[%s7 + $0x20] sm:$0xf]
      %v8255 = vld [vmem:[%s7 + $0x24] sm:$0xf]
      %v8256 = vld [vmem:[%s7 + $0x28] sm:$0xf]
      %v8257 = vld [vmem:[%s7 + $0x2c] sm:$0xf]
      %v8258 = vld [vmem:[%s7 + $0x30] sm:$0xf]
      %v8259 = vld [vmem:[%s7 + $0x34] sm:$0xf]
      %v8260 = vld [vmem:[%s7 + $0x38] sm:$0xf]
      %v8261 = vld [vmem:[%s7 + $0x3c] sm:$0xf]
      %v8262 = vld [vmem:[%s7 + $0x40] sm:$0xf]
      %v8263 = vld [vmem:[%s7 + $0x44] sm:$0xf]
      %v8264 = vld [vmem:[%s7 + $0x48] sm:$0xf]
      %v8265 = vld [vmem:[%s7 + $0x4c] sm:$0xf]
      %v8266 = vld [vmem:[%s7 + $0x50] sm:$0xf]
      %v8267 = vld [vmem:[%s7 + $0x54] sm:$0xf]
      %v8268 = vld [vmem:[%s7 + $0x58] sm:$0xf]
      %v8269 = vld [vmem:[%s7 + $0x5c] sm:$0xf]
      %v8270 = vld [vmem:[%s7 + $0x60] sm:$0xf]
      %v8271 = vld [vmem:[%s7 + $0x64] sm:$0xf]
      %v8272 = vld [vmem:[%s7 + $0x68] sm:$0xf]
      %v8273 = vld [vmem:[%s7 + $0x6c] sm:$0xf]
      %v8274 = vld [vmem:[%s7 + $0x70] sm:$0xf]
      %v8275 = vld [vmem:[%s7 + $0x74] sm:$0xf]
      %v8276 = vld [vmem:[%s7 + $0x78] sm:$0xf]
      %v8277 = vld [vmem:[%s7 + $0x7c] sm:$0xf]
      %v8278 = vld [vmem:[%s7 + $0x80] sm:$0xf]
      %v8279 = vld [vmem:[%s7 + $0x84] sm:$0xf]
      %v8280 = vld [vmem:[%s7 + $0x88] sm:$0xf]
      %v8281 = vld [vmem:[%s7 + $0x8c] sm:$0xf]
      %v8282 = vld [vmem:[%s7 + $0x90] sm:$0xf]
      %v8283 = vld [vmem:[%s7 + $0x94] sm:$0xf]
      %v8284 = vld [vmem:[%s7 + $0x98] sm:$0xf]
      %v8285 = vld [vmem:[%s7 + $0x9c] sm:$0xf]
      %v8286 = vld [vmem:[%s7 + $0xa0] sm:$0xf]
      %v8287 = vld [vmem:[%s7 + $0xa4] sm:$0xf]
      %v8288 = vld [vmem:[%s7 + $0xa8] sm:$0xf]
      %v8289 = vld [vmem:[%s7 + $0xac] sm:$0xf]
      %v8290 = vld [vmem:[%s7 + $0xb0] sm:$0xf]
      %v8291 = vld [vmem:[%s7 + $0xb4] sm:$0xf]
      %v8292 = vld [vmem:[%s7 + $0xb8] sm:$0xf]
      %v8293 = vld [vmem:[%s7 + $0xbc] sm:$0xf]
      %v8294 = vld [vmem:[%s7 + $0xc0] sm:$0xf]
      %v8295 = vld [vmem:[%s7 + $0xc4] sm:$0xf]
      %v8296 = vld [vmem:[%s7 + $0xc8] sm:$0xf]
      %v8297 = vld [vmem:[%s7 + $0xcc] sm:$0xf]
      %v8298 = vld [vmem:[%s7 + $0xd0] sm:$0xf]
      %v8299 = vld [vmem:[%s7 + $0xd4] sm:$0xf]
      %v8300 = vld [vmem:[%s7 + $0xd8] sm:$0xf]
      %v8301 = vld [vmem:[%s7 + $0xdc] sm:$0xf]
      %v8302 = vld [vmem:[%s7 + $0xe0] sm:$0xf]
      %v8303 = vld [vmem:[%s7 + $0xe4] sm:$0xf]
      %v8304 = vld [vmem:[%s7 + $0xe8] sm:$0xf]
      %v8305 = vld [vmem:[%s7 + $0xec] sm:$0xf]
      %v8306 = vld [vmem:[%s7 + $0xf0] sm:$0xf]
      %v8307 = vld [vmem:[%s7 + $0xf4] sm:$0xf]
      %v8308 = vld [vmem:[%s7 + $0xf8] sm:$0xf]
      %v8309 = vld [vmem:[%s7 + $0xfc] sm:$0xf]
      %v8310 = vld [vmem:[%s7 + $0x100] sm:$0xf]
      %v8311 = vld [vmem:[%s7 + $0x104] sm:$0xf]
      %v8312 = vld [vmem:[%s7 + $0x108] sm:$0xf]
      %v8313 = vld [vmem:[%s7 + $0x10c] sm:$0xf]
      %v8314 = vld [vmem:[%s7 + $0x110] sm:$0xf]
      %v8315 = vld [vmem:[%s7 + $0x114] sm:$0xf]
      %v8316 = vld [vmem:[%s7 + $0x118] sm:$0xf]
      %v8317 = vld [vmem:[%s7 + $0x11c] sm:$0xf]
      %v8318 = vld [vmem:[%s7 + $0x120] sm:$0xf]
      %v8319 = vld [vmem:[%s7 + $0x124] sm:$0xf]
      %v8320 = vld [vmem:[%s7 + $0x128] sm:$0xf]
      %v8321 = vld [vmem:[%s7 + $0x12c] sm:$0xf]
      %v8322 = vld [vmem:[%s7 + $0x130] sm:$0xf]
      %v8323 = vld [vmem:[%s7 + $0x134] sm:$0xf]
      %v8324 = vld [vmem:[%s7 + $0x138] sm:$0xf]
      %v8325 = vld [vmem:[%s7 + $0x13c] sm:$0xf]
      %v8326 = vld [vmem:[%s7 + $0x140] sm:$0xf]
      %v8327 = vld [vmem:[%s7 + $0x144] sm:$0xf]
      %v8328 = vld [vmem:[%s7 + $0x148] sm:$0xf]
      %v8329 = vld [vmem:[%s7 + $0x14c] sm:$0xf]
      %v8330 = vld [vmem:[%s7 + $0x150] sm:$0xf]
      %v8331 = vld [vmem:[%s7 + $0x154] sm:$0xf]
      %v8332 = vld [vmem:[%s7 + $0x158] sm:$0xf]
      %v8333 = vld [vmem:[%s7 + $0x15c] sm:$0xf]
      %v8334 = vld [vmem:[%s7 + $0x160] sm:$0xf]
      %v8335 = vld [vmem:[%s7 + $0x164] sm:$0xf]
      %v8336 = vld [vmem:[%s7 + $0x168] sm:$0xf]
      %v8337 = vld [vmem:[%s7 + $0x16c] sm:$0xf]
      %v8338 = vld [vmem:[%s7 + $0x170] sm:$0xf]
      %v8339 = vld [vmem:[%s7 + $0x174] sm:$0xf]
      %v8340 = vld [vmem:[%s7 + $0x178] sm:$0xf]
      %v8341 = vld [vmem:[%s7 + $0x17c] sm:$0xf]
      %v8342 = vld [vmem:[%s7 + $0x180] sm:$0xf]
      %v8343 = vld [vmem:[%s7 + $0x184] sm:$0xf]
      %v8344 = vld [vmem:[%s7 + $0x188] sm:$0xf]
      %v8345 = vld [vmem:[%s7 + $0x18c] sm:$0xf]
      %v8346 = vld [vmem:[%s7 + $0x190] sm:$0xf]
      %v8347 = vld [vmem:[%s7 + $0x194] sm:$0xf]
      %v8348 = vld [vmem:[%s7 + $0x198] sm:$0xf]
      %v8349 = vld [vmem:[%s7 + $0x19c] sm:$0xf]
      %v8350 = vld [vmem:[%s7 + $0x1a0] sm:$0xf]
      %v8351 = vld [vmem:[%s7 + $0x1a4] sm:$0xf]
      %v8352 = vld [vmem:[%s7 + $0x1a8] sm:$0xf]
      %v8353 = vld [vmem:[%s7 + $0x1ac] sm:$0xf]
      %v8354 = vld [vmem:[%s7 + $0x1b0] sm:$0xf]
      %v8355 = vld [vmem:[%s7 + $0x1b4] sm:$0xf]
      %v8356 = vld [vmem:[%s7 + $0x1b8] sm:$0xf]
      %v8357 = vld [vmem:[%s7 + $0x1bc] sm:$0xf]
      %v8358 = vld [vmem:[%s7 + $0x1c0] sm:$0xf]
      %v8359 = vld [vmem:[%s7 + $0x1c4] sm:$0xf]
      %v8360 = vld [vmem:[%s7 + $0x1c8] sm:$0xf]
      %v8361 = vld [vmem:[%s7 + $0x1cc] sm:$0xf]
      %v8362 = vld [vmem:[%s7 + $0x1d0] sm:$0xf]
      %v8363 = vld [vmem:[%s7 + $0x1d4] sm:$0xf]
      %v8364 = vld [vmem:[%s7 + $0x1d8] sm:$0xf]
      %v8365 = vld [vmem:[%s7 + $0x1dc] sm:$0xf]
      %v8366 = vld [vmem:[%s7 + $0x1e0] sm:$0xf]
      %v8367 = vld [vmem:[%s7 + $0x1e4] sm:$0xf]
      %v8368 = vld [vmem:[%s7 + $0x1e8] sm:$0xf]
      %v8369 = vld [vmem:[%s7 + $0x1ec] sm:$0xf]
      %v8370 = vld [vmem:[%s7 + $0x1f0] sm:$0xf]
      %v8371 = vld [vmem:[%s7 + $0x1f4] sm:$0xf]
      %v8372 = vld [vmem:[%s7 + $0x1f8] sm:$0xf]
      %v8373 = vld [vmem:[%s7 + $0x1fc] sm:$0xf]
      %v8374 = vld [vmem:[%s7 + $0x200] sm:$0xf]
      %v8375 = vld [vmem:[%s7 + $0x204] sm:$0xf]
      %v8376 = vld [vmem:[%s7 + $0x208] sm:$0xf]
      %v8377 = vld [vmem:[%s7 + $0x20c] sm:$0xf]
      %v8378 = vld [vmem:[%s7 + $0x210] sm:$0xf]
      %v8379 = vld [vmem:[%s7 + $0x214] sm:$0xf]
      %v8380 = vld [vmem:[%s7 + $0x218] sm:$0xf]
      %v8381 = vld [vmem:[%s7 + $0x21c] sm:$0xf]
      %v8382 = vld [vmem:[%s7 + $0x220] sm:$0xf]
      %v8383 = vld [vmem:[%s7 + $0x224] sm:$0xf]
      %v8384 = vld [vmem:[%s7 + $0x228] sm:$0xf]
      %v8385 = vld [vmem:[%s7 + $0x22c] sm:$0xf]
      %v8386 = vld [vmem:[%s7 + $0x230] sm:$0xf]
      %v8387 = vld [vmem:[%s7 + $0x234] sm:$0xf]
      %v8388 = vld [vmem:[%s7 + $0x238] sm:$0xf]
      %v8389 = vld [vmem:[%s7 + $0x23c] sm:$0xf]
      %v8390 = vld [vmem:[%s8] sm:$0x1]
      %v8392 = vperm.slane %v8390, 0
      %v8538 = vunpack.c.l.b16 %v8246
      %v8539 = vunpack.c.l.b16 %v8247
      %v8540 = vunpack.c.l.b16 %v8248
      %v8541 = vunpack.c.l.b16 %v8249
      %v8542 = vunpack.c.l.b16 %v8250
      %v8543 = vunpack.c.l.b16 %v8251
      %v8544 = vunpack.c.l.b16 %v8252
      %v8545 = vunpack.c.l.b16 %v8253
      %v8546 = vunpack.c.l.b16 %v8254
      %v8547 = vunpack.c.l.b16 %v8255
      %v8548 = vunpack.c.l.b16 %v8256
      %v8549 = vunpack.c.l.b16 %v8257
      %v8550 = vunpack.c.l.b16 %v8258
      %v8551 = vunpack.c.l.b16 %v8259
      %v8552 = vunpack.c.l.b16 %v8260
      %v8553 = vunpack.c.l.b16 %v8261
      %v8554 = vunpack.c.l.b16 %v8262
      %v8555 = vunpack.c.l.b16 %v8263
      %v8556 = vunpack.c.l.b16 %v8264
      %v8557 = vunpack.c.l.b16 %v8265
      %v8558 = vunpack.c.l.b16 %v8266
      %v8559 = vunpack.c.l.b16 %v8267
      %v8560 = vunpack.c.l.b16 %v8268
      %v8561 = vunpack.c.l.b16 %v8269
      %v8562 = vunpack.c.l.b16 %v8270
      %v8563 = vunpack.c.l.b16 %v8271
      %v8564 = vunpack.c.l.b16 %v8272
      %v8565 = vunpack.c.l.b16 %v8273
      %v8566 = vunpack.c.l.b16 %v8274
      %v8567 = vunpack.c.l.b16 %v8275
      %v8568 = vunpack.c.l.b16 %v8276
      %v8569 = vunpack.c.l.b16 %v8277
      %v8570 = vunpack.c.l.b16 %v8278
      %v8571 = vunpack.c.l.b16 %v8279
      %v8572 = vunpack.c.l.b16 %v8280
      %v8573 = vunpack.c.l.b16 %v8281
      %v8574 = vunpack.c.l.b16 %v8282
      %v8575 = vunpack.c.l.b16 %v8283
      %v8576 = vunpack.c.l.b16 %v8284
      %v8577 = vunpack.c.l.b16 %v8285
      %v8578 = vunpack.c.l.b16 %v8286
      %v8579 = vunpack.c.l.b16 %v8287
      %v8580 = vunpack.c.l.b16 %v8288
      %v8581 = vunpack.c.l.b16 %v8289
      %v8582 = vunpack.c.l.b16 %v8290
      %v8583 = vunpack.c.l.b16 %v8291
      %v8584 = vunpack.c.l.b16 %v8292
      %v8585 = vunpack.c.l.b16 %v8293
      %v8586 = vunpack.c.l.b16 %v8294
      %v8587 = vunpack.c.l.b16 %v8295
      %v8588 = vunpack.c.l.b16 %v8296
      %v8589 = vunpack.c.l.b16 %v8297
      %v8590 = vunpack.c.l.b16 %v8298
      %v8591 = vunpack.c.l.b16 %v8299
      %v8592 = vunpack.c.l.b16 %v8300
      %v8593 = vunpack.c.l.b16 %v8301
      %v8594 = vunpack.c.l.b16 %v8302
      %v8595 = vunpack.c.l.b16 %v8303
      %v8596 = vunpack.c.l.b16 %v8304
      %v8597 = vunpack.c.l.b16 %v8305
      %v8598 = vunpack.c.l.b16 %v8306
      %v8599 = vunpack.c.l.b16 %v8307
      %v8600 = vunpack.c.l.b16 %v8308
      %v8601 = vunpack.c.l.b16 %v8309
      %v8602 = vunpack.c.l.b16 %v8310
      %v8603 = vunpack.c.l.b16 %v8311
      %v8604 = vunpack.c.l.b16 %v8312
      %v8605 = vunpack.c.l.b16 %v8313
      %v8606 = vunpack.c.l.b16 %v8314
      %v8607 = vunpack.c.l.b16 %v8315
      %v8608 = vunpack.c.l.b16 %v8316
      %v8609 = vunpack.c.l.b16 %v8317
      %v8610 = vunpack.c.l.b16 %v8318
      %v8611 = vunpack.c.l.b16 %v8319
      %v8612 = vunpack.c.l.b16 %v8320
      %v8613 = vunpack.c.l.b16 %v8321
      %v8614 = vunpack.c.l.b16 %v8322
      %v8615 = vunpack.c.l.b16 %v8323
      %v8616 = vunpack.c.l.b16 %v8324
      %v8617 = vunpack.c.l.b16 %v8325
      %v8618 = vunpack.c.l.b16 %v8326
      %v8619 = vunpack.c.l.b16 %v8327
      %v8620 = vunpack.c.l.b16 %v8328
      %v8621 = vunpack.c.l.b16 %v8329
      %v8622 = vunpack.c.l.b16 %v8330
      %v8623 = vunpack.c.l.b16 %v8331
      %v8624 = vunpack.c.l.b16 %v8332
      %v8625 = vunpack.c.l.b16 %v8333
      %v8626 = vunpack.c.l.b16 %v8334
      %v8627 = vunpack.c.l.b16 %v8335
      %v8628 = vunpack.c.l.b16 %v8336
      %v8629 = vunpack.c.l.b16 %v8337
      %v8630 = vunpack.c.l.b16 %v8338
      %v8631 = vunpack.c.l.b16 %v8339
      %v8632 = vunpack.c.l.b16 %v8340
      %v8633 = vunpack.c.l.b16 %v8341
      %v8634 = vunpack.c.l.b16 %v8342
      %v8635 = vunpack.c.l.b16 %v8343
      %v8636 = vunpack.c.l.b16 %v8344
      %v8637 = vunpack.c.l.b16 %v8345
      %v8638 = vunpack.c.l.b16 %v8346
      %v8639 = vunpack.c.l.b16 %v8347
      %v8640 = vunpack.c.l.b16 %v8348
      %v8641 = vunpack.c.l.b16 %v8349
      %v8642 = vunpack.c.l.b16 %v8350
      %v8643 = vunpack.c.l.b16 %v8351
      %v8644 = vunpack.c.l.b16 %v8352
      %v8645 = vunpack.c.l.b16 %v8353
      %v8646 = vunpack.c.l.b16 %v8354
      %v8647 = vunpack.c.l.b16 %v8355
      %v8648 = vunpack.c.l.b16 %v8356
      %v8649 = vunpack.c.l.b16 %v8357
      %v8650 = vunpack.c.l.b16 %v8358
      %v8651 = vunpack.c.l.b16 %v8359
      %v8652 = vunpack.c.l.b16 %v8360
      %v8653 = vunpack.c.l.b16 %v8361
      %v8654 = vunpack.c.l.b16 %v8362
      %v8655 = vunpack.c.l.b16 %v8363
      %v8656 = vunpack.c.l.b16 %v8364
      %v8657 = vunpack.c.l.b16 %v8365
      %v8658 = vunpack.c.l.b16 %v8366
      %v8659 = vunpack.c.l.b16 %v8367
      %v8660 = vunpack.c.l.b16 %v8368
      %v8661 = vunpack.c.l.b16 %v8369
      %v8662 = vunpack.c.l.b16 %v8370
      %v8663 = vunpack.c.l.b16 %v8371
      %v8664 = vunpack.c.l.b16 %v8372
      %v8665 = vunpack.c.l.b16 %v8373
      %v8666 = vunpack.c.l.b16 %v8374
      %v8667 = vunpack.c.l.b16 %v8375
      %v8668 = vunpack.c.l.b16 %v8376
      %v8669 = vunpack.c.l.b16 %v8377
      %v8670 = vunpack.c.l.b16 %v8378
      %v8671 = vunpack.c.l.b16 %v8379
      %v8672 = vunpack.c.l.b16 %v8380
      %v8673 = vunpack.c.l.b16 %v8381
      %v8674 = vunpack.c.l.b16 %v8382
      %v8675 = vunpack.c.l.b16 %v8383
      %v8676 = vunpack.c.l.b16 %v8384
      %v8677 = vunpack.c.l.b16 %v8385
      %v8678 = vunpack.c.l.b16 %v8386
      %v8679 = vunpack.c.l.b16 %v8387
      %v8680 = vunpack.c.l.b16 %v8388
      %v8681 = vunpack.c.l.b16 %v8389
      %v8682 = vpack.c.b16 %v8539, %v8538
      %v8683 = vpack.c.b16 %v8541, %v8540
      %v8684 = vpack.c.b16 %v8543, %v8542
      %v8685 = vpack.c.b16 %v8545, %v8544
      %v8686 = vpack.c.b16 %v8547, %v8546
      %v8687 = vpack.c.b16 %v8549, %v8548
      %v8688 = vpack.c.b16 %v8551, %v8550
      %v8689 = vpack.c.b16 %v8553, %v8552
      %v8690 = vpack.c.b16 %v8555, %v8554
      %v8691 = vpack.c.b16 %v8557, %v8556
      %v8692 = vpack.c.b16 %v8559, %v8558
      %v8693 = vpack.c.b16 %v8561, %v8560
      %v8694 = vpack.c.b16 %v8563, %v8562
      %v8695 = vpack.c.b16 %v8565, %v8564
      %v8696 = vpack.c.b16 %v8567, %v8566
      %v8697 = vpack.c.b16 %v8569, %v8568
      %v8698 = vpack.c.b16 %v8571, %v8570
      %v8699 = vpack.c.b16 %v8573, %v8572
      %v8700 = vpack.c.b16 %v8575, %v8574
      %v8701 = vpack.c.b16 %v8577, %v8576
      %v8702 = vpack.c.b16 %v8579, %v8578
      %v8703 = vpack.c.b16 %v8581, %v8580
      %v8704 = vpack.c.b16 %v8583, %v8582
      %v8705 = vpack.c.b16 %v8585, %v8584
      %v8706 = vpack.c.b16 %v8587, %v8586
      %v8707 = vpack.c.b16 %v8589, %v8588
      %v8708 = vpack.c.b16 %v8591, %v8590
      %v8709 = vpack.c.b16 %v8593, %v8592
      %v8710 = vpack.c.b16 %v8595, %v8594
      %v8711 = vpack.c.b16 %v8597, %v8596
      %v8712 = vpack.c.b16 %v8599, %v8598
      %v8713 = vpack.c.b16 %v8601, %v8600
      %v8714 = vpack.c.b16 %v8603, %v8602
      %v8715 = vpack.c.b16 %v8605, %v8604
      %v8716 = vpack.c.b16 %v8607, %v8606
      %v8717 = vpack.c.b16 %v8609, %v8608
      %v8718 = vpack.c.b16 %v8611, %v8610
      %v8719 = vpack.c.b16 %v8613, %v8612
      %v8720 = vpack.c.b16 %v8615, %v8614
      %v8721 = vpack.c.b16 %v8617, %v8616
      %v8722 = vpack.c.b16 %v8619, %v8618
      %v8723 = vpack.c.b16 %v8621, %v8620
      %v8724 = vpack.c.b16 %v8623, %v8622
      %v8725 = vpack.c.b16 %v8625, %v8624
      %v8726 = vpack.c.b16 %v8627, %v8626
      %v8727 = vpack.c.b16 %v8629, %v8628
      %v8728 = vpack.c.b16 %v8631, %v8630
      %v8729 = vpack.c.b16 %v8633, %v8632
      %v8730 = vpack.c.b16 %v8635, %v8634
      %v8731 = vpack.c.b16 %v8637, %v8636
      %v8732 = vpack.c.b16 %v8639, %v8638
      %v8733 = vpack.c.b16 %v8641, %v8640
      %v8734 = vpack.c.b16 %v8643, %v8642
      %v8735 = vpack.c.b16 %v8645, %v8644
      %v8736 = vpack.c.b16 %v8647, %v8646
      %v8737 = vpack.c.b16 %v8649, %v8648
      %v8738 = vpack.c.b16 %v8651, %v8650
      %v8739 = vpack.c.b16 %v8653, %v8652
      %v8740 = vpack.c.b16 %v8655, %v8654
      %v8741 = vpack.c.b16 %v8657, %v8656
      %v8742 = vpack.c.b16 %v8659, %v8658
      %v8743 = vpack.c.b16 %v8661, %v8660
      %v8744 = vpack.c.b16 %v8663, %v8662
      %v8745 = vpack.c.b16 %v8665, %v8664
      %v8746 = vpack.c.b16 %v8667, %v8666
      %v8747 = vpack.c.b16 %v8669, %v8668
      %v8748 = vpack.c.b16 %v8671, %v8670
      %v8749 = vpack.c.b16 %v8673, %v8672
      %v8750 = vpack.c.b16 %v8675, %v8674
      %v8751 = vpack.c.b16 %v8677, %v8676
      %v8752 = vpack.c.b16 %v8679, %v8678
      %v8753 = vpack.c.b16 %v8681, %v8680
      %8826 = vmatpush.bf16.msra.mxu0 %v8689
      %8827 = vmatpush.bf16.msra.mxu0 %v8688
      %8828 = vmatpush.bf16.msra.mxu0 %v8687
      %8829 = vmatpush.bf16.msra.mxu0 %v8686
      %8830 = vmatpush.bf16.msra.mxu0 %v8685
      %8831 = vmatpush.bf16.msra.mxu0 %v8684
      %8832 = vmatpush.bf16.msra.mxu0 %v8683
      %8833 = vmatpush.bf16.msra.mxu0 %v8682
      %8834 = vmatmul.bf16.gmra.mxu0 %v7683
      %v8835 = vpop.f32.mrf.mxu0
      %v8836 = vadd.f32 %v8392, %v8835
      %v8837 = vpop.f32.mrf.mxu0
      %v8838 = vadd.f32 %v8392, %v8837
      %8839 = vmatmul.bf16.gmra.mxu0 %v7684
      %v8840 = vpop.f32.mrf.mxu0
      %v8841 = vadd.f32 %v8392, %v8840
      %v8842 = vpop.f32.mrf.mxu0
      %v8843 = vadd.f32 %v8392, %v8842
      %8844 = vmatmul.bf16.gmra.mxu0 %v7685
      %v8845 = vpop.f32.mrf.mxu0
      %v8846 = vadd.f32 %v8392, %v8845
      %v8847 = vpop.f32.mrf.mxu0
      %v8848 = vadd.f32 %v8392, %v8847
      %8849 = vmatmul.bf16.gmra.mxu0 %v7686
      %v8850 = vpop.f32.mrf.mxu0
      %v8851 = vadd.f32 %v8392, %v8850
      %v8852 = vpop.f32.mrf.mxu0
      %v8853 = vadd.f32 %v8392, %v8852
      %8854 = vmatmul.bf16.gmra.mxu0 %v8046
      %v8855 = vpop.f32.mrf.mxu0
      %v8856 = vadd.f32 %v8392, %v8855
      %v8857 = vpop.f32.mrf.mxu0
      %v8858 = vadd.f32 %v8392, %v8857
      %8859 = vmatmul.bf16.gmra.mxu0 %v8047
      %v8860 = vpop.f32.mrf.mxu0
      %v8861 = vadd.f32 %v8392, %v8860
      %v8862 = vpop.f32.mrf.mxu0
      %v8863 = vadd.f32 %v8392, %v8862
      %8864 = vmatmul.bf16.gmra.mxu0 %v8048
      %v8865 = vpop.f32.mrf.mxu0
      %v8866 = vadd.f32 %v8392, %v8865
      %v8867 = vpop.f32.mrf.mxu0
      %v8868 = vadd.f32 %v8392, %v8867
      %8869 = vmatmul.bf16.gmra.mxu0 %v8049
      %v8870 = vpop.f32.mrf.mxu0
      %v8871 = vadd.f32 %v8392, %v8870
      %v8872 = vpop.f32.mrf.mxu0
      %v8873 = vadd.f32 %v8392, %v8872
      %8874 = vdwg.mxu0
      %8875 = vmatpush.bf16.msra.mxu0 %v8697
      %8876 = vmatpush.bf16.msra.mxu0 %v8696
      %8877 = vmatpush.bf16.msra.mxu0 %v8695
      %8878 = vmatpush.bf16.msra.mxu0 %v8694
      %8879 = vmatpush.bf16.msra.mxu0 %v8693
      %8880 = vmatpush.bf16.msra.mxu0 %v8692
      %8881 = vmatpush.bf16.msra.mxu0 %v8691
      %8882 = vmatpush.bf16.msra.mxu0 %v8690
      %8883 = vmatmul.bf16.gmra.mxu0 %v7707
      %v8884 = vpop.f32.mrf.mxu0
      %v8885 = vadd.f32 %v8836, %v8884
      %v8886 = vpop.f32.mrf.mxu0
      %v8887 = vadd.f32 %v8838, %v8886
      %8888 = vmatmul.bf16.gmra.mxu0 %v7708
      %v8889 = vpop.f32.mrf.mxu0
      %v8890 = vadd.f32 %v8841, %v8889
      %v8891 = vpop.f32.mrf.mxu0
      %v8892 = vadd.f32 %v8843, %v8891
      %8893 = vmatmul.bf16.gmra.mxu0 %v7709
      %v8894 = vpop.f32.mrf.mxu0
      %v8895 = vadd.f32 %v8846, %v8894
      %v8896 = vpop.f32.mrf.mxu0
      %v8897 = vadd.f32 %v8848, %v8896
      %8898 = vmatmul.bf16.gmra.mxu0 %v7710
      %v8899 = vpop.f32.mrf.mxu0
      %v8900 = vadd.f32 %v8851, %v8899
      %v8901 = vpop.f32.mrf.mxu0
      %v8902 = vadd.f32 %v8853, %v8901
      %8903 = vmatmul.bf16.gmra.mxu0 %v8070
      %v8904 = vpop.f32.mrf.mxu0
      %v8905 = vadd.f32 %v8856, %v8904
      %v8906 = vpop.f32.mrf.mxu0
      %v8907 = vadd.f32 %v8858, %v8906
      %8908 = vmatmul.bf16.gmra.mxu0 %v8071
      %v8909 = vpop.f32.mrf.mxu0
      %v8910 = vadd.f32 %v8861, %v8909
      %v8911 = vpop.f32.mrf.mxu0
      %v8912 = vadd.f32 %v8863, %v8911
      %8913 = vmatmul.bf16.gmra.mxu0 %v8072
      %v8914 = vpop.f32.mrf.mxu0
      %v8915 = vadd.f32 %v8866, %v8914
      %v8916 = vpop.f32.mrf.mxu0
      %v8917 = vadd.f32 %v8868, %v8916
      %8918 = vmatmul.bf16.gmra.mxu0 %v8073
      %v8919 = vpop.f32.mrf.mxu0
      %v8920 = vadd.f32 %v8871, %v8919
      %v8921 = vpop.f32.mrf.mxu0
      %v8922 = vadd.f32 %v8873, %v8921
      %8923 = vdwg.mxu0
      %8924 = vmatpush.bf16.msra.mxu0 %v8705
      %8925 = vmatpush.bf16.msra.mxu0 %v8704
      %8926 = vmatpush.bf16.msra.mxu0 %v8703
      %8927 = vmatpush.bf16.msra.mxu0 %v8702
      %8928 = vmatpush.bf16.msra.mxu0 %v8701
      %8929 = vmatpush.bf16.msra.mxu0 %v8700
      %8930 = vmatpush.bf16.msra.mxu0 %v8699
      %8931 = vmatpush.bf16.msra.mxu0 %v8698
      %8932 = vmatmul.bf16.gmra.mxu0 %v7731
      %v8933 = vpop.f32.mrf.mxu0
      %v8934 = vadd.f32 %v8885, %v8933
      %v8935 = vpop.f32.mrf.mxu0
      %v8936 = vadd.f32 %v8887, %v8935
      %8937 = vmatmul.bf16.gmra.mxu0 %v7732
      %v8938 = vpop.f32.mrf.mxu0
      %v8939 = vadd.f32 %v8890, %v8938
      %v8940 = vpop.f32.mrf.mxu0
      %v8941 = vadd.f32 %v8892, %v8940
      %8942 = vmatmul.bf16.gmra.mxu0 %v7733
      %v8943 = vpop.f32.mrf.mxu0
      %v8944 = vadd.f32 %v8895, %v8943
      %v8945 = vpop.f32.mrf.mxu0
      %v8946 = vadd.f32 %v8897, %v8945
      %8947 = vmatmul.bf16.gmra.mxu0 %v7734
      %v8948 = vpop.f32.mrf.mxu0
      %v8949 = vadd.f32 %v8900, %v8948
      %v8950 = vpop.f32.mrf.mxu0
      %v8951 = vadd.f32 %v8902, %v8950
      %8952 = vmatmul.bf16.gmra.mxu0 %v8094
      %v8953 = vpop.f32.mrf.mxu0
      %v8954 = vadd.f32 %v8905, %v8953
      %v8955 = vpop.f32.mrf.mxu0
      %v8956 = vadd.f32 %v8907, %v8955
      %8957 = vmatmul.bf16.gmra.mxu0 %v8095
      %v8958 = vpop.f32.mrf.mxu0
      %v8959 = vadd.f32 %v8910, %v8958
      %v8960 = vpop.f32.mrf.mxu0
      %v8961 = vadd.f32 %v8912, %v8960
      %8962 = vmatmul.bf16.gmra.mxu0 %v8096
      %v8963 = vpop.f32.mrf.mxu0
      %v8964 = vadd.f32 %v8915, %v8963
      %v8965 = vpop.f32.mrf.mxu0
      %v8966 = vadd.f32 %v8917, %v8965
      %8967 = vmatmul.bf16.gmra.mxu0 %v8097
      %v8968 = vpop.f32.mrf.mxu0
      %v8969 = vadd.f32 %v8920, %v8968
      %v8970 = vpop.f32.mrf.mxu0
      %v8971 = vadd.f32 %v8922, %v8970
      %8972 = vdwg.mxu0
      %8973 = vmatpush.bf16.msra.mxu0 %v8713
      %8974 = vmatpush.bf16.msra.mxu0 %v8712
      %8975 = vmatpush.bf16.msra.mxu0 %v8711
      %8976 = vmatpush.bf16.msra.mxu0 %v8710
      %8977 = vmatpush.bf16.msra.mxu0 %v8709
      %8978 = vmatpush.bf16.msra.mxu0 %v8708
      %8979 = vmatpush.bf16.msra.mxu0 %v8707
      %8980 = vmatpush.bf16.msra.mxu0 %v8706
      %8981 = vmatmul.bf16.gmra.mxu0 %v7755
      %v8982 = vpop.f32.mrf.mxu0
      %v8983 = vadd.f32 %v8934, %v8982
      %v8984 = vpop.f32.mrf.mxu0
      %v8985 = vadd.f32 %v8936, %v8984
      %8986 = vmatmul.bf16.gmra.mxu0 %v7756
      %v8987 = vpop.f32.mrf.mxu0
      %v8988 = vadd.f32 %v8939, %v8987
      %v8989 = vpop.f32.mrf.mxu0
      %v8990 = vadd.f32 %v8941, %v8989
      %8991 = vmatmul.bf16.gmra.mxu0 %v7757
      %v8992 = vpop.f32.mrf.mxu0
      %v8993 = vadd.f32 %v8944, %v8992
      %v8994 = vpop.f32.mrf.mxu0
      %v8995 = vadd.f32 %v8946, %v8994
      %8996 = vmatmul.bf16.gmra.mxu0 %v7758
      %v8997 = vpop.f32.mrf.mxu0
      %v8998 = vadd.f32 %v8949, %v8997
      %v8999 = vpop.f32.mrf.mxu0
      %v9000 = vadd.f32 %v8951, %v8999
      %9001 = vmatmul.bf16.gmra.mxu0 %v8118
      %v9002 = vpop.f32.mrf.mxu0
      %v9003 = vadd.f32 %v8954, %v9002
      %v9004 = vpop.f32.mrf.mxu0
      %v9005 = vadd.f32 %v8956, %v9004
      %9006 = vmatmul.bf16.gmra.mxu0 %v8119
      %v9007 = vpop.f32.mrf.mxu0
      %v9008 = vadd.f32 %v8959, %v9007
      %v9009 = vpop.f32.mrf.mxu0
      %v9010 = vadd.f32 %v8961, %v9009
      %9011 = vmatmul.bf16.gmra.mxu0 %v8120
      %v9012 = vpop.f32.mrf.mxu0
      %v9013 = vadd.f32 %v8964, %v9012
      %v9014 = vpop.f32.mrf.mxu0
      %v9015 = vadd.f32 %v8966, %v9014
      %9016 = vmatmul.bf16.gmra.mxu0 %v8121
      %v9017 = vpop.f32.mrf.mxu0
      %v9018 = vadd.f32 %v8969, %v9017
      %v9019 = vpop.f32.mrf.mxu0
      %v9020 = vadd.f32 %v8971, %v9019
      %9021 = vdwg.mxu0
      %9022 = vmatpush.bf16.msra.mxu0 %v8721
      %9023 = vmatpush.bf16.msra.mxu0 %v8720
      %9024 = vmatpush.bf16.msra.mxu0 %v8719
      %9025 = vmatpush.bf16.msra.mxu0 %v8718
      %9026 = vmatpush.bf16.msra.mxu0 %v8717
      %9027 = vmatpush.bf16.msra.mxu0 %v8716
      %9028 = vmatpush.bf16.msra.mxu0 %v8715
      %9029 = vmatpush.bf16.msra.mxu0 %v8714
      %9030 = vmatmul.bf16.gmra.mxu0 %v7779
      %v9031 = vpop.f32.mrf.mxu0
      %v9032 = vadd.f32 %v8983, %v9031
      %v9033 = vpop.f32.mrf.mxu0
      %v9034 = vadd.f32 %v8985, %v9033
      %9035 = vmatmul.bf16.gmra.mxu0 %v7780
      %v9036 = vpop.f32.mrf.mxu0
      %v9037 = vadd.f32 %v8988, %v9036
      %v9038 = vpop.f32.mrf.mxu0
      %v9039 = vadd.f32 %v8990, %v9038
      %9040 = vmatmul.bf16.gmra.mxu0 %v7781
      %v9041 = vpop.f32.mrf.mxu0
      %v9042 = vadd.f32 %v8993, %v9041
      %v9043 = vpop.f32.mrf.mxu0
      %v9044 = vadd.f32 %v8995, %v9043
      %9045 = vmatmul.bf16.gmra.mxu0 %v7782
      %v9046 = vpop.f32.mrf.mxu0
      %v9047 = vadd.f32 %v8998, %v9046
      %v9048 = vpop.f32.mrf.mxu0
      %v9049 = vadd.f32 %v9000, %v9048
      %9050 = vmatmul.bf16.gmra.mxu0 %v8142
      %v9051 = vpop.f32.mrf.mxu0
      %v9052 = vadd.f32 %v9003, %v9051
      %v9053 = vpop.f32.mrf.mxu0
      %v9054 = vadd.f32 %v9005, %v9053
      %9055 = vmatmul.bf16.gmra.mxu0 %v8143
      %v9056 = vpop.f32.mrf.mxu0
      %v9057 = vadd.f32 %v9008, %v9056
      %v9058 = vpop.f32.mrf.mxu0
      %v9059 = vadd.f32 %v9010, %v9058
      %9060 = vmatmul.bf16.gmra.mxu0 %v8144
      %v9061 = vpop.f32.mrf.mxu0
      %v9062 = vadd.f32 %v9013, %v9061
      %v9063 = vpop.f32.mrf.mxu0
      %v9064 = vadd.f32 %v9015, %v9063
      %9065 = vmatmul.bf16.gmra.mxu0 %v8145
      %v9066 = vpop.f32.mrf.mxu0
      %v9067 = vadd.f32 %v9018, %v9066
      %v9068 = vpop.f32.mrf.mxu0
      %v9069 = vadd.f32 %v9020, %v9068
      %9070 = vdwg.mxu0
      %9071 = vmatpush.bf16.msra.mxu0 %v8729
      %9072 = vmatpush.bf16.msra.mxu0 %v8728
      %9073 = vmatpush.bf16.msra.mxu0 %v8727
      %9074 = vmatpush.bf16.msra.mxu0 %v8726
      %9075 = vmatpush.bf16.msra.mxu0 %v8725
      %9076 = vmatpush.bf16.msra.mxu0 %v8724
      %9077 = vmatpush.bf16.msra.mxu0 %v8723
      %9078 = vmatpush.bf16.msra.mxu0 %v8722
      %9079 = vmatmul.bf16.gmra.mxu0 %v7803
      %v9080 = vpop.f32.mrf.mxu0
      %v9081 = vadd.f32 %v9032, %v9080
      %v9082 = vpop.f32.mrf.mxu0
      %v9083 = vadd.f32 %v9034, %v9082
      %9084 = vmatmul.bf16.gmra.mxu0 %v7804
      %v9085 = vpop.f32.mrf.mxu0
      %v9086 = vadd.f32 %v9037, %v9085
      %v9087 = vpop.f32.mrf.mxu0
      %v9088 = vadd.f32 %v9039, %v9087
      %9089 = vmatmul.bf16.gmra.mxu0 %v7805
      %v9090 = vpop.f32.mrf.mxu0
      %v9091 = vadd.f32 %v9042, %v9090
      %v9092 = vpop.f32.mrf.mxu0
      %v9093 = vadd.f32 %v9044, %v9092
      %9094 = vmatmul.bf16.gmra.mxu0 %v7806
      %v9095 = vpop.f32.mrf.mxu0
      %v9096 = vadd.f32 %v9047, %v9095
      %v9097 = vpop.f32.mrf.mxu0
      %v9098 = vadd.f32 %v9049, %v9097
      %9099 = vmatmul.bf16.gmra.mxu0 %v8166
      %v9100 = vpop.f32.mrf.mxu0
      %v9101 = vadd.f32 %v9052, %v9100
      %v9102 = vpop.f32.mrf.mxu0
      %v9103 = vadd.f32 %v9054, %v9102
      %9104 = vmatmul.bf16.gmra.mxu0 %v8167
      %v9105 = vpop.f32.mrf.mxu0
      %v9106 = vadd.f32 %v9057, %v9105
      %v9107 = vpop.f32.mrf.mxu0
      %v9108 = vadd.f32 %v9059, %v9107
      %9109 = vmatmul.bf16.gmra.mxu0 %v8168
      %v9110 = vpop.f32.mrf.mxu0
      %v9111 = vadd.f32 %v9062, %v9110
      %v9112 = vpop.f32.mrf.mxu0
      %v9113 = vadd.f32 %v9064, %v9112
      %9114 = vmatmul.bf16.gmra.mxu0 %v8169
      %v9115 = vpop.f32.mrf.mxu0
      %v9116 = vadd.f32 %v9067, %v9115
      %v9117 = vpop.f32.mrf.mxu0
      %v9118 = vadd.f32 %v9069, %v9117
      %9119 = vdwg.mxu0
      %9120 = vmatpush.bf16.msra.mxu0 %v8737
      %9121 = vmatpush.bf16.msra.mxu0 %v8736
      %9122 = vmatpush.bf16.msra.mxu0 %v8735
      %9123 = vmatpush.bf16.msra.mxu0 %v8734
      %9124 = vmatpush.bf16.msra.mxu0 %v8733
      %9125 = vmatpush.bf16.msra.mxu0 %v8732
      %9126 = vmatpush.bf16.msra.mxu0 %v8731
      %9127 = vmatpush.bf16.msra.mxu0 %v8730
      %9128 = vmatmul.bf16.gmra.mxu0 %v7827
      %v9129 = vpop.f32.mrf.mxu0
      %v9130 = vadd.f32 %v9081, %v9129
      %v9131 = vpop.f32.mrf.mxu0
      %v9132 = vadd.f32 %v9083, %v9131
      %9133 = vmatmul.bf16.gmra.mxu0 %v7828
      %v9134 = vpop.f32.mrf.mxu0
      %v9135 = vadd.f32 %v9086, %v9134
      %v9136 = vpop.f32.mrf.mxu0
      %v9137 = vadd.f32 %v9088, %v9136
      %9138 = vmatmul.bf16.gmra.mxu0 %v7829
      %v9139 = vpop.f32.mrf.mxu0
      %v9140 = vadd.f32 %v9091, %v9139
      %v9141 = vpop.f32.mrf.mxu0
      %v9142 = vadd.f32 %v9093, %v9141
      %9143 = vmatmul.bf16.gmra.mxu0 %v7830
      %v9144 = vpop.f32.mrf.mxu0
      %v9145 = vadd.f32 %v9096, %v9144
      %v9146 = vpop.f32.mrf.mxu0
      %v9147 = vadd.f32 %v9098, %v9146
      %9148 = vmatmul.bf16.gmra.mxu0 %v8190
      %v9149 = vpop.f32.mrf.mxu0
      %v9150 = vadd.f32 %v9101, %v9149
      %v9151 = vpop.f32.mrf.mxu0
      %v9152 = vadd.f32 %v9103, %v9151
      %9153 = vmatmul.bf16.gmra.mxu0 %v8191
      %v9154 = vpop.f32.mrf.mxu0
      %v9155 = vadd.f32 %v9106, %v9154
      %v9156 = vpop.f32.mrf.mxu0
      %v9157 = vadd.f32 %v9108, %v9156
      %9158 = vmatmul.bf16.gmra.mxu0 %v8192
      %v9159 = vpop.f32.mrf.mxu0
      %v9160 = vadd.f32 %v9111, %v9159
      %v9161 = vpop.f32.mrf.mxu0
      %v9162 = vadd.f32 %v9113, %v9161
      %9163 = vmatmul.bf16.gmra.mxu0 %v8193
      %v9164 = vpop.f32.mrf.mxu0
      %v9165 = vadd.f32 %v9116, %v9164
      %v9166 = vpop.f32.mrf.mxu0
      %v9167 = vadd.f32 %v9118, %v9166
      %9168 = vdwg.mxu0
      %9169 = vmatpush.bf16.msra.mxu0 %v8745
      %9170 = vmatpush.bf16.msra.mxu0 %v8744
      %9171 = vmatpush.bf16.msra.mxu0 %v8743
      %9172 = vmatpush.bf16.msra.mxu0 %v8742
      %9173 = vmatpush.bf16.msra.mxu0 %v8741
      %9174 = vmatpush.bf16.msra.mxu0 %v8740
      %9175 = vmatpush.bf16.msra.mxu0 %v8739
      %9176 = vmatpush.bf16.msra.mxu0 %v8738
      %9177 = vmatmul.bf16.gmra.mxu0 %v7851
      %v9178 = vpop.f32.mrf.mxu0
      %v9179 = vadd.f32 %v9130, %v9178
      %v9180 = vpop.f32.mrf.mxu0
      %v9181 = vadd.f32 %v9132, %v9180
      %9182 = vmatmul.bf16.gmra.mxu0 %v7852
      %v9183 = vpop.f32.mrf.mxu0
      %v9184 = vadd.f32 %v9135, %v9183
      %v9185 = vpop.f32.mrf.mxu0
      %v9186 = vadd.f32 %v9137, %v9185
      %9187 = vmatmul.bf16.gmra.mxu0 %v7853
      %v9188 = vpop.f32.mrf.mxu0
      %v9189 = vadd.f32 %v9140, %v9188
      %v9190 = vpop.f32.mrf.mxu0
      %v9191 = vadd.f32 %v9142, %v9190
      %9192 = vmatmul.bf16.gmra.mxu0 %v7854
      %v9193 = vpop.f32.mrf.mxu0
      %v9194 = vadd.f32 %v9145, %v9193
      %v9195 = vpop.f32.mrf.mxu0
      %v9196 = vadd.f32 %v9147, %v9195
      %9197 = vmatmul.bf16.gmra.mxu0 %v8214
      %v9198 = vpop.f32.mrf.mxu0
      %v9199 = vadd.f32 %v9150, %v9198
      %v9200 = vpop.f32.mrf.mxu0
      %v9201 = vadd.f32 %v9152, %v9200
      %9202 = vmatmul.bf16.gmra.mxu0 %v8215
      %v9203 = vpop.f32.mrf.mxu0
      %v9204 = vadd.f32 %v9155, %v9203
      %v9205 = vpop.f32.mrf.mxu0
      %v9206 = vadd.f32 %v9157, %v9205
      %9207 = vmatmul.bf16.gmra.mxu0 %v8216
      %v9208 = vpop.f32.mrf.mxu0
      %v9209 = vadd.f32 %v9160, %v9208
      %v9210 = vpop.f32.mrf.mxu0
      %v9211 = vadd.f32 %v9162, %v9210
      %9212 = vmatmul.bf16.gmra.mxu0 %v8217
      %v9213 = vpop.f32.mrf.mxu0
      %v9214 = vadd.f32 %v9165, %v9213
      %v9215 = vpop.f32.mrf.mxu0
      %v9216 = vadd.f32 %v9167, %v9215
      %9217 = vdwg.mxu0
      %9218 = vmatpush.bf16.msra.mxu0 %v8753
      %9219 = vmatpush.bf16.msra.mxu0 %v8752
      %9220 = vmatpush.bf16.msra.mxu0 %v8751
      %9221 = vmatpush.bf16.msra.mxu0 %v8750
      %9222 = vmatpush.bf16.msra.mxu0 %v8749
      %9223 = vmatpush.bf16.msra.mxu0 %v8748
      %9224 = vmatpush.bf16.msra.mxu0 %v8747
      %9225 = vmatpush.bf16.msra.mxu0 %v8746
      %9226 = vmatmul.bf16.gmra.mxu0 %v7875
      %v9227 = vpop.f32.mrf.mxu0
      %v9228 = vadd.f32 %v9179, %v9227
      %v9229 = vpop.f32.mrf.mxu0
      %v9230 = vadd.f32 %v9181, %v9229
      %9231 = vmatmul.bf16.gmra.mxu0 %v7876
      %v9232 = vpop.f32.mrf.mxu0
      %v9233 = vadd.f32 %v9184, %v9232
      %v9234 = vpop.f32.mrf.mxu0
      %v9235 = vadd.f32 %v9186, %v9234
      %9236 = vmatmul.bf16.gmra.mxu0 %v7877
      %v9237 = vpop.f32.mrf.mxu0
      %v9238 = vadd.f32 %v9189, %v9237
      %v9239 = vpop.f32.mrf.mxu0
      %v9240 = vadd.f32 %v9191, %v9239
      %9241 = vmatmul.bf16.gmra.mxu0 %v7878
      %v9242 = vpop.f32.mrf.mxu0
      %v9243 = vadd.f32 %v9194, %v9242
      %v9244 = vpop.f32.mrf.mxu0
      %v9245 = vadd.f32 %v9196, %v9244
      %9246 = vmatmul.bf16.gmra.mxu0 %v8238
      %v9247 = vpop.f32.mrf.mxu0
      %v9248 = vadd.f32 %v9199, %v9247
      %v9249 = vpop.f32.mrf.mxu0
      %v9250 = vadd.f32 %v9201, %v9249
      %9251 = vmatmul.bf16.gmra.mxu0 %v8239
      %v9252 = vpop.f32.mrf.mxu0
      %v9253 = vadd.f32 %v9204, %v9252
      %v9254 = vpop.f32.mrf.mxu0
      %v9255 = vadd.f32 %v9206, %v9254
      %9256 = vmatmul.bf16.gmra.mxu0 %v8240
      %v9257 = vpop.f32.mrf.mxu0
      %v9258 = vadd.f32 %v9209, %v9257
      %v9259 = vpop.f32.mrf.mxu0
      %v9260 = vadd.f32 %v9211, %v9259
      %9261 = vmatmul.bf16.gmra.mxu0 %v8241
      %v9262 = vpop.f32.mrf.mxu0
      %v9263 = vadd.f32 %v9214, %v9262
      %v9264 = vpop.f32.mrf.mxu0
      %v9265 = vadd.f32 %v9216, %v9264
      %9266 = vdwg.mxu0
      %v9267 = vmax.f32 %v9228, 0.0
      %v9268 = vmax.f32 %v9230, 0.0
      %v9269 = vmax.f32 %v9233, 0.0
      %v9270 = vmax.f32 %v9235, 0.0
      %v9271 = vmax.f32 %v9238, 0.0
      %v9272 = vmax.f32 %v9240, 0.0
      %v9273 = vmax.f32 %v9243, 0.0
      %v9274 = vmax.f32 %v9245, 0.0
      %v9275 = vmax.f32 %v9248, 0.0
      %v9276 = vmax.f32 %v9250, 0.0
      %v9277 = vmax.f32 %v9253, 0.0
      %v9278 = vmax.f32 %v9255, 0.0
      %v9279 = vmax.f32 %v9258, 0.0
      %v9280 = vmax.f32 %v9260, 0.0
      %v9281 = vmax.f32 %v9263, 0.0
      %v9282 = vmax.f32 %v9265, 0.0
      %v9283 = vsub.f32 %v5764, %v5796
      %v9284 = vsub.f32 %v5765, %v5797
      %v9285 = vsub.f32 %v5766, %v5798
      %v9286 = vsub.f32 %v5767, %v5799
      %v9287 = vsub.f32 %v5768, %v5800
      %v9288 = vsub.f32 %v5769, %v5801
      %v9289 = vsub.f32 %v5770, %v5802
      %v9290 = vsub.f32 %v5771, %v5803
      %v9291 = vsub.f32 %v5772, %v5804
      %v9292 = vsub.f32 %v5773, %v5805
      %v9293 = vsub.f32 %v5774, %v5806
      %v9294 = vsub.f32 %v5775, %v5807
      %v9295 = vsub.f32 %v5776, %v5808
      %v9296 = vsub.f32 %v5777, %v5809
      %v9297 = vsub.f32 %v5778, %v5810
      %v9298 = vsub.f32 %v5779, %v5811
      %v9299 = vsub.f32 %v5780, %v5812
      %v9300 = vsub.f32 %v5781, %v5813
      %v9301 = vsub.f32 %v5782, %v5814
      %v9302 = vsub.f32 %v5783, %v5815
      %v9303 = vsub.f32 %v5784, %v5816
      %v9304 = vsub.f32 %v5785, %v5817
      %v9305 = vsub.f32 %v5786, %v5818
      %v9306 = vsub.f32 %v5787, %v5819
      %v9307 = vsub.f32 %v5788, %v5820
      %v9308 = vsub.f32 %v5789, %v5821
      %v9309 = vsub.f32 %v5790, %v5822
      %v9310 = vsub.f32 %v5791, %v5823
      %v9311 = vsub.f32 %v5792, %v5824
      %v9312 = vsub.f32 %v5793, %v5825
      %v9313 = vsub.f32 %v5794, %v5826
      %v9314 = vsub.f32 %v5795, %v5827
      %v9315 = vmul.f32 %v9283, %v9283
      %v9316 = vmul.f32 %v9284, %v9284
      %v9317 = vmul.f32 %v9285, %v9285
      %v9318 = vmul.f32 %v9286, %v9286
      %v9319 = vmul.f32 %v9287, %v9287
      %v9320 = vmul.f32 %v9288, %v9288
      %v9321 = vmul.f32 %v9289, %v9289
      %v9322 = vmul.f32 %v9290, %v9290
      %v9323 = vmul.f32 %v9291, %v9291
      %v9324 = vmul.f32 %v9292, %v9292
      %v9325 = vmul.f32 %v9293, %v9293
      %v9326 = vmul.f32 %v9294, %v9294
      %v9327 = vmul.f32 %v9295, %v9295
      %v9328 = vmul.f32 %v9296, %v9296
      %v9329 = vmul.f32 %v9297, %v9297
      %v9330 = vmul.f32 %v9298, %v9298
      %v9331 = vmul.f32 %v9299, %v9299
      %v9332 = vmul.f32 %v9300, %v9300
      %v9333 = vmul.f32 %v9301, %v9301
      %v9334 = vmul.f32 %v9302, %v9302
      %v9335 = vmul.f32 %v9303, %v9303
      %v9336 = vmul.f32 %v9304, %v9304
      %v9337 = vmul.f32 %v9305, %v9305
      %v9338 = vmul.f32 %v9306, %v9306
      %v9339 = vmul.f32 %v9307, %v9307
      %v9340 = vmul.f32 %v9308, %v9308
      %v9341 = vmul.f32 %v9309, %v9309
      %v9342 = vmul.f32 %v9310, %v9310
      %v9343 = vmul.f32 %v9311, %v9311
      %v9344 = vmul.f32 %v9312, %v9312
      %v9345 = vmul.f32 %v9313, %v9313
      %v9346 = vmul.f32 %v9314, %v9314
      %v9347 = vsel %vm332, %v9315, 0.0
      %v9348 = vsel %vm332, %v9316, 0.0
      %v9349 = vadd.f32 %v9347, %v9348
      %v9350 = vsel %vm332, %v9317, 0.0
      %v9351 = vadd.f32 %v9349, %v9350
      %v9352 = vsel %vm332, %v9318, 0.0
      %v9353 = vadd.f32 %v9351, %v9352
      %v9354 = vsel %vm332, %v9319, 0.0
      %v9355 = vadd.f32 %v9353, %v9354
      %v9356 = vsel %vm332, %v9320, 0.0
      %v9357 = vadd.f32 %v9355, %v9356
      %v9358 = vsel %vm332, %v9321, 0.0
      %v9359 = vadd.f32 %v9357, %v9358
      %v9360 = vsel %vm332, %v9322, 0.0
      %v9361 = vadd.f32 %v9359, %v9360
      %v9362 = vsel %vm332, %v9323, 0.0
      %v9363 = vadd.f32 %v9361, %v9362
      %v9364 = vsel %vm332, %v9324, 0.0
      %v9365 = vadd.f32 %v9363, %v9364
      %v9366 = vsel %vm332, %v9325, 0.0
      %v9367 = vadd.f32 %v9365, %v9366
      %v9368 = vsel %vm332, %v9326, 0.0
      %v9369 = vadd.f32 %v9367, %v9368
      %v9370 = vsel %vm332, %v9327, 0.0
      %v9371 = vadd.f32 %v9369, %v9370
      %v9372 = vsel %vm332, %v9328, 0.0
      %v9373 = vadd.f32 %v9371, %v9372
      %v9374 = vsel %vm332, %v9329, 0.0
      %v9375 = vadd.f32 %v9373, %v9374
      %v9376 = vsel %vm332, %v9330, 0.0
      %v9377 = vadd.f32 %v9375, %v9376
      %v9378 = vsel %vm332, %v9331, 0.0
      %v9379 = vadd.f32 %v9377, %v9378
      %v9380 = vsel %vm332, %v9332, 0.0
      %v9381 = vadd.f32 %v9379, %v9380
      %v9382 = vsel %vm332, %v9333, 0.0
      %v9383 = vadd.f32 %v9381, %v9382
      %v9384 = vsel %vm332, %v9334, 0.0
      %v9385 = vadd.f32 %v9383, %v9384
      %v9386 = vsel %vm332, %v9335, 0.0
      %v9387 = vadd.f32 %v9385, %v9386
      %v9388 = vsel %vm332, %v9336, 0.0
      %v9389 = vadd.f32 %v9387, %v9388
      %v9390 = vsel %vm332, %v9337, 0.0
      %v9391 = vadd.f32 %v9389, %v9390
      %v9392 = vsel %vm332, %v9338, 0.0
      %v9393 = vadd.f32 %v9391, %v9392
      %v9394 = vsel %vm332, %v9339, 0.0
      %v9395 = vadd.f32 %v9393, %v9394
      %v9396 = vsel %vm332, %v9340, 0.0
      %v9397 = vadd.f32 %v9395, %v9396
      %v9398 = vsel %vm332, %v9341, 0.0
      %v9399 = vadd.f32 %v9397, %v9398
      %v9400 = vsel %vm332, %v9342, 0.0
      %v9401 = vadd.f32 %v9399, %v9400
      %v9402 = vsel %vm332, %v9343, 0.0
      %v9403 = vadd.f32 %v9401, %v9402
      %v9404 = vsel %vm332, %v9344, 0.0
      %v9405 = vadd.f32 %v9403, %v9404
      %v9406 = vsel %vm332, %v9345, 0.0
      %v9407 = vadd.f32 %v9405, %v9406
      %v9408 = vsel %vm332, %v9346, 0.0
      %v9409 = vadd.f32 %v9407, %v9408
      %9410 = vadd.xlane.f32.xlu0 %v9409
      %v9411 = vpop.xlane.xlu0 %9410
      %v9412 = vrot.slane %v9411, 4
      %v9413 = vadd.f32 %v9411, %v9412
      %v9414 = vrot.slane %v9413, 2
      %v9415 = vadd.f32 %v9413, %v9414
      %v9416 = vrot.slane %v9415, 1
      %v9417 = vadd.f32 %v9415, %v9416
      %s9418 = vtos %v9417
      %9419 = vxpose.xlu0.b32.start [1/16] %v5764, 128
      %9420 = vxpose.xlu0.b32.cont [2/16] %v5765, 128
      %9421 = vxpose.xlu0.b32.cont [3/16] %v5766, 128
      %9422 = vxpose.xlu0.b32.cont [4/16] %v5767, 128
      %9423 = vxpose.xlu0.b32.cont [5/16] %v5768, 128
      %9424 = vxpose.xlu0.b32.cont [6/16] %v5769, 128
      %9425 = vxpose.xlu0.b32.cont [7/16] %v5770, 128
      %9426 = vxpose.xlu0.b32.cont [8/16] %v5771, 128
      %9427 = vxpose.xlu0.b32.cont [9/16] %v5772, 128
      %9428 = vxpose.xlu0.b32.cont [10/16] %v5773, 128
      %9429 = vxpose.xlu0.b32.cont [11/16] %v5774, 128
      %9430 = vxpose.xlu0.b32.cont [12/16] %v5775, 128
      %9431 = vxpose.xlu0.b32.cont [13/16] %v5776, 128
      %9432 = vxpose.xlu0.b32.cont [14/16] %v5777, 128
      %9433 = vxpose.xlu0.b32.cont [15/16] %v5778, 128
      %9434 = vxpose.xlu0.b32.end [16/16] %v5779, 128
      %v9435 = vpop.trf.xlu0
      %v9436 = vpop.trf.xlu0
      %v9437 = vpop.trf.xlu0
      %v9438 = vpop.trf.xlu0
      %v9439 = vpop.trf.xlu0
      %v9440 = vpop.trf.xlu0
      %v9441 = vpop.trf.xlu0
      %v9442 = vpop.trf.xlu0
      %v9443 = vpop.trf.xlu0
      %v9444 = vpop.trf.xlu0
      %v9445 = vpop.trf.xlu0
      %v9446 = vpop.trf.xlu0
      %v9447 = vpop.trf.xlu0
      %v9448 = vpop.trf.xlu0
      %v9449 = vpop.trf.xlu0
      %v9450 = vpop.trf.xlu0
      %9451 = vxpose.xlu0.b32.start [1/16] %v5780, 128
      %9452 = vxpose.xlu0.b32.cont [2/16] %v5781, 128
      %9453 = vxpose.xlu0.b32.cont [3/16] %v5782, 128
      %9454 = vxpose.xlu0.b32.cont [4/16] %v5783, 128
      %9455 = vxpose.xlu0.b32.cont [5/16] %v5784, 128
      %9456 = vxpose.xlu0.b32.cont [6/16] %v5785, 128
      %9457 = vxpose.xlu0.b32.cont [7/16] %v5786, 128
      %9458 = vxpose.xlu0.b32.cont [8/16] %v5787, 128
      %9459 = vxpose.xlu0.b32.cont [9/16] %v5788, 128
      %9460 = vxpose.xlu0.b32.cont [10/16] %v5789, 128
      %9461 = vxpose.xlu0.b32.cont [11/16] %v5790, 128
      %9462 = vxpose.xlu0.b32.cont [12/16] %v5791, 128
      %9463 = vxpose.xlu0.b32.cont [13/16] %v5792, 128
      %9464 = vxpose.xlu0.b32.cont [14/16] %v5793, 128
      %9465 = vxpose.xlu0.b32.cont [15/16] %v5794, 128
      %9466 = vxpose.xlu0.b32.end [16/16] %v5795, 128
      %v9467 = vpop.trf.xlu0
      %v9468 = vpop.trf.xlu0
      %v9469 = vpop.trf.xlu0
      %v9470 = vpop.trf.xlu0
      %v9471 = vpop.trf.xlu0
      %v9472 = vpop.trf.xlu0
      %v9473 = vpop.trf.xlu0
      %v9474 = vpop.trf.xlu0
      %v9475 = vpop.trf.xlu0
      %v9476 = vpop.trf.xlu0
      %v9477 = vpop.trf.xlu0
      %v9478 = vpop.trf.xlu0
      %v9479 = vpop.trf.xlu0
      %v9480 = vpop.trf.xlu0
      %v9481 = vpop.trf.xlu0
      %v9482 = vpop.trf.xlu0
      %9483 = vmatpush.msra.mxu0 %v5779
      %9484 = vmatpush.msra.mxu0 %v5778
      %9485 = vmatpush.msra.mxu0 %v5777
      %9486 = vmatpush.msra.mxu0 %v5776
      %9487 = vmatpush.msra.mxu0 %v5775
      %9488 = vmatpush.msra.mxu0 %v5774
      %9489 = vmatpush.msra.mxu0 %v5773
      %9490 = vmatpush.msra.mxu0 %v5772
      %9491 = vmatpush.msra.mxu0 %v5771
      %9492 = vmatpush.msra.mxu0 %v5770
      %9493 = vmatpush.msra.mxu0 %v5769
      %9494 = vmatpush.msra.mxu0 %v5768
      %9495 = vmatpush.msra.mxu0 %v5767
      %9496 = vmatpush.msra.mxu0 %v5766
      %9497 = vmatpush.msra.mxu0 %v5765
      %9498 = vmatpush.msra.mxu0 %v5764
      %9499 = vmatmul.f32.gmra.mxu0 %v9435
      %v9500 = vpop.f32.mrf.mxu0
      %v9501 = vadd.f32 0.0, %v9500
      %9502 = vmatmul.f32.gmra.mxu0 %v9436
      %v9503 = vpop.f32.mrf.mxu0
      %v9504 = vadd.f32 0.0, %v9503
      %9505 = vmatmul.f32.gmra.mxu0 %v9437
      %v9506 = vpop.f32.mrf.mxu0
      %v9507 = vadd.f32 0.0, %v9506
      %9508 = vmatmul.f32.gmra.mxu0 %v9438
      %v9509 = vpop.f32.mrf.mxu0
      %v9510 = vadd.f32 0.0, %v9509
      %9511 = vmatmul.f32.gmra.mxu0 %v9439
      %v9512 = vpop.f32.mrf.mxu0
      %v9513 = vadd.f32 0.0, %v9512
      %9514 = vmatmul.f32.gmra.mxu0 %v9440
      %v9515 = vpop.f32.mrf.mxu0
      %v9516 = vadd.f32 0.0, %v9515
      %9517 = vmatmul.f32.gmra.mxu0 %v9441
      %v9518 = vpop.f32.mrf.mxu0
      %v9519 = vadd.f32 0.0, %v9518
      %9520 = vmatmul.f32.gmra.mxu0 %v9442
      %v9521 = vpop.f32.mrf.mxu0
      %v9522 = vadd.f32 0.0, %v9521
      %9523 = vdwg.mxu0
      %9524 = vmatpush.msra.mxu0 %v5795
      %9525 = vmatpush.msra.mxu0 %v5794
      %9526 = vmatpush.msra.mxu0 %v5793
      %9527 = vmatpush.msra.mxu0 %v5792
      %9528 = vmatpush.msra.mxu0 %v5791
      %9529 = vmatpush.msra.mxu0 %v5790
      %9530 = vmatpush.msra.mxu0 %v5789
      %9531 = vmatpush.msra.mxu0 %v5788
      %9532 = vmatpush.msra.mxu0 %v5787
      %9533 = vmatpush.msra.mxu0 %v5786
      %9534 = vmatpush.msra.mxu0 %v5785
      %9535 = vmatpush.msra.mxu0 %v5784
      %9536 = vmatpush.msra.mxu0 %v5783
      %9537 = vmatpush.msra.mxu0 %v5782
      %9538 = vmatpush.msra.mxu0 %v5781
      %9539 = vmatpush.msra.mxu0 %v5780
      %9540 = vmatmul.f32.gmra.mxu0 %v9467
      %v9541 = vpop.f32.mrf.mxu0
      %v9542 = vadd.f32 %v9501, %v9541
      %9543 = vmatmul.f32.gmra.mxu0 %v9468
      %v9544 = vpop.f32.mrf.mxu0
      %v9545 = vadd.f32 %v9504, %v9544
      %9546 = vmatmul.f32.gmra.mxu0 %v9469
      %v9547 = vpop.f32.mrf.mxu0
      %v9548 = vadd.f32 %v9507, %v9547
      %9549 = vmatmul.f32.gmra.mxu0 %v9470
      %v9550 = vpop.f32.mrf.mxu0
      %v9551 = vadd.f32 %v9510, %v9550
      %9552 = vmatmul.f32.gmra.mxu0 %v9471
      %v9553 = vpop.f32.mrf.mxu0
      %v9554 = vadd.f32 %v9513, %v9553
      %9555 = vmatmul.f32.gmra.mxu0 %v9472
      %v9556 = vpop.f32.mrf.mxu0
      %v9557 = vadd.f32 %v9516, %v9556
      %9558 = vmatmul.f32.gmra.mxu0 %v9473
      %v9559 = vpop.f32.mrf.mxu0
      %v9560 = vadd.f32 %v9519, %v9559
      %9561 = vmatmul.f32.gmra.mxu0 %v9474
      %v9562 = vpop.f32.mrf.mxu0
      %v9563 = vadd.f32 %v9522, %v9562
      %9564 = vdwg.mxu0
      %v9565 = vmul.f32 %v9542, 6.1035156e-05
      %v9566 = vmul.f32 %v9545, 6.1035156e-05
      %v9567 = vmul.f32 %v9548, 6.1035156e-05
      %v9568 = vmul.f32 %v9551, 6.1035156e-05
      %v9569 = vmul.f32 %v9554, 6.1035156e-05
      %v9570 = vmul.f32 %v9557, 6.1035156e-05
      %v9571 = vmul.f32 %v9560, 6.1035156e-05
      %v9572 = vmul.f32 %v9563, 6.1035156e-05
      %9573 = vxpose.xlu0.b32.start [1/16] %v5796, 128
      %9574 = vxpose.xlu0.b32.cont [2/16] %v5797, 128
      %9575 = vxpose.xlu0.b32.cont [3/16] %v5798, 128
      %9576 = vxpose.xlu0.b32.cont [4/16] %v5799, 128
      %9577 = vxpose.xlu0.b32.cont [5/16] %v5800, 128
      %9578 = vxpose.xlu0.b32.cont [6/16] %v5801, 128
      %9579 = vxpose.xlu0.b32.cont [7/16] %v5802, 128
      %9580 = vxpose.xlu0.b32.cont [8/16] %v5803, 128
      %9581 = vxpose.xlu0.b32.cont [9/16] %v5804, 128
      %9582 = vxpose.xlu0.b32.cont [10/16] %v5805, 128
      %9583 = vxpose.xlu0.b32.cont [11/16] %v5806, 128
      %9584 = vxpose.xlu0.b32.cont [12/16] %v5807, 128
      %9585 = vxpose.xlu0.b32.cont [13/16] %v5808, 128
      %9586 = vxpose.xlu0.b32.cont [14/16] %v5809, 128
      %9587 = vxpose.xlu0.b32.cont [15/16] %v5810, 128
      %9588 = vxpose.xlu0.b32.end [16/16] %v5811, 128
      %v9589 = vpop.trf.xlu0
      %v9590 = vpop.trf.xlu0
      %v9591 = vpop.trf.xlu0
      %v9592 = vpop.trf.xlu0
      %v9593 = vpop.trf.xlu0
      %v9594 = vpop.trf.xlu0
      %v9595 = vpop.trf.xlu0
      %v9596 = vpop.trf.xlu0
      %v9597 = vpop.trf.xlu0
      %v9598 = vpop.trf.xlu0
      %v9599 = vpop.trf.xlu0
      %v9600 = vpop.trf.xlu0
      %v9601 = vpop.trf.xlu0
      %v9602 = vpop.trf.xlu0
      %v9603 = vpop.trf.xlu0
      %v9604 = vpop.trf.xlu0
      %9605 = vxpose.xlu0.b32.start [1/16] %v5812, 128
      %9606 = vxpose.xlu0.b32.cont [2/16] %v5813, 128
      %9607 = vxpose.xlu0.b32.cont [3/16] %v5814, 128
      %9608 = vxpose.xlu0.b32.cont [4/16] %v5815, 128
      %9609 = vxpose.xlu0.b32.cont [5/16] %v5816, 128
      %9610 = vxpose.xlu0.b32.cont [6/16] %v5817, 128
      %9611 = vxpose.xlu0.b32.cont [7/16] %v5818, 128
      %9612 = vxpose.xlu0.b32.cont [8/16] %v5819, 128
      %9613 = vxpose.xlu0.b32.cont [9/16] %v5820, 128
      %9614 = vxpose.xlu0.b32.cont [10/16] %v5821, 128
      %9615 = vxpose.xlu0.b32.cont [11/16] %v5822, 128
      %9616 = vxpose.xlu0.b32.cont [12/16] %v5823, 128
      %9617 = vxpose.xlu0.b32.cont [13/16] %v5824, 128
      %9618 = vxpose.xlu0.b32.cont [14/16] %v5825, 128
      %9619 = vxpose.xlu0.b32.cont [15/16] %v5826, 128
      %9620 = vxpose.xlu0.b32.end [16/16] %v5827, 128
      %v9621 = vpop.trf.xlu0
      %v9622 = vpop.trf.xlu0
      %v9623 = vpop.trf.xlu0
      %v9624 = vpop.trf.xlu0
      %v9625 = vpop.trf.xlu0
      %v9626 = vpop.trf.xlu0
      %v9627 = vpop.trf.xlu0
      %v9628 = vpop.trf.xlu0
      %v9629 = vpop.trf.xlu0
      %v9630 = vpop.trf.xlu0
      %v9631 = vpop.trf.xlu0
      %v9632 = vpop.trf.xlu0
      %v9633 = vpop.trf.xlu0
      %v9634 = vpop.trf.xlu0
      %v9635 = vpop.trf.xlu0
      %v9636 = vpop.trf.xlu0
      %9637 = vmatpush.msra.mxu0 %v5811
      %9638 = vmatpush.msra.mxu0 %v5810
      %9639 = vmatpush.msra.mxu0 %v5809
      %9640 = vmatpush.msra.mxu0 %v5808
      %9641 = vmatpush.msra.mxu0 %v5807
      %9642 = vmatpush.msra.mxu0 %v5806
      %9643 = vmatpush.msra.mxu0 %v5805
      %9644 = vmatpush.msra.mxu0 %v5804
      %9645 = vmatpush.msra.mxu0 %v5803
      %9646 = vmatpush.msra.mxu0 %v5802
      %9647 = vmatpush.msra.mxu0 %v5801
      %9648 = vmatpush.msra.mxu0 %v5800
      %9649 = vmatpush.msra.mxu0 %v5799
      %9650 = vmatpush.msra.mxu0 %v5798
      %9651 = vmatpush.msra.mxu0 %v5797
      %9652 = vmatpush.msra.mxu0 %v5796
      %9653 = vmatmul.f32.gmra.mxu0 %v9589
      %v9654 = vpop.f32.mrf.mxu0
      %v9655 = vadd.f32 0.0, %v9654
      %9656 = vmatmul.f32.gmra.mxu0 %v9590
      %v9657 = vpop.f32.mrf.mxu0
      %v9658 = vadd.f32 0.0, %v9657
      %9659 = vmatmul.f32.gmra.mxu0 %v9591
      %v9660 = vpop.f32.mrf.mxu0
      %v9661 = vadd.f32 0.0, %v9660
      %9662 = vmatmul.f32.gmra.mxu0 %v9592
      %v9663 = vpop.f32.mrf.mxu0
      %v9664 = vadd.f32 0.0, %v9663
      %9665 = vmatmul.f32.gmra.mxu0 %v9593
      %v9666 = vpop.f32.mrf.mxu0
      %v9667 = vadd.f32 0.0, %v9666
      %9668 = vmatmul.f32.gmra.mxu0 %v9594
      %v9669 = vpop.f32.mrf.mxu0
      %v9670 = vadd.f32 0.0, %v9669
      %9671 = vmatmul.f32.gmra.mxu0 %v9595
      %v9672 = vpop.f32.mrf.mxu0
      %v9673 = vadd.f32 0.0, %v9672
      %9674 = vmatmul.f32.gmra.mxu0 %v9596
      %v9675 = vpop.f32.mrf.mxu0
      %v9676 = vadd.f32 0.0, %v9675
      %9677 = vdwg.mxu0
      %9678 = vmatpush.msra.mxu0 %v5827
      %9679 = vmatpush.msra.mxu0 %v5826
      %9680 = vmatpush.msra.mxu0 %v5825
      %9681 = vmatpush.msra.mxu0 %v5824
      %9682 = vmatpush.msra.mxu0 %v5823
      %9683 = vmatpush.msra.mxu0 %v5822
      %9684 = vmatpush.msra.mxu0 %v5821
      %9685 = vmatpush.msra.mxu0 %v5820
      %9686 = vmatpush.msra.mxu0 %v5819
      %9687 = vmatpush.msra.mxu0 %v5818
      %9688 = vmatpush.msra.mxu0 %v5817
      %9689 = vmatpush.msra.mxu0 %v5816
      %9690 = vmatpush.msra.mxu0 %v5815
      %9691 = vmatpush.msra.mxu0 %v5814
      %9692 = vmatpush.msra.mxu0 %v5813
      %9693 = vmatpush.msra.mxu0 %v5812
      %9694 = vmatmul.f32.gmra.mxu0 %v9621
      %v9695 = vpop.f32.mrf.mxu0
      %v9696 = vadd.f32 %v9655, %v9695
      %9697 = vmatmul.f32.gmra.mxu0 %v9622
      %v9698 = vpop.f32.mrf.mxu0
      %v9699 = vadd.f32 %v9658, %v9698
      %9700 = vmatmul.f32.gmra.mxu0 %v9623
      %v9701 = vpop.f32.mrf.mxu0
      %v9702 = vadd.f32 %v9661, %v9701
      %9703 = vmatmul.f32.gmra.mxu0 %v9624
      %v9704 = vpop.f32.mrf.mxu0
      %v9705 = vadd.f32 %v9664, %v9704
      %9706 = vmatmul.f32.gmra.mxu0 %v9625
      %v9707 = vpop.f32.mrf.mxu0
      %v9708 = vadd.f32 %v9667, %v9707
      %9709 = vmatmul.f32.gmra.mxu0 %v9626
      %v9710 = vpop.f32.mrf.mxu0
      %v9711 = vadd.f32 %v9670, %v9710
      %9712 = vmatmul.f32.gmra.mxu0 %v9627
      %v9713 = vpop.f32.mrf.mxu0
      %v9714 = vadd.f32 %v9673, %v9713
      %9715 = vmatmul.f32.gmra.mxu0 %v9628
      %v9716 = vpop.f32.mrf.mxu0
      %v9717 = vadd.f32 %v9676, %v9716
      %9718 = vdwg.mxu0
      %v9719 = vmul.f32 %v9696, 6.1035156e-05
      %v9720 = vmul.f32 %v9699, 6.1035156e-05
      %v9721 = vmul.f32 %v9702, 6.1035156e-05
      %v9722 = vmul.f32 %v9705, 6.1035156e-05
      %v9723 = vmul.f32 %v9708, 6.1035156e-05
      %v9724 = vmul.f32 %v9711, 6.1035156e-05
      %v9725 = vmul.f32 %v9714, 6.1035156e-05
      %v9726 = vmul.f32 %v9717, 6.1035156e-05
      %v9727 = vsub.f32 %v9565, %v9719
      %v9728 = vsub.f32 %v9566, %v9720
      %v9729 = vsub.f32 %v9567, %v9721
      %v9730 = vsub.f32 %v9568, %v9722
      %v9731 = vsub.f32 %v9569, %v9723
      %v9732 = vsub.f32 %v9570, %v9724
      %v9733 = vsub.f32 %v9571, %v9725
      %v9734 = vsub.f32 %v9572, %v9726
      %v9735 = vmul.f32 %v9727, %v9727
      %v9736 = vmul.f32 %v9728, %v9728
      %v9737 = vmul.f32 %v9729, %v9729
      %v9738 = vmul.f32 %v9730, %v9730
      %v9739 = vmul.f32 %v9731, %v9731
      %v9740 = vmul.f32 %v9732, %v9732
      %v9741 = vmul.f32 %v9733, %v9733
      %v9742 = vmul.f32 %v9734, %v9734
      %v9743 = vsel %vm332, %v9735, 0.0
      %v9744 = vsel %vm332, %v9736, 0.0
      %v9745 = vadd.f32 %v9743, %v9744
      %v9746 = vsel %vm332, %v9737, 0.0
      %v9747 = vadd.f32 %v9745, %v9746
      %v9748 = vsel %vm332, %v9738, 0.0
      %v9749 = vadd.f32 %v9747, %v9748
      %v9750 = vsel %vm332, %v9739, 0.0
      %v9751 = vadd.f32 %v9749, %v9750
      %v9752 = vsel %vm332, %v9740, 0.0
      %v9753 = vadd.f32 %v9751, %v9752
      %v9754 = vsel %vm332, %v9741, 0.0
      %v9755 = vadd.f32 %v9753, %v9754
      %v9756 = vsel %vm332, %v9742, 0.0
      %v9757 = vadd.f32 %v9755, %v9756
      %9758 = vadd.xlane.f32.xlu0 %v9757
      %v9759 = vpop.xlane.xlu0 %9758
      %v9760 = vrot.slane %v9759, 4
      %v9761 = vadd.f32 %v9759, %v9760
      %v9762 = vrot.slane %v9761, 2
      %v9763 = vadd.f32 %v9761, %v9762
      %v9764 = vrot.slane %v9763, 1
      %v9765 = vadd.f32 %v9763, %v9764
      %s9766 = vtos %v9765
      %9767 = vxpose.xlu0.b32.start [1/16] %v9267, 128
      %9768 = vxpose.xlu0.b32.cont [2/16] %v9268, 128
      %9769 = vxpose.xlu0.b32.cont [3/16] %v9269, 128
      %9770 = vxpose.xlu0.b32.cont [4/16] %v9270, 128
      %9771 = vxpose.xlu0.b32.cont [5/16] %v9271, 128
      %9772 = vxpose.xlu0.b32.cont [6/16] %v9272, 128
      %9773 = vxpose.xlu0.b32.cont [7/16] %v9273, 128
      %9774 = vxpose.xlu0.b32.cont [8/16] %v9274, 128
      %9775 = vxpose.xlu0.b32.cont [9/16] 0.0, 128
      %9776 = vxpose.xlu0.b32.cont [10/16] 0.0, 128
      %9777 = vxpose.xlu0.b32.cont [11/16] 0.0, 128
      %9778 = vxpose.xlu0.b32.cont [12/16] 0.0, 128
      %9779 = vxpose.xlu0.b32.cont [13/16] 0.0, 128
      %9780 = vxpose.xlu0.b32.cont [14/16] 0.0, 128
      %9781 = vxpose.xlu0.b32.cont [15/16] 0.0, 128
      %9782 = vxpose.xlu0.b32.end [16/16] 0.0, 128
      %v9783 = vpop.trf.xlu0
      %v9784 = vpop.trf.xlu0
      %v9785 = vpop.trf.xlu0
      %v9786 = vpop.trf.xlu0
      %v9787 = vpop.trf.xlu0
      %v9788 = vpop.trf.xlu0
      %v9789 = vpop.trf.xlu0
      %v9790 = vpop.trf.xlu0
      %v9791 = vpop.trf.xlu0
      %v9792 = vpop.trf.xlu0
      %v9793 = vpop.trf.xlu0
      %v9794 = vpop.trf.xlu0
      %v9795 = vpop.trf.xlu0
      %v9796 = vpop.trf.xlu0
      %v9797 = vpop.trf.xlu0
      %v9798 = vpop.trf.xlu0
      %v9800 = vsel %vm332, %v9783, 0
      %v9803 = vsel %vm332, %v9784, 0
      %v9806 = vsel %vm332, %v9785, 0
      %v9809 = vsel %vm332, %v9786, 0
      %v9812 = vsel %vm332, %v9787, 0
      %v9815 = vsel %vm332, %v9788, 0
      %v9818 = vsel %vm332, %v9789, 0
      %v9821 = vsel %vm332, %v9790, 0
      %v9824 = vsel %vm332, %v9791, 0
      %v9827 = vsel %vm332, %v9792, 0
      %v9830 = vsel %vm332, %v9793, 0
      %v9833 = vsel %vm332, %v9794, 0
      %v9836 = vsel %vm332, %v9795, 0
      %v9839 = vsel %vm332, %v9796, 0
      %v9842 = vsel %vm332, %v9797, 0
      %v9845 = vsel %vm332, %v9798, 0
      %9847 = vmatpush.msra.mxu0 0.0
      %9848 = vmatpush.msra.mxu0 0.0
      %9849 = vmatpush.msra.mxu0 0.0
      %9850 = vmatpush.msra.mxu0 0.0
      %9851 = vmatpush.msra.mxu0 0.0
      %9852 = vmatpush.msra.mxu0 0.0
      %9853 = vmatpush.msra.mxu0 0.0
      %9854 = vmatpush.msra.mxu0 0.0
      %9855 = vmatpush.msra.mxu0 %v9274
      %9856 = vmatpush.msra.mxu0 %v9273
      %9857 = vmatpush.msra.mxu0 %v9272
      %9858 = vmatpush.msra.mxu0 %v9271
      %9859 = vmatpush.msra.mxu0 %v9270
      %9860 = vmatpush.msra.mxu0 %v9269
      %9861 = vmatpush.msra.mxu0 %v9268
      %9862 = vmatpush.msra.mxu0 %v9267
      %9863 = vmatmul.f32.gmra.mxu0 %v9800
      %v9864 = vpop.f32.mrf.mxu0
      %v9865 = vadd.f32 0.0, %v9864
      %9866 = vmatmul.f32.gmra.mxu0 %v9803
      %v9867 = vpop.f32.mrf.mxu0
      %v9868 = vadd.f32 0.0, %v9867
      %9869 = vmatmul.f32.gmra.mxu0 %v9806
      %v9870 = vpop.f32.mrf.mxu0
      %v9871 = vadd.f32 0.0, %v9870
      %9872 = vmatmul.f32.gmra.mxu0 %v9809
      %v9873 = vpop.f32.mrf.mxu0
      %v9874 = vadd.f32 0.0, %v9873
      %9875 = vmatmul.f32.gmra.mxu0 %v9812
      %v9876 = vpop.f32.mrf.mxu0
      %v9877 = vadd.f32 0.0, %v9876
      %9878 = vmatmul.f32.gmra.mxu0 %v9815
      %v9879 = vpop.f32.mrf.mxu0
      %v9880 = vadd.f32 0.0, %v9879
      %9881 = vmatmul.f32.gmra.mxu0 %v9818
      %v9882 = vpop.f32.mrf.mxu0
      %v9883 = vadd.f32 0.0, %v9882
      %9884 = vmatmul.f32.gmra.mxu0 %v9821
      %v9885 = vpop.f32.mrf.mxu0
      %v9886 = vadd.f32 0.0, %v9885
      %9887 = vmatmul.f32.gmra.mxu0 %v9824
      %v9888 = vpop.f32.mrf.mxu0
      %v9889 = vadd.f32 0.0, %v9888
      %9890 = vmatmul.f32.gmra.mxu0 %v9827
      %v9891 = vpop.f32.mrf.mxu0
      %v9892 = vadd.f32 0.0, %v9891
      %9893 = vmatmul.f32.gmra.mxu0 %v9830
      %v9894 = vpop.f32.mrf.mxu0
      %v9895 = vadd.f32 0.0, %v9894
      %9896 = vmatmul.f32.gmra.mxu0 %v9833
      %v9897 = vpop.f32.mrf.mxu0
      %v9898 = vadd.f32 0.0, %v9897
      %9899 = vmatmul.f32.gmra.mxu0 %v9836
      %v9900 = vpop.f32.mrf.mxu0
      %v9901 = vadd.f32 0.0, %v9900
      %9902 = vmatmul.f32.gmra.mxu0 %v9839
      %v9903 = vpop.f32.mrf.mxu0
      %v9904 = vadd.f32 0.0, %v9903
      %9905 = vmatmul.f32.gmra.mxu0 %v9842
      %v9906 = vpop.f32.mrf.mxu0
      %v9907 = vadd.f32 0.0, %v9906
      %9908 = vmatmul.f32.gmra.mxu0 %v9845
      %v9909 = vpop.f32.mrf.mxu0
      %v9910 = vadd.f32 0.0, %v9909
      %9911 = vdwg.mxu0
      %v9912 = vmul.f32 %v9865, 0.00012207031
      %v9913 = vmul.f32 %v9868, 0.00012207031
      %v9914 = vmul.f32 %v9871, 0.00012207031
      %v9915 = vmul.f32 %v9874, 0.00012207031
      %v9916 = vmul.f32 %v9877, 0.00012207031
      %v9917 = vmul.f32 %v9880, 0.00012207031
      %v9918 = vmul.f32 %v9883, 0.00012207031
      %v9919 = vmul.f32 %v9886, 0.00012207031
      %v9920 = vmul.f32 %v9889, 0.00012207031
      %v9921 = vmul.f32 %v9892, 0.00012207031
      %v9922 = vmul.f32 %v9895, 0.00012207031
      %v9923 = vmul.f32 %v9898, 0.00012207031
      %v9924 = vmul.f32 %v9901, 0.00012207031
      %v9925 = vmul.f32 %v9904, 0.00012207031
      %v9926 = vmul.f32 %v9907, 0.00012207031
      %v9927 = vmul.f32 %v9910, 0.00012207031
      %9928 = vxpose.xlu0.b32.start [1/16] %v9275, 128
      %9929 = vxpose.xlu0.b32.cont [2/16] %v9276, 128
      %9930 = vxpose.xlu0.b32.cont [3/16] %v9277, 128
      %9931 = vxpose.xlu0.b32.cont [4/16] %v9278, 128
      %9932 = vxpose.xlu0.b32.cont [5/16] %v9279, 128
      %9933 = vxpose.xlu0.b32.cont [6/16] %v9280, 128
      %9934 = vxpose.xlu0.b32.cont [7/16] %v9281, 128
      %9935 = vxpose.xlu0.b32.cont [8/16] %v9282, 128
      %9936 = vxpose.xlu0.b32.cont [9/16] 0.0, 128
      %9937 = vxpose.xlu0.b32.cont [10/16] 0.0, 128
      %9938 = vxpose.xlu0.b32.cont [11/16] 0.0, 128
      %9939 = vxpose.xlu0.b32.cont [12/16] 0.0, 128
      %9940 = vxpose.xlu0.b32.cont [13/16] 0.0, 128
      %9941 = vxpose.xlu0.b32.cont [14/16] 0.0, 128
      %9942 = vxpose.xlu0.b32.cont [15/16] 0.0, 128
      %9943 = vxpose.xlu0.b32.end [16/16] 0.0, 128
      %v9944 = vpop.trf.xlu0
      %v9945 = vpop.trf.xlu0
      %v9946 = vpop.trf.xlu0
      %v9947 = vpop.trf.xlu0
      %v9948 = vpop.trf.xlu0
      %v9949 = vpop.trf.xlu0
      %v9950 = vpop.trf.xlu0
      %v9951 = vpop.trf.xlu0
      %v9952 = vpop.trf.xlu0
      %v9953 = vpop.trf.xlu0
      %v9954 = vpop.trf.xlu0
      %v9955 = vpop.trf.xlu0
      %v9956 = vpop.trf.xlu0
      %v9957 = vpop.trf.xlu0
      %v9958 = vpop.trf.xlu0
      %v9959 = vpop.trf.xlu0
      %v9961 = vsel %vm332, %v9944, 0
      %v9964 = vsel %vm332, %v9945, 0
      %v9967 = vsel %vm332, %v9946, 0
      %v9970 = vsel %vm332, %v9947, 0
      %v9973 = vsel %vm332, %v9948, 0
      %v9976 = vsel %vm332, %v9949, 0
      %v9979 = vsel %vm332, %v9950, 0
      %v9982 = vsel %vm332, %v9951, 0
      %v9985 = vsel %vm332, %v9952, 0
      %v9988 = vsel %vm332, %v9953, 0
      %v9991 = vsel %vm332, %v9954, 0
      %v9994 = vsel %vm332, %v9955, 0
      %v9997 = vsel %vm332, %v9956, 0
      %v10000 = vsel %vm332, %v9957, 0
      %v10003 = vsel %vm332, %v9958, 0
      %v10006 = vsel %vm332, %v9959, 0
      %10008 = vmatpush.msra.mxu0 0.0
      %10009 = vmatpush.msra.mxu0 0.0
      %10010 = vmatpush.msra.mxu0 0.0
      %10011 = vmatpush.msra.mxu0 0.0
      %10012 = vmatpush.msra.mxu0 0.0
      %10013 = vmatpush.msra.mxu0 0.0
      %10014 = vmatpush.msra.mxu0 0.0
      %10015 = vmatpush.msra.mxu0 0.0
      %10016 = vmatpush.msra.mxu0 %v9282
      %10017 = vmatpush.msra.mxu0 %v9281
      %10018 = vmatpush.msra.mxu0 %v9280
      %10019 = vmatpush.msra.mxu0 %v9279
      %10020 = vmatpush.msra.mxu0 %v9278
      %10021 = vmatpush.msra.mxu0 %v9277
      %10022 = vmatpush.msra.mxu0 %v9276
      %10023 = vmatpush.msra.mxu0 %v9275
      %10024 = vmatmul.f32.gmra.mxu0 %v9961
      %v10025 = vpop.f32.mrf.mxu0
      %v10026 = vadd.f32 0.0, %v10025
      %10027 = vmatmul.f32.gmra.mxu0 %v9964
      %v10028 = vpop.f32.mrf.mxu0
      %v10029 = vadd.f32 0.0, %v10028
      %10030 = vmatmul.f32.gmra.mxu0 %v9967
      %v10031 = vpop.f32.mrf.mxu0
      %v10032 = vadd.f32 0.0, %v10031
      %10033 = vmatmul.f32.gmra.mxu0 %v9970
      %v10034 = vpop.f32.mrf.mxu0
      %v10035 = vadd.f32 0.0, %v10034
      %10036 = vmatmul.f32.gmra.mxu0 %v9973
      %v10037 = vpop.f32.mrf.mxu0
      %v10038 = vadd.f32 0.0, %v10037
      %10039 = vmatmul.f32.gmra.mxu0 %v9976
      %v10040 = vpop.f32.mrf.mxu0
      %v10041 = vadd.f32 0.0, %v10040
      %10042 = vmatmul.f32.gmra.mxu0 %v9979
      %v10043 = vpop.f32.mrf.mxu0
      %v10044 = vadd.f32 0.0, %v10043
      %10045 = vmatmul.f32.gmra.mxu0 %v9982
      %v10046 = vpop.f32.mrf.mxu0
      %v10047 = vadd.f32 0.0, %v10046
      %10048 = vmatmul.f32.gmra.mxu0 %v9985
      %v10049 = vpop.f32.mrf.mxu0
      %v10050 = vadd.f32 0.0, %v10049
      %10051 = vmatmul.f32.gmra.mxu0 %v9988
      %v10052 = vpop.f32.mrf.mxu0
      %v10053 = vadd.f32 0.0, %v10052
      %10054 = vmatmul.f32.gmra.mxu0 %v9991
      %v10055 = vpop.f32.mrf.mxu0
      %v10056 = vadd.f32 0.0, %v10055
      %10057 = vmatmul.f32.gmra.mxu0 %v9994
      %v10058 = vpop.f32.mrf.mxu0
      %v10059 = vadd.f32 0.0, %v10058
      %10060 = vmatmul.f32.gmra.mxu0 %v9997
      %v10061 = vpop.f32.mrf.mxu0
      %v10062 = vadd.f32 0.0, %v10061
      %10063 = vmatmul.f32.gmra.mxu0 %v10000
      %v10064 = vpop.f32.mrf.mxu0
      %v10065 = vadd.f32 0.0, %v10064
      %10066 = vmatmul.f32.gmra.mxu0 %v10003
      %v10067 = vpop.f32.mrf.mxu0
      %v10068 = vadd.f32 0.0, %v10067
      %10069 = vmatmul.f32.gmra.mxu0 %v10006
      %v10070 = vpop.f32.mrf.mxu0
      %v10071 = vadd.f32 0.0, %v10070
      %10072 = vdwg.mxu0
      %v10073 = vmul.f32 %v10026, 0.00012207031
      %v10074 = vmul.f32 %v10029, 0.00012207031
      %v10075 = vmul.f32 %v10032, 0.00012207031
      %v10076 = vmul.f32 %v10035, 0.00012207031
      %v10077 = vmul.f32 %v10038, 0.00012207031
      %v10078 = vmul.f32 %v10041, 0.00012207031
      %v10079 = vmul.f32 %v10044, 0.00012207031
      %v10080 = vmul.f32 %v10047, 0.00012207031
      %v10081 = vmul.f32 %v10050, 0.00012207031
      %v10082 = vmul.f32 %v10053, 0.00012207031
      %v10083 = vmul.f32 %v10056, 0.00012207031
      %v10084 = vmul.f32 %v10059, 0.00012207031
      %v10085 = vmul.f32 %v10062, 0.00012207031
      %v10086 = vmul.f32 %v10065, 0.00012207031
      %v10087 = vmul.f32 %v10068, 0.00012207031
      %v10088 = vmul.f32 %v10071, 0.00012207031
      %v10089 = vsub.f32 %v9912, %v10073
      %v10090 = vsub.f32 %v9913, %v10074
      %v10091 = vsub.f32 %v9914, %v10075
      %v10092 = vsub.f32 %v9915, %v10076
      %v10093 = vsub.f32 %v9916, %v10077
      %v10094 = vsub.f32 %v9917, %v10078
      %v10095 = vsub.f32 %v9918, %v10079
      %v10096 = vsub.f32 %v9919, %v10080
      %v10097 = vsub.f32 %v9920, %v10081
      %v10098 = vsub.f32 %v9921, %v10082
      %v10099 = vsub.f32 %v9922, %v10083
      %v10100 = vsub.f32 %v9923, %v10084
      %v10101 = vsub.f32 %v9924, %v10085
      %v10102 = vsub.f32 %v9925, %v10086
      %v10103 = vsub.f32 %v9926, %v10087
      %v10104 = vsub.f32 %v9927, %v10088
      %v10105 = vmul.f32 %v10089, %v10089
      %v10106 = vmul.f32 %v10090, %v10090
      %v10107 = vmul.f32 %v10091, %v10091
      %v10108 = vmul.f32 %v10092, %v10092
      %v10109 = vmul.f32 %v10093, %v10093
      %v10110 = vmul.f32 %v10094, %v10094
      %v10111 = vmul.f32 %v10095, %v10095
      %v10112 = vmul.f32 %v10096, %v10096
      %v10113 = vmul.f32 %v10097, %v10097
      %v10114 = vmul.f32 %v10098, %v10098
      %v10115 = vmul.f32 %v10099, %v10099
      %v10116 = vmul.f32 %v10100, %v10100
      %v10117 = vmul.f32 %v10101, %v10101
      %v10118 = vmul.f32 %v10102, %v10102
      %v10119 = vmul.f32 %v10103, %v10103
      %v10120 = vmul.f32 %v10104, %v10104
      %v10121 = vadd.f32 %v10105, %v10106
      %v10122 = vadd.f32 %v10121, %v10107
      %v10123 = vadd.f32 %v10122, %v10108
      %v10124 = vadd.f32 %v10123, %v10109
      %v10125 = vadd.f32 %v10124, %v10110
      %v10126 = vadd.f32 %v10125, %v10111
      %v10127 = vadd.f32 %v10126, %v10112
      %v10128 = vadd.f32 %v10127, %v10113
      %v10129 = vadd.f32 %v10128, %v10114
      %v10130 = vadd.f32 %v10129, %v10115
      %v10131 = vadd.f32 %v10130, %v10116
      %v10132 = vadd.f32 %v10131, %v10117
      %v10133 = vadd.f32 %v10132, %v10118
      %v10134 = vadd.f32 %v10133, %v10119
      %v10135 = vadd.f32 %v10134, %v10120
      %10136 = vadd.xlane.f32.xlu0 %v10135
      %v10137 = vpop.xlane.xlu0 %10136
      %v10138 = vrot.slane %v10137, 4
      %v10139 = vadd.f32 %v10137, %v10138
      %v10140 = vrot.slane %v10139, 2
      %v10141 = vadd.f32 %v10139, %v10140
      %v10142 = vrot.slane %v10141, 1
      %v10143 = vadd.f32 %v10141, %v10142
      %s10144 = vtos %v10143
      %v10145 = vlaneseq
      %v10146 = vand.u32 %v10145, 127
      %vm10147 = vcmp.eq.s32.totalorder %v10146, 0
      %v10148 = vstv %s9418
      %v10149 = vsel %vm10147, %v10148, 0.0
      %vm10150 = vcmp.eq.s32.totalorder %v10146, 1
      %v10151 = vstv %s9766
      %v10152 = vsel %vm10150, %v10151, 0.0
      %v10153 = vadd.f32 %v10149, %v10152
      %vm10154 = vcmp.eq.s32.totalorder %v10146, 2
      %v10155 = vstv %s10144
      %v10156 = vsel %vm10154, %v10155, 0.0
      %v10157 = vadd.f32 %v10153, %v10156
      %10158 = vst [vmem:[%s330] sm:$0xff] %v10157
      %p10159 = scmp.lt.s32.totalorder %s20, 1
      %s10160 = scalar_select %p10159, %s20, 1
      %s10161 = smul.addr %s10160, 8
      %s10162 = scalar_lea.vmem %s9, %s10161
      // Predicated region
      $region57: #{vgg_loss.1} parent=55 // pred_check
        %p10163 = pneg %p232
      $region58: #{vgg_loss.1} parent=55 // pred_check_branch
        %10165 = sbr.rel (%p10163) target = $region60
      $region59: #{vgg_loss.1} parent=55 // pred_region
        _
      $region60: #{vgg_loss.1} parent=55 // pred_fallthru
        _
    $region56: #{vgg_loss.1} parent=5 // pred_fallthru
      _
    %p10166 = scmp.le.s32.totalorder 2, %s15
    // Predicated region
    $region61: #{vgg_loss.1} parent=5 // pred_check
      %p10167 = pneg %p10166
    $region62: #{vgg_loss.1} parent=5 // pred_check_branch
      %10169 = sbr.rel (%p10167) target = $region64
    $region63: #{vgg_loss.1} parent=5 // pred_region
      %s10170 = ssub.s32 %s15, 2
      // Predicated region
      $region65: #{vgg_loss.1} parent=63 // pred_check
        %p10171 = pneg %p238
      $region66: #{vgg_loss.1} parent=63 // pred_check_branch
        %10173 = sbr.rel (%p10171) target = $region68
      $region67: #{vgg_loss.1} parent=63 // pred_region
        %p10174 = scmp.lt.s32.totalorder %s21, 1
        %s10175 = scalar_select %p10174, %s21, 1
        %s10176 = smul.addr %s10175, 8
        %s10177 = scalar_lea.vmem %s9, %s10176
      $region68: #{vgg_loss.1} parent=63 // pred_fallthru
        _
    $region64: #{vgg_loss.1} parent=5 // pred_fallthru
      _
  $region6: #{vgg_loss.1} parent=0 // loop_footer
    %s19 = sadd.s32 1, %s15
  $region7: #{vgg_loss.1} parent=0 // loop_footer_branch
    %14 = sbr.rel target = $region3
  $region8: #{vgg_loss.1} parent=0 // loop_exit
    _

</llo_original>
